<compile_context>
chip_gen: v5e
topology: v5e:2x2
jax: 0.10.0
libtpu: 0.0.40
codegen_flags: <defaults>
</compile_context>

<pallas_src>
import jax
import jax.numpy as jnp
from jax.experimental import pallas as pl
from jax.experimental.pallas import tpu as pltpu


def _siren_kernel(x_ref, wt_ref, b_ref, o_ref):
    # x_ref: (tm, D_in), wt_ref: (D_in, D_out_p), b_ref: (1, D_out_p)
    acc = jnp.dot(x_ref[...], wt_ref[...], preferred_element_type=jnp.float32)
    acc = acc + b_ref[...]                    # broadcast bias over rows
    o_ref[...] = jnp.sin(acc).astype(o_ref.dtype)   # w0 already folded into W, b


def _pick_tm(n_rows, d_in, d_out_p, tm_req, itemsize, budget_bytes=12 * (1 << 20)):
    """Largest sublane-multiple row tile whose double-buffered working set fits."""
    tm = min(tm_req, max(8, ((n_rows + 7) // 8) * 8))
    tm = max(8, (tm // 8) * 8)
    while tm > 8:
        # 2x buffered x tile + 2x buffered out tile + 2x W^T + bias
        work = (2 * tm * (d_in + d_out_p) + 2 * d_in * d_out_p + 2 * d_out_p) * itemsize
        if work <= budget_bytes:
            break
        tm = max(8, ((tm // 2) // 8) * 8)
    return tm


def functional_siren(x, weight, bias, *, w0=30.0, tm=512, compute_dtype=None):
    """Pallas equivalent of FunctionalSiren.forward (default Sine activation)."""
    N, D_in = x.shape
    D_out, D_in_w = weight.shape
    assert D_in == D_in_w
    out_dtype = x.dtype

    cdt = x.dtype if compute_dtype is None else compute_dtype

    # --- wrapper glue (cheap, O(D_in*D_out)): fold w0, transpose, pad lanes ---
    # TODO(synk): in a full SIREN stack, store weights pre-transposed/pre-scaled
    # and fuse consecutive skinny layers into one kernel to keep activations in VMEM.
    wt = (weight.T * jnp.asarray(w0, weight.dtype)).astype(cdt)        # (D_in, D_out)
    b = (bias * jnp.asarray(w0, bias.dtype)).astype(jnp.float32)       # (D_out,)

    D_out_p = max(128, pl.cdiv(D_out, 128) * 128)                      # lane-dense out
    if D_out_p != D_out:
        wt = jnp.pad(wt, ((0, 0), (0, D_out_p - D_out)))
        b = jnp.pad(b, (0, D_out_p - D_out))
    b2 = b.reshape(1, D_out_p)

    x_c = x.astype(cdt)
    itemsize = jnp.dtype(cdt).itemsize
    tm_eff = _pick_tm(N, D_in, D_out_p, tm, max(itemsize, jnp.dtype(out_dtype).itemsize))

    N_p = pl.cdiv(N, tm_eff) * tm_eff
    if N_p != N:
        x_c = jnp.pad(x_c, ((0, N_p - N), (0, 0)))

    grid = (N_p // tm_eff,)

    cost = pl.CostEstimate(
        flops=2 * N_p * D_in * D_out_p,
        transcendentals=N_p * D_out_p,
        bytes_accessed=(N_p * D_in + D_in * D_out_p + D_out_p) * itemsize
        + N_p * D_out_p * jnp.dtype(out_dtype).itemsize,
    )

    out = pl.pallas_call(
        _siren_kernel,
        out_shape=jax.ShapeDtypeStruct((N_p, D_out_p), out_dtype),
        grid_spec=pltpu.PrefetchScalarGridSpec(
            num_scalar_prefetch=0,
            grid=grid,
            in_specs=[
                pl.BlockSpec((tm_eff, D_in), lambda i: (i, 0)),      # x row tile
                pl.BlockSpec((D_in, D_out_p), lambda i: (0, 0)),     # full W^T (grid-invariant)
                pl.BlockSpec((1, D_out_p), lambda i: (0, 0)),        # bias row (grid-invariant)
            ],
            out_specs=pl.BlockSpec((tm_eff, D_out_p), lambda i: (i, 0)),
        ),
        compiler_params=pltpu.CompilerParams(
            dimension_semantics=("parallel",),      # shards grid steps across TCs on v7x
            vmem_limit_bytes=64 << 20,
        ),
        cost_estimate=cost,
    )(x_c, wt, b2)

    return out[:N, :D_out]


def _reference(x, weight, bias, w0=30.0):
    return jnp.sin(w0 * (x @ weight.T + bias))


if __name__ == "__main__":
    key = jax.random.PRNGKey(0)
    k_x, k_w, k_b = jax.random.split(key, 3)

    # Small, module-consistent shapes; N is deliberately not a multiple of the
    # tile so the padded-last-tile path is exercised, and grid length is >= 2.
    N, D_in, D_out = 1000, 16, 32
    w0, c = 30.0, 6.0

    x = jax.random.normal(k_x, (N, D_in), dtype=jnp.float32)
    # SIREN-style deterministic init for the (externally supplied) weight/bias:
    w_bound = jnp.sqrt(c / D_in) / w0
    weight = jax.random.uniform(k_w, (D_out, D_in), dtype=jnp.float32,
                                minval=-w_bound, maxval=w_bound)
    bias = jax.random.uniform(k_b, (D_out,), dtype=jnp.float32,
                              minval=-1.0 / D_in, maxval=1.0 / D_in)

    out = functional_siren(x, weight, bias, w0=w0)
    out = jax.block_until_ready(out)

    ref = _reference(x, weight, bias, w0=w0)
    assert out.shape == (N, D_out)
    assert jnp.allclose(out, ref, atol=1e-5, rtol=1e-5)

    print("KERNEL_OK")
</pallas_src>

<mosaic_0001>
module attributes {stable_mosaic.version = 11 : i64} {
  func.func @_siren_kernel(%arg0: i32, %arg1: memref<512x16xf32, #tpu.memory_space<vmem>>, %arg2: memref<16x128xf32, #tpu.memory_space<vmem>>, %arg3: memref<1x128xf32, #tpu.memory_space<vmem>>, %arg4: memref<512x128xf32, #tpu.memory_space<vmem>>) attributes {dimension_semantics = [#tpu.dimension_semantics<parallel>], iteration_bounds = array<i64: 2>, scalar_prefetch = 0 : i64, scratch_operands = 0 : i64, tpu.core_type = #tpu.core_type<tc>, window_params = [{transform_indices = @transform_0, window_bounds = array<i64: 512, 16>}, {pipeline_mode = #tpu.pipeline_mode<synchronous>, transform_indices = @transform_1, window_bounds = array<i64: 16, 128>}, {pipeline_mode = #tpu.pipeline_mode<synchronous>, transform_indices = @transform_2, window_bounds = array<i64: 1, 128>}, {transform_indices = @transform_3, window_bounds = array<i64: 512, 128>}]} {
    %c0 = arith.constant 0 : index
    %c0_0 = arith.constant 0 : index
    %0 = vector.load %arg1[%c0, %c0_0] : memref<512x16xf32, #tpu.memory_space<vmem>>, vector<512x16xf32>
    %c0_1 = arith.constant 0 : index
    %c0_2 = arith.constant 0 : index
    %1 = vector.load %arg2[%c0_1, %c0_2] : memref<16x128xf32, #tpu.memory_space<vmem>>, vector<16x128xf32>
    %cst = arith.constant dense<0.000000e+00> : vector<512x128xf32>
    %2 = tpu.matmul %0, %1, %cst {dimension_numbers = #tpu.dot_dimension_numbers<[1], [0], [0], [1], [0, 0, 1, 1], [], []>} : vector<512x16xf32>, vector<16x128xf32>, vector<512x128xf32> -> vector<512x128xf32>
    %c0_3 = arith.constant 0 : index
    %c0_4 = arith.constant 0 : index
    %3 = vector.load %arg3[%c0_3, %c0_4] : memref<1x128xf32, #tpu.memory_space<vmem>>, vector<1x128xf32>
    %4 = vector.broadcast %3 : vector<1x128xf32> to vector<512x128xf32>
    %5 = arith.addf %2, %4 : vector<512x128xf32>
    %6 = math.sin %5 : vector<512x128xf32>
    %c0_5 = arith.constant 0 : index
    %c0_6 = arith.constant 0 : index
    %7 = vector.load %arg4[%c0_5, %c0_6] : memref<512x128xf32, #tpu.memory_space<vmem>>, vector<512x128xf32>
    tpu.vector_store %arg4[%c0_5, %c0_6], %6 {strides = array<i32>} : memref<512x128xf32, #tpu.memory_space<vmem>>, vector<512x128xf32>,
    return
  }
  func.func @transform_0(%arg0: i32) -> (i32, i32) {
    %c0_i32 = arith.constant 0 : i32
    %c0_i32_0 = arith.constant 0 : i32
    return %arg0, %c0_i32 : i32, i32
  }
  func.func @transform_1(%arg0: i32) -> (i32, i32) {
    %c0_i32 = arith.constant 0 : i32
    %c0_i32_0 = arith.constant 0 : i32
    %c0_i32_1 = arith.constant 0 : i32
    return %c0_i32, %c0_i32_0 : i32, i32
  }
  func.func @transform_2(%arg0: i32) -> (i32, i32) {
    %c0_i32 = arith.constant 0 : i32
    %c0_i32_0 = arith.constant 0 : i32
    %c0_i32_1 = arith.constant 0 : i32
    return %c0_i32, %c0_i32_0 : i32, i32
  }
  func.func @transform_3(%arg0: i32) -> (i32, i32) {
    %c0_i32 = arith.constant 0 : i32
    %c0_i32_0 = arith.constant 0 : i32
    return %arg0, %c0_i32 : i32, i32
  }
}

</mosaic_0001>

<llo_original>
// kernel: tpu_custom_call.1
$region0: #{tpu_custom_call.1}
  #allocation0 [shape = 'u32[]', space=smem, size = 0x4, offset = 0x4, fixed_abs, tag = 'smem constant byte address 0x4 - core index']
  #allocation1 [shape = 'u32[72,128]{1,0:T(1,128)}', space=vmem, size = 0x9000, scoped, tag = 'internal scratch']
  %s0 = inlined_call_operand.vmem [shape: f32[1024,16], index: 0, kind: input, shape index: {}]
  %s1 = inlined_call_operand.vmem [shape: f32[16,128], index: 1, kind: input, shape index: {}]
  %s2 = inlined_call_operand.vmem [shape: f32[1,128], index: 2, kind: input, shape index: {}]
  %s3 = inlined_call_operand.hbm [shape: f32[1024,128], index: 3, kind: output, shape index: {}]
  %s4 = sld [smem:[#allocation0]]
  $region45: #{tpu_custom_call.1} parent=0
    _
  %s6 = ssub.s32 1, %s4
  %s7 = scalar_select 0, %s6, %s4
  $region1: #{tpu_custom_call.1} parent=0
    #allocation2 [shape = 'u8[524288]{0}', space=vmem, size = 0x80000, scoped, tag = 'output window, operand 0']
    #allocation3 [shape = 's32[2]{0}', space=sflag, size = 0x8, scoped, tag = 'scoped memory for tpu_custom_call.1']
    %8 = vsyncpa [#allocation3], 0
    %s9 = scalar_lea.sflag [#allocation3], 1
    %10 = vsyncpa %s9, 0
    loop: start=0, step=1, limit=4
    $region2: #{tpu_custom_call.1} parent=1 // loop_pre_header
      _
    $region3: #{tpu_custom_call.1} parent=1 // loop_header
      %s12 = sphi 0, %s16
      %p13 = scmp.ge.s32.totalorder %s12, 4
      %s22 = sphi 0, %s24
      %s25 = sphi 0, %s22
      %s26 = sphi 0, %s25
      %s42 = sphi 0, %s26
      %s46 = sphi 0, %s46
      %s48 = sphi 0, %s46
      %s49 = sphi 0, %s48
      %s63 = sphi 0, %s49
      %s67 = sphi 0, %s67
      %s69 = sphi 0, %s67
      %s70 = sphi 0, %s69
      %s84 = sphi 0, %s70
      %s90 = sphi 0, %s92
      %s93 = sphi 0, %s90
      %s94 = sphi 0, %s93
      %s110 = sphi 0, %s94
    $region4: #{tpu_custom_call.1} parent=1 // loop_header_branch
      %15 = sbr.rel (%p13) target = $region8
    $region5: #{tpu_custom_call.1} parent=1 // loop_body
      %s17 = ssub.s32 %s12, 1
      %s18 = ssub.s32 %s12, 2
      %s19 = sadd.s32 %s12, 1
      %s20 = ssub.s32 %s12, %s19
      %p21 = scmp.eq.s32.totalorder %s20, 0
      %s23 = sadd.s32 %s22, 1
      %s24 = scalar_select %p21, %s22, %s23
      %p27 = pneg %p21
      %p28 = scmp.eq.s32.totalorder %s12, 1
      %p29 = por %p27, %p28
      %p30 = scmp.ne.s32.totalorder %s22, %s25
      %p31 = scmp.eq.s32.totalorder %s12, 0
      %p32 = por %p30, %p31
      %p33 = scmp.ne.s32.totalorder %s22, %s25
      %p34 = scmp.eq.s32.totalorder %s17, 1
      %p35 = por %p33, %p34
      %p36 = scmp.ne.s32.totalorder %s25, %s26
      %p37 = scmp.eq.s32.totalorder %s17, 0
      %p38 = por %p36, %p37
      %p39 = scmp.ne.s32.totalorder %s25, %s26
      %p40 = scmp.eq.s32.totalorder %s18, 1
      %p41 = por %p39, %p40
      %p43 = scmp.ne.s32.totalorder %s26, %s42
      %p44 = scmp.eq.s32.totalorder %s18, 0
      %p45 = por %p43, %p44
      %s47 = sadd.s32 %s46, 1
      %p50 = scmp.eq.s32.totalorder %s12, 1
      %p51 = scmp.ne.s32.totalorder %s46, %s48
      %p52 = scmp.eq.s32.totalorder %s12, 0
      %p53 = por %p51, %p52
      %p54 = scmp.ne.s32.totalorder %s46, %s48
      %p55 = scmp.eq.s32.totalorder %s17, 1
      %p56 = por %p54, %p55
      %p57 = scmp.ne.s32.totalorder %s48, %s49
      %p58 = scmp.eq.s32.totalorder %s17, 0
      %p59 = por %p57, %p58
      %p60 = scmp.ne.s32.totalorder %s48, %s49
      %p61 = scmp.eq.s32.totalorder %s18, 1
      %p62 = por %p60, %p61
      %p64 = scmp.ne.s32.totalorder %s49, %s63
      %p65 = scmp.eq.s32.totalorder %s18, 0
      %p66 = por %p64, %p65
      %s68 = sadd.s32 %s67, 1
      %p71 = scmp.eq.s32.totalorder %s12, 1
      %p72 = scmp.ne.s32.totalorder %s67, %s69
      %p73 = scmp.eq.s32.totalorder %s12, 0
      %p74 = por %p72, %p73
      %p75 = scmp.ne.s32.totalorder %s67, %s69
      %p76 = scmp.eq.s32.totalorder %s17, 1
      %p77 = por %p75, %p76
      %p78 = scmp.ne.s32.totalorder %s69, %s70
      %p79 = scmp.eq.s32.totalorder %s17, 0
      %p80 = por %p78, %p79
      %p81 = scmp.ne.s32.totalorder %s69, %s70
      %p82 = scmp.eq.s32.totalorder %s18, 1
      %p83 = por %p81, %p82
      %p85 = scmp.ne.s32.totalorder %s70, %s84
      %p86 = scmp.eq.s32.totalorder %s18, 0
      %p87 = por %p85, %p86
      %s88 = ssub.s32 %s12, %s19
      %p89 = scmp.eq.s32.totalorder %s88, 0
      %s91 = sadd.s32 %s90, 1
      %s92 = scalar_select %p89, %s90, %s91
      %p95 = pneg %p89
      %p96 = scmp.eq.s32.totalorder %s12, 1
      %p97 = por %p95, %p96
      %p98 = scmp.ne.s32.totalorder %s90, %s93
      %p99 = scmp.eq.s32.totalorder %s12, 0
      %p100 = por %p98, %p99
      %p101 = scmp.ne.s32.totalorder %s90, %s93
      %p102 = scmp.eq.s32.totalorder %s17, 1
      %p103 = por %p101, %p102
      %p104 = scmp.ne.s32.totalorder %s93, %s94
      %p105 = scmp.eq.s32.totalorder %s17, 0
      %p106 = por %p104, %p105
      %p107 = scmp.ne.s32.totalorder %s93, %s94
      %p108 = scmp.eq.s32.totalorder %s18, 1
      %p109 = por %p107, %p108
      %p111 = scmp.ne.s32.totalorder %s94, %s110
      %p112 = scmp.eq.s32.totalorder %s18, 0
      %p113 = por %p111, %p112
      %p114 = scmp.le.s32.totalorder 1, %s12
      %p115 = scmp.lt.s32.totalorder %s12, 3
      %p116 = pnand %p114, %p115
      %p117 = pneg %p116
      // Predicated region
      $region9: #{tpu_custom_call.1} parent=5 // pred_check
        _
      $region10: #{tpu_custom_call.1} parent=5 // pred_check_branch
        %119 = sbr.rel (%p116) target = $region12
      $region11: #{tpu_custom_call.1} parent=5 // pred_region
        %s120 = ssub.s32 %s12, 1
        // Predicated region
        $region13: #{tpu_custom_call.1} parent=11 // pred_check
          %p121 = pneg %p59
        $region14: #{tpu_custom_call.1} parent=11 // pred_check_branch
          %123 = sbr.rel (%p121) target = $region16
        $region15: #{tpu_custom_call.1} parent=11 // pred_region
          _
        $region16: #{tpu_custom_call.1} parent=11 // pred_fallthru
          _
        // Predicated region
        $region17: #{tpu_custom_call.1} parent=11 // pred_check
          %p124 = pneg %p80
        $region18: #{tpu_custom_call.1} parent=11 // pred_check_branch
          %126 = sbr.rel (%p124) target = $region20
        $region19: #{tpu_custom_call.1} parent=11 // pred_region
          _
        $region20: #{tpu_custom_call.1} parent=11 // pred_fallthru
          _
      $region12: #{tpu_custom_call.1} parent=5 // pred_fallthru
        _
      %p127 = scmp.lt.s32.totalorder %s12, 2
      // Predicated region
      $region21: #{tpu_custom_call.1} parent=5 // pred_check
        %p128 = pneg %p127
      $region22: #{tpu_custom_call.1} parent=5 // pred_check_branch
        %130 = sbr.rel (%p128) target = $region24
      $region23: #{tpu_custom_call.1} parent=5 // pred_region
        // Predicated region
        $region25: #{tpu_custom_call.1} parent=23 // pred_check
          %p131 = pneg %p32
        $region26: #{tpu_custom_call.1} parent=23 // pred_check_branch
          %133 = sbr.rel (%p131) target = $region28
        $region27: #{tpu_custom_call.1} parent=23 // pred_region
          %s134 = smul.u32 64, %s12
          %p135 = scmp.lt.s32.totalorder %s134, 127
          %s136 = scalar_select %p135, %s134, 127
          %s137 = smul.addr %s136, 8
          %s138 = scalar_lea.vmem %s0, %s137
          %s139 = smul.u32 64, %s12
        $region28: #{tpu_custom_call.1} parent=23 // pred_fallthru
          _
      $region24: #{tpu_custom_call.1} parent=5 // pred_fallthru
        _
      %p140 = scmp.le.s32.totalorder 1, %s12
      %p141 = scmp.lt.s32.totalorder %s12, 3
      %p142 = pnand %p140, %p141
      %p143 = pneg %p142
      // Predicated region
      $region29: #{tpu_custom_call.1} parent=5 // pred_check
        _
      $region30: #{tpu_custom_call.1} parent=5 // pred_check_branch
        %145 = sbr.rel (%p142) target = $region32
      $region31: #{tpu_custom_call.1} parent=5 // pred_region
        %s146 = ssub.s32 %s12, 1
        %s147 = smul.u32 64, %s17
        %p148 = scmp.lt.s32.totalorder %s147, 127
        %s149 = scalar_select %p148, %s147, 127
        %s150 = smul.addr %s149, 8
        %s151 = scalar_lea.vmem %s0, %s150
        %p152 = pneg %p38
        %p153 = pneg %p35
        %p154 = pneg %p59
        %p155 = pneg %p56
        %p156 = pneg %p80
        %p157 = pneg %p77
        %p158 = pneg %p106
        %p159 = pneg %p103
        %s160 = sand.u32 %s93, 1
        %s161 = scalar_lea.sflag [#allocation3], %s160
        %s162 = sand.u32 %s93, 1
        %s163 = smul.addr %s162, 512
        %s164 = scalar_lea.vmem [#allocation2], %s163
        %s165 = smul.u32 64, %s17
        %p166 = scmp.lt.s32.totalorder %s165, 127
        %s167 = scalar_select %p166, %s165, 127
        %s168 = smul.addr %s167, 8
        %s169 = scalar_lea.vmem %s0, %s168
        %s170 = smul.u32 64, %s17
        %s171 = smul.u32 64, %s17
        %v172 = vld [vmem:[%s169] sm:$0xff]
        %v173 = vld [vmem:[%s169 + $0x8] sm:$0xff]
        %v174 = vld [vmem:[%s169 + $0x10] sm:$0xff]
        %v175 = vld [vmem:[%s169 + $0x18] sm:$0xff]
        %v176 = vld [vmem:[%s169 + $0x20] sm:$0xff]
        %v177 = vld [vmem:[%s169 + $0x28] sm:$0xff]
        %v178 = vld [vmem:[%s169 + $0x30] sm:$0xff]
        %v179 = vld [vmem:[%s169 + $0x38] sm:$0xff]
        %v180 = vld [vmem:[%s169 + $0x40] sm:$0xff]
        %v181 = vld [vmem:[%s169 + $0x48] sm:$0xff]
        %v182 = vld [vmem:[%s169 + $0x50] sm:$0xff]
        %v183 = vld [vmem:[%s169 + $0x58] sm:$0xff]
        %v184 = vld [vmem:[%s169 + $0x60] sm:$0xff]
        %v185 = vld [vmem:[%s169 + $0x68] sm:$0xff]
        %v186 = vld [vmem:[%s169 + $0x70] sm:$0xff]
        %v187 = vld [vmem:[%s169 + $0x78] sm:$0xff]
        %v188 = vld [vmem:[%s169 + $0x80] sm:$0xff]
        %v189 = vld [vmem:[%s169 + $0x88] sm:$0xff]
        %v190 = vld [vmem:[%s169 + $0x90] sm:$0xff]
        %v191 = vld [vmem:[%s169 + $0x98] sm:$0xff]
        %v192 = vld [vmem:[%s169 + $0xa0] sm:$0xff]
        %v193 = vld [vmem:[%s169 + $0xa8] sm:$0xff]
        %v194 = vld [vmem:[%s169 + $0xb0] sm:$0xff]
        %v195 = vld [vmem:[%s169 + $0xb8] sm:$0xff]
        %v196 = vld [vmem:[%s169 + $0xc0] sm:$0xff]
        %v197 = vld [vmem:[%s169 + $0xc8] sm:$0xff]
        %v198 = vld [vmem:[%s169 + $0xd0] sm:$0xff]
        %v199 = vld [vmem:[%s169 + $0xd8] sm:$0xff]
        %v200 = vld [vmem:[%s169 + $0xe0] sm:$0xff]
        %v201 = vld [vmem:[%s169 + $0xe8] sm:$0xff]
        %v202 = vld [vmem:[%s169 + $0xf0] sm:$0xff]
        %v203 = vld [vmem:[%s169 + $0xf8] sm:$0xff]
        %v204 = vld [vmem:[%s169 + $0x100] sm:$0xff]
        %v205 = vld [vmem:[%s169 + $0x108] sm:$0xff]
        %v206 = vld [vmem:[%s169 + $0x110] sm:$0xff]
        %v207 = vld [vmem:[%s169 + $0x118] sm:$0xff]
        %v208 = vld [vmem:[%s169 + $0x120] sm:$0xff]
        %v209 = vld [vmem:[%s169 + $0x128] sm:$0xff]
        %v210 = vld [vmem:[%s169 + $0x130] sm:$0xff]
        %v211 = vld [vmem:[%s169 + $0x138] sm:$0xff]
        %v212 = vld [vmem:[%s169 + $0x140] sm:$0xff]
        %v213 = vld [vmem:[%s169 + $0x148] sm:$0xff]
        %v214 = vld [vmem:[%s169 + $0x150] sm:$0xff]
        %v215 = vld [vmem:[%s169 + $0x158] sm:$0xff]
        %v216 = vld [vmem:[%s169 + $0x160] sm:$0xff]
        %v217 = vld [vmem:[%s169 + $0x168] sm:$0xff]
        %v218 = vld [vmem:[%s169 + $0x170] sm:$0xff]
        %v219 = vld [vmem:[%s169 + $0x178] sm:$0xff]
        %v220 = vld [vmem:[%s169 + $0x180] sm:$0xff]
        %v221 = vld [vmem:[%s169 + $0x188] sm:$0xff]
        %v222 = vld [vmem:[%s169 + $0x190] sm:$0xff]
        %v223 = vld [vmem:[%s169 + $0x198] sm:$0xff]
        %v224 = vld [vmem:[%s169 + $0x1a0] sm:$0xff]
        %v225 = vld [vmem:[%s169 + $0x1a8] sm:$0xff]
        %v226 = vld [vmem:[%s169 + $0x1b0] sm:$0xff]
        %v227 = vld [vmem:[%s169 + $0x1b8] sm:$0xff]
        %v228 = vld [vmem:[%s169 + $0x1c0] sm:$0xff]
        %v229 = vld [vmem:[%s169 + $0x1c8] sm:$0xff]
        %v230 = vld [vmem:[%s169 + $0x1d0] sm:$0xff]
        %v231 = vld [vmem:[%s169 + $0x1d8] sm:$0xff]
        %v232 = vld [vmem:[%s169 + $0x1e0] sm:$0xff]
        %v233 = vld [vmem:[%s169 + $0x1e8] sm:$0xff]
        %v234 = vld [vmem:[%s169 + $0x1f0] sm:$0xff]
        %v235 = vld [vmem:[%s169 + $0x1f8] sm:$0xff]
        %v236 = vld [vmem:[%s1] sm:$0xff]
        %v237 = vld [vmem:[%s1 + $0x8] sm:$0xff]
        %v238 = vld [vmem:[%s2] sm:$0x1]
        %v240 = vperm.slane %v238, 0
        %vm242 = vcmask 130048
        %v244 = vsel %vm242, %v172, 0
        %v247 = vsel %vm242, %v173, 0
        %v250 = vsel %vm242, %v174, 0
        %v253 = vsel %vm242, %v175, 0
        %v256 = vsel %vm242, %v176, 0
        %v259 = vsel %vm242, %v177, 0
        %v262 = vsel %vm242, %v178, 0
        %v265 = vsel %vm242, %v179, 0
        %v268 = vsel %vm242, %v180, 0
        %v271 = vsel %vm242, %v181, 0
        %v274 = vsel %vm242, %v182, 0
        %v277 = vsel %vm242, %v183, 0
        %v280 = vsel %vm242, %v184, 0
        %v283 = vsel %vm242, %v185, 0
        %v286 = vsel %vm242, %v186, 0
        %v289 = vsel %vm242, %v187, 0
        %v292 = vsel %vm242, %v188, 0
        %v295 = vsel %vm242, %v189, 0
        %v298 = vsel %vm242, %v190, 0
        %v301 = vsel %vm242, %v191, 0
        %v304 = vsel %vm242, %v192, 0
        %v307 = vsel %vm242, %v193, 0
        %v310 = vsel %vm242, %v194, 0
        %v313 = vsel %vm242, %v195, 0
        %v316 = vsel %vm242, %v196, 0
        %v319 = vsel %vm242, %v197, 0
        %v322 = vsel %vm242, %v198, 0
        %v325 = vsel %vm242, %v199, 0
        %v328 = vsel %vm242, %v200, 0
        %v331 = vsel %vm242, %v201, 0
        %v334 = vsel %vm242, %v202, 0
        %v337 = vsel %vm242, %v203, 0
        %v340 = vsel %vm242, %v204, 0
        %v343 = vsel %vm242, %v205, 0
        %v346 = vsel %vm242, %v206, 0
        %v349 = vsel %vm242, %v207, 0
        %v352 = vsel %vm242, %v208, 0
        %v355 = vsel %vm242, %v209, 0
        %v358 = vsel %vm242, %v210, 0
        %v361 = vsel %vm242, %v211, 0
        %v364 = vsel %vm242, %v212, 0
        %v367 = vsel %vm242, %v213, 0
        %v370 = vsel %vm242, %v214, 0
        %v373 = vsel %vm242, %v215, 0
        %v376 = vsel %vm242, %v216, 0
        %v379 = vsel %vm242, %v217, 0
        %v382 = vsel %vm242, %v218, 0
        %v385 = vsel %vm242, %v219, 0
        %v388 = vsel %vm242, %v220, 0
        %v391 = vsel %vm242, %v221, 0
        %v394 = vsel %vm242, %v222, 0
        %v397 = vsel %vm242, %v223, 0
        %v400 = vsel %vm242, %v224, 0
        %v403 = vsel %vm242, %v225, 0
        %v406 = vsel %vm242, %v226, 0
        %v409 = vsel %vm242, %v227, 0
        %v412 = vsel %vm242, %v228, 0
        %v415 = vsel %vm242, %v229, 0
        %v418 = vsel %vm242, %v230, 0
        %v421 = vsel %vm242, %v231, 0
        %v424 = vsel %vm242, %v232, 0
        %v427 = vsel %vm242, %v233, 0
        %v430 = vsel %vm242, %v234, 0
        %v433 = vsel %vm242, %v235, 0
        %435 = vmatpush.msra.mxu0 0.0
        %436 = vmatpush.msra.mxu0 0.0
        %437 = vmatpush.msra.mxu0 0.0
        %438 = vmatpush.msra.mxu0 0.0
        %439 = vmatpush.msra.mxu0 0.0
        %440 = vmatpush.msra.mxu0 0.0
        %441 = vmatpush.msra.mxu0 0.0
        %442 = vmatpush.msra.mxu0 0.0
        %443 = vmatpush.msra.mxu0 0.0
        %444 = vmatpush.msra.mxu0 0.0
        %445 = vmatpush.msra.mxu0 0.0
        %446 = vmatpush.msra.mxu0 0.0
        %447 = vmatpush.msra.mxu0 0.0
        %448 = vmatpush.msra.mxu0 0.0
        %449 = vmatpush.msra.mxu0 %v237
        %450 = vmatpush.msra.mxu0 %v236
        %451 = vmatmul.f32.gmra.mxu0 %v244
        %v452 = vpop.f32.mrf.mxu0
        %v453 = vadd.f32 %v240, %v452
        %454 = vmatmul.f32.gmra.mxu0 %v247
        %v455 = vpop.f32.mrf.mxu0
        %v456 = vadd.f32 %v240, %v455
        %457 = vmatmul.f32.gmra.mxu0 %v250
        %v458 = vpop.f32.mrf.mxu0
        %v459 = vadd.f32 %v240, %v458
        %460 = vmatmul.f32.gmra.mxu0 %v253
        %v461 = vpop.f32.mrf.mxu0
        %v462 = vadd.f32 %v240, %v461
        %463 = vmatmul.f32.gmra.mxu0 %v256
        %v464 = vpop.f32.mrf.mxu0
        %v465 = vadd.f32 %v240, %v464
        %466 = vmatmul.f32.gmra.mxu0 %v259
        %v467 = vpop.f32.mrf.mxu0
        %v468 = vadd.f32 %v240, %v467
        %469 = vmatmul.f32.gmra.mxu0 %v262
        %v470 = vpop.f32.mrf.mxu0
        %v471 = vadd.f32 %v240, %v470
        %472 = vmatmul.f32.gmra.mxu0 %v265
        %v473 = vpop.f32.mrf.mxu0
        %v474 = vadd.f32 %v240, %v473
        %475 = vmatmul.f32.gmra.mxu0 %v268
        %v476 = vpop.f32.mrf.mxu0
        %v477 = vadd.f32 %v240, %v476
        %478 = vmatmul.f32.gmra.mxu0 %v271
        %v479 = vpop.f32.mrf.mxu0
        %v480 = vadd.f32 %v240, %v479
        %481 = vmatmul.f32.gmra.mxu0 %v274
        %v482 = vpop.f32.mrf.mxu0
        %v483 = vadd.f32 %v240, %v482
        %484 = vmatmul.f32.gmra.mxu0 %v277
        %v485 = vpop.f32.mrf.mxu0
        %v486 = vadd.f32 %v240, %v485
        %487 = vmatmul.f32.gmra.mxu0 %v280
        %v488 = vpop.f32.mrf.mxu0
        %v489 = vadd.f32 %v240, %v488
        %490 = vmatmul.f32.gmra.mxu0 %v283
        %v491 = vpop.f32.mrf.mxu0
        %v492 = vadd.f32 %v240, %v491
        %493 = vmatmul.f32.gmra.mxu0 %v286
        %v494 = vpop.f32.mrf.mxu0
        %v495 = vadd.f32 %v240, %v494
        %496 = vmatmul.f32.gmra.mxu0 %v289
        %v497 = vpop.f32.mrf.mxu0
        %v498 = vadd.f32 %v240, %v497
        %499 = vmatmul.f32.gmra.mxu0 %v292
        %v500 = vpop.f32.mrf.mxu0
        %v501 = vadd.f32 %v240, %v500
        %502 = vmatmul.f32.gmra.mxu0 %v295
        %v503 = vpop.f32.mrf.mxu0
        %v504 = vadd.f32 %v240, %v503
        %505 = vmatmul.f32.gmra.mxu0 %v298
        %v506 = vpop.f32.mrf.mxu0
        %v507 = vadd.f32 %v240, %v506
        %508 = vmatmul.f32.gmra.mxu0 %v301
        %v509 = vpop.f32.mrf.mxu0
        %v510 = vadd.f32 %v240, %v509
        %511 = vmatmul.f32.gmra.mxu0 %v304
        %v512 = vpop.f32.mrf.mxu0
        %v513 = vadd.f32 %v240, %v512
        %514 = vmatmul.f32.gmra.mxu0 %v307
        %v515 = vpop.f32.mrf.mxu0
        %v516 = vadd.f32 %v240, %v515
        %517 = vmatmul.f32.gmra.mxu0 %v310
        %v518 = vpop.f32.mrf.mxu0
        %v519 = vadd.f32 %v240, %v518
        %520 = vmatmul.f32.gmra.mxu0 %v313
        %v521 = vpop.f32.mrf.mxu0
        %v522 = vadd.f32 %v240, %v521
        %523 = vmatmul.f32.gmra.mxu0 %v316
        %v524 = vpop.f32.mrf.mxu0
        %v525 = vadd.f32 %v240, %v524
        %526 = vmatmul.f32.gmra.mxu0 %v319
        %v527 = vpop.f32.mrf.mxu0
        %v528 = vadd.f32 %v240, %v527
        %529 = vmatmul.f32.gmra.mxu0 %v322
        %v530 = vpop.f32.mrf.mxu0
        %v531 = vadd.f32 %v240, %v530
        %532 = vmatmul.f32.gmra.mxu0 %v325
        %v533 = vpop.f32.mrf.mxu0
        %v534 = vadd.f32 %v240, %v533
        %535 = vmatmul.f32.gmra.mxu0 %v328
        %v536 = vpop.f32.mrf.mxu0
        %v537 = vadd.f32 %v240, %v536
        %538 = vmatmul.f32.gmra.mxu0 %v331
        %v539 = vpop.f32.mrf.mxu0
        %v540 = vadd.f32 %v240, %v539
        %541 = vmatmul.f32.gmra.mxu0 %v334
        %v542 = vpop.f32.mrf.mxu0
        %v543 = vadd.f32 %v240, %v542
        %544 = vmatmul.f32.gmra.mxu0 %v337
        %v545 = vpop.f32.mrf.mxu0
        %v546 = vadd.f32 %v240, %v545
        %547 = vmatmul.f32.gmra.mxu0 %v340
        %v548 = vpop.f32.mrf.mxu0
        %v549 = vadd.f32 %v240, %v548
        %550 = vmatmul.f32.gmra.mxu0 %v343
        %v551 = vpop.f32.mrf.mxu0
        %v552 = vadd.f32 %v240, %v551
        %553 = vmatmul.f32.gmra.mxu0 %v346
        %v554 = vpop.f32.mrf.mxu0
        %v555 = vadd.f32 %v240, %v554
        %556 = vmatmul.f32.gmra.mxu0 %v349
        %v557 = vpop.f32.mrf.mxu0
        %v558 = vadd.f32 %v240, %v557
        %559 = vmatmul.f32.gmra.mxu0 %v352
        %v560 = vpop.f32.mrf.mxu0
        %v561 = vadd.f32 %v240, %v560
        %562 = vmatmul.f32.gmra.mxu0 %v355
        %v563 = vpop.f32.mrf.mxu0
        %v564 = vadd.f32 %v240, %v563
        %565 = vmatmul.f32.gmra.mxu0 %v358
        %v566 = vpop.f32.mrf.mxu0
        %v567 = vadd.f32 %v240, %v566
        %568 = vmatmul.f32.gmra.mxu0 %v361
        %v569 = vpop.f32.mrf.mxu0
        %v570 = vadd.f32 %v240, %v569
        %571 = vmatmul.f32.gmra.mxu0 %v364
        %v572 = vpop.f32.mrf.mxu0
        %v573 = vadd.f32 %v240, %v572
        %574 = vmatmul.f32.gmra.mxu0 %v367
        %v575 = vpop.f32.mrf.mxu0
        %v576 = vadd.f32 %v240, %v575
        %577 = vmatmul.f32.gmra.mxu0 %v370
        %v578 = vpop.f32.mrf.mxu0
        %v579 = vadd.f32 %v240, %v578
        %580 = vmatmul.f32.gmra.mxu0 %v373
        %v581 = vpop.f32.mrf.mxu0
        %v582 = vadd.f32 %v240, %v581
        %583 = vmatmul.f32.gmra.mxu0 %v376
        %v584 = vpop.f32.mrf.mxu0
        %v585 = vadd.f32 %v240, %v584
        %586 = vmatmul.f32.gmra.mxu0 %v379
        %v587 = vpop.f32.mrf.mxu0
        %v588 = vadd.f32 %v240, %v587
        %589 = vmatmul.f32.gmra.mxu0 %v382
        %v590 = vpop.f32.mrf.mxu0
        %v591 = vadd.f32 %v240, %v590
        %592 = vmatmul.f32.gmra.mxu0 %v385
        %v593 = vpop.f32.mrf.mxu0
        %v594 = vadd.f32 %v240, %v593
        %595 = vmatmul.f32.gmra.mxu0 %v388
        %v596 = vpop.f32.mrf.mxu0
        %v597 = vadd.f32 %v240, %v596
        %598 = vmatmul.f32.gmra.mxu0 %v391
        %v599 = vpop.f32.mrf.mxu0
        %v600 = vadd.f32 %v240, %v599
        %601 = vmatmul.f32.gmra.mxu0 %v394
        %v602 = vpop.f32.mrf.mxu0
        %v603 = vadd.f32 %v240, %v602
        %604 = vmatmul.f32.gmra.mxu0 %v397
        %v605 = vpop.f32.mrf.mxu0
        %v606 = vadd.f32 %v240, %v605
        %607 = vmatmul.f32.gmra.mxu0 %v400
        %v608 = vpop.f32.mrf.mxu0
        %v609 = vadd.f32 %v240, %v608
        %610 = vmatmul.f32.gmra.mxu0 %v403
        %v611 = vpop.f32.mrf.mxu0
        %v612 = vadd.f32 %v240, %v611
        %613 = vmatmul.f32.gmra.mxu0 %v406
        %v614 = vpop.f32.mrf.mxu0
        %v615 = vadd.f32 %v240, %v614
        %616 = vmatmul.f32.gmra.mxu0 %v409
        %v617 = vpop.f32.mrf.mxu0
        %v618 = vadd.f32 %v240, %v617
        %619 = vmatmul.f32.gmra.mxu0 %v412
        %v620 = vpop.f32.mrf.mxu0
        %v621 = vadd.f32 %v240, %v620
        %622 = vmatmul.f32.gmra.mxu0 %v415
        %v623 = vpop.f32.mrf.mxu0
        %v624 = vadd.f32 %v240, %v623
        %625 = vmatmul.f32.gmra.mxu0 %v418
        %v626 = vpop.f32.mrf.mxu0
        %v627 = vadd.f32 %v240, %v626
        %628 = vmatmul.f32.gmra.mxu0 %v421
        %v629 = vpop.f32.mrf.mxu0
        %v630 = vadd.f32 %v240, %v629
        %631 = vmatmul.f32.gmra.mxu0 %v424
        %v632 = vpop.f32.mrf.mxu0
        %v633 = vadd.f32 %v240, %v632
        %634 = vmatmul.f32.gmra.mxu0 %v427
        %v635 = vpop.f32.mrf.mxu0
        %v636 = vadd.f32 %v240, %v635
        %637 = vmatmul.f32.gmra.mxu0 %v430
        %v638 = vpop.f32.mrf.mxu0
        %v639 = vadd.f32 %v240, %v638
        %640 = vmatmul.f32.gmra.mxu0 %v433
        %v641 = vpop.f32.mrf.mxu0
        %v642 = vadd.f32 %v240, %v641
        %643 = vdwg.mxu0
        %v644 = vand.u32 2147483647, %v453
        %vm645 = vcmp.le.f32.partialorder %v644, 0.7853982
        %vm646 = vcmp.lt.s32.totalorder %v453, 0
        %v647 = vand.u32 %v453, 2139095040
        %v648 = vshrl.u32 %v647, 23
        %v649 = vsub.s32 %v648, 127
        %v650 = vand.u32 2147483647, %v453
        %v651 = vand.u32 %v650, 8388607
        %v652 = vor.u32 %v651, 8388608
        %v653 = vsub.s32 0, %v652
        %v654 = vadd.s32 %v649, 1
        %vm655 = vcmp.gt.s32.totalorder %v654, 0
        %v656 = vsel %vm655, %v654, 0
        %v657 = vshrl.u32 %v656, 5
        %v658 = vand.u32 %v656, 31
        %v659 = vsub.s32 32, %v658
        %v660 = vshrl.u32 683565275, %v659
        %v661 = vshll.u32 683565275, %v658
        %v662 = vshrl.u32 2475754826, %v659
        %v663 = vor.u32 %v661, %v662
        %v664 = vshll.u32 2475754826, %v658
        %v665 = vshrl.u32 2131351028, %v659
        %v666 = vor.u32 %v664, %v665
        %v667 = vshll.u32 2131351028, %v658
        %v668 = vshrl.u32 2102212464, %v659
        %v669 = vor.u32 %v667, %v668
        %v670 = vshll.u32 2102212464, %v658
        %v671 = vshrl.u32 920167782, %v659
        %v672 = vor.u32 %v670, %v671
        %v673 = vshll.u32 920167782, %v658
        %v674 = vshrl.u32 1326507024, %v659
        %v675 = vor.u32 %v673, %v674
        %vm676 = vcmp.lt.s32.totalorder %v657, 1
        %vm677 = vcmp.lt.s32.totalorder %v657, 2
        %vm678 = vcmp.lt.s32.totalorder %v657, 3
        %vm679 = vcmp.lt.s32.totalorder %v657, 4
        %v680 = vsel %vm676, %v660, %v663
        %v681 = vsel %vm679, %v669, 2102212464
        %v682 = vsel %vm678, %v666, %v681
        %v683 = vsel %vm677, %v680, %v682
        %v684 = vsel %vm676, %v663, %v666
        %v685 = vsel %vm679, %v672, 920167782
        %v686 = vsel %vm678, %v669, %v685
        %v687 = vsel %vm677, %v684, %v686
        %v688 = vsel %vm676, %v666, %v669
        %v689 = vsel %vm679, %v675, 1326507024
        %v690 = vsel %vm678, %v672, %v689
        %v691 = vsel %vm677, %v688, %v690
        %v692 = vshll.u32 %v652, 8
        %v693 = vand.u32 %v692, 65535
        %v694 = vshrl.u32 %v692, 16
        %v695 = vand.u32 %v691, 65535
        %v696 = vshrl.u32 %v691, 16
        %v697 = vmul.u32 %v693, %v695
        %v698 = vmul.u32 %v693, %v696
        %v699 = vmul.u32 %v694, %v695
        %v700 = vmul.u32 %v694, %v696
        %v701 = vshll.u32 %v698, 16
        %v702 = vshrl.u32 %v698, 16
        %v703 = vshll.u32 %v699, 16
        %v704 = vshrl.u32 %v699, 16
        %vm705 = vc.u32 %v697, %v701
        %v706 = vsel %vm705, 1, 0
        %v707 = vadd.s32 %v697, %v701
        %v708 = vadd.s32 %v700, %v706
        %vm709 = vc.u32 %v707, %v703
        %v710 = vsel %vm709, 1, 0
        %v711 = vadd.s32 %v707, %v703
        %v712 = vadd.s32 %v708, %v710
        %v713 = vadd.s32 %v712, %v702
        %v714 = vadd.s32 %v713, %v704
        %v715 = vand.u32 %v692, 65535
        %v716 = vshrl.u32 %v692, 16
        %v717 = vand.u32 %v687, 65535
        %v718 = vshrl.u32 %v687, 16
        %v719 = vmul.u32 %v715, %v717
        %v720 = vmul.u32 %v715, %v718
        %v721 = vmul.u32 %v716, %v717
        %v722 = vmul.u32 %v716, %v718
        %v723 = vshll.u32 %v720, 16
        %v724 = vshrl.u32 %v720, 16
        %v725 = vshll.u32 %v721, 16
        %v726 = vshrl.u32 %v721, 16
        %vm727 = vc.u32 %v719, %v723
        %v728 = vsel %vm727, 1, 0
        %v729 = vadd.s32 %v719, %v723
        %v730 = vadd.s32 %v722, %v728
        %vm731 = vc.u32 %v729, %v725
        %v732 = vsel %vm731, 1, 0
        %v733 = vadd.s32 %v729, %v725
        %v734 = vadd.s32 %v730, %v732
        %v735 = vadd.s32 %v734, %v724
        %v736 = vadd.s32 %v735, %v726
        %v737 = vmul.u32 %v692, %v683
        %v738 = vadd.s32 %v714, %v733
        %vm739 = vc.u32 %v714, %v733
        %v740 = vadd.s32 %v736, 1
        %v741 = vsel %vm739, %v740, %v736
        %v742 = vadd.s32 %v737, %v741
        %v743 = vadd.s32 %v742, 536870912
        %v744 = vshrl.u32 %v743, 30
        %v745 = vshll.u32 %v744, 30
        %v746 = vsub.s32 %v742, %v745
        %vm747 = vcmp.lt.s32.totalorder %v746, 0
        %v748 = vsub.s32 0, %v746
        %v749 = vsel %vm747, %v748, %v746
        %v750 = vclz %v749
        %v751 = vsub.s32 %v750, 2
        %vm752 = vcmp.gt.s32.totalorder 0, %v751
        %v753 = vsel %vm752, 0, %v751
        %v754 = vsub.s32 32, %v753
        %v755 = vshll.u32 %v746, %v753
        %v756 = vshrl.u32 %v738, %v754
        %v757 = vor.u32 %v755, %v756
        %v758 = vsub.s32 4294967266, %v753
        %v759 = vadd.s32 %v758, 127
        %v760 = vshll.u32 %v759, 23
        %v761 = vor.u32 4788187, %v760
        %v762 = vand.u32 2147483647, %v761
        %v764 = vcvt.s32.f32 %v757
        %v765 = vmul.f32 %v764, %v762
        %v766 = vxor.u32 %v765, 2147483648
        %v767 = vsel %vm646, %v766, %v765
        %v768 = vsub.s32 4, %v744
        %v769 = vsel %vm646, %v768, %v744
        %v770 = vsel %vm645, %v453, %v767
        %v771 = vsel %vm645, 0, %v769
        %v772 = vmul.f32 %v770, %v770
        %v773 = vmul.f32 %v772, -0.001358992
        %v774 = vadd.f32 %v773, 0.041655596
        %v775 = vmul.f32 %v772, %v774
        %v776 = vadd.f32 %v775, -0.4999988
        %v777 = vmul.f32 %v772, %v776
        %v778 = vadd.f32 1.0, %v777
        %v779 = vmul.f32 %v770, %v770
        %v780 = vmul.f32 %v779, -0.00019511016
        %v781 = vadd.f32 %v780, 0.008332121
        %v782 = vmul.f32 %v779, %v781
        %v783 = vadd.f32 %v782, -0.16666654
        %v784 = vmul.f32 %v779, %v783
        %v785 = vadd.f32 %v784, 1.0
        %v786 = vmul.f32 %v785, %v770
        %vm787 = vweird.f32 %v453
        %v788 = vadd.s32 %v771, 3
        %v789 = vand.u32 %v788, 3
        %vm790 = vcmp.lt.s32.totalorder %v789, 2
        %vm791 = vcmp.eq.s32.totalorder %v789, 0
        %v792 = vxor.u32 %v786, 2147483648
        %v793 = vsel %vm791, %v778, %v792
        %vm794 = vcmp.eq.s32.totalorder %v789, 2
        %v795 = vxor.u32 %v778, 2147483648
        %v796 = vsel %vm794, %v795, %v786
        %v797 = vsel %vm790, %v793, %v796
        %v798 = vsel %vm787, nan, %v797
        %v799 = vand.u32 2147483647, %v456
        %vm800 = vcmp.le.f32.partialorder %v799, 0.7853982
        %vm801 = vcmp.lt.s32.totalorder %v456, 0
        %v802 = vand.u32 %v456, 2139095040
        %v803 = vshrl.u32 %v802, 23
        %v804 = vsub.s32 %v803, 127
        %v805 = vand.u32 2147483647, %v456
        %v806 = vand.u32 %v805, 8388607
        %v807 = vor.u32 %v806, 8388608
        %v808 = vsub.s32 0, %v807
        %v809 = vadd.s32 %v804, 1
        %vm810 = vcmp.gt.s32.totalorder %v809, 0
        %v811 = vsel %vm810, %v809, 0
        %v812 = vshrl.u32 %v811, 5
        %v813 = vand.u32 %v811, 31
        %v814 = vsub.s32 32, %v813
        %v815 = vshrl.u32 683565275, %v814
        %v816 = vshll.u32 683565275, %v813
        %v817 = vshrl.u32 2475754826, %v814
        %v818 = vor.u32 %v816, %v817
        %v819 = vshll.u32 2475754826, %v813
        %v820 = vshrl.u32 2131351028, %v814
        %v821 = vor.u32 %v819, %v820
        %v822 = vshll.u32 2131351028, %v813
        %v823 = vshrl.u32 2102212464, %v814
        %v824 = vor.u32 %v822, %v823
        %v825 = vshll.u32 2102212464, %v813
        %v826 = vshrl.u32 920167782, %v814
        %v827 = vor.u32 %v825, %v826
        %v828 = vshll.u32 920167782, %v813
        %v829 = vshrl.u32 1326507024, %v814
        %v830 = vor.u32 %v828, %v829
        %vm831 = vcmp.lt.s32.totalorder %v812, 1
        %vm832 = vcmp.lt.s32.totalorder %v812, 2
        %vm833 = vcmp.lt.s32.totalorder %v812, 3
        %vm834 = vcmp.lt.s32.totalorder %v812, 4
        %v835 = vsel %vm831, %v815, %v818
        %v836 = vsel %vm834, %v824, 2102212464
        %v837 = vsel %vm833, %v821, %v836
        %v838 = vsel %vm832, %v835, %v837
        %v839 = vsel %vm831, %v818, %v821
        %v840 = vsel %vm834, %v827, 920167782
        %v841 = vsel %vm833, %v824, %v840
        %v842 = vsel %vm832, %v839, %v841
        %v843 = vsel %vm831, %v821, %v824
        %v844 = vsel %vm834, %v830, 1326507024
        %v845 = vsel %vm833, %v827, %v844
        %v846 = vsel %vm832, %v843, %v845
        %v847 = vshll.u32 %v807, 8
        %v848 = vand.u32 %v847, 65535
        %v849 = vshrl.u32 %v847, 16
        %v850 = vand.u32 %v846, 65535
        %v851 = vshrl.u32 %v846, 16
        %v852 = vmul.u32 %v848, %v850
        %v853 = vmul.u32 %v848, %v851
        %v854 = vmul.u32 %v849, %v850
        %v855 = vmul.u32 %v849, %v851
        %v856 = vshll.u32 %v853, 16
        %v857 = vshrl.u32 %v853, 16
        %v858 = vshll.u32 %v854, 16
        %v859 = vshrl.u32 %v854, 16
        %vm860 = vc.u32 %v852, %v856
        %v861 = vsel %vm860, 1, 0
        %v862 = vadd.s32 %v852, %v856
        %v863 = vadd.s32 %v855, %v861
        %vm864 = vc.u32 %v862, %v858
        %v865 = vsel %vm864, 1, 0
        %v866 = vadd.s32 %v862, %v858
        %v867 = vadd.s32 %v863, %v865
        %v868 = vadd.s32 %v867, %v857
        %v869 = vadd.s32 %v868, %v859
        %v870 = vand.u32 %v847, 65535
        %v871 = vshrl.u32 %v847, 16
        %v872 = vand.u32 %v842, 65535
        %v873 = vshrl.u32 %v842, 16
        %v874 = vmul.u32 %v870, %v872
        %v875 = vmul.u32 %v870, %v873
        %v876 = vmul.u32 %v871, %v872
        %v877 = vmul.u32 %v871, %v873
        %v878 = vshll.u32 %v875, 16
        %v879 = vshrl.u32 %v875, 16
        %v880 = vshll.u32 %v876, 16
        %v881 = vshrl.u32 %v876, 16
        %vm882 = vc.u32 %v874, %v878
        %v883 = vsel %vm882, 1, 0
        %v884 = vadd.s32 %v874, %v878
        %v885 = vadd.s32 %v877, %v883
        %vm886 = vc.u32 %v884, %v880
        %v887 = vsel %vm886, 1, 0
        %v888 = vadd.s32 %v884, %v880
        %v889 = vadd.s32 %v885, %v887
        %v890 = vadd.s32 %v889, %v879
        %v891 = vadd.s32 %v890, %v881
        %v892 = vmul.u32 %v847, %v838
        %v893 = vadd.s32 %v869, %v888
        %vm894 = vc.u32 %v869, %v888
        %v895 = vadd.s32 %v891, 1
        %v896 = vsel %vm894, %v895, %v891
        %v897 = vadd.s32 %v892, %v896
        %v898 = vadd.s32 %v897, 536870912
        %v899 = vshrl.u32 %v898, 30
        %v900 = vshll.u32 %v899, 30
        %v901 = vsub.s32 %v897, %v900
        %vm902 = vcmp.lt.s32.totalorder %v901, 0
        %v903 = vsub.s32 0, %v901
        %v904 = vsel %vm902, %v903, %v901
        %v905 = vclz %v904
        %v906 = vsub.s32 %v905, 2
        %vm907 = vcmp.gt.s32.totalorder 0, %v906
        %v908 = vsel %vm907, 0, %v906
        %v909 = vsub.s32 32, %v908
        %v910 = vshll.u32 %v901, %v908
        %v911 = vshrl.u32 %v893, %v909
        %v912 = vor.u32 %v910, %v911
        %v913 = vsub.s32 4294967266, %v908
        %v914 = vadd.s32 %v913, 127
        %v915 = vshll.u32 %v914, 23
        %v916 = vor.u32 4788187, %v915
        %v917 = vand.u32 2147483647, %v916
        %v919 = vcvt.s32.f32 %v912
        %v920 = vmul.f32 %v919, %v917
        %v921 = vxor.u32 %v920, 2147483648
        %v922 = vsel %vm801, %v921, %v920
        %v923 = vsub.s32 4, %v899
        %v924 = vsel %vm801, %v923, %v899
        %v925 = vsel %vm800, %v456, %v922
        %v926 = vsel %vm800, 0, %v924
        %v927 = vmul.f32 %v925, %v925
        %v928 = vmul.f32 %v927, -0.001358992
        %v929 = vadd.f32 %v928, 0.041655596
        %v930 = vmul.f32 %v927, %v929
        %v931 = vadd.f32 %v930, -0.4999988
        %v932 = vmul.f32 %v927, %v931
        %v933 = vadd.f32 1.0, %v932
        %v934 = vmul.f32 %v925, %v925
        %v935 = vmul.f32 %v934, -0.00019511016
        %v936 = vadd.f32 %v935, 0.008332121
        %v937 = vmul.f32 %v934, %v936
        %v938 = vadd.f32 %v937, -0.16666654
        %v939 = vmul.f32 %v934, %v938
        %v940 = vadd.f32 %v939, 1.0
        %v941 = vmul.f32 %v940, %v925
        %vm942 = vweird.f32 %v456
        %v943 = vadd.s32 %v926, 3
        %v944 = vand.u32 %v943, 3
        %vm945 = vcmp.lt.s32.totalorder %v944, 2
        %vm946 = vcmp.eq.s32.totalorder %v944, 0
        %v947 = vxor.u32 %v941, 2147483648
        %v948 = vsel %vm946, %v933, %v947
        %vm949 = vcmp.eq.s32.totalorder %v944, 2
        %v950 = vxor.u32 %v933, 2147483648
        %v951 = vsel %vm949, %v950, %v941
        %v952 = vsel %vm945, %v948, %v951
        %v953 = vsel %vm942, nan, %v952
        %v954 = vand.u32 2147483647, %v459
        %vm955 = vcmp.le.f32.partialorder %v954, 0.7853982
        %vm956 = vcmp.lt.s32.totalorder %v459, 0
        %v957 = vand.u32 %v459, 2139095040
        %v958 = vshrl.u32 %v957, 23
        %v959 = vsub.s32 %v958, 127
        %v960 = vand.u32 2147483647, %v459
        %v961 = vand.u32 %v960, 8388607
        %v962 = vor.u32 %v961, 8388608
        %v963 = vsub.s32 0, %v962
        %v964 = vadd.s32 %v959, 1
        %vm965 = vcmp.gt.s32.totalorder %v964, 0
        %v966 = vsel %vm965, %v964, 0
        %v967 = vshrl.u32 %v966, 5
        %v968 = vand.u32 %v966, 31
        %v969 = vsub.s32 32, %v968
        %v970 = vshrl.u32 683565275, %v969
        %v971 = vshll.u32 683565275, %v968
        %v972 = vshrl.u32 2475754826, %v969
        %v973 = vor.u32 %v971, %v972
        %v974 = vshll.u32 2475754826, %v968
        %v975 = vshrl.u32 2131351028, %v969
        %v976 = vor.u32 %v974, %v975
        %v977 = vshll.u32 2131351028, %v968
        %v978 = vshrl.u32 2102212464, %v969
        %v979 = vor.u32 %v977, %v978
        %v980 = vshll.u32 2102212464, %v968
        %v981 = vshrl.u32 920167782, %v969
        %v982 = vor.u32 %v980, %v981
        %v983 = vshll.u32 920167782, %v968
        %v984 = vshrl.u32 1326507024, %v969
        %v985 = vor.u32 %v983, %v984
        %vm986 = vcmp.lt.s32.totalorder %v967, 1
        %vm987 = vcmp.lt.s32.totalorder %v967, 2
        %vm988 = vcmp.lt.s32.totalorder %v967, 3
        %vm989 = vcmp.lt.s32.totalorder %v967, 4
        %v990 = vsel %vm986, %v970, %v973
        %v991 = vsel %vm989, %v979, 2102212464
        %v992 = vsel %vm988, %v976, %v991
        %v993 = vsel %vm987, %v990, %v992
        %v994 = vsel %vm986, %v973, %v976
        %v995 = vsel %vm989, %v982, 920167782
        %v996 = vsel %vm988, %v979, %v995
        %v997 = vsel %vm987, %v994, %v996
        %v998 = vsel %vm986, %v976, %v979
        %v999 = vsel %vm989, %v985, 1326507024
        %v1000 = vsel %vm988, %v982, %v999
        %v1001 = vsel %vm987, %v998, %v1000
        %v1002 = vshll.u32 %v962, 8
        %v1003 = vand.u32 %v1002, 65535
        %v1004 = vshrl.u32 %v1002, 16
        %v1005 = vand.u32 %v1001, 65535
        %v1006 = vshrl.u32 %v1001, 16
        %v1007 = vmul.u32 %v1003, %v1005
        %v1008 = vmul.u32 %v1003, %v1006
        %v1009 = vmul.u32 %v1004, %v1005
        %v1010 = vmul.u32 %v1004, %v1006
        %v1011 = vshll.u32 %v1008, 16
        %v1012 = vshrl.u32 %v1008, 16
        %v1013 = vshll.u32 %v1009, 16
        %v1014 = vshrl.u32 %v1009, 16
        %vm1015 = vc.u32 %v1007, %v1011
        %v1016 = vsel %vm1015, 1, 0
        %v1017 = vadd.s32 %v1007, %v1011
        %v1018 = vadd.s32 %v1010, %v1016
        %vm1019 = vc.u32 %v1017, %v1013
        %v1020 = vsel %vm1019, 1, 0
        %v1021 = vadd.s32 %v1017, %v1013
        %v1022 = vadd.s32 %v1018, %v1020
        %v1023 = vadd.s32 %v1022, %v1012
        %v1024 = vadd.s32 %v1023, %v1014
        %v1025 = vand.u32 %v1002, 65535
        %v1026 = vshrl.u32 %v1002, 16
        %v1027 = vand.u32 %v997, 65535
        %v1028 = vshrl.u32 %v997, 16
        %v1029 = vmul.u32 %v1025, %v1027
        %v1030 = vmul.u32 %v1025, %v1028
        %v1031 = vmul.u32 %v1026, %v1027
        %v1032 = vmul.u32 %v1026, %v1028
        %v1033 = vshll.u32 %v1030, 16
        %v1034 = vshrl.u32 %v1030, 16
        %v1035 = vshll.u32 %v1031, 16
        %v1036 = vshrl.u32 %v1031, 16
        %vm1037 = vc.u32 %v1029, %v1033
        %v1038 = vsel %vm1037, 1, 0
        %v1039 = vadd.s32 %v1029, %v1033
        %v1040 = vadd.s32 %v1032, %v1038
        %vm1041 = vc.u32 %v1039, %v1035
        %v1042 = vsel %vm1041, 1, 0
        %v1043 = vadd.s32 %v1039, %v1035
        %v1044 = vadd.s32 %v1040, %v1042
        %v1045 = vadd.s32 %v1044, %v1034
        %v1046 = vadd.s32 %v1045, %v1036
        %v1047 = vmul.u32 %v1002, %v993
        %v1048 = vadd.s32 %v1024, %v1043
        %vm1049 = vc.u32 %v1024, %v1043
        %v1050 = vadd.s32 %v1046, 1
        %v1051 = vsel %vm1049, %v1050, %v1046
        %v1052 = vadd.s32 %v1047, %v1051
        %v1053 = vadd.s32 %v1052, 536870912
        %v1054 = vshrl.u32 %v1053, 30
        %v1055 = vshll.u32 %v1054, 30
        %v1056 = vsub.s32 %v1052, %v1055
        %vm1057 = vcmp.lt.s32.totalorder %v1056, 0
        %v1058 = vsub.s32 0, %v1056
        %v1059 = vsel %vm1057, %v1058, %v1056
        %v1060 = vclz %v1059
        %v1061 = vsub.s32 %v1060, 2
        %vm1062 = vcmp.gt.s32.totalorder 0, %v1061
        %v1063 = vsel %vm1062, 0, %v1061
        %v1064 = vsub.s32 32, %v1063
        %v1065 = vshll.u32 %v1056, %v1063
        %v1066 = vshrl.u32 %v1048, %v1064
        %v1067 = vor.u32 %v1065, %v1066
        %v1068 = vsub.s32 4294967266, %v1063
        %v1069 = vadd.s32 %v1068, 127
        %v1070 = vshll.u32 %v1069, 23
        %v1071 = vor.u32 4788187, %v1070
        %v1072 = vand.u32 2147483647, %v1071
        %v1074 = vcvt.s32.f32 %v1067
        %v1075 = vmul.f32 %v1074, %v1072
        %v1076 = vxor.u32 %v1075, 2147483648
        %v1077 = vsel %vm956, %v1076, %v1075
        %v1078 = vsub.s32 4, %v1054
        %v1079 = vsel %vm956, %v1078, %v1054
        %v1080 = vsel %vm955, %v459, %v1077
        %v1081 = vsel %vm955, 0, %v1079
        %v1082 = vmul.f32 %v1080, %v1080
        %v1083 = vmul.f32 %v1082, -0.001358992
        %v1084 = vadd.f32 %v1083, 0.041655596
        %v1085 = vmul.f32 %v1082, %v1084
        %v1086 = vadd.f32 %v1085, -0.4999988
        %v1087 = vmul.f32 %v1082, %v1086
        %v1088 = vadd.f32 1.0, %v1087
        %v1089 = vmul.f32 %v1080, %v1080
        %v1090 = vmul.f32 %v1089, -0.00019511016
        %v1091 = vadd.f32 %v1090, 0.008332121
        %v1092 = vmul.f32 %v1089, %v1091
        %v1093 = vadd.f32 %v1092, -0.16666654
        %v1094 = vmul.f32 %v1089, %v1093
        %v1095 = vadd.f32 %v1094, 1.0
        %v1096 = vmul.f32 %v1095, %v1080
        %vm1097 = vweird.f32 %v459
        %v1098 = vadd.s32 %v1081, 3
        %v1099 = vand.u32 %v1098, 3
        %vm1100 = vcmp.lt.s32.totalorder %v1099, 2
        %vm1101 = vcmp.eq.s32.totalorder %v1099, 0
        %v1102 = vxor.u32 %v1096, 2147483648
        %v1103 = vsel %vm1101, %v1088, %v1102
        %vm1104 = vcmp.eq.s32.totalorder %v1099, 2
        %v1105 = vxor.u32 %v1088, 2147483648
        %v1106 = vsel %vm1104, %v1105, %v1096
        %v1107 = vsel %vm1100, %v1103, %v1106
        %v1108 = vsel %vm1097, nan, %v1107
        %v1109 = vand.u32 2147483647, %v462
        %vm1110 = vcmp.le.f32.partialorder %v1109, 0.7853982
        %vm1111 = vcmp.lt.s32.totalorder %v462, 0
        %v1112 = vand.u32 %v462, 2139095040
        %v1113 = vshrl.u32 %v1112, 23
        %v1114 = vsub.s32 %v1113, 127
        %v1115 = vand.u32 2147483647, %v462
        %v1116 = vand.u32 %v1115, 8388607
        %v1117 = vor.u32 %v1116, 8388608
        %v1118 = vsub.s32 0, %v1117
        %v1119 = vadd.s32 %v1114, 1
        %vm1120 = vcmp.gt.s32.totalorder %v1119, 0
        %v1121 = vsel %vm1120, %v1119, 0
        %v1122 = vshrl.u32 %v1121, 5
        %v1123 = vand.u32 %v1121, 31
        %v1124 = vsub.s32 32, %v1123
        %v1125 = vshrl.u32 683565275, %v1124
        %v1126 = vshll.u32 683565275, %v1123
        %v1127 = vshrl.u32 2475754826, %v1124
        %v1128 = vor.u32 %v1126, %v1127
        %v1129 = vshll.u32 2475754826, %v1123
        %v1130 = vshrl.u32 2131351028, %v1124
        %v1131 = vor.u32 %v1129, %v1130
        %v1132 = vshll.u32 2131351028, %v1123
        %v1133 = vshrl.u32 2102212464, %v1124
        %v1134 = vor.u32 %v1132, %v1133
        %v1135 = vshll.u32 2102212464, %v1123
        %v1136 = vshrl.u32 920167782, %v1124
        %v1137 = vor.u32 %v1135, %v1136
        %v1138 = vshll.u32 920167782, %v1123
        %v1139 = vshrl.u32 1326507024, %v1124
        %v1140 = vor.u32 %v1138, %v1139
        %vm1141 = vcmp.lt.s32.totalorder %v1122, 1
        %vm1142 = vcmp.lt.s32.totalorder %v1122, 2
        %vm1143 = vcmp.lt.s32.totalorder %v1122, 3
        %vm1144 = vcmp.lt.s32.totalorder %v1122, 4
        %v1145 = vsel %vm1141, %v1125, %v1128
        %v1146 = vsel %vm1144, %v1134, 2102212464
        %v1147 = vsel %vm1143, %v1131, %v1146
        %v1148 = vsel %vm1142, %v1145, %v1147
        %v1149 = vsel %vm1141, %v1128, %v1131
        %v1150 = vsel %vm1144, %v1137, 920167782
        %v1151 = vsel %vm1143, %v1134, %v1150
        %v1152 = vsel %vm1142, %v1149, %v1151
        %v1153 = vsel %vm1141, %v1131, %v1134
        %v1154 = vsel %vm1144, %v1140, 1326507024
        %v1155 = vsel %vm1143, %v1137, %v1154
        %v1156 = vsel %vm1142, %v1153, %v1155
        %v1157 = vshll.u32 %v1117, 8
        %v1158 = vand.u32 %v1157, 65535
        %v1159 = vshrl.u32 %v1157, 16
        %v1160 = vand.u32 %v1156, 65535
        %v1161 = vshrl.u32 %v1156, 16
        %v1162 = vmul.u32 %v1158, %v1160
        %v1163 = vmul.u32 %v1158, %v1161
        %v1164 = vmul.u32 %v1159, %v1160
        %v1165 = vmul.u32 %v1159, %v1161
        %v1166 = vshll.u32 %v1163, 16
        %v1167 = vshrl.u32 %v1163, 16
        %v1168 = vshll.u32 %v1164, 16
        %v1169 = vshrl.u32 %v1164, 16
        %vm1170 = vc.u32 %v1162, %v1166
        %v1171 = vsel %vm1170, 1, 0
        %v1172 = vadd.s32 %v1162, %v1166
        %v1173 = vadd.s32 %v1165, %v1171
        %vm1174 = vc.u32 %v1172, %v1168
        %v1175 = vsel %vm1174, 1, 0
        %v1176 = vadd.s32 %v1172, %v1168
        %v1177 = vadd.s32 %v1173, %v1175
        %v1178 = vadd.s32 %v1177, %v1167
        %v1179 = vadd.s32 %v1178, %v1169
        %v1180 = vand.u32 %v1157, 65535
        %v1181 = vshrl.u32 %v1157, 16
        %v1182 = vand.u32 %v1152, 65535
        %v1183 = vshrl.u32 %v1152, 16
        %v1184 = vmul.u32 %v1180, %v1182
        %v1185 = vmul.u32 %v1180, %v1183
        %v1186 = vmul.u32 %v1181, %v1182
        %v1187 = vmul.u32 %v1181, %v1183
        %v1188 = vshll.u32 %v1185, 16
        %v1189 = vshrl.u32 %v1185, 16
        %v1190 = vshll.u32 %v1186, 16
        %v1191 = vshrl.u32 %v1186, 16
        %vm1192 = vc.u32 %v1184, %v1188
        %v1193 = vsel %vm1192, 1, 0
        %v1194 = vadd.s32 %v1184, %v1188
        %v1195 = vadd.s32 %v1187, %v1193
        %vm1196 = vc.u32 %v1194, %v1190
        %v1197 = vsel %vm1196, 1, 0
        %v1198 = vadd.s32 %v1194, %v1190
        %v1199 = vadd.s32 %v1195, %v1197
        %v1200 = vadd.s32 %v1199, %v1189
        %v1201 = vadd.s32 %v1200, %v1191
        %v1202 = vmul.u32 %v1157, %v1148
        %v1203 = vadd.s32 %v1179, %v1198
        %vm1204 = vc.u32 %v1179, %v1198
        %v1205 = vadd.s32 %v1201, 1
        %v1206 = vsel %vm1204, %v1205, %v1201
        %v1207 = vadd.s32 %v1202, %v1206
        %v1208 = vadd.s32 %v1207, 536870912
        %v1209 = vshrl.u32 %v1208, 30
        %v1210 = vshll.u32 %v1209, 30
        %v1211 = vsub.s32 %v1207, %v1210
        %vm1212 = vcmp.lt.s32.totalorder %v1211, 0
        %v1213 = vsub.s32 0, %v1211
        %v1214 = vsel %vm1212, %v1213, %v1211
        %v1215 = vclz %v1214
        %v1216 = vsub.s32 %v1215, 2
        %vm1217 = vcmp.gt.s32.totalorder 0, %v1216
        %v1218 = vsel %vm1217, 0, %v1216
        %v1219 = vsub.s32 32, %v1218
        %v1220 = vshll.u32 %v1211, %v1218
        %v1221 = vshrl.u32 %v1203, %v1219
        %v1222 = vor.u32 %v1220, %v1221
        %v1223 = vsub.s32 4294967266, %v1218
        %v1224 = vadd.s32 %v1223, 127
        %v1225 = vshll.u32 %v1224, 23
        %v1226 = vor.u32 4788187, %v1225
        %v1227 = vand.u32 2147483647, %v1226
        %v1229 = vcvt.s32.f32 %v1222
        %v1230 = vmul.f32 %v1229, %v1227
        %v1231 = vxor.u32 %v1230, 2147483648
        %v1232 = vsel %vm1111, %v1231, %v1230
        %v1233 = vsub.s32 4, %v1209
        %v1234 = vsel %vm1111, %v1233, %v1209
        %v1235 = vsel %vm1110, %v462, %v1232
        %v1236 = vsel %vm1110, 0, %v1234
        %v1237 = vmul.f32 %v1235, %v1235
        %v1238 = vmul.f32 %v1237, -0.001358992
        %v1239 = vadd.f32 %v1238, 0.041655596
        %v1240 = vmul.f32 %v1237, %v1239
        %v1241 = vadd.f32 %v1240, -0.4999988
        %v1242 = vmul.f32 %v1237, %v1241
        %v1243 = vadd.f32 1.0, %v1242
        %v1244 = vmul.f32 %v1235, %v1235
        %v1245 = vmul.f32 %v1244, -0.00019511016
        %v1246 = vadd.f32 %v1245, 0.008332121
        %v1247 = vmul.f32 %v1244, %v1246
        %v1248 = vadd.f32 %v1247, -0.16666654
        %v1249 = vmul.f32 %v1244, %v1248
        %v1250 = vadd.f32 %v1249, 1.0
        %v1251 = vmul.f32 %v1250, %v1235
        %vm1252 = vweird.f32 %v462
        %v1253 = vadd.s32 %v1236, 3
        %v1254 = vand.u32 %v1253, 3
        %vm1255 = vcmp.lt.s32.totalorder %v1254, 2
        %vm1256 = vcmp.eq.s32.totalorder %v1254, 0
        %v1257 = vxor.u32 %v1251, 2147483648
        %v1258 = vsel %vm1256, %v1243, %v1257
        %vm1259 = vcmp.eq.s32.totalorder %v1254, 2
        %v1260 = vxor.u32 %v1243, 2147483648
        %v1261 = vsel %vm1259, %v1260, %v1251
        %v1262 = vsel %vm1255, %v1258, %v1261
        %v1263 = vsel %vm1252, nan, %v1262
        %v1264 = vand.u32 2147483647, %v465
        %vm1265 = vcmp.le.f32.partialorder %v1264, 0.7853982
        %vm1266 = vcmp.lt.s32.totalorder %v465, 0
        %v1267 = vand.u32 %v465, 2139095040
        %v1268 = vshrl.u32 %v1267, 23
        %v1269 = vsub.s32 %v1268, 127
        %v1270 = vand.u32 2147483647, %v465
        %v1271 = vand.u32 %v1270, 8388607
        %v1272 = vor.u32 %v1271, 8388608
        %v1273 = vsub.s32 0, %v1272
        %v1274 = vadd.s32 %v1269, 1
        %vm1275 = vcmp.gt.s32.totalorder %v1274, 0
        %v1276 = vsel %vm1275, %v1274, 0
        %v1277 = vshrl.u32 %v1276, 5
        %v1278 = vand.u32 %v1276, 31
        %v1279 = vsub.s32 32, %v1278
        %v1280 = vshrl.u32 683565275, %v1279
        %v1281 = vshll.u32 683565275, %v1278
        %v1282 = vshrl.u32 2475754826, %v1279
        %v1283 = vor.u32 %v1281, %v1282
        %v1284 = vshll.u32 2475754826, %v1278
        %v1285 = vshrl.u32 2131351028, %v1279
        %v1286 = vor.u32 %v1284, %v1285
        %v1287 = vshll.u32 2131351028, %v1278
        %v1288 = vshrl.u32 2102212464, %v1279
        %v1289 = vor.u32 %v1287, %v1288
        %v1290 = vshll.u32 2102212464, %v1278
        %v1291 = vshrl.u32 920167782, %v1279
        %v1292 = vor.u32 %v1290, %v1291
        %v1293 = vshll.u32 920167782, %v1278
        %v1294 = vshrl.u32 1326507024, %v1279
        %v1295 = vor.u32 %v1293, %v1294
        %vm1296 = vcmp.lt.s32.totalorder %v1277, 1
        %vm1297 = vcmp.lt.s32.totalorder %v1277, 2
        %vm1298 = vcmp.lt.s32.totalorder %v1277, 3
        %vm1299 = vcmp.lt.s32.totalorder %v1277, 4
        %v1300 = vsel %vm1296, %v1280, %v1283
        %v1301 = vsel %vm1299, %v1289, 2102212464
        %v1302 = vsel %vm1298, %v1286, %v1301
        %v1303 = vsel %vm1297, %v1300, %v1302
        %v1304 = vsel %vm1296, %v1283, %v1286
        %v1305 = vsel %vm1299, %v1292, 920167782
        %v1306 = vsel %vm1298, %v1289, %v1305
        %v1307 = vsel %vm1297, %v1304, %v1306
        %v1308 = vsel %vm1296, %v1286, %v1289
        %v1309 = vsel %vm1299, %v1295, 1326507024
        %v1310 = vsel %vm1298, %v1292, %v1309
        %v1311 = vsel %vm1297, %v1308, %v1310
        %v1312 = vshll.u32 %v1272, 8
        %v1313 = vand.u32 %v1312, 65535
        %v1314 = vshrl.u32 %v1312, 16
        %v1315 = vand.u32 %v1311, 65535
        %v1316 = vshrl.u32 %v1311, 16
        %v1317 = vmul.u32 %v1313, %v1315
        %v1318 = vmul.u32 %v1313, %v1316
        %v1319 = vmul.u32 %v1314, %v1315
        %v1320 = vmul.u32 %v1314, %v1316
        %v1321 = vshll.u32 %v1318, 16
        %v1322 = vshrl.u32 %v1318, 16
        %v1323 = vshll.u32 %v1319, 16
        %v1324 = vshrl.u32 %v1319, 16
        %vm1325 = vc.u32 %v1317, %v1321
        %v1326 = vsel %vm1325, 1, 0
        %v1327 = vadd.s32 %v1317, %v1321
        %v1328 = vadd.s32 %v1320, %v1326
        %vm1329 = vc.u32 %v1327, %v1323
        %v1330 = vsel %vm1329, 1, 0
        %v1331 = vadd.s32 %v1327, %v1323
        %v1332 = vadd.s32 %v1328, %v1330
        %v1333 = vadd.s32 %v1332, %v1322
        %v1334 = vadd.s32 %v1333, %v1324
        %v1335 = vand.u32 %v1312, 65535
        %v1336 = vshrl.u32 %v1312, 16
        %v1337 = vand.u32 %v1307, 65535
        %v1338 = vshrl.u32 %v1307, 16
        %v1339 = vmul.u32 %v1335, %v1337
        %v1340 = vmul.u32 %v1335, %v1338
        %v1341 = vmul.u32 %v1336, %v1337
        %v1342 = vmul.u32 %v1336, %v1338
        %v1343 = vshll.u32 %v1340, 16
        %v1344 = vshrl.u32 %v1340, 16
        %v1345 = vshll.u32 %v1341, 16
        %v1346 = vshrl.u32 %v1341, 16
        %vm1347 = vc.u32 %v1339, %v1343
        %v1348 = vsel %vm1347, 1, 0
        %v1349 = vadd.s32 %v1339, %v1343
        %v1350 = vadd.s32 %v1342, %v1348
        %vm1351 = vc.u32 %v1349, %v1345
        %v1352 = vsel %vm1351, 1, 0
        %v1353 = vadd.s32 %v1349, %v1345
        %v1354 = vadd.s32 %v1350, %v1352
        %v1355 = vadd.s32 %v1354, %v1344
        %v1356 = vadd.s32 %v1355, %v1346
        %v1357 = vmul.u32 %v1312, %v1303
        %v1358 = vadd.s32 %v1334, %v1353
        %vm1359 = vc.u32 %v1334, %v1353
        %v1360 = vadd.s32 %v1356, 1
        %v1361 = vsel %vm1359, %v1360, %v1356
        %v1362 = vadd.s32 %v1357, %v1361
        %v1363 = vadd.s32 %v1362, 536870912
        %v1364 = vshrl.u32 %v1363, 30
        %v1365 = vshll.u32 %v1364, 30
        %v1366 = vsub.s32 %v1362, %v1365
        %vm1367 = vcmp.lt.s32.totalorder %v1366, 0
        %v1368 = vsub.s32 0, %v1366
        %v1369 = vsel %vm1367, %v1368, %v1366
        %v1370 = vclz %v1369
        %v1371 = vsub.s32 %v1370, 2
        %vm1372 = vcmp.gt.s32.totalorder 0, %v1371
        %v1373 = vsel %vm1372, 0, %v1371
        %v1374 = vsub.s32 32, %v1373
        %v1375 = vshll.u32 %v1366, %v1373
        %v1376 = vshrl.u32 %v1358, %v1374
        %v1377 = vor.u32 %v1375, %v1376
        %v1378 = vsub.s32 4294967266, %v1373
        %v1379 = vadd.s32 %v1378, 127
        %v1380 = vshll.u32 %v1379, 23
        %v1381 = vor.u32 4788187, %v1380
        %v1382 = vand.u32 2147483647, %v1381
        %v1384 = vcvt.s32.f32 %v1377
        %v1385 = vmul.f32 %v1384, %v1382
        %v1386 = vxor.u32 %v1385, 2147483648
        %v1387 = vsel %vm1266, %v1386, %v1385
        %v1388 = vsub.s32 4, %v1364
        %v1389 = vsel %vm1266, %v1388, %v1364
        %v1390 = vsel %vm1265, %v465, %v1387
        %v1391 = vsel %vm1265, 0, %v1389
        %v1392 = vmul.f32 %v1390, %v1390
        %v1393 = vmul.f32 %v1392, -0.001358992
        %v1394 = vadd.f32 %v1393, 0.041655596
        %v1395 = vmul.f32 %v1392, %v1394
        %v1396 = vadd.f32 %v1395, -0.4999988
        %v1397 = vmul.f32 %v1392, %v1396
        %v1398 = vadd.f32 1.0, %v1397
        %v1399 = vmul.f32 %v1390, %v1390
        %v1400 = vmul.f32 %v1399, -0.00019511016
        %v1401 = vadd.f32 %v1400, 0.008332121
        %v1402 = vmul.f32 %v1399, %v1401
        %v1403 = vadd.f32 %v1402, -0.16666654
        %v1404 = vmul.f32 %v1399, %v1403
        %v1405 = vadd.f32 %v1404, 1.0
        %v1406 = vmul.f32 %v1405, %v1390
        %vm1407 = vweird.f32 %v465
        %v1408 = vadd.s32 %v1391, 3
        %v1409 = vand.u32 %v1408, 3
        %vm1410 = vcmp.lt.s32.totalorder %v1409, 2
        %vm1411 = vcmp.eq.s32.totalorder %v1409, 0
        %v1412 = vxor.u32 %v1406, 2147483648
        %v1413 = vsel %vm1411, %v1398, %v1412
        %vm1414 = vcmp.eq.s32.totalorder %v1409, 2
        %v1415 = vxor.u32 %v1398, 2147483648
        %v1416 = vsel %vm1414, %v1415, %v1406
        %v1417 = vsel %vm1410, %v1413, %v1416
        %v1418 = vsel %vm1407, nan, %v1417
        %v1419 = vand.u32 2147483647, %v468
        %vm1420 = vcmp.le.f32.partialorder %v1419, 0.7853982
        %vm1421 = vcmp.lt.s32.totalorder %v468, 0
        %v1422 = vand.u32 %v468, 2139095040
        %v1423 = vshrl.u32 %v1422, 23
        %v1424 = vsub.s32 %v1423, 127
        %v1425 = vand.u32 2147483647, %v468
        %v1426 = vand.u32 %v1425, 8388607
        %v1427 = vor.u32 %v1426, 8388608
        %v1428 = vsub.s32 0, %v1427
        %v1429 = vadd.s32 %v1424, 1
        %vm1430 = vcmp.gt.s32.totalorder %v1429, 0
        %v1431 = vsel %vm1430, %v1429, 0
        %v1432 = vshrl.u32 %v1431, 5
        %v1433 = vand.u32 %v1431, 31
        %v1434 = vsub.s32 32, %v1433
        %v1435 = vshrl.u32 683565275, %v1434
        %v1436 = vshll.u32 683565275, %v1433
        %v1437 = vshrl.u32 2475754826, %v1434
        %v1438 = vor.u32 %v1436, %v1437
        %v1439 = vshll.u32 2475754826, %v1433
        %v1440 = vshrl.u32 2131351028, %v1434
        %v1441 = vor.u32 %v1439, %v1440
        %v1442 = vshll.u32 2131351028, %v1433
        %v1443 = vshrl.u32 2102212464, %v1434
        %v1444 = vor.u32 %v1442, %v1443
        %v1445 = vshll.u32 2102212464, %v1433
        %v1446 = vshrl.u32 920167782, %v1434
        %v1447 = vor.u32 %v1445, %v1446
        %v1448 = vshll.u32 920167782, %v1433
        %v1449 = vshrl.u32 1326507024, %v1434
        %v1450 = vor.u32 %v1448, %v1449
        %vm1451 = vcmp.lt.s32.totalorder %v1432, 1
        %vm1452 = vcmp.lt.s32.totalorder %v1432, 2
        %vm1453 = vcmp.lt.s32.totalorder %v1432, 3
        %vm1454 = vcmp.lt.s32.totalorder %v1432, 4
        %v1455 = vsel %vm1451, %v1435, %v1438
        %v1456 = vsel %vm1454, %v1444, 2102212464
        %v1457 = vsel %vm1453, %v1441, %v1456
        %v1458 = vsel %vm1452, %v1455, %v1457
        %v1459 = vsel %vm1451, %v1438, %v1441
        %v1460 = vsel %vm1454, %v1447, 920167782
        %v1461 = vsel %vm1453, %v1444, %v1460
        %v1462 = vsel %vm1452, %v1459, %v1461
        %v1463 = vsel %vm1451, %v1441, %v1444
        %v1464 = vsel %vm1454, %v1450, 1326507024
        %v1465 = vsel %vm1453, %v1447, %v1464
        %v1466 = vsel %vm1452, %v1463, %v1465
        %v1467 = vshll.u32 %v1427, 8
        %v1468 = vand.u32 %v1467, 65535
        %v1469 = vshrl.u32 %v1467, 16
        %v1470 = vand.u32 %v1466, 65535
        %v1471 = vshrl.u32 %v1466, 16
        %v1472 = vmul.u32 %v1468, %v1470
        %v1473 = vmul.u32 %v1468, %v1471
        %v1474 = vmul.u32 %v1469, %v1470
        %v1475 = vmul.u32 %v1469, %v1471
        %v1476 = vshll.u32 %v1473, 16
        %v1477 = vshrl.u32 %v1473, 16
        %v1478 = vshll.u32 %v1474, 16
        %v1479 = vshrl.u32 %v1474, 16
        %vm1480 = vc.u32 %v1472, %v1476
        %v1481 = vsel %vm1480, 1, 0
        %v1482 = vadd.s32 %v1472, %v1476
        %v1483 = vadd.s32 %v1475, %v1481
        %vm1484 = vc.u32 %v1482, %v1478
        %v1485 = vsel %vm1484, 1, 0
        %v1486 = vadd.s32 %v1482, %v1478
        %v1487 = vadd.s32 %v1483, %v1485
        %v1488 = vadd.s32 %v1487, %v1477
        %v1489 = vadd.s32 %v1488, %v1479
        %v1490 = vand.u32 %v1467, 65535
        %v1491 = vshrl.u32 %v1467, 16
        %v1492 = vand.u32 %v1462, 65535
        %v1493 = vshrl.u32 %v1462, 16
        %v1494 = vmul.u32 %v1490, %v1492
        %v1495 = vmul.u32 %v1490, %v1493
        %v1496 = vmul.u32 %v1491, %v1492
        %v1497 = vmul.u32 %v1491, %v1493
        %v1498 = vshll.u32 %v1495, 16
        %v1499 = vshrl.u32 %v1495, 16
        %v1500 = vshll.u32 %v1496, 16
        %v1501 = vshrl.u32 %v1496, 16
        %vm1502 = vc.u32 %v1494, %v1498
        %v1503 = vsel %vm1502, 1, 0
        %v1504 = vadd.s32 %v1494, %v1498
        %v1505 = vadd.s32 %v1497, %v1503
        %vm1506 = vc.u32 %v1504, %v1500
        %v1507 = vsel %vm1506, 1, 0
        %v1508 = vadd.s32 %v1504, %v1500
        %v1509 = vadd.s32 %v1505, %v1507
        %v1510 = vadd.s32 %v1509, %v1499
        %v1511 = vadd.s32 %v1510, %v1501
        %v1512 = vmul.u32 %v1467, %v1458
        %v1513 = vadd.s32 %v1489, %v1508
        %vm1514 = vc.u32 %v1489, %v1508
        %v1515 = vadd.s32 %v1511, 1
        %v1516 = vsel %vm1514, %v1515, %v1511
        %v1517 = vadd.s32 %v1512, %v1516
        %v1518 = vadd.s32 %v1517, 536870912
        %v1519 = vshrl.u32 %v1518, 30
        %v1520 = vshll.u32 %v1519, 30
        %v1521 = vsub.s32 %v1517, %v1520
        %vm1522 = vcmp.lt.s32.totalorder %v1521, 0
        %v1523 = vsub.s32 0, %v1521
        %v1524 = vsel %vm1522, %v1523, %v1521
        %v1525 = vclz %v1524
        %v1526 = vsub.s32 %v1525, 2
        %vm1527 = vcmp.gt.s32.totalorder 0, %v1526
        %v1528 = vsel %vm1527, 0, %v1526
        %v1529 = vsub.s32 32, %v1528
        %v1530 = vshll.u32 %v1521, %v1528
        %v1531 = vshrl.u32 %v1513, %v1529
        %v1532 = vor.u32 %v1530, %v1531
        %v1533 = vsub.s32 4294967266, %v1528
        %v1534 = vadd.s32 %v1533, 127
        %v1535 = vshll.u32 %v1534, 23
        %v1536 = vor.u32 4788187, %v1535
        %v1537 = vand.u32 2147483647, %v1536
        %v1539 = vcvt.s32.f32 %v1532
        %v1540 = vmul.f32 %v1539, %v1537
        %v1541 = vxor.u32 %v1540, 2147483648
        %v1542 = vsel %vm1421, %v1541, %v1540
        %v1543 = vsub.s32 4, %v1519
        %v1544 = vsel %vm1421, %v1543, %v1519
        %v1545 = vsel %vm1420, %v468, %v1542
        %v1546 = vsel %vm1420, 0, %v1544
        %v1547 = vmul.f32 %v1545, %v1545
        %v1548 = vmul.f32 %v1547, -0.001358992
        %v1549 = vadd.f32 %v1548, 0.041655596
        %v1550 = vmul.f32 %v1547, %v1549
        %v1551 = vadd.f32 %v1550, -0.4999988
        %v1552 = vmul.f32 %v1547, %v1551
        %v1553 = vadd.f32 1.0, %v1552
        %v1554 = vmul.f32 %v1545, %v1545
        %v1555 = vmul.f32 %v1554, -0.00019511016
        %v1556 = vadd.f32 %v1555, 0.008332121
        %v1557 = vmul.f32 %v1554, %v1556
        %v1558 = vadd.f32 %v1557, -0.16666654
        %v1559 = vmul.f32 %v1554, %v1558
        %v1560 = vadd.f32 %v1559, 1.0
        %v1561 = vmul.f32 %v1560, %v1545
        %vm1562 = vweird.f32 %v468
        %v1563 = vadd.s32 %v1546, 3
        %v1564 = vand.u32 %v1563, 3
        %vm1565 = vcmp.lt.s32.totalorder %v1564, 2
        %vm1566 = vcmp.eq.s32.totalorder %v1564, 0
        %v1567 = vxor.u32 %v1561, 2147483648
        %v1568 = vsel %vm1566, %v1553, %v1567
        %vm1569 = vcmp.eq.s32.totalorder %v1564, 2
        %v1570 = vxor.u32 %v1553, 2147483648
        %v1571 = vsel %vm1569, %v1570, %v1561
        %v1572 = vsel %vm1565, %v1568, %v1571
        %v1573 = vsel %vm1562, nan, %v1572
        %v1574 = vand.u32 2147483647, %v471
        %vm1575 = vcmp.le.f32.partialorder %v1574, 0.7853982
        %vm1576 = vcmp.lt.s32.totalorder %v471, 0
        %v1577 = vand.u32 %v471, 2139095040
        %v1578 = vshrl.u32 %v1577, 23
        %v1579 = vsub.s32 %v1578, 127
        %v1580 = vand.u32 2147483647, %v471
        %v1581 = vand.u32 %v1580, 8388607
        %v1582 = vor.u32 %v1581, 8388608
        %v1583 = vsub.s32 0, %v1582
        %v1584 = vadd.s32 %v1579, 1
        %vm1585 = vcmp.gt.s32.totalorder %v1584, 0
        %v1586 = vsel %vm1585, %v1584, 0
        %v1587 = vshrl.u32 %v1586, 5
        %v1588 = vand.u32 %v1586, 31
        %v1589 = vsub.s32 32, %v1588
        %v1590 = vshrl.u32 683565275, %v1589
        %v1591 = vshll.u32 683565275, %v1588
        %v1592 = vshrl.u32 2475754826, %v1589
        %v1593 = vor.u32 %v1591, %v1592
        %v1594 = vshll.u32 2475754826, %v1588
        %v1595 = vshrl.u32 2131351028, %v1589
        %v1596 = vor.u32 %v1594, %v1595
        %v1597 = vshll.u32 2131351028, %v1588
        %v1598 = vshrl.u32 2102212464, %v1589
        %v1599 = vor.u32 %v1597, %v1598
        %v1600 = vshll.u32 2102212464, %v1588
        %v1601 = vshrl.u32 920167782, %v1589
        %v1602 = vor.u32 %v1600, %v1601
        %v1603 = vshll.u32 920167782, %v1588
        %v1604 = vshrl.u32 1326507024, %v1589
        %v1605 = vor.u32 %v1603, %v1604
        %vm1606 = vcmp.lt.s32.totalorder %v1587, 1
        %vm1607 = vcmp.lt.s32.totalorder %v1587, 2
        %vm1608 = vcmp.lt.s32.totalorder %v1587, 3
        %vm1609 = vcmp.lt.s32.totalorder %v1587, 4
        %v1610 = vsel %vm1606, %v1590, %v1593
        %v1611 = vsel %vm1609, %v1599, 2102212464
        %v1612 = vsel %vm1608, %v1596, %v1611
        %v1613 = vsel %vm1607, %v1610, %v1612
        %v1614 = vsel %vm1606, %v1593, %v1596
        %v1615 = vsel %vm1609, %v1602, 920167782
        %v1616 = vsel %vm1608, %v1599, %v1615
        %v1617 = vsel %vm1607, %v1614, %v1616
        %v1618 = vsel %vm1606, %v1596, %v1599
        %v1619 = vsel %vm1609, %v1605, 1326507024
        %v1620 = vsel %vm1608, %v1602, %v1619
        %v1621 = vsel %vm1607, %v1618, %v1620
        %v1622 = vshll.u32 %v1582, 8
        %v1623 = vand.u32 %v1622, 65535
        %v1624 = vshrl.u32 %v1622, 16
        %v1625 = vand.u32 %v1621, 65535
        %v1626 = vshrl.u32 %v1621, 16
        %v1627 = vmul.u32 %v1623, %v1625
        %v1628 = vmul.u32 %v1623, %v1626
        %v1629 = vmul.u32 %v1624, %v1625
        %v1630 = vmul.u32 %v1624, %v1626
        %v1631 = vshll.u32 %v1628, 16
        %v1632 = vshrl.u32 %v1628, 16
        %v1633 = vshll.u32 %v1629, 16
        %v1634 = vshrl.u32 %v1629, 16
        %vm1635 = vc.u32 %v1627, %v1631
        %v1636 = vsel %vm1635, 1, 0
        %v1637 = vadd.s32 %v1627, %v1631
        %v1638 = vadd.s32 %v1630, %v1636
        %vm1639 = vc.u32 %v1637, %v1633
        %v1640 = vsel %vm1639, 1, 0
        %v1641 = vadd.s32 %v1637, %v1633
        %v1642 = vadd.s32 %v1638, %v1640
        %v1643 = vadd.s32 %v1642, %v1632
        %v1644 = vadd.s32 %v1643, %v1634
        %v1645 = vand.u32 %v1622, 65535
        %v1646 = vshrl.u32 %v1622, 16
        %v1647 = vand.u32 %v1617, 65535
        %v1648 = vshrl.u32 %v1617, 16
        %v1649 = vmul.u32 %v1645, %v1647
        %v1650 = vmul.u32 %v1645, %v1648
        %v1651 = vmul.u32 %v1646, %v1647
        %v1652 = vmul.u32 %v1646, %v1648
        %v1653 = vshll.u32 %v1650, 16
        %v1654 = vshrl.u32 %v1650, 16
        %v1655 = vshll.u32 %v1651, 16
        %v1656 = vshrl.u32 %v1651, 16
        %vm1657 = vc.u32 %v1649, %v1653
        %v1658 = vsel %vm1657, 1, 0
        %v1659 = vadd.s32 %v1649, %v1653
        %v1660 = vadd.s32 %v1652, %v1658
        %vm1661 = vc.u32 %v1659, %v1655
        %v1662 = vsel %vm1661, 1, 0
        %v1663 = vadd.s32 %v1659, %v1655
        %v1664 = vadd.s32 %v1660, %v1662
        %v1665 = vadd.s32 %v1664, %v1654
        %v1666 = vadd.s32 %v1665, %v1656
        %v1667 = vmul.u32 %v1622, %v1613
        %v1668 = vadd.s32 %v1644, %v1663
        %vm1669 = vc.u32 %v1644, %v1663
        %v1670 = vadd.s32 %v1666, 1
        %v1671 = vsel %vm1669, %v1670, %v1666
        %v1672 = vadd.s32 %v1667, %v1671
        %v1673 = vadd.s32 %v1672, 536870912
        %v1674 = vshrl.u32 %v1673, 30
        %v1675 = vshll.u32 %v1674, 30
        %v1676 = vsub.s32 %v1672, %v1675
        %vm1677 = vcmp.lt.s32.totalorder %v1676, 0
        %v1678 = vsub.s32 0, %v1676
        %v1679 = vsel %vm1677, %v1678, %v1676
        %v1680 = vclz %v1679
        %v1681 = vsub.s32 %v1680, 2
        %vm1682 = vcmp.gt.s32.totalorder 0, %v1681
        %v1683 = vsel %vm1682, 0, %v1681
        %v1684 = vsub.s32 32, %v1683
        %v1685 = vshll.u32 %v1676, %v1683
        %v1686 = vshrl.u32 %v1668, %v1684
        %v1687 = vor.u32 %v1685, %v1686
        %v1688 = vsub.s32 4294967266, %v1683
        %v1689 = vadd.s32 %v1688, 127
        %v1690 = vshll.u32 %v1689, 23
        %v1691 = vor.u32 4788187, %v1690
        %v1692 = vand.u32 2147483647, %v1691
        %v1694 = vcvt.s32.f32 %v1687
        %v1695 = vmul.f32 %v1694, %v1692
        %v1696 = vxor.u32 %v1695, 2147483648
        %v1697 = vsel %vm1576, %v1696, %v1695
        %v1698 = vsub.s32 4, %v1674
        %v1699 = vsel %vm1576, %v1698, %v1674
        %v1700 = vsel %vm1575, %v471, %v1697
        %v1701 = vsel %vm1575, 0, %v1699
        %v1702 = vmul.f32 %v1700, %v1700
        %v1703 = vmul.f32 %v1702, -0.001358992
        %v1704 = vadd.f32 %v1703, 0.041655596
        %v1705 = vmul.f32 %v1702, %v1704
        %v1706 = vadd.f32 %v1705, -0.4999988
        %v1707 = vmul.f32 %v1702, %v1706
        %v1708 = vadd.f32 1.0, %v1707
        %v1709 = vmul.f32 %v1700, %v1700
        %v1710 = vmul.f32 %v1709, -0.00019511016
        %v1711 = vadd.f32 %v1710, 0.008332121
        %v1712 = vmul.f32 %v1709, %v1711
        %v1713 = vadd.f32 %v1712, -0.16666654
        %v1714 = vmul.f32 %v1709, %v1713
        %v1715 = vadd.f32 %v1714, 1.0
        %v1716 = vmul.f32 %v1715, %v1700
        %vm1717 = vweird.f32 %v471
        %v1718 = vadd.s32 %v1701, 3
        %v1719 = vand.u32 %v1718, 3
        %vm1720 = vcmp.lt.s32.totalorder %v1719, 2
        %vm1721 = vcmp.eq.s32.totalorder %v1719, 0
        %v1722 = vxor.u32 %v1716, 2147483648
        %v1723 = vsel %vm1721, %v1708, %v1722
        %vm1724 = vcmp.eq.s32.totalorder %v1719, 2
        %v1725 = vxor.u32 %v1708, 2147483648
        %v1726 = vsel %vm1724, %v1725, %v1716
        %v1727 = vsel %vm1720, %v1723, %v1726
        %v1728 = vsel %vm1717, nan, %v1727
        %v1729 = vand.u32 2147483647, %v474
        %vm1730 = vcmp.le.f32.partialorder %v1729, 0.7853982
        %vm1731 = vcmp.lt.s32.totalorder %v474, 0
        %v1732 = vand.u32 %v474, 2139095040
        %v1733 = vshrl.u32 %v1732, 23
        %v1734 = vsub.s32 %v1733, 127
        %v1735 = vand.u32 2147483647, %v474
        %v1736 = vand.u32 %v1735, 8388607
        %v1737 = vor.u32 %v1736, 8388608
        %v1738 = vsub.s32 0, %v1737
        %v1739 = vadd.s32 %v1734, 1
        %vm1740 = vcmp.gt.s32.totalorder %v1739, 0
        %v1741 = vsel %vm1740, %v1739, 0
        %v1742 = vshrl.u32 %v1741, 5
        %v1743 = vand.u32 %v1741, 31
        %v1744 = vsub.s32 32, %v1743
        %v1745 = vshrl.u32 683565275, %v1744
        %v1746 = vshll.u32 683565275, %v1743
        %v1747 = vshrl.u32 2475754826, %v1744
        %v1748 = vor.u32 %v1746, %v1747
        %v1749 = vshll.u32 2475754826, %v1743
        %v1750 = vshrl.u32 2131351028, %v1744
        %v1751 = vor.u32 %v1749, %v1750
        %v1752 = vshll.u32 2131351028, %v1743
        %v1753 = vshrl.u32 2102212464, %v1744
        %v1754 = vor.u32 %v1752, %v1753
        %v1755 = vshll.u32 2102212464, %v1743
        %v1756 = vshrl.u32 920167782, %v1744
        %v1757 = vor.u32 %v1755, %v1756
        %v1758 = vshll.u32 920167782, %v1743
        %v1759 = vshrl.u32 1326507024, %v1744
        %v1760 = vor.u32 %v1758, %v1759
        %vm1761 = vcmp.lt.s32.totalorder %v1742, 1
        %vm1762 = vcmp.lt.s32.totalorder %v1742, 2
        %vm1763 = vcmp.lt.s32.totalorder %v1742, 3
        %vm1764 = vcmp.lt.s32.totalorder %v1742, 4
        %v1765 = vsel %vm1761, %v1745, %v1748
        %v1766 = vsel %vm1764, %v1754, 2102212464
        %v1767 = vsel %vm1763, %v1751, %v1766
        %v1768 = vsel %vm1762, %v1765, %v1767
        %v1769 = vsel %vm1761, %v1748, %v1751
        %v1770 = vsel %vm1764, %v1757, 920167782
        %v1771 = vsel %vm1763, %v1754, %v1770
        %v1772 = vsel %vm1762, %v1769, %v1771
        %v1773 = vsel %vm1761, %v1751, %v1754
        %v1774 = vsel %vm1764, %v1760, 1326507024
        %v1775 = vsel %vm1763, %v1757, %v1774
        %v1776 = vsel %vm1762, %v1773, %v1775
        %v1777 = vshll.u32 %v1737, 8
        %v1778 = vand.u32 %v1777, 65535
        %v1779 = vshrl.u32 %v1777, 16
        %v1780 = vand.u32 %v1776, 65535
        %v1781 = vshrl.u32 %v1776, 16
        %v1782 = vmul.u32 %v1778, %v1780
        %v1783 = vmul.u32 %v1778, %v1781
        %v1784 = vmul.u32 %v1779, %v1780
        %v1785 = vmul.u32 %v1779, %v1781
        %v1786 = vshll.u32 %v1783, 16
        %v1787 = vshrl.u32 %v1783, 16
        %v1788 = vshll.u32 %v1784, 16
        %v1789 = vshrl.u32 %v1784, 16
        %vm1790 = vc.u32 %v1782, %v1786
        %v1791 = vsel %vm1790, 1, 0
        %v1792 = vadd.s32 %v1782, %v1786
        %v1793 = vadd.s32 %v1785, %v1791
        %vm1794 = vc.u32 %v1792, %v1788
        %v1795 = vsel %vm1794, 1, 0
        %v1796 = vadd.s32 %v1792, %v1788
        %v1797 = vadd.s32 %v1793, %v1795
        %v1798 = vadd.s32 %v1797, %v1787
        %v1799 = vadd.s32 %v1798, %v1789
        %v1800 = vand.u32 %v1777, 65535
        %v1801 = vshrl.u32 %v1777, 16
        %v1802 = vand.u32 %v1772, 65535
        %v1803 = vshrl.u32 %v1772, 16
        %v1804 = vmul.u32 %v1800, %v1802
        %v1805 = vmul.u32 %v1800, %v1803
        %v1806 = vmul.u32 %v1801, %v1802
        %v1807 = vmul.u32 %v1801, %v1803
        %v1808 = vshll.u32 %v1805, 16
        %v1809 = vshrl.u32 %v1805, 16
        %v1810 = vshll.u32 %v1806, 16
        %v1811 = vshrl.u32 %v1806, 16
        %vm1812 = vc.u32 %v1804, %v1808
        %v1813 = vsel %vm1812, 1, 0
        %v1814 = vadd.s32 %v1804, %v1808
        %v1815 = vadd.s32 %v1807, %v1813
        %vm1816 = vc.u32 %v1814, %v1810
        %v1817 = vsel %vm1816, 1, 0
        %v1818 = vadd.s32 %v1814, %v1810
        %v1819 = vadd.s32 %v1815, %v1817
        %v1820 = vadd.s32 %v1819, %v1809
        %v1821 = vadd.s32 %v1820, %v1811
        %v1822 = vmul.u32 %v1777, %v1768
        %v1823 = vadd.s32 %v1799, %v1818
        %vm1824 = vc.u32 %v1799, %v1818
        %v1825 = vadd.s32 %v1821, 1
        %v1826 = vsel %vm1824, %v1825, %v1821
        %v1827 = vadd.s32 %v1822, %v1826
        %v1828 = vadd.s32 %v1827, 536870912
        %v1829 = vshrl.u32 %v1828, 30
        %v1830 = vshll.u32 %v1829, 30
        %v1831 = vsub.s32 %v1827, %v1830
        %vm1832 = vcmp.lt.s32.totalorder %v1831, 0
        %v1833 = vsub.s32 0, %v1831
        %v1834 = vsel %vm1832, %v1833, %v1831
        %v1835 = vclz %v1834
        %v1836 = vsub.s32 %v1835, 2
        %vm1837 = vcmp.gt.s32.totalorder 0, %v1836
        %v1838 = vsel %vm1837, 0, %v1836
        %v1839 = vsub.s32 32, %v1838
        %v1840 = vshll.u32 %v1831, %v1838
        %v1841 = vshrl.u32 %v1823, %v1839
        %v1842 = vor.u32 %v1840, %v1841
        %v1843 = vsub.s32 4294967266, %v1838
        %v1844 = vadd.s32 %v1843, 127
        %v1845 = vshll.u32 %v1844, 23
        %v1846 = vor.u32 4788187, %v1845
        %v1847 = vand.u32 2147483647, %v1846
        %v1849 = vcvt.s32.f32 %v1842
        %v1850 = vmul.f32 %v1849, %v1847
        %v1851 = vxor.u32 %v1850, 2147483648
        %v1852 = vsel %vm1731, %v1851, %v1850
        %v1853 = vsub.s32 4, %v1829
        %v1854 = vsel %vm1731, %v1853, %v1829
        %v1855 = vsel %vm1730, %v474, %v1852
        %v1856 = vsel %vm1730, 0, %v1854
        %v1857 = vmul.f32 %v1855, %v1855
        %v1858 = vmul.f32 %v1857, -0.001358992
        %v1859 = vadd.f32 %v1858, 0.041655596
        %v1860 = vmul.f32 %v1857, %v1859
        %v1861 = vadd.f32 %v1860, -0.4999988
        %v1862 = vmul.f32 %v1857, %v1861
        %v1863 = vadd.f32 1.0, %v1862
        %v1864 = vmul.f32 %v1855, %v1855
        %v1865 = vmul.f32 %v1864, -0.00019511016
        %v1866 = vadd.f32 %v1865, 0.008332121
        %v1867 = vmul.f32 %v1864, %v1866
        %v1868 = vadd.f32 %v1867, -0.16666654
        %v1869 = vmul.f32 %v1864, %v1868
        %v1870 = vadd.f32 %v1869, 1.0
        %v1871 = vmul.f32 %v1870, %v1855
        %vm1872 = vweird.f32 %v474
        %v1873 = vadd.s32 %v1856, 3
        %v1874 = vand.u32 %v1873, 3
        %vm1875 = vcmp.lt.s32.totalorder %v1874, 2
        %vm1876 = vcmp.eq.s32.totalorder %v1874, 0
        %v1877 = vxor.u32 %v1871, 2147483648
        %v1878 = vsel %vm1876, %v1863, %v1877
        %vm1879 = vcmp.eq.s32.totalorder %v1874, 2
        %v1880 = vxor.u32 %v1863, 2147483648
        %v1881 = vsel %vm1879, %v1880, %v1871
        %v1882 = vsel %vm1875, %v1878, %v1881
        %v1883 = vsel %vm1872, nan, %v1882
        %v1884 = vand.u32 2147483647, %v477
        %vm1885 = vcmp.le.f32.partialorder %v1884, 0.7853982
        %vm1886 = vcmp.lt.s32.totalorder %v477, 0
        %v1887 = vand.u32 %v477, 2139095040
        %v1888 = vshrl.u32 %v1887, 23
        %v1889 = vsub.s32 %v1888, 127
        %v1890 = vand.u32 2147483647, %v477
        %v1891 = vand.u32 %v1890, 8388607
        %v1892 = vor.u32 %v1891, 8388608
        %v1893 = vsub.s32 0, %v1892
        %v1894 = vadd.s32 %v1889, 1
        %vm1895 = vcmp.gt.s32.totalorder %v1894, 0
        %v1896 = vsel %vm1895, %v1894, 0
        %v1897 = vshrl.u32 %v1896, 5
        %v1898 = vand.u32 %v1896, 31
        %v1899 = vsub.s32 32, %v1898
        %v1900 = vshrl.u32 683565275, %v1899
        %v1901 = vshll.u32 683565275, %v1898
        %v1902 = vshrl.u32 2475754826, %v1899
        %v1903 = vor.u32 %v1901, %v1902
        %v1904 = vshll.u32 2475754826, %v1898
        %v1905 = vshrl.u32 2131351028, %v1899
        %v1906 = vor.u32 %v1904, %v1905
        %v1907 = vshll.u32 2131351028, %v1898
        %v1908 = vshrl.u32 2102212464, %v1899
        %v1909 = vor.u32 %v1907, %v1908
        %v1910 = vshll.u32 2102212464, %v1898
        %v1911 = vshrl.u32 920167782, %v1899
        %v1912 = vor.u32 %v1910, %v1911
        %v1913 = vshll.u32 920167782, %v1898
        %v1914 = vshrl.u32 1326507024, %v1899
        %v1915 = vor.u32 %v1913, %v1914
        %vm1916 = vcmp.lt.s32.totalorder %v1897, 1
        %vm1917 = vcmp.lt.s32.totalorder %v1897, 2
        %vm1918 = vcmp.lt.s32.totalorder %v1897, 3
        %vm1919 = vcmp.lt.s32.totalorder %v1897, 4
        %v1920 = vsel %vm1916, %v1900, %v1903
        %v1921 = vsel %vm1919, %v1909, 2102212464
        %v1922 = vsel %vm1918, %v1906, %v1921
        %v1923 = vsel %vm1917, %v1920, %v1922
        %v1924 = vsel %vm1916, %v1903, %v1906
        %v1925 = vsel %vm1919, %v1912, 920167782
        %v1926 = vsel %vm1918, %v1909, %v1925
        %v1927 = vsel %vm1917, %v1924, %v1926
        %v1928 = vsel %vm1916, %v1906, %v1909
        %v1929 = vsel %vm1919, %v1915, 1326507024
        %v1930 = vsel %vm1918, %v1912, %v1929
        %v1931 = vsel %vm1917, %v1928, %v1930
        %v1932 = vshll.u32 %v1892, 8
        %v1933 = vand.u32 %v1932, 65535
        %v1934 = vshrl.u32 %v1932, 16
        %v1935 = vand.u32 %v1931, 65535
        %v1936 = vshrl.u32 %v1931, 16
        %v1937 = vmul.u32 %v1933, %v1935
        %v1938 = vmul.u32 %v1933, %v1936
        %v1939 = vmul.u32 %v1934, %v1935
        %v1940 = vmul.u32 %v1934, %v1936
        %v1941 = vshll.u32 %v1938, 16
        %v1942 = vshrl.u32 %v1938, 16
        %v1943 = vshll.u32 %v1939, 16
        %v1944 = vshrl.u32 %v1939, 16
        %vm1945 = vc.u32 %v1937, %v1941
        %v1946 = vsel %vm1945, 1, 0
        %v1947 = vadd.s32 %v1937, %v1941
        %v1948 = vadd.s32 %v1940, %v1946
        %vm1949 = vc.u32 %v1947, %v1943
        %v1950 = vsel %vm1949, 1, 0
        %v1951 = vadd.s32 %v1947, %v1943
        %v1952 = vadd.s32 %v1948, %v1950
        %v1953 = vadd.s32 %v1952, %v1942
        %v1954 = vadd.s32 %v1953, %v1944
        %v1955 = vand.u32 %v1932, 65535
        %v1956 = vshrl.u32 %v1932, 16
        %v1957 = vand.u32 %v1927, 65535
        %v1958 = vshrl.u32 %v1927, 16
        %v1959 = vmul.u32 %v1955, %v1957
        %v1960 = vmul.u32 %v1955, %v1958
        %v1961 = vmul.u32 %v1956, %v1957
        %v1962 = vmul.u32 %v1956, %v1958
        %v1963 = vshll.u32 %v1960, 16
        %v1964 = vshrl.u32 %v1960, 16
        %v1965 = vshll.u32 %v1961, 16
        %v1966 = vshrl.u32 %v1961, 16
        %vm1967 = vc.u32 %v1959, %v1963
        %v1968 = vsel %vm1967, 1, 0
        %v1969 = vadd.s32 %v1959, %v1963
        %v1970 = vadd.s32 %v1962, %v1968
        %vm1971 = vc.u32 %v1969, %v1965
        %v1972 = vsel %vm1971, 1, 0
        %v1973 = vadd.s32 %v1969, %v1965
        %v1974 = vadd.s32 %v1970, %v1972
        %v1975 = vadd.s32 %v1974, %v1964
        %v1976 = vadd.s32 %v1975, %v1966
        %v1977 = vmul.u32 %v1932, %v1923
        %v1978 = vadd.s32 %v1954, %v1973
        %vm1979 = vc.u32 %v1954, %v1973
        %v1980 = vadd.s32 %v1976, 1
        %v1981 = vsel %vm1979, %v1980, %v1976
        %v1982 = vadd.s32 %v1977, %v1981
        %v1983 = vadd.s32 %v1982, 536870912
        %v1984 = vshrl.u32 %v1983, 30
        %v1985 = vshll.u32 %v1984, 30
        %v1986 = vsub.s32 %v1982, %v1985
        %vm1987 = vcmp.lt.s32.totalorder %v1986, 0
        %v1988 = vsub.s32 0, %v1986
        %v1989 = vsel %vm1987, %v1988, %v1986
        %v1990 = vclz %v1989
        %v1991 = vsub.s32 %v1990, 2
        %vm1992 = vcmp.gt.s32.totalorder 0, %v1991
        %v1993 = vsel %vm1992, 0, %v1991
        %v1994 = vsub.s32 32, %v1993
        %v1995 = vshll.u32 %v1986, %v1993
        %v1996 = vshrl.u32 %v1978, %v1994
        %v1997 = vor.u32 %v1995, %v1996
        %v1998 = vsub.s32 4294967266, %v1993
        %v1999 = vadd.s32 %v1998, 127
        %v2000 = vshll.u32 %v1999, 23
        %v2001 = vor.u32 4788187, %v2000
        %v2002 = vand.u32 2147483647, %v2001
        %v2004 = vcvt.s32.f32 %v1997
        %v2005 = vmul.f32 %v2004, %v2002
        %v2006 = vxor.u32 %v2005, 2147483648
        %v2007 = vsel %vm1886, %v2006, %v2005
        %v2008 = vsub.s32 4, %v1984
        %v2009 = vsel %vm1886, %v2008, %v1984
        %v2010 = vsel %vm1885, %v477, %v2007
        %v2011 = vsel %vm1885, 0, %v2009
        %v2012 = vmul.f32 %v2010, %v2010
        %v2013 = vmul.f32 %v2012, -0.001358992
        %v2014 = vadd.f32 %v2013, 0.041655596
        %v2015 = vmul.f32 %v2012, %v2014
        %v2016 = vadd.f32 %v2015, -0.4999988
        %v2017 = vmul.f32 %v2012, %v2016
        %v2018 = vadd.f32 1.0, %v2017
        %v2019 = vmul.f32 %v2010, %v2010
        %v2020 = vmul.f32 %v2019, -0.00019511016
        %v2021 = vadd.f32 %v2020, 0.008332121
        %v2022 = vmul.f32 %v2019, %v2021
        %v2023 = vadd.f32 %v2022, -0.16666654
        %v2024 = vmul.f32 %v2019, %v2023
        %v2025 = vadd.f32 %v2024, 1.0
        %v2026 = vmul.f32 %v2025, %v2010
        %vm2027 = vweird.f32 %v477
        %v2028 = vadd.s32 %v2011, 3
        %v2029 = vand.u32 %v2028, 3
        %vm2030 = vcmp.lt.s32.totalorder %v2029, 2
        %vm2031 = vcmp.eq.s32.totalorder %v2029, 0
        %v2032 = vxor.u32 %v2026, 2147483648
        %v2033 = vsel %vm2031, %v2018, %v2032
        %vm2034 = vcmp.eq.s32.totalorder %v2029, 2
        %v2035 = vxor.u32 %v2018, 2147483648
        %v2036 = vsel %vm2034, %v2035, %v2026
        %v2037 = vsel %vm2030, %v2033, %v2036
        %v2038 = vsel %vm2027, nan, %v2037
        %v2039 = vand.u32 2147483647, %v480
        %vm2040 = vcmp.le.f32.partialorder %v2039, 0.7853982
        %vm2041 = vcmp.lt.s32.totalorder %v480, 0
        %v2042 = vand.u32 %v480, 2139095040
        %v2043 = vshrl.u32 %v2042, 23
        %v2044 = vsub.s32 %v2043, 127
        %v2045 = vand.u32 2147483647, %v480
        %v2046 = vand.u32 %v2045, 8388607
        %v2047 = vor.u32 %v2046, 8388608
        %v2048 = vsub.s32 0, %v2047
        %v2049 = vadd.s32 %v2044, 1
        %vm2050 = vcmp.gt.s32.totalorder %v2049, 0
        %v2051 = vsel %vm2050, %v2049, 0
        %v2052 = vshrl.u32 %v2051, 5
        %v2053 = vand.u32 %v2051, 31
        %v2054 = vsub.s32 32, %v2053
        %v2055 = vshrl.u32 683565275, %v2054
        %v2056 = vshll.u32 683565275, %v2053
        %v2057 = vshrl.u32 2475754826, %v2054
        %v2058 = vor.u32 %v2056, %v2057
        %v2059 = vshll.u32 2475754826, %v2053
        %v2060 = vshrl.u32 2131351028, %v2054
        %v2061 = vor.u32 %v2059, %v2060
        %v2062 = vshll.u32 2131351028, %v2053
        %v2063 = vshrl.u32 2102212464, %v2054
        %v2064 = vor.u32 %v2062, %v2063
        %v2065 = vshll.u32 2102212464, %v2053
        %v2066 = vshrl.u32 920167782, %v2054
        %v2067 = vor.u32 %v2065, %v2066
        %v2068 = vshll.u32 920167782, %v2053
        %v2069 = vshrl.u32 1326507024, %v2054
        %v2070 = vor.u32 %v2068, %v2069
        %vm2071 = vcmp.lt.s32.totalorder %v2052, 1
        %vm2072 = vcmp.lt.s32.totalorder %v2052, 2
        %vm2073 = vcmp.lt.s32.totalorder %v2052, 3
        %vm2074 = vcmp.lt.s32.totalorder %v2052, 4
        %v2075 = vsel %vm2071, %v2055, %v2058
        %v2076 = vsel %vm2074, %v2064, 2102212464
        %v2077 = vsel %vm2073, %v2061, %v2076
        %v2078 = vsel %vm2072, %v2075, %v2077
        %v2079 = vsel %vm2071, %v2058, %v2061
        %v2080 = vsel %vm2074, %v2067, 920167782
        %v2081 = vsel %vm2073, %v2064, %v2080
        %v2082 = vsel %vm2072, %v2079, %v2081
        %v2083 = vsel %vm2071, %v2061, %v2064
        %v2084 = vsel %vm2074, %v2070, 1326507024
        %v2085 = vsel %vm2073, %v2067, %v2084
        %v2086 = vsel %vm2072, %v2083, %v2085
        %v2087 = vshll.u32 %v2047, 8
        %v2088 = vand.u32 %v2087, 65535
        %v2089 = vshrl.u32 %v2087, 16
        %v2090 = vand.u32 %v2086, 65535
        %v2091 = vshrl.u32 %v2086, 16
        %v2092 = vmul.u32 %v2088, %v2090
        %v2093 = vmul.u32 %v2088, %v2091
        %v2094 = vmul.u32 %v2089, %v2090
        %v2095 = vmul.u32 %v2089, %v2091
        %v2096 = vshll.u32 %v2093, 16
        %v2097 = vshrl.u32 %v2093, 16
        %v2098 = vshll.u32 %v2094, 16
        %v2099 = vshrl.u32 %v2094, 16
        %vm2100 = vc.u32 %v2092, %v2096
        %v2101 = vsel %vm2100, 1, 0
        %v2102 = vadd.s32 %v2092, %v2096
        %v2103 = vadd.s32 %v2095, %v2101
        %vm2104 = vc.u32 %v2102, %v2098
        %v2105 = vsel %vm2104, 1, 0
        %v2106 = vadd.s32 %v2102, %v2098
        %v2107 = vadd.s32 %v2103, %v2105
        %v2108 = vadd.s32 %v2107, %v2097
        %v2109 = vadd.s32 %v2108, %v2099
        %v2110 = vand.u32 %v2087, 65535
        %v2111 = vshrl.u32 %v2087, 16
        %v2112 = vand.u32 %v2082, 65535
        %v2113 = vshrl.u32 %v2082, 16
        %v2114 = vmul.u32 %v2110, %v2112
        %v2115 = vmul.u32 %v2110, %v2113
        %v2116 = vmul.u32 %v2111, %v2112
        %v2117 = vmul.u32 %v2111, %v2113
        %v2118 = vshll.u32 %v2115, 16
        %v2119 = vshrl.u32 %v2115, 16
        %v2120 = vshll.u32 %v2116, 16
        %v2121 = vshrl.u32 %v2116, 16
        %vm2122 = vc.u32 %v2114, %v2118
        %v2123 = vsel %vm2122, 1, 0
        %v2124 = vadd.s32 %v2114, %v2118
        %v2125 = vadd.s32 %v2117, %v2123
        %vm2126 = vc.u32 %v2124, %v2120
        %v2127 = vsel %vm2126, 1, 0
        %v2128 = vadd.s32 %v2124, %v2120
        %v2129 = vadd.s32 %v2125, %v2127
        %v2130 = vadd.s32 %v2129, %v2119
        %v2131 = vadd.s32 %v2130, %v2121
        %v2132 = vmul.u32 %v2087, %v2078
        %v2133 = vadd.s32 %v2109, %v2128
        %vm2134 = vc.u32 %v2109, %v2128
        %v2135 = vadd.s32 %v2131, 1
        %v2136 = vsel %vm2134, %v2135, %v2131
        %v2137 = vadd.s32 %v2132, %v2136
        %v2138 = vadd.s32 %v2137, 536870912
        %v2139 = vshrl.u32 %v2138, 30
        %v2140 = vshll.u32 %v2139, 30
        %v2141 = vsub.s32 %v2137, %v2140
        %vm2142 = vcmp.lt.s32.totalorder %v2141, 0
        %v2143 = vsub.s32 0, %v2141
        %v2144 = vsel %vm2142, %v2143, %v2141
        %v2145 = vclz %v2144
        %v2146 = vsub.s32 %v2145, 2
        %vm2147 = vcmp.gt.s32.totalorder 0, %v2146
        %v2148 = vsel %vm2147, 0, %v2146
        %v2149 = vsub.s32 32, %v2148
        %v2150 = vshll.u32 %v2141, %v2148
        %v2151 = vshrl.u32 %v2133, %v2149
        %v2152 = vor.u32 %v2150, %v2151
        %v2153 = vsub.s32 4294967266, %v2148
        %v2154 = vadd.s32 %v2153, 127
        %v2155 = vshll.u32 %v2154, 23
        %v2156 = vor.u32 4788187, %v2155
        %v2157 = vand.u32 2147483647, %v2156
        %v2159 = vcvt.s32.f32 %v2152
        %v2160 = vmul.f32 %v2159, %v2157
        %v2161 = vxor.u32 %v2160, 2147483648
        %v2162 = vsel %vm2041, %v2161, %v2160
        %v2163 = vsub.s32 4, %v2139
        %v2164 = vsel %vm2041, %v2163, %v2139
        %v2165 = vsel %vm2040, %v480, %v2162
        %v2166 = vsel %vm2040, 0, %v2164
        %v2167 = vmul.f32 %v2165, %v2165
        %v2168 = vmul.f32 %v2167, -0.001358992
        %v2169 = vadd.f32 %v2168, 0.041655596
        %v2170 = vmul.f32 %v2167, %v2169
        %v2171 = vadd.f32 %v2170, -0.4999988
        %v2172 = vmul.f32 %v2167, %v2171
        %v2173 = vadd.f32 1.0, %v2172
        %v2174 = vmul.f32 %v2165, %v2165
        %v2175 = vmul.f32 %v2174, -0.00019511016
        %v2176 = vadd.f32 %v2175, 0.008332121
        %v2177 = vmul.f32 %v2174, %v2176
        %v2178 = vadd.f32 %v2177, -0.16666654
        %v2179 = vmul.f32 %v2174, %v2178
        %v2180 = vadd.f32 %v2179, 1.0
        %v2181 = vmul.f32 %v2180, %v2165
        %vm2182 = vweird.f32 %v480
        %v2183 = vadd.s32 %v2166, 3
        %v2184 = vand.u32 %v2183, 3
        %vm2185 = vcmp.lt.s32.totalorder %v2184, 2
        %vm2186 = vcmp.eq.s32.totalorder %v2184, 0
        %v2187 = vxor.u32 %v2181, 2147483648
        %v2188 = vsel %vm2186, %v2173, %v2187
        %vm2189 = vcmp.eq.s32.totalorder %v2184, 2
        %v2190 = vxor.u32 %v2173, 2147483648
        %v2191 = vsel %vm2189, %v2190, %v2181
        %v2192 = vsel %vm2185, %v2188, %v2191
        %v2193 = vsel %vm2182, nan, %v2192
        %v2194 = vand.u32 2147483647, %v483
        %vm2195 = vcmp.le.f32.partialorder %v2194, 0.7853982
        %vm2196 = vcmp.lt.s32.totalorder %v483, 0
        %v2197 = vand.u32 %v483, 2139095040
        %v2198 = vshrl.u32 %v2197, 23
        %v2199 = vsub.s32 %v2198, 127
        %v2200 = vand.u32 2147483647, %v483
        %v2201 = vand.u32 %v2200, 8388607
        %v2202 = vor.u32 %v2201, 8388608
        %v2203 = vsub.s32 0, %v2202
        %v2204 = vadd.s32 %v2199, 1
        %vm2205 = vcmp.gt.s32.totalorder %v2204, 0
        %v2206 = vsel %vm2205, %v2204, 0
        %v2207 = vshrl.u32 %v2206, 5
        %v2208 = vand.u32 %v2206, 31
        %v2209 = vsub.s32 32, %v2208
        %v2210 = vshrl.u32 683565275, %v2209
        %v2211 = vshll.u32 683565275, %v2208
        %v2212 = vshrl.u32 2475754826, %v2209
        %v2213 = vor.u32 %v2211, %v2212
        %v2214 = vshll.u32 2475754826, %v2208
        %v2215 = vshrl.u32 2131351028, %v2209
        %v2216 = vor.u32 %v2214, %v2215
        %v2217 = vshll.u32 2131351028, %v2208
        %v2218 = vshrl.u32 2102212464, %v2209
        %v2219 = vor.u32 %v2217, %v2218
        %v2220 = vshll.u32 2102212464, %v2208
        %v2221 = vshrl.u32 920167782, %v2209
        %v2222 = vor.u32 %v2220, %v2221
        %v2223 = vshll.u32 920167782, %v2208
        %v2224 = vshrl.u32 1326507024, %v2209
        %v2225 = vor.u32 %v2223, %v2224
        %vm2226 = vcmp.lt.s32.totalorder %v2207, 1
        %vm2227 = vcmp.lt.s32.totalorder %v2207, 2
        %vm2228 = vcmp.lt.s32.totalorder %v2207, 3
        %vm2229 = vcmp.lt.s32.totalorder %v2207, 4
        %v2230 = vsel %vm2226, %v2210, %v2213
        %v2231 = vsel %vm2229, %v2219, 2102212464
        %v2232 = vsel %vm2228, %v2216, %v2231
        %v2233 = vsel %vm2227, %v2230, %v2232
        %v2234 = vsel %vm2226, %v2213, %v2216
        %v2235 = vsel %vm2229, %v2222, 920167782
        %v2236 = vsel %vm2228, %v2219, %v2235
        %v2237 = vsel %vm2227, %v2234, %v2236
        %v2238 = vsel %vm2226, %v2216, %v2219
        %v2239 = vsel %vm2229, %v2225, 1326507024
        %v2240 = vsel %vm2228, %v2222, %v2239
        %v2241 = vsel %vm2227, %v2238, %v2240
        %v2242 = vshll.u32 %v2202, 8
        %v2243 = vand.u32 %v2242, 65535
        %v2244 = vshrl.u32 %v2242, 16
        %v2245 = vand.u32 %v2241, 65535
        %v2246 = vshrl.u32 %v2241, 16
        %v2247 = vmul.u32 %v2243, %v2245
        %v2248 = vmul.u32 %v2243, %v2246
        %v2249 = vmul.u32 %v2244, %v2245
        %v2250 = vmul.u32 %v2244, %v2246
        %v2251 = vshll.u32 %v2248, 16
        %v2252 = vshrl.u32 %v2248, 16
        %v2253 = vshll.u32 %v2249, 16
        %v2254 = vshrl.u32 %v2249, 16
        %vm2255 = vc.u32 %v2247, %v2251
        %v2256 = vsel %vm2255, 1, 0
        %v2257 = vadd.s32 %v2247, %v2251
        %v2258 = vadd.s32 %v2250, %v2256
        %vm2259 = vc.u32 %v2257, %v2253
        %v2260 = vsel %vm2259, 1, 0
        %v2261 = vadd.s32 %v2257, %v2253
        %v2262 = vadd.s32 %v2258, %v2260
        %v2263 = vadd.s32 %v2262, %v2252
        %v2264 = vadd.s32 %v2263, %v2254
        %v2265 = vand.u32 %v2242, 65535
        %v2266 = vshrl.u32 %v2242, 16
        %v2267 = vand.u32 %v2237, 65535
        %v2268 = vshrl.u32 %v2237, 16
        %v2269 = vmul.u32 %v2265, %v2267
        %v2270 = vmul.u32 %v2265, %v2268
        %v2271 = vmul.u32 %v2266, %v2267
        %v2272 = vmul.u32 %v2266, %v2268
        %v2273 = vshll.u32 %v2270, 16
        %v2274 = vshrl.u32 %v2270, 16
        %v2275 = vshll.u32 %v2271, 16
        %v2276 = vshrl.u32 %v2271, 16
        %vm2277 = vc.u32 %v2269, %v2273
        %v2278 = vsel %vm2277, 1, 0
        %v2279 = vadd.s32 %v2269, %v2273
        %v2280 = vadd.s32 %v2272, %v2278
        %vm2281 = vc.u32 %v2279, %v2275
        %v2282 = vsel %vm2281, 1, 0
        %v2283 = vadd.s32 %v2279, %v2275
        %v2284 = vadd.s32 %v2280, %v2282
        %v2285 = vadd.s32 %v2284, %v2274
        %v2286 = vadd.s32 %v2285, %v2276
        %v2287 = vmul.u32 %v2242, %v2233
        %v2288 = vadd.s32 %v2264, %v2283
        %vm2289 = vc.u32 %v2264, %v2283
        %v2290 = vadd.s32 %v2286, 1
        %v2291 = vsel %vm2289, %v2290, %v2286
        %v2292 = vadd.s32 %v2287, %v2291
        %v2293 = vadd.s32 %v2292, 536870912
        %v2294 = vshrl.u32 %v2293, 30
        %v2295 = vshll.u32 %v2294, 30
        %v2296 = vsub.s32 %v2292, %v2295
        %vm2297 = vcmp.lt.s32.totalorder %v2296, 0
        %v2298 = vsub.s32 0, %v2296
        %v2299 = vsel %vm2297, %v2298, %v2296
        %v2300 = vclz %v2299
        %v2301 = vsub.s32 %v2300, 2
        %vm2302 = vcmp.gt.s32.totalorder 0, %v2301
        %v2303 = vsel %vm2302, 0, %v2301
        %v2304 = vsub.s32 32, %v2303
        %v2305 = vshll.u32 %v2296, %v2303
        %v2306 = vshrl.u32 %v2288, %v2304
        %v2307 = vor.u32 %v2305, %v2306
        %v2308 = vsub.s32 4294967266, %v2303
        %v2309 = vadd.s32 %v2308, 127
        %v2310 = vshll.u32 %v2309, 23
        %v2311 = vor.u32 4788187, %v2310
        %v2312 = vand.u32 2147483647, %v2311
        %v2314 = vcvt.s32.f32 %v2307
        %v2315 = vmul.f32 %v2314, %v2312
        %v2316 = vxor.u32 %v2315, 2147483648
        %v2317 = vsel %vm2196, %v2316, %v2315
        %v2318 = vsub.s32 4, %v2294
        %v2319 = vsel %vm2196, %v2318, %v2294
        %v2320 = vsel %vm2195, %v483, %v2317
        %v2321 = vsel %vm2195, 0, %v2319
        %v2322 = vmul.f32 %v2320, %v2320
        %v2323 = vmul.f32 %v2322, -0.001358992
        %v2324 = vadd.f32 %v2323, 0.041655596
        %v2325 = vmul.f32 %v2322, %v2324
        %v2326 = vadd.f32 %v2325, -0.4999988
        %v2327 = vmul.f32 %v2322, %v2326
        %v2328 = vadd.f32 1.0, %v2327
        %v2329 = vmul.f32 %v2320, %v2320
        %v2330 = vmul.f32 %v2329, -0.00019511016
        %v2331 = vadd.f32 %v2330, 0.008332121
        %v2332 = vmul.f32 %v2329, %v2331
        %v2333 = vadd.f32 %v2332, -0.16666654
        %v2334 = vmul.f32 %v2329, %v2333
        %v2335 = vadd.f32 %v2334, 1.0
        %v2336 = vmul.f32 %v2335, %v2320
        %vm2337 = vweird.f32 %v483
        %v2338 = vadd.s32 %v2321, 3
        %v2339 = vand.u32 %v2338, 3
        %vm2340 = vcmp.lt.s32.totalorder %v2339, 2
        %vm2341 = vcmp.eq.s32.totalorder %v2339, 0
        %v2342 = vxor.u32 %v2336, 2147483648
        %v2343 = vsel %vm2341, %v2328, %v2342
        %vm2344 = vcmp.eq.s32.totalorder %v2339, 2
        %v2345 = vxor.u32 %v2328, 2147483648
        %v2346 = vsel %vm2344, %v2345, %v2336
        %v2347 = vsel %vm2340, %v2343, %v2346
        %v2348 = vsel %vm2337, nan, %v2347
        %v2349 = vand.u32 2147483647, %v486
        %vm2350 = vcmp.le.f32.partialorder %v2349, 0.7853982
        %vm2351 = vcmp.lt.s32.totalorder %v486, 0
        %v2352 = vand.u32 %v486, 2139095040
        %v2353 = vshrl.u32 %v2352, 23
        %v2354 = vsub.s32 %v2353, 127
        %v2355 = vand.u32 2147483647, %v486
        %v2356 = vand.u32 %v2355, 8388607
        %v2357 = vor.u32 %v2356, 8388608
        %v2358 = vsub.s32 0, %v2357
        %v2359 = vadd.s32 %v2354, 1
        %vm2360 = vcmp.gt.s32.totalorder %v2359, 0
        %v2361 = vsel %vm2360, %v2359, 0
        %v2362 = vshrl.u32 %v2361, 5
        %v2363 = vand.u32 %v2361, 31
        %v2364 = vsub.s32 32, %v2363
        %v2365 = vshrl.u32 683565275, %v2364
        %v2366 = vshll.u32 683565275, %v2363
        %v2367 = vshrl.u32 2475754826, %v2364
        %v2368 = vor.u32 %v2366, %v2367
        %v2369 = vshll.u32 2475754826, %v2363
        %v2370 = vshrl.u32 2131351028, %v2364
        %v2371 = vor.u32 %v2369, %v2370
        %v2372 = vshll.u32 2131351028, %v2363
        %v2373 = vshrl.u32 2102212464, %v2364
        %v2374 = vor.u32 %v2372, %v2373
        %v2375 = vshll.u32 2102212464, %v2363
        %v2376 = vshrl.u32 920167782, %v2364
        %v2377 = vor.u32 %v2375, %v2376
        %v2378 = vshll.u32 920167782, %v2363
        %v2379 = vshrl.u32 1326507024, %v2364
        %v2380 = vor.u32 %v2378, %v2379
        %vm2381 = vcmp.lt.s32.totalorder %v2362, 1
        %vm2382 = vcmp.lt.s32.totalorder %v2362, 2
        %vm2383 = vcmp.lt.s32.totalorder %v2362, 3
        %vm2384 = vcmp.lt.s32.totalorder %v2362, 4
        %v2385 = vsel %vm2381, %v2365, %v2368
        %v2386 = vsel %vm2384, %v2374, 2102212464
        %v2387 = vsel %vm2383, %v2371, %v2386
        %v2388 = vsel %vm2382, %v2385, %v2387
        %v2389 = vsel %vm2381, %v2368, %v2371
        %v2390 = vsel %vm2384, %v2377, 920167782
        %v2391 = vsel %vm2383, %v2374, %v2390
        %v2392 = vsel %vm2382, %v2389, %v2391
        %v2393 = vsel %vm2381, %v2371, %v2374
        %v2394 = vsel %vm2384, %v2380, 1326507024
        %v2395 = vsel %vm2383, %v2377, %v2394
        %v2396 = vsel %vm2382, %v2393, %v2395
        %v2397 = vshll.u32 %v2357, 8
        %v2398 = vand.u32 %v2397, 65535
        %v2399 = vshrl.u32 %v2397, 16
        %v2400 = vand.u32 %v2396, 65535
        %v2401 = vshrl.u32 %v2396, 16
        %v2402 = vmul.u32 %v2398, %v2400
        %v2403 = vmul.u32 %v2398, %v2401
        %v2404 = vmul.u32 %v2399, %v2400
        %v2405 = vmul.u32 %v2399, %v2401
        %v2406 = vshll.u32 %v2403, 16
        %v2407 = vshrl.u32 %v2403, 16
        %v2408 = vshll.u32 %v2404, 16
        %v2409 = vshrl.u32 %v2404, 16
        %vm2410 = vc.u32 %v2402, %v2406
        %v2411 = vsel %vm2410, 1, 0
        %v2412 = vadd.s32 %v2402, %v2406
        %v2413 = vadd.s32 %v2405, %v2411
        %vm2414 = vc.u32 %v2412, %v2408
        %v2415 = vsel %vm2414, 1, 0
        %v2416 = vadd.s32 %v2412, %v2408
        %v2417 = vadd.s32 %v2413, %v2415
        %v2418 = vadd.s32 %v2417, %v2407
        %v2419 = vadd.s32 %v2418, %v2409
        %v2420 = vand.u32 %v2397, 65535
        %v2421 = vshrl.u32 %v2397, 16
        %v2422 = vand.u32 %v2392, 65535
        %v2423 = vshrl.u32 %v2392, 16
        %v2424 = vmul.u32 %v2420, %v2422
        %v2425 = vmul.u32 %v2420, %v2423
        %v2426 = vmul.u32 %v2421, %v2422
        %v2427 = vmul.u32 %v2421, %v2423
        %v2428 = vshll.u32 %v2425, 16
        %v2429 = vshrl.u32 %v2425, 16
        %v2430 = vshll.u32 %v2426, 16
        %v2431 = vshrl.u32 %v2426, 16
        %vm2432 = vc.u32 %v2424, %v2428
        %v2433 = vsel %vm2432, 1, 0
        %v2434 = vadd.s32 %v2424, %v2428
        %v2435 = vadd.s32 %v2427, %v2433
        %vm2436 = vc.u32 %v2434, %v2430
        %v2437 = vsel %vm2436, 1, 0
        %v2438 = vadd.s32 %v2434, %v2430
        %v2439 = vadd.s32 %v2435, %v2437
        %v2440 = vadd.s32 %v2439, %v2429
        %v2441 = vadd.s32 %v2440, %v2431
        %v2442 = vmul.u32 %v2397, %v2388
        %v2443 = vadd.s32 %v2419, %v2438
        %vm2444 = vc.u32 %v2419, %v2438
        %v2445 = vadd.s32 %v2441, 1
        %v2446 = vsel %vm2444, %v2445, %v2441
        %v2447 = vadd.s32 %v2442, %v2446
        %v2448 = vadd.s32 %v2447, 536870912
        %v2449 = vshrl.u32 %v2448, 30
        %v2450 = vshll.u32 %v2449, 30
        %v2451 = vsub.s32 %v2447, %v2450
        %vm2452 = vcmp.lt.s32.totalorder %v2451, 0
        %v2453 = vsub.s32 0, %v2451
        %v2454 = vsel %vm2452, %v2453, %v2451
        %v2455 = vclz %v2454
        %v2456 = vsub.s32 %v2455, 2
        %vm2457 = vcmp.gt.s32.totalorder 0, %v2456
        %v2458 = vsel %vm2457, 0, %v2456
        %v2459 = vsub.s32 32, %v2458
        %v2460 = vshll.u32 %v2451, %v2458
        %v2461 = vshrl.u32 %v2443, %v2459
        %v2462 = vor.u32 %v2460, %v2461
        %v2463 = vsub.s32 4294967266, %v2458
        %v2464 = vadd.s32 %v2463, 127
        %v2465 = vshll.u32 %v2464, 23
        %v2466 = vor.u32 4788187, %v2465
        %v2467 = vand.u32 2147483647, %v2466
        %v2469 = vcvt.s32.f32 %v2462
        %v2470 = vmul.f32 %v2469, %v2467
        %v2471 = vxor.u32 %v2470, 2147483648
        %v2472 = vsel %vm2351, %v2471, %v2470
        %v2473 = vsub.s32 4, %v2449
        %v2474 = vsel %vm2351, %v2473, %v2449
        %v2475 = vsel %vm2350, %v486, %v2472
        %v2476 = vsel %vm2350, 0, %v2474
        %v2477 = vmul.f32 %v2475, %v2475
        %v2478 = vmul.f32 %v2477, -0.001358992
        %v2479 = vadd.f32 %v2478, 0.041655596
        %v2480 = vmul.f32 %v2477, %v2479
        %v2481 = vadd.f32 %v2480, -0.4999988
        %v2482 = vmul.f32 %v2477, %v2481
        %v2483 = vadd.f32 1.0, %v2482
        %v2484 = vmul.f32 %v2475, %v2475
        %v2485 = vmul.f32 %v2484, -0.00019511016
        %v2486 = vadd.f32 %v2485, 0.008332121
        %v2487 = vmul.f32 %v2484, %v2486
        %v2488 = vadd.f32 %v2487, -0.16666654
        %v2489 = vmul.f32 %v2484, %v2488
        %v2490 = vadd.f32 %v2489, 1.0
        %v2491 = vmul.f32 %v2490, %v2475
        %vm2492 = vweird.f32 %v486
        %v2493 = vadd.s32 %v2476, 3
        %v2494 = vand.u32 %v2493, 3
        %vm2495 = vcmp.lt.s32.totalorder %v2494, 2
        %vm2496 = vcmp.eq.s32.totalorder %v2494, 0
        %v2497 = vxor.u32 %v2491, 2147483648
        %v2498 = vsel %vm2496, %v2483, %v2497
        %vm2499 = vcmp.eq.s32.totalorder %v2494, 2
        %v2500 = vxor.u32 %v2483, 2147483648
        %v2501 = vsel %vm2499, %v2500, %v2491
        %v2502 = vsel %vm2495, %v2498, %v2501
        %v2503 = vsel %vm2492, nan, %v2502
        %v2504 = vand.u32 2147483647, %v489
        %vm2505 = vcmp.le.f32.partialorder %v2504, 0.7853982
        %vm2506 = vcmp.lt.s32.totalorder %v489, 0
        %v2507 = vand.u32 %v489, 2139095040
        %v2508 = vshrl.u32 %v2507, 23
        %v2509 = vsub.s32 %v2508, 127
        %v2510 = vand.u32 2147483647, %v489
        %v2511 = vand.u32 %v2510, 8388607
        %v2512 = vor.u32 %v2511, 8388608
        %v2513 = vsub.s32 0, %v2512
        %v2514 = vadd.s32 %v2509, 1
        %vm2515 = vcmp.gt.s32.totalorder %v2514, 0
        %v2516 = vsel %vm2515, %v2514, 0
        %v2517 = vshrl.u32 %v2516, 5
        %v2518 = vand.u32 %v2516, 31
        %v2519 = vsub.s32 32, %v2518
        %v2520 = vshrl.u32 683565275, %v2519
        %v2521 = vshll.u32 683565275, %v2518
        %v2522 = vshrl.u32 2475754826, %v2519
        %v2523 = vor.u32 %v2521, %v2522
        %v2524 = vshll.u32 2475754826, %v2518
        %v2525 = vshrl.u32 2131351028, %v2519
        %v2526 = vor.u32 %v2524, %v2525
        %v2527 = vshll.u32 2131351028, %v2518
        %v2528 = vshrl.u32 2102212464, %v2519
        %v2529 = vor.u32 %v2527, %v2528
        %v2530 = vshll.u32 2102212464, %v2518
        %v2531 = vshrl.u32 920167782, %v2519
        %v2532 = vor.u32 %v2530, %v2531
        %v2533 = vshll.u32 920167782, %v2518
        %v2534 = vshrl.u32 1326507024, %v2519
        %v2535 = vor.u32 %v2533, %v2534
        %vm2536 = vcmp.lt.s32.totalorder %v2517, 1
        %vm2537 = vcmp.lt.s32.totalorder %v2517, 2
        %vm2538 = vcmp.lt.s32.totalorder %v2517, 3
        %vm2539 = vcmp.lt.s32.totalorder %v2517, 4
        %v2540 = vsel %vm2536, %v2520, %v2523
        %v2541 = vsel %vm2539, %v2529, 2102212464
        %v2542 = vsel %vm2538, %v2526, %v2541
        %v2543 = vsel %vm2537, %v2540, %v2542
        %v2544 = vsel %vm2536, %v2523, %v2526
        %v2545 = vsel %vm2539, %v2532, 920167782
        %v2546 = vsel %vm2538, %v2529, %v2545
        %v2547 = vsel %vm2537, %v2544, %v2546
        %v2548 = vsel %vm2536, %v2526, %v2529
        %v2549 = vsel %vm2539, %v2535, 1326507024
        %v2550 = vsel %vm2538, %v2532, %v2549
        %v2551 = vsel %vm2537, %v2548, %v2550
        %v2552 = vshll.u32 %v2512, 8
        %v2553 = vand.u32 %v2552, 65535
        %v2554 = vshrl.u32 %v2552, 16
        %v2555 = vand.u32 %v2551, 65535
        %v2556 = vshrl.u32 %v2551, 16
        %v2557 = vmul.u32 %v2553, %v2555
        %v2558 = vmul.u32 %v2553, %v2556
        %v2559 = vmul.u32 %v2554, %v2555
        %v2560 = vmul.u32 %v2554, %v2556
        %v2561 = vshll.u32 %v2558, 16
        %v2562 = vshrl.u32 %v2558, 16
        %v2563 = vshll.u32 %v2559, 16
        %v2564 = vshrl.u32 %v2559, 16
        %vm2565 = vc.u32 %v2557, %v2561
        %v2566 = vsel %vm2565, 1, 0
        %v2567 = vadd.s32 %v2557, %v2561
        %v2568 = vadd.s32 %v2560, %v2566
        %vm2569 = vc.u32 %v2567, %v2563
        %v2570 = vsel %vm2569, 1, 0
        %v2571 = vadd.s32 %v2567, %v2563
        %v2572 = vadd.s32 %v2568, %v2570
        %v2573 = vadd.s32 %v2572, %v2562
        %v2574 = vadd.s32 %v2573, %v2564
        %v2575 = vand.u32 %v2552, 65535
        %v2576 = vshrl.u32 %v2552, 16
        %v2577 = vand.u32 %v2547, 65535
        %v2578 = vshrl.u32 %v2547, 16
        %v2579 = vmul.u32 %v2575, %v2577
        %v2580 = vmul.u32 %v2575, %v2578
        %v2581 = vmul.u32 %v2576, %v2577
        %v2582 = vmul.u32 %v2576, %v2578
        %v2583 = vshll.u32 %v2580, 16
        %v2584 = vshrl.u32 %v2580, 16
        %v2585 = vshll.u32 %v2581, 16
        %v2586 = vshrl.u32 %v2581, 16
        %vm2587 = vc.u32 %v2579, %v2583
        %v2588 = vsel %vm2587, 1, 0
        %v2589 = vadd.s32 %v2579, %v2583
        %v2590 = vadd.s32 %v2582, %v2588
        %vm2591 = vc.u32 %v2589, %v2585
        %v2592 = vsel %vm2591, 1, 0
        %v2593 = vadd.s32 %v2589, %v2585
        %v2594 = vadd.s32 %v2590, %v2592
        %v2595 = vadd.s32 %v2594, %v2584
        %v2596 = vadd.s32 %v2595, %v2586
        %v2597 = vmul.u32 %v2552, %v2543
        %v2598 = vadd.s32 %v2574, %v2593
        %vm2599 = vc.u32 %v2574, %v2593
        %v2600 = vadd.s32 %v2596, 1
        %v2601 = vsel %vm2599, %v2600, %v2596
        %v2602 = vadd.s32 %v2597, %v2601
        %v2603 = vadd.s32 %v2602, 536870912
        %v2604 = vshrl.u32 %v2603, 30
        %v2605 = vshll.u32 %v2604, 30
        %v2606 = vsub.s32 %v2602, %v2605
        %vm2607 = vcmp.lt.s32.totalorder %v2606, 0
        %v2608 = vsub.s32 0, %v2606
        %v2609 = vsel %vm2607, %v2608, %v2606
        %v2610 = vclz %v2609
        %v2611 = vsub.s32 %v2610, 2
        %vm2612 = vcmp.gt.s32.totalorder 0, %v2611
        %v2613 = vsel %vm2612, 0, %v2611
        %v2614 = vsub.s32 32, %v2613
        %v2615 = vshll.u32 %v2606, %v2613
        %v2616 = vshrl.u32 %v2598, %v2614
        %v2617 = vor.u32 %v2615, %v2616
        %v2618 = vsub.s32 4294967266, %v2613
        %v2619 = vadd.s32 %v2618, 127
        %v2620 = vshll.u32 %v2619, 23
        %v2621 = vor.u32 4788187, %v2620
        %v2622 = vand.u32 2147483647, %v2621
        %v2624 = vcvt.s32.f32 %v2617
        %v2625 = vmul.f32 %v2624, %v2622
        %v2626 = vxor.u32 %v2625, 2147483648
        %v2627 = vsel %vm2506, %v2626, %v2625
        %v2628 = vsub.s32 4, %v2604
        %v2629 = vsel %vm2506, %v2628, %v2604
        %v2630 = vsel %vm2505, %v489, %v2627
        %v2631 = vsel %vm2505, 0, %v2629
        %v2632 = vmul.f32 %v2630, %v2630
        %v2633 = vmul.f32 %v2632, -0.001358992
        %v2634 = vadd.f32 %v2633, 0.041655596
        %v2635 = vmul.f32 %v2632, %v2634
        %v2636 = vadd.f32 %v2635, -0.4999988
        %v2637 = vmul.f32 %v2632, %v2636
        %v2638 = vadd.f32 1.0, %v2637
        %v2639 = vmul.f32 %v2630, %v2630
        %v2640 = vmul.f32 %v2639, -0.00019511016
        %v2641 = vadd.f32 %v2640, 0.008332121
        %v2642 = vmul.f32 %v2639, %v2641
        %v2643 = vadd.f32 %v2642, -0.16666654
        %v2644 = vmul.f32 %v2639, %v2643
        %v2645 = vadd.f32 %v2644, 1.0
        %v2646 = vmul.f32 %v2645, %v2630
        %vm2647 = vweird.f32 %v489
        %v2648 = vadd.s32 %v2631, 3
        %v2649 = vand.u32 %v2648, 3
        %vm2650 = vcmp.lt.s32.totalorder %v2649, 2
        %vm2651 = vcmp.eq.s32.totalorder %v2649, 0
        %v2652 = vxor.u32 %v2646, 2147483648
        %v2653 = vsel %vm2651, %v2638, %v2652
        %vm2654 = vcmp.eq.s32.totalorder %v2649, 2
        %v2655 = vxor.u32 %v2638, 2147483648
        %v2656 = vsel %vm2654, %v2655, %v2646
        %v2657 = vsel %vm2650, %v2653, %v2656
        %v2658 = vsel %vm2647, nan, %v2657
        %v2659 = vand.u32 2147483647, %v492
        %vm2660 = vcmp.le.f32.partialorder %v2659, 0.7853982
        %vm2661 = vcmp.lt.s32.totalorder %v492, 0
        %v2662 = vand.u32 %v492, 2139095040
        %v2663 = vshrl.u32 %v2662, 23
        %v2664 = vsub.s32 %v2663, 127
        %v2665 = vand.u32 2147483647, %v492
        %v2666 = vand.u32 %v2665, 8388607
        %v2667 = vor.u32 %v2666, 8388608
        %v2668 = vsub.s32 0, %v2667
        %v2669 = vadd.s32 %v2664, 1
        %vm2670 = vcmp.gt.s32.totalorder %v2669, 0
        %v2671 = vsel %vm2670, %v2669, 0
        %v2672 = vshrl.u32 %v2671, 5
        %v2673 = vand.u32 %v2671, 31
        %v2674 = vsub.s32 32, %v2673
        %v2675 = vshrl.u32 683565275, %v2674
        %v2676 = vshll.u32 683565275, %v2673
        %v2677 = vshrl.u32 2475754826, %v2674
        %v2678 = vor.u32 %v2676, %v2677
        %v2679 = vshll.u32 2475754826, %v2673
        %v2680 = vshrl.u32 2131351028, %v2674
        %v2681 = vor.u32 %v2679, %v2680
        %v2682 = vshll.u32 2131351028, %v2673
        %v2683 = vshrl.u32 2102212464, %v2674
        %v2684 = vor.u32 %v2682, %v2683
        %v2685 = vshll.u32 2102212464, %v2673
        %v2686 = vshrl.u32 920167782, %v2674
        %v2687 = vor.u32 %v2685, %v2686
        %v2688 = vshll.u32 920167782, %v2673
        %v2689 = vshrl.u32 1326507024, %v2674
        %v2690 = vor.u32 %v2688, %v2689
        %vm2691 = vcmp.lt.s32.totalorder %v2672, 1
        %vm2692 = vcmp.lt.s32.totalorder %v2672, 2
        %vm2693 = vcmp.lt.s32.totalorder %v2672, 3
        %vm2694 = vcmp.lt.s32.totalorder %v2672, 4
        %v2695 = vsel %vm2691, %v2675, %v2678
        %v2696 = vsel %vm2694, %v2684, 2102212464
        %v2697 = vsel %vm2693, %v2681, %v2696
        %v2698 = vsel %vm2692, %v2695, %v2697
        %v2699 = vsel %vm2691, %v2678, %v2681
        %v2700 = vsel %vm2694, %v2687, 920167782
        %v2701 = vsel %vm2693, %v2684, %v2700
        %v2702 = vsel %vm2692, %v2699, %v2701
        %v2703 = vsel %vm2691, %v2681, %v2684
        %v2704 = vsel %vm2694, %v2690, 1326507024
        %v2705 = vsel %vm2693, %v2687, %v2704
        %v2706 = vsel %vm2692, %v2703, %v2705
        %v2707 = vshll.u32 %v2667, 8
        %v2708 = vand.u32 %v2707, 65535
        %v2709 = vshrl.u32 %v2707, 16
        %v2710 = vand.u32 %v2706, 65535
        %v2711 = vshrl.u32 %v2706, 16
        %v2712 = vmul.u32 %v2708, %v2710
        %v2713 = vmul.u32 %v2708, %v2711
        %v2714 = vmul.u32 %v2709, %v2710
        %v2715 = vmul.u32 %v2709, %v2711
        %v2716 = vshll.u32 %v2713, 16
        %v2717 = vshrl.u32 %v2713, 16
        %v2718 = vshll.u32 %v2714, 16
        %v2719 = vshrl.u32 %v2714, 16
        %vm2720 = vc.u32 %v2712, %v2716
        %v2721 = vsel %vm2720, 1, 0
        %v2722 = vadd.s32 %v2712, %v2716
        %v2723 = vadd.s32 %v2715, %v2721
        %vm2724 = vc.u32 %v2722, %v2718
        %v2725 = vsel %vm2724, 1, 0
        %v2726 = vadd.s32 %v2722, %v2718
        %v2727 = vadd.s32 %v2723, %v2725
        %v2728 = vadd.s32 %v2727, %v2717
        %v2729 = vadd.s32 %v2728, %v2719
        %v2730 = vand.u32 %v2707, 65535
        %v2731 = vshrl.u32 %v2707, 16
        %v2732 = vand.u32 %v2702, 65535
        %v2733 = vshrl.u32 %v2702, 16
        %v2734 = vmul.u32 %v2730, %v2732
        %v2735 = vmul.u32 %v2730, %v2733
        %v2736 = vmul.u32 %v2731, %v2732
        %v2737 = vmul.u32 %v2731, %v2733
        %v2738 = vshll.u32 %v2735, 16
        %v2739 = vshrl.u32 %v2735, 16
        %v2740 = vshll.u32 %v2736, 16
        %v2741 = vshrl.u32 %v2736, 16
        %vm2742 = vc.u32 %v2734, %v2738
        %v2743 = vsel %vm2742, 1, 0
        %v2744 = vadd.s32 %v2734, %v2738
        %v2745 = vadd.s32 %v2737, %v2743
        %vm2746 = vc.u32 %v2744, %v2740
        %v2747 = vsel %vm2746, 1, 0
        %v2748 = vadd.s32 %v2744, %v2740
        %v2749 = vadd.s32 %v2745, %v2747
        %v2750 = vadd.s32 %v2749, %v2739
        %v2751 = vadd.s32 %v2750, %v2741
        %v2752 = vmul.u32 %v2707, %v2698
        %v2753 = vadd.s32 %v2729, %v2748
        %vm2754 = vc.u32 %v2729, %v2748
        %v2755 = vadd.s32 %v2751, 1
        %v2756 = vsel %vm2754, %v2755, %v2751
        %v2757 = vadd.s32 %v2752, %v2756
        %v2758 = vadd.s32 %v2757, 536870912
        %v2759 = vshrl.u32 %v2758, 30
        %v2760 = vshll.u32 %v2759, 30
        %v2761 = vsub.s32 %v2757, %v2760
        %vm2762 = vcmp.lt.s32.totalorder %v2761, 0
        %v2763 = vsub.s32 0, %v2761
        %v2764 = vsel %vm2762, %v2763, %v2761
        %v2765 = vclz %v2764
        %v2766 = vsub.s32 %v2765, 2
        %vm2767 = vcmp.gt.s32.totalorder 0, %v2766
        %v2768 = vsel %vm2767, 0, %v2766
        %v2769 = vsub.s32 32, %v2768
        %v2770 = vshll.u32 %v2761, %v2768
        %v2771 = vshrl.u32 %v2753, %v2769
        %v2772 = vor.u32 %v2770, %v2771
        %v2773 = vsub.s32 4294967266, %v2768
        %v2774 = vadd.s32 %v2773, 127
        %v2775 = vshll.u32 %v2774, 23
        %v2776 = vor.u32 4788187, %v2775
        %v2777 = vand.u32 2147483647, %v2776
        %v2779 = vcvt.s32.f32 %v2772
        %v2780 = vmul.f32 %v2779, %v2777
        %v2781 = vxor.u32 %v2780, 2147483648
        %v2782 = vsel %vm2661, %v2781, %v2780
        %v2783 = vsub.s32 4, %v2759
        %v2784 = vsel %vm2661, %v2783, %v2759
        %v2785 = vsel %vm2660, %v492, %v2782
        %v2786 = vsel %vm2660, 0, %v2784
        %v2787 = vmul.f32 %v2785, %v2785
        %v2788 = vmul.f32 %v2787, -0.001358992
        %v2789 = vadd.f32 %v2788, 0.041655596
        %v2790 = vmul.f32 %v2787, %v2789
        %v2791 = vadd.f32 %v2790, -0.4999988
        %v2792 = vmul.f32 %v2787, %v2791
        %v2793 = vadd.f32 1.0, %v2792
        %v2794 = vmul.f32 %v2785, %v2785
        %v2795 = vmul.f32 %v2794, -0.00019511016
        %v2796 = vadd.f32 %v2795, 0.008332121
        %v2797 = vmul.f32 %v2794, %v2796
        %v2798 = vadd.f32 %v2797, -0.16666654
        %v2799 = vmul.f32 %v2794, %v2798
        %v2800 = vadd.f32 %v2799, 1.0
        %v2801 = vmul.f32 %v2800, %v2785
        %vm2802 = vweird.f32 %v492
        %v2803 = vadd.s32 %v2786, 3
        %v2804 = vand.u32 %v2803, 3
        %vm2805 = vcmp.lt.s32.totalorder %v2804, 2
        %vm2806 = vcmp.eq.s32.totalorder %v2804, 0
        %v2807 = vxor.u32 %v2801, 2147483648
        %v2808 = vsel %vm2806, %v2793, %v2807
        %vm2809 = vcmp.eq.s32.totalorder %v2804, 2
        %v2810 = vxor.u32 %v2793, 2147483648
        %v2811 = vsel %vm2809, %v2810, %v2801
        %v2812 = vsel %vm2805, %v2808, %v2811
        %v2813 = vsel %vm2802, nan, %v2812
        %v2814 = vand.u32 2147483647, %v495
        %vm2815 = vcmp.le.f32.partialorder %v2814, 0.7853982
        %vm2816 = vcmp.lt.s32.totalorder %v495, 0
        %v2817 = vand.u32 %v495, 2139095040
        %v2818 = vshrl.u32 %v2817, 23
        %v2819 = vsub.s32 %v2818, 127
        %v2820 = vand.u32 2147483647, %v495
        %v2821 = vand.u32 %v2820, 8388607
        %v2822 = vor.u32 %v2821, 8388608
        %v2823 = vsub.s32 0, %v2822
        %v2824 = vadd.s32 %v2819, 1
        %vm2825 = vcmp.gt.s32.totalorder %v2824, 0
        %v2826 = vsel %vm2825, %v2824, 0
        %v2827 = vshrl.u32 %v2826, 5
        %v2828 = vand.u32 %v2826, 31
        %v2829 = vsub.s32 32, %v2828
        %v2830 = vshrl.u32 683565275, %v2829
        %v2831 = vshll.u32 683565275, %v2828
        %v2832 = vshrl.u32 2475754826, %v2829
        %v2833 = vor.u32 %v2831, %v2832
        %v2834 = vshll.u32 2475754826, %v2828
        %v2835 = vshrl.u32 2131351028, %v2829
        %v2836 = vor.u32 %v2834, %v2835
        %v2837 = vshll.u32 2131351028, %v2828
        %v2838 = vshrl.u32 2102212464, %v2829
        %v2839 = vor.u32 %v2837, %v2838
        %v2840 = vshll.u32 2102212464, %v2828
        %v2841 = vshrl.u32 920167782, %v2829
        %v2842 = vor.u32 %v2840, %v2841
        %v2843 = vshll.u32 920167782, %v2828
        %v2844 = vshrl.u32 1326507024, %v2829
        %v2845 = vor.u32 %v2843, %v2844
        %vm2846 = vcmp.lt.s32.totalorder %v2827, 1
        %vm2847 = vcmp.lt.s32.totalorder %v2827, 2
        %vm2848 = vcmp.lt.s32.totalorder %v2827, 3
        %vm2849 = vcmp.lt.s32.totalorder %v2827, 4
        %v2850 = vsel %vm2846, %v2830, %v2833
        %v2851 = vsel %vm2849, %v2839, 2102212464
        %v2852 = vsel %vm2848, %v2836, %v2851
        %v2853 = vsel %vm2847, %v2850, %v2852
        %v2854 = vsel %vm2846, %v2833, %v2836
        %v2855 = vsel %vm2849, %v2842, 920167782
        %v2856 = vsel %vm2848, %v2839, %v2855
        %v2857 = vsel %vm2847, %v2854, %v2856
        %v2858 = vsel %vm2846, %v2836, %v2839
        %v2859 = vsel %vm2849, %v2845, 1326507024
        %v2860 = vsel %vm2848, %v2842, %v2859
        %v2861 = vsel %vm2847, %v2858, %v2860
        %v2862 = vshll.u32 %v2822, 8
        %v2863 = vand.u32 %v2862, 65535
        %v2864 = vshrl.u32 %v2862, 16
        %v2865 = vand.u32 %v2861, 65535
        %v2866 = vshrl.u32 %v2861, 16
        %v2867 = vmul.u32 %v2863, %v2865
        %v2868 = vmul.u32 %v2863, %v2866
        %v2869 = vmul.u32 %v2864, %v2865
        %v2870 = vmul.u32 %v2864, %v2866
        %v2871 = vshll.u32 %v2868, 16
        %v2872 = vshrl.u32 %v2868, 16
        %v2873 = vshll.u32 %v2869, 16
        %v2874 = vshrl.u32 %v2869, 16
        %vm2875 = vc.u32 %v2867, %v2871
        %v2876 = vsel %vm2875, 1, 0
        %v2877 = vadd.s32 %v2867, %v2871
        %v2878 = vadd.s32 %v2870, %v2876
        %vm2879 = vc.u32 %v2877, %v2873
        %v2880 = vsel %vm2879, 1, 0
        %v2881 = vadd.s32 %v2877, %v2873
        %v2882 = vadd.s32 %v2878, %v2880
        %v2883 = vadd.s32 %v2882, %v2872
        %v2884 = vadd.s32 %v2883, %v2874
        %v2885 = vand.u32 %v2862, 65535
        %v2886 = vshrl.u32 %v2862, 16
        %v2887 = vand.u32 %v2857, 65535
        %v2888 = vshrl.u32 %v2857, 16
        %v2889 = vmul.u32 %v2885, %v2887
        %v2890 = vmul.u32 %v2885, %v2888
        %v2891 = vmul.u32 %v2886, %v2887
        %v2892 = vmul.u32 %v2886, %v2888
        %v2893 = vshll.u32 %v2890, 16
        %v2894 = vshrl.u32 %v2890, 16
        %v2895 = vshll.u32 %v2891, 16
        %v2896 = vshrl.u32 %v2891, 16
        %vm2897 = vc.u32 %v2889, %v2893
        %v2898 = vsel %vm2897, 1, 0
        %v2899 = vadd.s32 %v2889, %v2893
        %v2900 = vadd.s32 %v2892, %v2898
        %vm2901 = vc.u32 %v2899, %v2895
        %v2902 = vsel %vm2901, 1, 0
        %v2903 = vadd.s32 %v2899, %v2895
        %v2904 = vadd.s32 %v2900, %v2902
        %v2905 = vadd.s32 %v2904, %v2894
        %v2906 = vadd.s32 %v2905, %v2896
        %v2907 = vmul.u32 %v2862, %v2853
        %v2908 = vadd.s32 %v2884, %v2903
        %vm2909 = vc.u32 %v2884, %v2903
        %v2910 = vadd.s32 %v2906, 1
        %v2911 = vsel %vm2909, %v2910, %v2906
        %v2912 = vadd.s32 %v2907, %v2911
        %v2913 = vadd.s32 %v2912, 536870912
        %v2914 = vshrl.u32 %v2913, 30
        %v2915 = vshll.u32 %v2914, 30
        %v2916 = vsub.s32 %v2912, %v2915
        %vm2917 = vcmp.lt.s32.totalorder %v2916, 0
        %v2918 = vsub.s32 0, %v2916
        %v2919 = vsel %vm2917, %v2918, %v2916
        %v2920 = vclz %v2919
        %v2921 = vsub.s32 %v2920, 2
        %vm2922 = vcmp.gt.s32.totalorder 0, %v2921
        %v2923 = vsel %vm2922, 0, %v2921
        %v2924 = vsub.s32 32, %v2923
        %v2925 = vshll.u32 %v2916, %v2923
        %v2926 = vshrl.u32 %v2908, %v2924
        %v2927 = vor.u32 %v2925, %v2926
        %v2928 = vsub.s32 4294967266, %v2923
        %v2929 = vadd.s32 %v2928, 127
        %v2930 = vshll.u32 %v2929, 23
        %v2931 = vor.u32 4788187, %v2930
        %v2932 = vand.u32 2147483647, %v2931
        %v2934 = vcvt.s32.f32 %v2927
        %v2935 = vmul.f32 %v2934, %v2932
        %v2936 = vxor.u32 %v2935, 2147483648
        %v2937 = vsel %vm2816, %v2936, %v2935
        %v2938 = vsub.s32 4, %v2914
        %v2939 = vsel %vm2816, %v2938, %v2914
        %v2940 = vsel %vm2815, %v495, %v2937
        %v2941 = vsel %vm2815, 0, %v2939
        %v2942 = vmul.f32 %v2940, %v2940
        %v2943 = vmul.f32 %v2942, -0.001358992
        %v2944 = vadd.f32 %v2943, 0.041655596
        %v2945 = vmul.f32 %v2942, %v2944
        %v2946 = vadd.f32 %v2945, -0.4999988
        %v2947 = vmul.f32 %v2942, %v2946
        %v2948 = vadd.f32 1.0, %v2947
        %v2949 = vmul.f32 %v2940, %v2940
        %v2950 = vmul.f32 %v2949, -0.00019511016
        %v2951 = vadd.f32 %v2950, 0.008332121
        %v2952 = vmul.f32 %v2949, %v2951
        %v2953 = vadd.f32 %v2952, -0.16666654
        %v2954 = vmul.f32 %v2949, %v2953
        %v2955 = vadd.f32 %v2954, 1.0
        %v2956 = vmul.f32 %v2955, %v2940
        %vm2957 = vweird.f32 %v495
        %v2958 = vadd.s32 %v2941, 3
        %v2959 = vand.u32 %v2958, 3
        %vm2960 = vcmp.lt.s32.totalorder %v2959, 2
        %vm2961 = vcmp.eq.s32.totalorder %v2959, 0
        %v2962 = vxor.u32 %v2956, 2147483648
        %v2963 = vsel %vm2961, %v2948, %v2962
        %vm2964 = vcmp.eq.s32.totalorder %v2959, 2
        %v2965 = vxor.u32 %v2948, 2147483648
        %v2966 = vsel %vm2964, %v2965, %v2956
        %v2967 = vsel %vm2960, %v2963, %v2966
        %v2968 = vsel %vm2957, nan, %v2967
        %v2969 = vand.u32 2147483647, %v498
        %vm2970 = vcmp.le.f32.partialorder %v2969, 0.7853982
        %vm2971 = vcmp.lt.s32.totalorder %v498, 0
        %v2972 = vand.u32 %v498, 2139095040
        %v2973 = vshrl.u32 %v2972, 23
        %v2974 = vsub.s32 %v2973, 127
        %v2975 = vand.u32 2147483647, %v498
        %v2976 = vand.u32 %v2975, 8388607
        %v2977 = vor.u32 %v2976, 8388608
        %v2978 = vsub.s32 0, %v2977
        %v2979 = vadd.s32 %v2974, 1
        %vm2980 = vcmp.gt.s32.totalorder %v2979, 0
        %v2981 = vsel %vm2980, %v2979, 0
        %v2982 = vshrl.u32 %v2981, 5
        %v2983 = vand.u32 %v2981, 31
        %v2984 = vsub.s32 32, %v2983
        %v2985 = vshrl.u32 683565275, %v2984
        %v2986 = vshll.u32 683565275, %v2983
        %v2987 = vshrl.u32 2475754826, %v2984
        %v2988 = vor.u32 %v2986, %v2987
        %v2989 = vshll.u32 2475754826, %v2983
        %v2990 = vshrl.u32 2131351028, %v2984
        %v2991 = vor.u32 %v2989, %v2990
        %v2992 = vshll.u32 2131351028, %v2983
        %v2993 = vshrl.u32 2102212464, %v2984
        %v2994 = vor.u32 %v2992, %v2993
        %v2995 = vshll.u32 2102212464, %v2983
        %v2996 = vshrl.u32 920167782, %v2984
        %v2997 = vor.u32 %v2995, %v2996
        %v2998 = vshll.u32 920167782, %v2983
        %v2999 = vshrl.u32 1326507024, %v2984
        %v3000 = vor.u32 %v2998, %v2999
        %vm3001 = vcmp.lt.s32.totalorder %v2982, 1
        %vm3002 = vcmp.lt.s32.totalorder %v2982, 2
        %vm3003 = vcmp.lt.s32.totalorder %v2982, 3
        %vm3004 = vcmp.lt.s32.totalorder %v2982, 4
        %v3005 = vsel %vm3001, %v2985, %v2988
        %v3006 = vsel %vm3004, %v2994, 2102212464
        %v3007 = vsel %vm3003, %v2991, %v3006
        %v3008 = vsel %vm3002, %v3005, %v3007
        %v3009 = vsel %vm3001, %v2988, %v2991
        %v3010 = vsel %vm3004, %v2997, 920167782
        %v3011 = vsel %vm3003, %v2994, %v3010
        %v3012 = vsel %vm3002, %v3009, %v3011
        %v3013 = vsel %vm3001, %v2991, %v2994
        %v3014 = vsel %vm3004, %v3000, 1326507024
        %v3015 = vsel %vm3003, %v2997, %v3014
        %v3016 = vsel %vm3002, %v3013, %v3015
        %v3017 = vshll.u32 %v2977, 8
        %v3018 = vand.u32 %v3017, 65535
        %v3019 = vshrl.u32 %v3017, 16
        %v3020 = vand.u32 %v3016, 65535
        %v3021 = vshrl.u32 %v3016, 16
        %v3022 = vmul.u32 %v3018, %v3020
        %v3023 = vmul.u32 %v3018, %v3021
        %v3024 = vmul.u32 %v3019, %v3020
        %v3025 = vmul.u32 %v3019, %v3021
        %v3026 = vshll.u32 %v3023, 16
        %v3027 = vshrl.u32 %v3023, 16
        %v3028 = vshll.u32 %v3024, 16
        %v3029 = vshrl.u32 %v3024, 16
        %vm3030 = vc.u32 %v3022, %v3026
        %v3031 = vsel %vm3030, 1, 0
        %v3032 = vadd.s32 %v3022, %v3026
        %v3033 = vadd.s32 %v3025, %v3031
        %vm3034 = vc.u32 %v3032, %v3028
        %v3035 = vsel %vm3034, 1, 0
        %v3036 = vadd.s32 %v3032, %v3028
        %v3037 = vadd.s32 %v3033, %v3035
        %v3038 = vadd.s32 %v3037, %v3027
        %v3039 = vadd.s32 %v3038, %v3029
        %v3040 = vand.u32 %v3017, 65535
        %v3041 = vshrl.u32 %v3017, 16
        %v3042 = vand.u32 %v3012, 65535
        %v3043 = vshrl.u32 %v3012, 16
        %v3044 = vmul.u32 %v3040, %v3042
        %v3045 = vmul.u32 %v3040, %v3043
        %v3046 = vmul.u32 %v3041, %v3042
        %v3047 = vmul.u32 %v3041, %v3043
        %v3048 = vshll.u32 %v3045, 16
        %v3049 = vshrl.u32 %v3045, 16
        %v3050 = vshll.u32 %v3046, 16
        %v3051 = vshrl.u32 %v3046, 16
        %vm3052 = vc.u32 %v3044, %v3048
        %v3053 = vsel %vm3052, 1, 0
        %v3054 = vadd.s32 %v3044, %v3048
        %v3055 = vadd.s32 %v3047, %v3053
        %vm3056 = vc.u32 %v3054, %v3050
        %v3057 = vsel %vm3056, 1, 0
        %v3058 = vadd.s32 %v3054, %v3050
        %v3059 = vadd.s32 %v3055, %v3057
        %v3060 = vadd.s32 %v3059, %v3049
        %v3061 = vadd.s32 %v3060, %v3051
        %v3062 = vmul.u32 %v3017, %v3008
        %v3063 = vadd.s32 %v3039, %v3058
        %vm3064 = vc.u32 %v3039, %v3058
        %v3065 = vadd.s32 %v3061, 1
        %v3066 = vsel %vm3064, %v3065, %v3061
        %v3067 = vadd.s32 %v3062, %v3066
        %v3068 = vadd.s32 %v3067, 536870912
        %v3069 = vshrl.u32 %v3068, 30
        %v3070 = vshll.u32 %v3069, 30
        %v3071 = vsub.s32 %v3067, %v3070
        %vm3072 = vcmp.lt.s32.totalorder %v3071, 0
        %v3073 = vsub.s32 0, %v3071
        %v3074 = vsel %vm3072, %v3073, %v3071
        %v3075 = vclz %v3074
        %v3076 = vsub.s32 %v3075, 2
        %vm3077 = vcmp.gt.s32.totalorder 0, %v3076
        %v3078 = vsel %vm3077, 0, %v3076
        %v3079 = vsub.s32 32, %v3078
        %v3080 = vshll.u32 %v3071, %v3078
        %v3081 = vshrl.u32 %v3063, %v3079
        %v3082 = vor.u32 %v3080, %v3081
        %v3083 = vsub.s32 4294967266, %v3078
        %v3084 = vadd.s32 %v3083, 127
        %v3085 = vshll.u32 %v3084, 23
        %v3086 = vor.u32 4788187, %v3085
        %v3087 = vand.u32 2147483647, %v3086
        %v3089 = vcvt.s32.f32 %v3082
        %v3090 = vmul.f32 %v3089, %v3087
        %v3091 = vxor.u32 %v3090, 2147483648
        %v3092 = vsel %vm2971, %v3091, %v3090
        %v3093 = vsub.s32 4, %v3069
        %v3094 = vsel %vm2971, %v3093, %v3069
        %v3095 = vsel %vm2970, %v498, %v3092
        %v3096 = vsel %vm2970, 0, %v3094
        %v3097 = vmul.f32 %v3095, %v3095
        %v3098 = vmul.f32 %v3097, -0.001358992
        %v3099 = vadd.f32 %v3098, 0.041655596
        %v3100 = vmul.f32 %v3097, %v3099
        %v3101 = vadd.f32 %v3100, -0.4999988
        %v3102 = vmul.f32 %v3097, %v3101
        %v3103 = vadd.f32 1.0, %v3102
        %v3104 = vmul.f32 %v3095, %v3095
        %v3105 = vmul.f32 %v3104, -0.00019511016
        %v3106 = vadd.f32 %v3105, 0.008332121
        %v3107 = vmul.f32 %v3104, %v3106
        %v3108 = vadd.f32 %v3107, -0.16666654
        %v3109 = vmul.f32 %v3104, %v3108
        %v3110 = vadd.f32 %v3109, 1.0
        %v3111 = vmul.f32 %v3110, %v3095
        %vm3112 = vweird.f32 %v498
        %v3113 = vadd.s32 %v3096, 3
        %v3114 = vand.u32 %v3113, 3
        %vm3115 = vcmp.lt.s32.totalorder %v3114, 2
        %vm3116 = vcmp.eq.s32.totalorder %v3114, 0
        %v3117 = vxor.u32 %v3111, 2147483648
        %v3118 = vsel %vm3116, %v3103, %v3117
        %vm3119 = vcmp.eq.s32.totalorder %v3114, 2
        %v3120 = vxor.u32 %v3103, 2147483648
        %v3121 = vsel %vm3119, %v3120, %v3111
        %v3122 = vsel %vm3115, %v3118, %v3121
        %v3123 = vsel %vm3112, nan, %v3122
        %v3124 = vand.u32 2147483647, %v501
        %vm3125 = vcmp.le.f32.partialorder %v3124, 0.7853982
        %vm3126 = vcmp.lt.s32.totalorder %v501, 0
        %v3127 = vand.u32 %v501, 2139095040
        %v3128 = vshrl.u32 %v3127, 23
        %v3129 = vsub.s32 %v3128, 127
        %v3130 = vand.u32 2147483647, %v501
        %v3131 = vand.u32 %v3130, 8388607
        %v3132 = vor.u32 %v3131, 8388608
        %v3133 = vsub.s32 0, %v3132
        %v3134 = vadd.s32 %v3129, 1
        %vm3135 = vcmp.gt.s32.totalorder %v3134, 0
        %v3136 = vsel %vm3135, %v3134, 0
        %v3137 = vshrl.u32 %v3136, 5
        %v3138 = vand.u32 %v3136, 31
        %v3139 = vsub.s32 32, %v3138
        %v3140 = vshrl.u32 683565275, %v3139
        %v3141 = vshll.u32 683565275, %v3138
        %v3142 = vshrl.u32 2475754826, %v3139
        %v3143 = vor.u32 %v3141, %v3142
        %v3144 = vshll.u32 2475754826, %v3138
        %v3145 = vshrl.u32 2131351028, %v3139
        %v3146 = vor.u32 %v3144, %v3145
        %v3147 = vshll.u32 2131351028, %v3138
        %v3148 = vshrl.u32 2102212464, %v3139
        %v3149 = vor.u32 %v3147, %v3148
        %v3150 = vshll.u32 2102212464, %v3138
        %v3151 = vshrl.u32 920167782, %v3139
        %v3152 = vor.u32 %v3150, %v3151
        %v3153 = vshll.u32 920167782, %v3138
        %v3154 = vshrl.u32 1326507024, %v3139
        %v3155 = vor.u32 %v3153, %v3154
        %vm3156 = vcmp.lt.s32.totalorder %v3137, 1
        %vm3157 = vcmp.lt.s32.totalorder %v3137, 2
        %vm3158 = vcmp.lt.s32.totalorder %v3137, 3
        %vm3159 = vcmp.lt.s32.totalorder %v3137, 4
        %v3160 = vsel %vm3156, %v3140, %v3143
        %v3161 = vsel %vm3159, %v3149, 2102212464
        %v3162 = vsel %vm3158, %v3146, %v3161
        %v3163 = vsel %vm3157, %v3160, %v3162
        %v3164 = vsel %vm3156, %v3143, %v3146
        %v3165 = vsel %vm3159, %v3152, 920167782
        %v3166 = vsel %vm3158, %v3149, %v3165
        %v3167 = vsel %vm3157, %v3164, %v3166
        %v3168 = vsel %vm3156, %v3146, %v3149
        %v3169 = vsel %vm3159, %v3155, 1326507024
        %v3170 = vsel %vm3158, %v3152, %v3169
        %v3171 = vsel %vm3157, %v3168, %v3170
        %v3172 = vshll.u32 %v3132, 8
        %v3173 = vand.u32 %v3172, 65535
        %v3174 = vshrl.u32 %v3172, 16
        %v3175 = vand.u32 %v3171, 65535
        %v3176 = vshrl.u32 %v3171, 16
        %v3177 = vmul.u32 %v3173, %v3175
        %v3178 = vmul.u32 %v3173, %v3176
        %v3179 = vmul.u32 %v3174, %v3175
        %v3180 = vmul.u32 %v3174, %v3176
        %v3181 = vshll.u32 %v3178, 16
        %v3182 = vshrl.u32 %v3178, 16
        %v3183 = vshll.u32 %v3179, 16
        %v3184 = vshrl.u32 %v3179, 16
        %vm3185 = vc.u32 %v3177, %v3181
        %v3186 = vsel %vm3185, 1, 0
        %v3187 = vadd.s32 %v3177, %v3181
        %v3188 = vadd.s32 %v3180, %v3186
        %vm3189 = vc.u32 %v3187, %v3183
        %v3190 = vsel %vm3189, 1, 0
        %v3191 = vadd.s32 %v3187, %v3183
        %v3192 = vadd.s32 %v3188, %v3190
        %v3193 = vadd.s32 %v3192, %v3182
        %v3194 = vadd.s32 %v3193, %v3184
        %v3195 = vand.u32 %v3172, 65535
        %v3196 = vshrl.u32 %v3172, 16
        %v3197 = vand.u32 %v3167, 65535
        %v3198 = vshrl.u32 %v3167, 16
        %v3199 = vmul.u32 %v3195, %v3197
        %v3200 = vmul.u32 %v3195, %v3198
        %v3201 = vmul.u32 %v3196, %v3197
        %v3202 = vmul.u32 %v3196, %v3198
        %v3203 = vshll.u32 %v3200, 16
        %v3204 = vshrl.u32 %v3200, 16
        %v3205 = vshll.u32 %v3201, 16
        %v3206 = vshrl.u32 %v3201, 16
        %vm3207 = vc.u32 %v3199, %v3203
        %v3208 = vsel %vm3207, 1, 0
        %v3209 = vadd.s32 %v3199, %v3203
        %v3210 = vadd.s32 %v3202, %v3208
        %vm3211 = vc.u32 %v3209, %v3205
        %v3212 = vsel %vm3211, 1, 0
        %v3213 = vadd.s32 %v3209, %v3205
        %v3214 = vadd.s32 %v3210, %v3212
        %v3215 = vadd.s32 %v3214, %v3204
        %v3216 = vadd.s32 %v3215, %v3206
        %v3217 = vmul.u32 %v3172, %v3163
        %v3218 = vadd.s32 %v3194, %v3213
        %vm3219 = vc.u32 %v3194, %v3213
        %v3220 = vadd.s32 %v3216, 1
        %v3221 = vsel %vm3219, %v3220, %v3216
        %v3222 = vadd.s32 %v3217, %v3221
        %v3223 = vadd.s32 %v3222, 536870912
        %v3224 = vshrl.u32 %v3223, 30
        %v3225 = vshll.u32 %v3224, 30
        %v3226 = vsub.s32 %v3222, %v3225
        %vm3227 = vcmp.lt.s32.totalorder %v3226, 0
        %v3228 = vsub.s32 0, %v3226
        %v3229 = vsel %vm3227, %v3228, %v3226
        %v3230 = vclz %v3229
        %v3231 = vsub.s32 %v3230, 2
        %vm3232 = vcmp.gt.s32.totalorder 0, %v3231
        %v3233 = vsel %vm3232, 0, %v3231
        %v3234 = vsub.s32 32, %v3233
        %v3235 = vshll.u32 %v3226, %v3233
        %v3236 = vshrl.u32 %v3218, %v3234
        %v3237 = vor.u32 %v3235, %v3236
        %v3238 = vsub.s32 4294967266, %v3233
        %v3239 = vadd.s32 %v3238, 127
        %v3240 = vshll.u32 %v3239, 23
        %v3241 = vor.u32 4788187, %v3240
        %v3242 = vand.u32 2147483647, %v3241
        %v3244 = vcvt.s32.f32 %v3237
        %v3245 = vmul.f32 %v3244, %v3242
        %v3246 = vxor.u32 %v3245, 2147483648
        %v3247 = vsel %vm3126, %v3246, %v3245
        %v3248 = vsub.s32 4, %v3224
        %v3249 = vsel %vm3126, %v3248, %v3224
        %v3250 = vsel %vm3125, %v501, %v3247
        %v3251 = vsel %vm3125, 0, %v3249
        %v3252 = vmul.f32 %v3250, %v3250
        %v3253 = vmul.f32 %v3252, -0.001358992
        %v3254 = vadd.f32 %v3253, 0.041655596
        %v3255 = vmul.f32 %v3252, %v3254
        %v3256 = vadd.f32 %v3255, -0.4999988
        %v3257 = vmul.f32 %v3252, %v3256
        %v3258 = vadd.f32 1.0, %v3257
        %v3259 = vmul.f32 %v3250, %v3250
        %v3260 = vmul.f32 %v3259, -0.00019511016
        %v3261 = vadd.f32 %v3260, 0.008332121
        %v3262 = vmul.f32 %v3259, %v3261
        %v3263 = vadd.f32 %v3262, -0.16666654
        %v3264 = vmul.f32 %v3259, %v3263
        %v3265 = vadd.f32 %v3264, 1.0
        %v3266 = vmul.f32 %v3265, %v3250
        %vm3267 = vweird.f32 %v501
        %v3268 = vadd.s32 %v3251, 3
        %v3269 = vand.u32 %v3268, 3
        %vm3270 = vcmp.lt.s32.totalorder %v3269, 2
        %vm3271 = vcmp.eq.s32.totalorder %v3269, 0
        %v3272 = vxor.u32 %v3266, 2147483648
        %v3273 = vsel %vm3271, %v3258, %v3272
        %vm3274 = vcmp.eq.s32.totalorder %v3269, 2
        %v3275 = vxor.u32 %v3258, 2147483648
        %v3276 = vsel %vm3274, %v3275, %v3266
        %v3277 = vsel %vm3270, %v3273, %v3276
        %v3278 = vsel %vm3267, nan, %v3277
        %v3279 = vand.u32 2147483647, %v504
        %vm3280 = vcmp.le.f32.partialorder %v3279, 0.7853982
        %vm3281 = vcmp.lt.s32.totalorder %v504, 0
        %v3282 = vand.u32 %v504, 2139095040
        %v3283 = vshrl.u32 %v3282, 23
        %v3284 = vsub.s32 %v3283, 127
        %v3285 = vand.u32 2147483647, %v504
        %v3286 = vand.u32 %v3285, 8388607
        %v3287 = vor.u32 %v3286, 8388608
        %v3288 = vsub.s32 0, %v3287
        %v3289 = vadd.s32 %v3284, 1
        %vm3290 = vcmp.gt.s32.totalorder %v3289, 0
        %v3291 = vsel %vm3290, %v3289, 0
        %v3292 = vshrl.u32 %v3291, 5
        %v3293 = vand.u32 %v3291, 31
        %v3294 = vsub.s32 32, %v3293
        %v3295 = vshrl.u32 683565275, %v3294
        %v3296 = vshll.u32 683565275, %v3293
        %v3297 = vshrl.u32 2475754826, %v3294
        %v3298 = vor.u32 %v3296, %v3297
        %v3299 = vshll.u32 2475754826, %v3293
        %v3300 = vshrl.u32 2131351028, %v3294
        %v3301 = vor.u32 %v3299, %v3300
        %v3302 = vshll.u32 2131351028, %v3293
        %v3303 = vshrl.u32 2102212464, %v3294
        %v3304 = vor.u32 %v3302, %v3303
        %v3305 = vshll.u32 2102212464, %v3293
        %v3306 = vshrl.u32 920167782, %v3294
        %v3307 = vor.u32 %v3305, %v3306
        %v3308 = vshll.u32 920167782, %v3293
        %v3309 = vshrl.u32 1326507024, %v3294
        %v3310 = vor.u32 %v3308, %v3309
        %vm3311 = vcmp.lt.s32.totalorder %v3292, 1
        %vm3312 = vcmp.lt.s32.totalorder %v3292, 2
        %vm3313 = vcmp.lt.s32.totalorder %v3292, 3
        %vm3314 = vcmp.lt.s32.totalorder %v3292, 4
        %v3315 = vsel %vm3311, %v3295, %v3298
        %v3316 = vsel %vm3314, %v3304, 2102212464
        %v3317 = vsel %vm3313, %v3301, %v3316
        %v3318 = vsel %vm3312, %v3315, %v3317
        %v3319 = vsel %vm3311, %v3298, %v3301
        %v3320 = vsel %vm3314, %v3307, 920167782
        %v3321 = vsel %vm3313, %v3304, %v3320
        %v3322 = vsel %vm3312, %v3319, %v3321
        %v3323 = vsel %vm3311, %v3301, %v3304
        %v3324 = vsel %vm3314, %v3310, 1326507024
        %v3325 = vsel %vm3313, %v3307, %v3324
        %v3326 = vsel %vm3312, %v3323, %v3325
        %v3327 = vshll.u32 %v3287, 8
        %v3328 = vand.u32 %v3327, 65535
        %v3329 = vshrl.u32 %v3327, 16
        %v3330 = vand.u32 %v3326, 65535
        %v3331 = vshrl.u32 %v3326, 16
        %v3332 = vmul.u32 %v3328, %v3330
        %v3333 = vmul.u32 %v3328, %v3331
        %v3334 = vmul.u32 %v3329, %v3330
        %v3335 = vmul.u32 %v3329, %v3331
        %v3336 = vshll.u32 %v3333, 16
        %v3337 = vshrl.u32 %v3333, 16
        %v3338 = vshll.u32 %v3334, 16
        %v3339 = vshrl.u32 %v3334, 16
        %vm3340 = vc.u32 %v3332, %v3336
        %v3341 = vsel %vm3340, 1, 0
        %v3342 = vadd.s32 %v3332, %v3336
        %v3343 = vadd.s32 %v3335, %v3341
        %vm3344 = vc.u32 %v3342, %v3338
        %v3345 = vsel %vm3344, 1, 0
        %v3346 = vadd.s32 %v3342, %v3338
        %v3347 = vadd.s32 %v3343, %v3345
        %v3348 = vadd.s32 %v3347, %v3337
        %v3349 = vadd.s32 %v3348, %v3339
        %v3350 = vand.u32 %v3327, 65535
        %v3351 = vshrl.u32 %v3327, 16
        %v3352 = vand.u32 %v3322, 65535
        %v3353 = vshrl.u32 %v3322, 16
        %v3354 = vmul.u32 %v3350, %v3352
        %v3355 = vmul.u32 %v3350, %v3353
        %v3356 = vmul.u32 %v3351, %v3352
        %v3357 = vmul.u32 %v3351, %v3353
        %v3358 = vshll.u32 %v3355, 16
        %v3359 = vshrl.u32 %v3355, 16
        %v3360 = vshll.u32 %v3356, 16
        %v3361 = vshrl.u32 %v3356, 16
        %vm3362 = vc.u32 %v3354, %v3358
        %v3363 = vsel %vm3362, 1, 0
        %v3364 = vadd.s32 %v3354, %v3358
        %v3365 = vadd.s32 %v3357, %v3363
        %vm3366 = vc.u32 %v3364, %v3360
        %v3367 = vsel %vm3366, 1, 0
        %v3368 = vadd.s32 %v3364, %v3360
        %v3369 = vadd.s32 %v3365, %v3367
        %v3370 = vadd.s32 %v3369, %v3359
        %v3371 = vadd.s32 %v3370, %v3361
        %v3372 = vmul.u32 %v3327, %v3318
        %v3373 = vadd.s32 %v3349, %v3368
        %vm3374 = vc.u32 %v3349, %v3368
        %v3375 = vadd.s32 %v3371, 1
        %v3376 = vsel %vm3374, %v3375, %v3371
        %v3377 = vadd.s32 %v3372, %v3376
        %v3378 = vadd.s32 %v3377, 536870912
        %v3379 = vshrl.u32 %v3378, 30
        %v3380 = vshll.u32 %v3379, 30
        %v3381 = vsub.s32 %v3377, %v3380
        %vm3382 = vcmp.lt.s32.totalorder %v3381, 0
        %v3383 = vsub.s32 0, %v3381
        %v3384 = vsel %vm3382, %v3383, %v3381
        %v3385 = vclz %v3384
        %v3386 = vsub.s32 %v3385, 2
        %vm3387 = vcmp.gt.s32.totalorder 0, %v3386
        %v3388 = vsel %vm3387, 0, %v3386
        %v3389 = vsub.s32 32, %v3388
        %v3390 = vshll.u32 %v3381, %v3388
        %v3391 = vshrl.u32 %v3373, %v3389
        %v3392 = vor.u32 %v3390, %v3391
        %v3393 = vsub.s32 4294967266, %v3388
        %v3394 = vadd.s32 %v3393, 127
        %v3395 = vshll.u32 %v3394, 23
        %v3396 = vor.u32 4788187, %v3395
        %v3397 = vand.u32 2147483647, %v3396
        %v3399 = vcvt.s32.f32 %v3392
        %v3400 = vmul.f32 %v3399, %v3397
        %v3401 = vxor.u32 %v3400, 2147483648
        %v3402 = vsel %vm3281, %v3401, %v3400
        %v3403 = vsub.s32 4, %v3379
        %v3404 = vsel %vm3281, %v3403, %v3379
        %v3405 = vsel %vm3280, %v504, %v3402
        %v3406 = vsel %vm3280, 0, %v3404
        %v3407 = vmul.f32 %v3405, %v3405
        %v3408 = vmul.f32 %v3407, -0.001358992
        %v3409 = vadd.f32 %v3408, 0.041655596
        %v3410 = vmul.f32 %v3407, %v3409
        %v3411 = vadd.f32 %v3410, -0.4999988
        %v3412 = vmul.f32 %v3407, %v3411
        %v3413 = vadd.f32 1.0, %v3412
        %v3414 = vmul.f32 %v3405, %v3405
        %v3415 = vmul.f32 %v3414, -0.00019511016
        %v3416 = vadd.f32 %v3415, 0.008332121
        %v3417 = vmul.f32 %v3414, %v3416
        %v3418 = vadd.f32 %v3417, -0.16666654
        %v3419 = vmul.f32 %v3414, %v3418
        %v3420 = vadd.f32 %v3419, 1.0
        %v3421 = vmul.f32 %v3420, %v3405
        %vm3422 = vweird.f32 %v504
        %v3423 = vadd.s32 %v3406, 3
        %v3424 = vand.u32 %v3423, 3
        %vm3425 = vcmp.lt.s32.totalorder %v3424, 2
        %vm3426 = vcmp.eq.s32.totalorder %v3424, 0
        %v3427 = vxor.u32 %v3421, 2147483648
        %v3428 = vsel %vm3426, %v3413, %v3427
        %vm3429 = vcmp.eq.s32.totalorder %v3424, 2
        %v3430 = vxor.u32 %v3413, 2147483648
        %v3431 = vsel %vm3429, %v3430, %v3421
        %v3432 = vsel %vm3425, %v3428, %v3431
        %v3433 = vsel %vm3422, nan, %v3432
        %v3434 = vand.u32 2147483647, %v507
        %vm3435 = vcmp.le.f32.partialorder %v3434, 0.7853982
        %vm3436 = vcmp.lt.s32.totalorder %v507, 0
        %v3437 = vand.u32 %v507, 2139095040
        %v3438 = vshrl.u32 %v3437, 23
        %v3439 = vsub.s32 %v3438, 127
        %v3440 = vand.u32 2147483647, %v507
        %v3441 = vand.u32 %v3440, 8388607
        %v3442 = vor.u32 %v3441, 8388608
        %v3443 = vsub.s32 0, %v3442
        %v3444 = vadd.s32 %v3439, 1
        %vm3445 = vcmp.gt.s32.totalorder %v3444, 0
        %v3446 = vsel %vm3445, %v3444, 0
        %v3447 = vshrl.u32 %v3446, 5
        %v3448 = vand.u32 %v3446, 31
        %v3449 = vsub.s32 32, %v3448
        %v3450 = vshrl.u32 683565275, %v3449
        %v3451 = vshll.u32 683565275, %v3448
        %v3452 = vshrl.u32 2475754826, %v3449
        %v3453 = vor.u32 %v3451, %v3452
        %v3454 = vshll.u32 2475754826, %v3448
        %v3455 = vshrl.u32 2131351028, %v3449
        %v3456 = vor.u32 %v3454, %v3455
        %v3457 = vshll.u32 2131351028, %v3448
        %v3458 = vshrl.u32 2102212464, %v3449
        %v3459 = vor.u32 %v3457, %v3458
        %v3460 = vshll.u32 2102212464, %v3448
        %v3461 = vshrl.u32 920167782, %v3449
        %v3462 = vor.u32 %v3460, %v3461
        %v3463 = vshll.u32 920167782, %v3448
        %v3464 = vshrl.u32 1326507024, %v3449
        %v3465 = vor.u32 %v3463, %v3464
        %vm3466 = vcmp.lt.s32.totalorder %v3447, 1
        %vm3467 = vcmp.lt.s32.totalorder %v3447, 2
        %vm3468 = vcmp.lt.s32.totalorder %v3447, 3
        %vm3469 = vcmp.lt.s32.totalorder %v3447, 4
        %v3470 = vsel %vm3466, %v3450, %v3453
        %v3471 = vsel %vm3469, %v3459, 2102212464
        %v3472 = vsel %vm3468, %v3456, %v3471
        %v3473 = vsel %vm3467, %v3470, %v3472
        %v3474 = vsel %vm3466, %v3453, %v3456
        %v3475 = vsel %vm3469, %v3462, 920167782
        %v3476 = vsel %vm3468, %v3459, %v3475
        %v3477 = vsel %vm3467, %v3474, %v3476
        %v3478 = vsel %vm3466, %v3456, %v3459
        %v3479 = vsel %vm3469, %v3465, 1326507024
        %v3480 = vsel %vm3468, %v3462, %v3479
        %v3481 = vsel %vm3467, %v3478, %v3480
        %v3482 = vshll.u32 %v3442, 8
        %v3483 = vand.u32 %v3482, 65535
        %v3484 = vshrl.u32 %v3482, 16
        %v3485 = vand.u32 %v3481, 65535
        %v3486 = vshrl.u32 %v3481, 16
        %v3487 = vmul.u32 %v3483, %v3485
        %v3488 = vmul.u32 %v3483, %v3486
        %v3489 = vmul.u32 %v3484, %v3485
        %v3490 = vmul.u32 %v3484, %v3486
        %v3491 = vshll.u32 %v3488, 16
        %v3492 = vshrl.u32 %v3488, 16
        %v3493 = vshll.u32 %v3489, 16
        %v3494 = vshrl.u32 %v3489, 16
        %vm3495 = vc.u32 %v3487, %v3491
        %v3496 = vsel %vm3495, 1, 0
        %v3497 = vadd.s32 %v3487, %v3491
        %v3498 = vadd.s32 %v3490, %v3496
        %vm3499 = vc.u32 %v3497, %v3493
        %v3500 = vsel %vm3499, 1, 0
        %v3501 = vadd.s32 %v3497, %v3493
        %v3502 = vadd.s32 %v3498, %v3500
        %v3503 = vadd.s32 %v3502, %v3492
        %v3504 = vadd.s32 %v3503, %v3494
        %v3505 = vand.u32 %v3482, 65535
        %v3506 = vshrl.u32 %v3482, 16
        %v3507 = vand.u32 %v3477, 65535
        %v3508 = vshrl.u32 %v3477, 16
        %v3509 = vmul.u32 %v3505, %v3507
        %v3510 = vmul.u32 %v3505, %v3508
        %v3511 = vmul.u32 %v3506, %v3507
        %v3512 = vmul.u32 %v3506, %v3508
        %v3513 = vshll.u32 %v3510, 16
        %v3514 = vshrl.u32 %v3510, 16
        %v3515 = vshll.u32 %v3511, 16
        %v3516 = vshrl.u32 %v3511, 16
        %vm3517 = vc.u32 %v3509, %v3513
        %v3518 = vsel %vm3517, 1, 0
        %v3519 = vadd.s32 %v3509, %v3513
        %v3520 = vadd.s32 %v3512, %v3518
        %vm3521 = vc.u32 %v3519, %v3515
        %v3522 = vsel %vm3521, 1, 0
        %v3523 = vadd.s32 %v3519, %v3515
        %v3524 = vadd.s32 %v3520, %v3522
        %v3525 = vadd.s32 %v3524, %v3514
        %v3526 = vadd.s32 %v3525, %v3516
        %v3527 = vmul.u32 %v3482, %v3473
        %v3528 = vadd.s32 %v3504, %v3523
        %vm3529 = vc.u32 %v3504, %v3523
        %v3530 = vadd.s32 %v3526, 1
        %v3531 = vsel %vm3529, %v3530, %v3526
        %v3532 = vadd.s32 %v3527, %v3531
        %v3533 = vadd.s32 %v3532, 536870912
        %v3534 = vshrl.u32 %v3533, 30
        %v3535 = vshll.u32 %v3534, 30
        %v3536 = vsub.s32 %v3532, %v3535
        %vm3537 = vcmp.lt.s32.totalorder %v3536, 0
        %v3538 = vsub.s32 0, %v3536
        %v3539 = vsel %vm3537, %v3538, %v3536
        %v3540 = vclz %v3539
        %v3541 = vsub.s32 %v3540, 2
        %vm3542 = vcmp.gt.s32.totalorder 0, %v3541
        %v3543 = vsel %vm3542, 0, %v3541
        %v3544 = vsub.s32 32, %v3543
        %v3545 = vshll.u32 %v3536, %v3543
        %v3546 = vshrl.u32 %v3528, %v3544
        %v3547 = vor.u32 %v3545, %v3546
        %v3548 = vsub.s32 4294967266, %v3543
        %v3549 = vadd.s32 %v3548, 127
        %v3550 = vshll.u32 %v3549, 23
        %v3551 = vor.u32 4788187, %v3550
        %v3552 = vand.u32 2147483647, %v3551
        %v3554 = vcvt.s32.f32 %v3547
        %v3555 = vmul.f32 %v3554, %v3552
        %v3556 = vxor.u32 %v3555, 2147483648
        %v3557 = vsel %vm3436, %v3556, %v3555
        %v3558 = vsub.s32 4, %v3534
        %v3559 = vsel %vm3436, %v3558, %v3534
        %v3560 = vsel %vm3435, %v507, %v3557
        %v3561 = vsel %vm3435, 0, %v3559
        %v3562 = vmul.f32 %v3560, %v3560
        %v3563 = vmul.f32 %v3562, -0.001358992
        %v3564 = vadd.f32 %v3563, 0.041655596
        %v3565 = vmul.f32 %v3562, %v3564
        %v3566 = vadd.f32 %v3565, -0.4999988
        %v3567 = vmul.f32 %v3562, %v3566
        %v3568 = vadd.f32 1.0, %v3567
        %v3569 = vmul.f32 %v3560, %v3560
        %v3570 = vmul.f32 %v3569, -0.00019511016
        %v3571 = vadd.f32 %v3570, 0.008332121
        %v3572 = vmul.f32 %v3569, %v3571
        %v3573 = vadd.f32 %v3572, -0.16666654
        %v3574 = vmul.f32 %v3569, %v3573
        %v3575 = vadd.f32 %v3574, 1.0
        %v3576 = vmul.f32 %v3575, %v3560
        %vm3577 = vweird.f32 %v507
        %v3578 = vadd.s32 %v3561, 3
        %v3579 = vand.u32 %v3578, 3
        %vm3580 = vcmp.lt.s32.totalorder %v3579, 2
        %vm3581 = vcmp.eq.s32.totalorder %v3579, 0
        %v3582 = vxor.u32 %v3576, 2147483648
        %v3583 = vsel %vm3581, %v3568, %v3582
        %vm3584 = vcmp.eq.s32.totalorder %v3579, 2
        %v3585 = vxor.u32 %v3568, 2147483648
        %v3586 = vsel %vm3584, %v3585, %v3576
        %v3587 = vsel %vm3580, %v3583, %v3586
        %v3588 = vsel %vm3577, nan, %v3587
        %v3589 = vand.u32 2147483647, %v510
        %vm3590 = vcmp.le.f32.partialorder %v3589, 0.7853982
        %vm3591 = vcmp.lt.s32.totalorder %v510, 0
        %v3592 = vand.u32 %v510, 2139095040
        %v3593 = vshrl.u32 %v3592, 23
        %v3594 = vsub.s32 %v3593, 127
        %v3595 = vand.u32 2147483647, %v510
        %v3596 = vand.u32 %v3595, 8388607
        %v3597 = vor.u32 %v3596, 8388608
        %v3598 = vsub.s32 0, %v3597
        %v3599 = vadd.s32 %v3594, 1
        %vm3600 = vcmp.gt.s32.totalorder %v3599, 0
        %v3601 = vsel %vm3600, %v3599, 0
        %v3602 = vshrl.u32 %v3601, 5
        %v3603 = vand.u32 %v3601, 31
        %v3604 = vsub.s32 32, %v3603
        %v3605 = vshrl.u32 683565275, %v3604
        %v3606 = vshll.u32 683565275, %v3603
        %v3607 = vshrl.u32 2475754826, %v3604
        %v3608 = vor.u32 %v3606, %v3607
        %v3609 = vshll.u32 2475754826, %v3603
        %v3610 = vshrl.u32 2131351028, %v3604
        %v3611 = vor.u32 %v3609, %v3610
        %v3612 = vshll.u32 2131351028, %v3603
        %v3613 = vshrl.u32 2102212464, %v3604
        %v3614 = vor.u32 %v3612, %v3613
        %v3615 = vshll.u32 2102212464, %v3603
        %v3616 = vshrl.u32 920167782, %v3604
        %v3617 = vor.u32 %v3615, %v3616
        %v3618 = vshll.u32 920167782, %v3603
        %v3619 = vshrl.u32 1326507024, %v3604
        %v3620 = vor.u32 %v3618, %v3619
        %vm3621 = vcmp.lt.s32.totalorder %v3602, 1
        %vm3622 = vcmp.lt.s32.totalorder %v3602, 2
        %vm3623 = vcmp.lt.s32.totalorder %v3602, 3
        %vm3624 = vcmp.lt.s32.totalorder %v3602, 4
        %v3625 = vsel %vm3621, %v3605, %v3608
        %v3626 = vsel %vm3624, %v3614, 2102212464
        %v3627 = vsel %vm3623, %v3611, %v3626
        %v3628 = vsel %vm3622, %v3625, %v3627
        %v3629 = vsel %vm3621, %v3608, %v3611
        %v3630 = vsel %vm3624, %v3617, 920167782
        %v3631 = vsel %vm3623, %v3614, %v3630
        %v3632 = vsel %vm3622, %v3629, %v3631
        %v3633 = vsel %vm3621, %v3611, %v3614
        %v3634 = vsel %vm3624, %v3620, 1326507024
        %v3635 = vsel %vm3623, %v3617, %v3634
        %v3636 = vsel %vm3622, %v3633, %v3635
        %v3637 = vshll.u32 %v3597, 8
        %v3638 = vand.u32 %v3637, 65535
        %v3639 = vshrl.u32 %v3637, 16
        %v3640 = vand.u32 %v3636, 65535
        %v3641 = vshrl.u32 %v3636, 16
        %v3642 = vmul.u32 %v3638, %v3640
        %v3643 = vmul.u32 %v3638, %v3641
        %v3644 = vmul.u32 %v3639, %v3640
        %v3645 = vmul.u32 %v3639, %v3641
        %v3646 = vshll.u32 %v3643, 16
        %v3647 = vshrl.u32 %v3643, 16
        %v3648 = vshll.u32 %v3644, 16
        %v3649 = vshrl.u32 %v3644, 16
        %vm3650 = vc.u32 %v3642, %v3646
        %v3651 = vsel %vm3650, 1, 0
        %v3652 = vadd.s32 %v3642, %v3646
        %v3653 = vadd.s32 %v3645, %v3651
        %vm3654 = vc.u32 %v3652, %v3648
        %v3655 = vsel %vm3654, 1, 0
        %v3656 = vadd.s32 %v3652, %v3648
        %v3657 = vadd.s32 %v3653, %v3655
        %v3658 = vadd.s32 %v3657, %v3647
        %v3659 = vadd.s32 %v3658, %v3649
        %v3660 = vand.u32 %v3637, 65535
        %v3661 = vshrl.u32 %v3637, 16
        %v3662 = vand.u32 %v3632, 65535
        %v3663 = vshrl.u32 %v3632, 16
        %v3664 = vmul.u32 %v3660, %v3662
        %v3665 = vmul.u32 %v3660, %v3663
        %v3666 = vmul.u32 %v3661, %v3662
        %v3667 = vmul.u32 %v3661, %v3663
        %v3668 = vshll.u32 %v3665, 16
        %v3669 = vshrl.u32 %v3665, 16
        %v3670 = vshll.u32 %v3666, 16
        %v3671 = vshrl.u32 %v3666, 16
        %vm3672 = vc.u32 %v3664, %v3668
        %v3673 = vsel %vm3672, 1, 0
        %v3674 = vadd.s32 %v3664, %v3668
        %v3675 = vadd.s32 %v3667, %v3673
        %vm3676 = vc.u32 %v3674, %v3670
        %v3677 = vsel %vm3676, 1, 0
        %v3678 = vadd.s32 %v3674, %v3670
        %v3679 = vadd.s32 %v3675, %v3677
        %v3680 = vadd.s32 %v3679, %v3669
        %v3681 = vadd.s32 %v3680, %v3671
        %v3682 = vmul.u32 %v3637, %v3628
        %v3683 = vadd.s32 %v3659, %v3678
        %vm3684 = vc.u32 %v3659, %v3678
        %v3685 = vadd.s32 %v3681, 1
        %v3686 = vsel %vm3684, %v3685, %v3681
        %v3687 = vadd.s32 %v3682, %v3686
        %v3688 = vadd.s32 %v3687, 536870912
        %v3689 = vshrl.u32 %v3688, 30
        %v3690 = vshll.u32 %v3689, 30
        %v3691 = vsub.s32 %v3687, %v3690
        %vm3692 = vcmp.lt.s32.totalorder %v3691, 0
        %v3693 = vsub.s32 0, %v3691
        %v3694 = vsel %vm3692, %v3693, %v3691
        %v3695 = vclz %v3694
        %v3696 = vsub.s32 %v3695, 2
        %vm3697 = vcmp.gt.s32.totalorder 0, %v3696
        %v3698 = vsel %vm3697, 0, %v3696
        %v3699 = vsub.s32 32, %v3698
        %v3700 = vshll.u32 %v3691, %v3698
        %v3701 = vshrl.u32 %v3683, %v3699
        %v3702 = vor.u32 %v3700, %v3701
        %v3703 = vsub.s32 4294967266, %v3698
        %v3704 = vadd.s32 %v3703, 127
        %v3705 = vshll.u32 %v3704, 23
        %v3706 = vor.u32 4788187, %v3705
        %v3707 = vand.u32 2147483647, %v3706
        %v3709 = vcvt.s32.f32 %v3702
        %v3710 = vmul.f32 %v3709, %v3707
        %v3711 = vxor.u32 %v3710, 2147483648
        %v3712 = vsel %vm3591, %v3711, %v3710
        %v3713 = vsub.s32 4, %v3689
        %v3714 = vsel %vm3591, %v3713, %v3689
        %v3715 = vsel %vm3590, %v510, %v3712
        %v3716 = vsel %vm3590, 0, %v3714
        %v3717 = vmul.f32 %v3715, %v3715
        %v3718 = vmul.f32 %v3717, -0.001358992
        %v3719 = vadd.f32 %v3718, 0.041655596
        %v3720 = vmul.f32 %v3717, %v3719
        %v3721 = vadd.f32 %v3720, -0.4999988
        %v3722 = vmul.f32 %v3717, %v3721
        %v3723 = vadd.f32 1.0, %v3722
        %v3724 = vmul.f32 %v3715, %v3715
        %v3725 = vmul.f32 %v3724, -0.00019511016
        %v3726 = vadd.f32 %v3725, 0.008332121
        %v3727 = vmul.f32 %v3724, %v3726
        %v3728 = vadd.f32 %v3727, -0.16666654
        %v3729 = vmul.f32 %v3724, %v3728
        %v3730 = vadd.f32 %v3729, 1.0
        %v3731 = vmul.f32 %v3730, %v3715
        %vm3732 = vweird.f32 %v510
        %v3733 = vadd.s32 %v3716, 3
        %v3734 = vand.u32 %v3733, 3
        %vm3735 = vcmp.lt.s32.totalorder %v3734, 2
        %vm3736 = vcmp.eq.s32.totalorder %v3734, 0
        %v3737 = vxor.u32 %v3731, 2147483648
        %v3738 = vsel %vm3736, %v3723, %v3737
        %vm3739 = vcmp.eq.s32.totalorder %v3734, 2
        %v3740 = vxor.u32 %v3723, 2147483648
        %v3741 = vsel %vm3739, %v3740, %v3731
        %v3742 = vsel %vm3735, %v3738, %v3741
        %v3743 = vsel %vm3732, nan, %v3742
        %v3744 = vand.u32 2147483647, %v513
        %vm3745 = vcmp.le.f32.partialorder %v3744, 0.7853982
        %vm3746 = vcmp.lt.s32.totalorder %v513, 0
        %v3747 = vand.u32 %v513, 2139095040
        %v3748 = vshrl.u32 %v3747, 23
        %v3749 = vsub.s32 %v3748, 127
        %v3750 = vand.u32 2147483647, %v513
        %v3751 = vand.u32 %v3750, 8388607
        %v3752 = vor.u32 %v3751, 8388608
        %v3753 = vsub.s32 0, %v3752
        %v3754 = vadd.s32 %v3749, 1
        %vm3755 = vcmp.gt.s32.totalorder %v3754, 0
        %v3756 = vsel %vm3755, %v3754, 0
        %v3757 = vshrl.u32 %v3756, 5
        %v3758 = vand.u32 %v3756, 31
        %v3759 = vsub.s32 32, %v3758
        %v3760 = vshrl.u32 683565275, %v3759
        %v3761 = vshll.u32 683565275, %v3758
        %v3762 = vshrl.u32 2475754826, %v3759
        %v3763 = vor.u32 %v3761, %v3762
        %v3764 = vshll.u32 2475754826, %v3758
        %v3765 = vshrl.u32 2131351028, %v3759
        %v3766 = vor.u32 %v3764, %v3765
        %v3767 = vshll.u32 2131351028, %v3758
        %v3768 = vshrl.u32 2102212464, %v3759
        %v3769 = vor.u32 %v3767, %v3768
        %v3770 = vshll.u32 2102212464, %v3758
        %v3771 = vshrl.u32 920167782, %v3759
        %v3772 = vor.u32 %v3770, %v3771
        %v3773 = vshll.u32 920167782, %v3758
        %v3774 = vshrl.u32 1326507024, %v3759
        %v3775 = vor.u32 %v3773, %v3774
        %vm3776 = vcmp.lt.s32.totalorder %v3757, 1
        %vm3777 = vcmp.lt.s32.totalorder %v3757, 2
        %vm3778 = vcmp.lt.s32.totalorder %v3757, 3
        %vm3779 = vcmp.lt.s32.totalorder %v3757, 4
        %v3780 = vsel %vm3776, %v3760, %v3763
        %v3781 = vsel %vm3779, %v3769, 2102212464
        %v3782 = vsel %vm3778, %v3766, %v3781
        %v3783 = vsel %vm3777, %v3780, %v3782
        %v3784 = vsel %vm3776, %v3763, %v3766
        %v3785 = vsel %vm3779, %v3772, 920167782
        %v3786 = vsel %vm3778, %v3769, %v3785
        %v3787 = vsel %vm3777, %v3784, %v3786
        %v3788 = vsel %vm3776, %v3766, %v3769
        %v3789 = vsel %vm3779, %v3775, 1326507024
        %v3790 = vsel %vm3778, %v3772, %v3789
        %v3791 = vsel %vm3777, %v3788, %v3790
        %v3792 = vshll.u32 %v3752, 8
        %v3793 = vand.u32 %v3792, 65535
        %v3794 = vshrl.u32 %v3792, 16
        %v3795 = vand.u32 %v3791, 65535
        %v3796 = vshrl.u32 %v3791, 16
        %v3797 = vmul.u32 %v3793, %v3795
        %v3798 = vmul.u32 %v3793, %v3796
        %v3799 = vmul.u32 %v3794, %v3795
        %v3800 = vmul.u32 %v3794, %v3796
        %v3801 = vshll.u32 %v3798, 16
        %v3802 = vshrl.u32 %v3798, 16
        %v3803 = vshll.u32 %v3799, 16
        %v3804 = vshrl.u32 %v3799, 16
        %vm3805 = vc.u32 %v3797, %v3801
        %v3806 = vsel %vm3805, 1, 0
        %v3807 = vadd.s32 %v3797, %v3801
        %v3808 = vadd.s32 %v3800, %v3806
        %vm3809 = vc.u32 %v3807, %v3803
        %v3810 = vsel %vm3809, 1, 0
        %v3811 = vadd.s32 %v3807, %v3803
        %v3812 = vadd.s32 %v3808, %v3810
        %v3813 = vadd.s32 %v3812, %v3802
        %v3814 = vadd.s32 %v3813, %v3804
        %v3815 = vand.u32 %v3792, 65535
        %v3816 = vshrl.u32 %v3792, 16
        %v3817 = vand.u32 %v3787, 65535
        %v3818 = vshrl.u32 %v3787, 16
        %v3819 = vmul.u32 %v3815, %v3817
        %v3820 = vmul.u32 %v3815, %v3818
        %v3821 = vmul.u32 %v3816, %v3817
        %v3822 = vmul.u32 %v3816, %v3818
        %v3823 = vshll.u32 %v3820, 16
        %v3824 = vshrl.u32 %v3820, 16
        %v3825 = vshll.u32 %v3821, 16
        %v3826 = vshrl.u32 %v3821, 16
        %vm3827 = vc.u32 %v3819, %v3823
        %v3828 = vsel %vm3827, 1, 0
        %v3829 = vadd.s32 %v3819, %v3823
        %v3830 = vadd.s32 %v3822, %v3828
        %vm3831 = vc.u32 %v3829, %v3825
        %v3832 = vsel %vm3831, 1, 0
        %v3833 = vadd.s32 %v3829, %v3825
        %v3834 = vadd.s32 %v3830, %v3832
        %v3835 = vadd.s32 %v3834, %v3824
        %v3836 = vadd.s32 %v3835, %v3826
        %v3837 = vmul.u32 %v3792, %v3783
        %v3838 = vadd.s32 %v3814, %v3833
        %vm3839 = vc.u32 %v3814, %v3833
        %v3840 = vadd.s32 %v3836, 1
        %v3841 = vsel %vm3839, %v3840, %v3836
        %v3842 = vadd.s32 %v3837, %v3841
        %v3843 = vadd.s32 %v3842, 536870912
        %v3844 = vshrl.u32 %v3843, 30
        %v3845 = vshll.u32 %v3844, 30
        %v3846 = vsub.s32 %v3842, %v3845
        %vm3847 = vcmp.lt.s32.totalorder %v3846, 0
        %v3848 = vsub.s32 0, %v3846
        %v3849 = vsel %vm3847, %v3848, %v3846
        %v3850 = vclz %v3849
        %v3851 = vsub.s32 %v3850, 2
        %vm3852 = vcmp.gt.s32.totalorder 0, %v3851
        %v3853 = vsel %vm3852, 0, %v3851
        %v3854 = vsub.s32 32, %v3853
        %v3855 = vshll.u32 %v3846, %v3853
        %v3856 = vshrl.u32 %v3838, %v3854
        %v3857 = vor.u32 %v3855, %v3856
        %v3858 = vsub.s32 4294967266, %v3853
        %v3859 = vadd.s32 %v3858, 127
        %v3860 = vshll.u32 %v3859, 23
        %v3861 = vor.u32 4788187, %v3860
        %v3862 = vand.u32 2147483647, %v3861
        %v3864 = vcvt.s32.f32 %v3857
        %v3865 = vmul.f32 %v3864, %v3862
        %v3866 = vxor.u32 %v3865, 2147483648
        %v3867 = vsel %vm3746, %v3866, %v3865
        %v3868 = vsub.s32 4, %v3844
        %v3869 = vsel %vm3746, %v3868, %v3844
        %v3870 = vsel %vm3745, %v513, %v3867
        %v3871 = vsel %vm3745, 0, %v3869
        %v3872 = vmul.f32 %v3870, %v3870
        %v3873 = vmul.f32 %v3872, -0.001358992
        %v3874 = vadd.f32 %v3873, 0.041655596
        %v3875 = vmul.f32 %v3872, %v3874
        %v3876 = vadd.f32 %v3875, -0.4999988
        %v3877 = vmul.f32 %v3872, %v3876
        %v3878 = vadd.f32 1.0, %v3877
        %v3879 = vmul.f32 %v3870, %v3870
        %v3880 = vmul.f32 %v3879, -0.00019511016
        %v3881 = vadd.f32 %v3880, 0.008332121
        %v3882 = vmul.f32 %v3879, %v3881
        %v3883 = vadd.f32 %v3882, -0.16666654
        %v3884 = vmul.f32 %v3879, %v3883
        %v3885 = vadd.f32 %v3884, 1.0
        %v3886 = vmul.f32 %v3885, %v3870
        %vm3887 = vweird.f32 %v513
        %v3888 = vadd.s32 %v3871, 3
        %v3889 = vand.u32 %v3888, 3
        %vm3890 = vcmp.lt.s32.totalorder %v3889, 2
        %vm3891 = vcmp.eq.s32.totalorder %v3889, 0
        %v3892 = vxor.u32 %v3886, 2147483648
        %v3893 = vsel %vm3891, %v3878, %v3892
        %vm3894 = vcmp.eq.s32.totalorder %v3889, 2
        %v3895 = vxor.u32 %v3878, 2147483648
        %v3896 = vsel %vm3894, %v3895, %v3886
        %v3897 = vsel %vm3890, %v3893, %v3896
        %v3898 = vsel %vm3887, nan, %v3897
        %v3899 = vand.u32 2147483647, %v516
        %vm3900 = vcmp.le.f32.partialorder %v3899, 0.7853982
        %vm3901 = vcmp.lt.s32.totalorder %v516, 0
        %v3902 = vand.u32 %v516, 2139095040
        %v3903 = vshrl.u32 %v3902, 23
        %v3904 = vsub.s32 %v3903, 127
        %v3905 = vand.u32 2147483647, %v516
        %v3906 = vand.u32 %v3905, 8388607
        %v3907 = vor.u32 %v3906, 8388608
        %v3908 = vsub.s32 0, %v3907
        %v3909 = vadd.s32 %v3904, 1
        %vm3910 = vcmp.gt.s32.totalorder %v3909, 0
        %v3911 = vsel %vm3910, %v3909, 0
        %v3912 = vshrl.u32 %v3911, 5
        %v3913 = vand.u32 %v3911, 31
        %v3914 = vsub.s32 32, %v3913
        %v3915 = vshrl.u32 683565275, %v3914
        %v3916 = vshll.u32 683565275, %v3913
        %v3917 = vshrl.u32 2475754826, %v3914
        %v3918 = vor.u32 %v3916, %v3917
        %v3919 = vshll.u32 2475754826, %v3913
        %v3920 = vshrl.u32 2131351028, %v3914
        %v3921 = vor.u32 %v3919, %v3920
        %v3922 = vshll.u32 2131351028, %v3913
        %v3923 = vshrl.u32 2102212464, %v3914
        %v3924 = vor.u32 %v3922, %v3923
        %v3925 = vshll.u32 2102212464, %v3913
        %v3926 = vshrl.u32 920167782, %v3914
        %v3927 = vor.u32 %v3925, %v3926
        %v3928 = vshll.u32 920167782, %v3913
        %v3929 = vshrl.u32 1326507024, %v3914
        %v3930 = vor.u32 %v3928, %v3929
        %vm3931 = vcmp.lt.s32.totalorder %v3912, 1
        %vm3932 = vcmp.lt.s32.totalorder %v3912, 2
        %vm3933 = vcmp.lt.s32.totalorder %v3912, 3
        %vm3934 = vcmp.lt.s32.totalorder %v3912, 4
        %v3935 = vsel %vm3931, %v3915, %v3918
        %v3936 = vsel %vm3934, %v3924, 2102212464
        %v3937 = vsel %vm3933, %v3921, %v3936
        %v3938 = vsel %vm3932, %v3935, %v3937
        %v3939 = vsel %vm3931, %v3918, %v3921
        %v3940 = vsel %vm3934, %v3927, 920167782
        %v3941 = vsel %vm3933, %v3924, %v3940
        %v3942 = vsel %vm3932, %v3939, %v3941
        %v3943 = vsel %vm3931, %v3921, %v3924
        %v3944 = vsel %vm3934, %v3930, 1326507024
        %v3945 = vsel %vm3933, %v3927, %v3944
        %v3946 = vsel %vm3932, %v3943, %v3945
        %v3947 = vshll.u32 %v3907, 8
        %v3948 = vand.u32 %v3947, 65535
        %v3949 = vshrl.u32 %v3947, 16
        %v3950 = vand.u32 %v3946, 65535
        %v3951 = vshrl.u32 %v3946, 16
        %v3952 = vmul.u32 %v3948, %v3950
        %v3953 = vmul.u32 %v3948, %v3951
        %v3954 = vmul.u32 %v3949, %v3950
        %v3955 = vmul.u32 %v3949, %v3951
        %v3956 = vshll.u32 %v3953, 16
        %v3957 = vshrl.u32 %v3953, 16
        %v3958 = vshll.u32 %v3954, 16
        %v3959 = vshrl.u32 %v3954, 16
        %vm3960 = vc.u32 %v3952, %v3956
        %v3961 = vsel %vm3960, 1, 0
        %v3962 = vadd.s32 %v3952, %v3956
        %v3963 = vadd.s32 %v3955, %v3961
        %vm3964 = vc.u32 %v3962, %v3958
        %v3965 = vsel %vm3964, 1, 0
        %v3966 = vadd.s32 %v3962, %v3958
        %v3967 = vadd.s32 %v3963, %v3965
        %v3968 = vadd.s32 %v3967, %v3957
        %v3969 = vadd.s32 %v3968, %v3959
        %v3970 = vand.u32 %v3947, 65535
        %v3971 = vshrl.u32 %v3947, 16
        %v3972 = vand.u32 %v3942, 65535
        %v3973 = vshrl.u32 %v3942, 16
        %v3974 = vmul.u32 %v3970, %v3972
        %v3975 = vmul.u32 %v3970, %v3973
        %v3976 = vmul.u32 %v3971, %v3972
        %v3977 = vmul.u32 %v3971, %v3973
        %v3978 = vshll.u32 %v3975, 16
        %v3979 = vshrl.u32 %v3975, 16
        %v3980 = vshll.u32 %v3976, 16
        %v3981 = vshrl.u32 %v3976, 16
        %vm3982 = vc.u32 %v3974, %v3978
        %v3983 = vsel %vm3982, 1, 0
        %v3984 = vadd.s32 %v3974, %v3978
        %v3985 = vadd.s32 %v3977, %v3983
        %vm3986 = vc.u32 %v3984, %v3980
        %v3987 = vsel %vm3986, 1, 0
        %v3988 = vadd.s32 %v3984, %v3980
        %v3989 = vadd.s32 %v3985, %v3987
        %v3990 = vadd.s32 %v3989, %v3979
        %v3991 = vadd.s32 %v3990, %v3981
        %v3992 = vmul.u32 %v3947, %v3938
        %v3993 = vadd.s32 %v3969, %v3988
        %vm3994 = vc.u32 %v3969, %v3988
        %v3995 = vadd.s32 %v3991, 1
        %v3996 = vsel %vm3994, %v3995, %v3991
        %v3997 = vadd.s32 %v3992, %v3996
        %v3998 = vadd.s32 %v3997, 536870912
        %v3999 = vshrl.u32 %v3998, 30
        %v4000 = vshll.u32 %v3999, 30
        %v4001 = vsub.s32 %v3997, %v4000
        %vm4002 = vcmp.lt.s32.totalorder %v4001, 0
        %v4003 = vsub.s32 0, %v4001
        %v4004 = vsel %vm4002, %v4003, %v4001
        %v4005 = vclz %v4004
        %v4006 = vsub.s32 %v4005, 2
        %vm4007 = vcmp.gt.s32.totalorder 0, %v4006
        %v4008 = vsel %vm4007, 0, %v4006
        %v4009 = vsub.s32 32, %v4008
        %v4010 = vshll.u32 %v4001, %v4008
        %v4011 = vshrl.u32 %v3993, %v4009
        %v4012 = vor.u32 %v4010, %v4011
        %v4013 = vsub.s32 4294967266, %v4008
        %v4014 = vadd.s32 %v4013, 127
        %v4015 = vshll.u32 %v4014, 23
        %v4016 = vor.u32 4788187, %v4015
        %v4017 = vand.u32 2147483647, %v4016
        %v4019 = vcvt.s32.f32 %v4012
        %v4020 = vmul.f32 %v4019, %v4017
        %v4021 = vxor.u32 %v4020, 2147483648
        %v4022 = vsel %vm3901, %v4021, %v4020
        %v4023 = vsub.s32 4, %v3999
        %v4024 = vsel %vm3901, %v4023, %v3999
        %v4025 = vsel %vm3900, %v516, %v4022
        %v4026 = vsel %vm3900, 0, %v4024
        %v4027 = vmul.f32 %v4025, %v4025
        %v4028 = vmul.f32 %v4027, -0.001358992
        %v4029 = vadd.f32 %v4028, 0.041655596
        %v4030 = vmul.f32 %v4027, %v4029
        %v4031 = vadd.f32 %v4030, -0.4999988
        %v4032 = vmul.f32 %v4027, %v4031
        %v4033 = vadd.f32 1.0, %v4032
        %v4034 = vmul.f32 %v4025, %v4025
        %v4035 = vmul.f32 %v4034, -0.00019511016
        %v4036 = vadd.f32 %v4035, 0.008332121
        %v4037 = vmul.f32 %v4034, %v4036
        %v4038 = vadd.f32 %v4037, -0.16666654
        %v4039 = vmul.f32 %v4034, %v4038
        %v4040 = vadd.f32 %v4039, 1.0
        %v4041 = vmul.f32 %v4040, %v4025
        %vm4042 = vweird.f32 %v516
        %v4043 = vadd.s32 %v4026, 3
        %v4044 = vand.u32 %v4043, 3
        %vm4045 = vcmp.lt.s32.totalorder %v4044, 2
        %vm4046 = vcmp.eq.s32.totalorder %v4044, 0
        %v4047 = vxor.u32 %v4041, 2147483648
        %v4048 = vsel %vm4046, %v4033, %v4047
        %vm4049 = vcmp.eq.s32.totalorder %v4044, 2
        %v4050 = vxor.u32 %v4033, 2147483648
        %v4051 = vsel %vm4049, %v4050, %v4041
        %v4052 = vsel %vm4045, %v4048, %v4051
        %v4053 = vsel %vm4042, nan, %v4052
        %v4054 = vand.u32 2147483647, %v519
        %vm4055 = vcmp.le.f32.partialorder %v4054, 0.7853982
        %vm4056 = vcmp.lt.s32.totalorder %v519, 0
        %v4057 = vand.u32 %v519, 2139095040
        %v4058 = vshrl.u32 %v4057, 23
        %v4059 = vsub.s32 %v4058, 127
        %v4060 = vand.u32 2147483647, %v519
        %v4061 = vand.u32 %v4060, 8388607
        %v4062 = vor.u32 %v4061, 8388608
        %v4063 = vsub.s32 0, %v4062
        %v4064 = vadd.s32 %v4059, 1
        %vm4065 = vcmp.gt.s32.totalorder %v4064, 0
        %v4066 = vsel %vm4065, %v4064, 0
        %v4067 = vshrl.u32 %v4066, 5
        %v4068 = vand.u32 %v4066, 31
        %v4069 = vsub.s32 32, %v4068
        %v4070 = vshrl.u32 683565275, %v4069
        %v4071 = vshll.u32 683565275, %v4068
        %v4072 = vshrl.u32 2475754826, %v4069
        %v4073 = vor.u32 %v4071, %v4072
        %v4074 = vshll.u32 2475754826, %v4068
        %v4075 = vshrl.u32 2131351028, %v4069
        %v4076 = vor.u32 %v4074, %v4075
        %v4077 = vshll.u32 2131351028, %v4068
        %v4078 = vshrl.u32 2102212464, %v4069
        %v4079 = vor.u32 %v4077, %v4078
        %v4080 = vshll.u32 2102212464, %v4068
        %v4081 = vshrl.u32 920167782, %v4069
        %v4082 = vor.u32 %v4080, %v4081
        %v4083 = vshll.u32 920167782, %v4068
        %v4084 = vshrl.u32 1326507024, %v4069
        %v4085 = vor.u32 %v4083, %v4084
        %vm4086 = vcmp.lt.s32.totalorder %v4067, 1
        %vm4087 = vcmp.lt.s32.totalorder %v4067, 2
        %vm4088 = vcmp.lt.s32.totalorder %v4067, 3
        %vm4089 = vcmp.lt.s32.totalorder %v4067, 4
        %v4090 = vsel %vm4086, %v4070, %v4073
        %v4091 = vsel %vm4089, %v4079, 2102212464
        %v4092 = vsel %vm4088, %v4076, %v4091
        %v4093 = vsel %vm4087, %v4090, %v4092
        %v4094 = vsel %vm4086, %v4073, %v4076
        %v4095 = vsel %vm4089, %v4082, 920167782
        %v4096 = vsel %vm4088, %v4079, %v4095
        %v4097 = vsel %vm4087, %v4094, %v4096
        %v4098 = vsel %vm4086, %v4076, %v4079
        %v4099 = vsel %vm4089, %v4085, 1326507024
        %v4100 = vsel %vm4088, %v4082, %v4099
        %v4101 = vsel %vm4087, %v4098, %v4100
        %v4102 = vshll.u32 %v4062, 8
        %v4103 = vand.u32 %v4102, 65535
        %v4104 = vshrl.u32 %v4102, 16
        %v4105 = vand.u32 %v4101, 65535
        %v4106 = vshrl.u32 %v4101, 16
        %v4107 = vmul.u32 %v4103, %v4105
        %v4108 = vmul.u32 %v4103, %v4106
        %v4109 = vmul.u32 %v4104, %v4105
        %v4110 = vmul.u32 %v4104, %v4106
        %v4111 = vshll.u32 %v4108, 16
        %v4112 = vshrl.u32 %v4108, 16
        %v4113 = vshll.u32 %v4109, 16
        %v4114 = vshrl.u32 %v4109, 16
        %vm4115 = vc.u32 %v4107, %v4111
        %v4116 = vsel %vm4115, 1, 0
        %v4117 = vadd.s32 %v4107, %v4111
        %v4118 = vadd.s32 %v4110, %v4116
        %vm4119 = vc.u32 %v4117, %v4113
        %v4120 = vsel %vm4119, 1, 0
        %v4121 = vadd.s32 %v4117, %v4113
        %v4122 = vadd.s32 %v4118, %v4120
        %v4123 = vadd.s32 %v4122, %v4112
        %v4124 = vadd.s32 %v4123, %v4114
        %v4125 = vand.u32 %v4102, 65535
        %v4126 = vshrl.u32 %v4102, 16
        %v4127 = vand.u32 %v4097, 65535
        %v4128 = vshrl.u32 %v4097, 16
        %v4129 = vmul.u32 %v4125, %v4127
        %v4130 = vmul.u32 %v4125, %v4128
        %v4131 = vmul.u32 %v4126, %v4127
        %v4132 = vmul.u32 %v4126, %v4128
        %v4133 = vshll.u32 %v4130, 16
        %v4134 = vshrl.u32 %v4130, 16
        %v4135 = vshll.u32 %v4131, 16
        %v4136 = vshrl.u32 %v4131, 16
        %vm4137 = vc.u32 %v4129, %v4133
        %v4138 = vsel %vm4137, 1, 0
        %v4139 = vadd.s32 %v4129, %v4133
        %v4140 = vadd.s32 %v4132, %v4138
        %vm4141 = vc.u32 %v4139, %v4135
        %v4142 = vsel %vm4141, 1, 0
        %v4143 = vadd.s32 %v4139, %v4135
        %v4144 = vadd.s32 %v4140, %v4142
        %v4145 = vadd.s32 %v4144, %v4134
        %v4146 = vadd.s32 %v4145, %v4136
        %v4147 = vmul.u32 %v4102, %v4093
        %v4148 = vadd.s32 %v4124, %v4143
        %vm4149 = vc.u32 %v4124, %v4143
        %v4150 = vadd.s32 %v4146, 1
        %v4151 = vsel %vm4149, %v4150, %v4146
        %v4152 = vadd.s32 %v4147, %v4151
        %v4153 = vadd.s32 %v4152, 536870912
        %v4154 = vshrl.u32 %v4153, 30
        %v4155 = vshll.u32 %v4154, 30
        %v4156 = vsub.s32 %v4152, %v4155
        %vm4157 = vcmp.lt.s32.totalorder %v4156, 0
        %v4158 = vsub.s32 0, %v4156
        %v4159 = vsel %vm4157, %v4158, %v4156
        %v4160 = vclz %v4159
        %v4161 = vsub.s32 %v4160, 2
        %vm4162 = vcmp.gt.s32.totalorder 0, %v4161
        %v4163 = vsel %vm4162, 0, %v4161
        %v4164 = vsub.s32 32, %v4163
        %v4165 = vshll.u32 %v4156, %v4163
        %v4166 = vshrl.u32 %v4148, %v4164
        %v4167 = vor.u32 %v4165, %v4166
        %v4168 = vsub.s32 4294967266, %v4163
        %v4169 = vadd.s32 %v4168, 127
        %v4170 = vshll.u32 %v4169, 23
        %v4171 = vor.u32 4788187, %v4170
        %v4172 = vand.u32 2147483647, %v4171
        %v4174 = vcvt.s32.f32 %v4167
        %v4175 = vmul.f32 %v4174, %v4172
        %v4176 = vxor.u32 %v4175, 2147483648
        %v4177 = vsel %vm4056, %v4176, %v4175
        %v4178 = vsub.s32 4, %v4154
        %v4179 = vsel %vm4056, %v4178, %v4154
        %v4180 = vsel %vm4055, %v519, %v4177
        %v4181 = vsel %vm4055, 0, %v4179
        %v4182 = vmul.f32 %v4180, %v4180
        %v4183 = vmul.f32 %v4182, -0.001358992
        %v4184 = vadd.f32 %v4183, 0.041655596
        %v4185 = vmul.f32 %v4182, %v4184
        %v4186 = vadd.f32 %v4185, -0.4999988
        %v4187 = vmul.f32 %v4182, %v4186
        %v4188 = vadd.f32 1.0, %v4187
        %v4189 = vmul.f32 %v4180, %v4180
        %v4190 = vmul.f32 %v4189, -0.00019511016
        %v4191 = vadd.f32 %v4190, 0.008332121
        %v4192 = vmul.f32 %v4189, %v4191
        %v4193 = vadd.f32 %v4192, -0.16666654
        %v4194 = vmul.f32 %v4189, %v4193
        %v4195 = vadd.f32 %v4194, 1.0
        %v4196 = vmul.f32 %v4195, %v4180
        %vm4197 = vweird.f32 %v519
        %v4198 = vadd.s32 %v4181, 3
        %v4199 = vand.u32 %v4198, 3
        %vm4200 = vcmp.lt.s32.totalorder %v4199, 2
        %vm4201 = vcmp.eq.s32.totalorder %v4199, 0
        %v4202 = vxor.u32 %v4196, 2147483648
        %v4203 = vsel %vm4201, %v4188, %v4202
        %vm4204 = vcmp.eq.s32.totalorder %v4199, 2
        %v4205 = vxor.u32 %v4188, 2147483648
        %v4206 = vsel %vm4204, %v4205, %v4196
        %v4207 = vsel %vm4200, %v4203, %v4206
        %v4208 = vsel %vm4197, nan, %v4207
        %v4209 = vand.u32 2147483647, %v522
        %vm4210 = vcmp.le.f32.partialorder %v4209, 0.7853982
        %vm4211 = vcmp.lt.s32.totalorder %v522, 0
        %v4212 = vand.u32 %v522, 2139095040
        %v4213 = vshrl.u32 %v4212, 23
        %v4214 = vsub.s32 %v4213, 127
        %v4215 = vand.u32 2147483647, %v522
        %v4216 = vand.u32 %v4215, 8388607
        %v4217 = vor.u32 %v4216, 8388608
        %v4218 = vsub.s32 0, %v4217
        %v4219 = vadd.s32 %v4214, 1
        %vm4220 = vcmp.gt.s32.totalorder %v4219, 0
        %v4221 = vsel %vm4220, %v4219, 0
        %v4222 = vshrl.u32 %v4221, 5
        %v4223 = vand.u32 %v4221, 31
        %v4224 = vsub.s32 32, %v4223
        %v4225 = vshrl.u32 683565275, %v4224
        %v4226 = vshll.u32 683565275, %v4223
        %v4227 = vshrl.u32 2475754826, %v4224
        %v4228 = vor.u32 %v4226, %v4227
        %v4229 = vshll.u32 2475754826, %v4223
        %v4230 = vshrl.u32 2131351028, %v4224
        %v4231 = vor.u32 %v4229, %v4230
        %v4232 = vshll.u32 2131351028, %v4223
        %v4233 = vshrl.u32 2102212464, %v4224
        %v4234 = vor.u32 %v4232, %v4233
        %v4235 = vshll.u32 2102212464, %v4223
        %v4236 = vshrl.u32 920167782, %v4224
        %v4237 = vor.u32 %v4235, %v4236
        %v4238 = vshll.u32 920167782, %v4223
        %v4239 = vshrl.u32 1326507024, %v4224
        %v4240 = vor.u32 %v4238, %v4239
        %vm4241 = vcmp.lt.s32.totalorder %v4222, 1
        %vm4242 = vcmp.lt.s32.totalorder %v4222, 2
        %vm4243 = vcmp.lt.s32.totalorder %v4222, 3
        %vm4244 = vcmp.lt.s32.totalorder %v4222, 4
        %v4245 = vsel %vm4241, %v4225, %v4228
        %v4246 = vsel %vm4244, %v4234, 2102212464
        %v4247 = vsel %vm4243, %v4231, %v4246
        %v4248 = vsel %vm4242, %v4245, %v4247
        %v4249 = vsel %vm4241, %v4228, %v4231
        %v4250 = vsel %vm4244, %v4237, 920167782
        %v4251 = vsel %vm4243, %v4234, %v4250
        %v4252 = vsel %vm4242, %v4249, %v4251
        %v4253 = vsel %vm4241, %v4231, %v4234
        %v4254 = vsel %vm4244, %v4240, 1326507024
        %v4255 = vsel %vm4243, %v4237, %v4254
        %v4256 = vsel %vm4242, %v4253, %v4255
        %v4257 = vshll.u32 %v4217, 8
        %v4258 = vand.u32 %v4257, 65535
        %v4259 = vshrl.u32 %v4257, 16
        %v4260 = vand.u32 %v4256, 65535
        %v4261 = vshrl.u32 %v4256, 16
        %v4262 = vmul.u32 %v4258, %v4260
        %v4263 = vmul.u32 %v4258, %v4261
        %v4264 = vmul.u32 %v4259, %v4260
        %v4265 = vmul.u32 %v4259, %v4261
        %v4266 = vshll.u32 %v4263, 16
        %v4267 = vshrl.u32 %v4263, 16
        %v4268 = vshll.u32 %v4264, 16
        %v4269 = vshrl.u32 %v4264, 16
        %vm4270 = vc.u32 %v4262, %v4266
        %v4271 = vsel %vm4270, 1, 0
        %v4272 = vadd.s32 %v4262, %v4266
        %v4273 = vadd.s32 %v4265, %v4271
        %vm4274 = vc.u32 %v4272, %v4268
        %v4275 = vsel %vm4274, 1, 0
        %v4276 = vadd.s32 %v4272, %v4268
        %v4277 = vadd.s32 %v4273, %v4275
        %v4278 = vadd.s32 %v4277, %v4267
        %v4279 = vadd.s32 %v4278, %v4269
        %v4280 = vand.u32 %v4257, 65535
        %v4281 = vshrl.u32 %v4257, 16
        %v4282 = vand.u32 %v4252, 65535
        %v4283 = vshrl.u32 %v4252, 16
        %v4284 = vmul.u32 %v4280, %v4282
        %v4285 = vmul.u32 %v4280, %v4283
        %v4286 = vmul.u32 %v4281, %v4282
        %v4287 = vmul.u32 %v4281, %v4283
        %v4288 = vshll.u32 %v4285, 16
        %v4289 = vshrl.u32 %v4285, 16
        %v4290 = vshll.u32 %v4286, 16
        %v4291 = vshrl.u32 %v4286, 16
        %vm4292 = vc.u32 %v4284, %v4288
        %v4293 = vsel %vm4292, 1, 0
        %v4294 = vadd.s32 %v4284, %v4288
        %v4295 = vadd.s32 %v4287, %v4293
        %vm4296 = vc.u32 %v4294, %v4290
        %v4297 = vsel %vm4296, 1, 0
        %v4298 = vadd.s32 %v4294, %v4290
        %v4299 = vadd.s32 %v4295, %v4297
        %v4300 = vadd.s32 %v4299, %v4289
        %v4301 = vadd.s32 %v4300, %v4291
        %v4302 = vmul.u32 %v4257, %v4248
        %v4303 = vadd.s32 %v4279, %v4298
        %vm4304 = vc.u32 %v4279, %v4298
        %v4305 = vadd.s32 %v4301, 1
        %v4306 = vsel %vm4304, %v4305, %v4301
        %v4307 = vadd.s32 %v4302, %v4306
        %v4308 = vadd.s32 %v4307, 536870912
        %v4309 = vshrl.u32 %v4308, 30
        %v4310 = vshll.u32 %v4309, 30
        %v4311 = vsub.s32 %v4307, %v4310
        %vm4312 = vcmp.lt.s32.totalorder %v4311, 0
        %v4313 = vsub.s32 0, %v4311
        %v4314 = vsel %vm4312, %v4313, %v4311
        %v4315 = vclz %v4314
        %v4316 = vsub.s32 %v4315, 2
        %vm4317 = vcmp.gt.s32.totalorder 0, %v4316
        %v4318 = vsel %vm4317, 0, %v4316
        %v4319 = vsub.s32 32, %v4318
        %v4320 = vshll.u32 %v4311, %v4318
        %v4321 = vshrl.u32 %v4303, %v4319
        %v4322 = vor.u32 %v4320, %v4321
        %v4323 = vsub.s32 4294967266, %v4318
        %v4324 = vadd.s32 %v4323, 127
        %v4325 = vshll.u32 %v4324, 23
        %v4326 = vor.u32 4788187, %v4325
        %v4327 = vand.u32 2147483647, %v4326
        %v4329 = vcvt.s32.f32 %v4322
        %v4330 = vmul.f32 %v4329, %v4327
        %v4331 = vxor.u32 %v4330, 2147483648
        %v4332 = vsel %vm4211, %v4331, %v4330
        %v4333 = vsub.s32 4, %v4309
        %v4334 = vsel %vm4211, %v4333, %v4309
        %v4335 = vsel %vm4210, %v522, %v4332
        %v4336 = vsel %vm4210, 0, %v4334
        %v4337 = vmul.f32 %v4335, %v4335
        %v4338 = vmul.f32 %v4337, -0.001358992
        %v4339 = vadd.f32 %v4338, 0.041655596
        %v4340 = vmul.f32 %v4337, %v4339
        %v4341 = vadd.f32 %v4340, -0.4999988
        %v4342 = vmul.f32 %v4337, %v4341
        %v4343 = vadd.f32 1.0, %v4342
        %v4344 = vmul.f32 %v4335, %v4335
        %v4345 = vmul.f32 %v4344, -0.00019511016
        %v4346 = vadd.f32 %v4345, 0.008332121
        %v4347 = vmul.f32 %v4344, %v4346
        %v4348 = vadd.f32 %v4347, -0.16666654
        %v4349 = vmul.f32 %v4344, %v4348
        %v4350 = vadd.f32 %v4349, 1.0
        %v4351 = vmul.f32 %v4350, %v4335
        %vm4352 = vweird.f32 %v522
        %v4353 = vadd.s32 %v4336, 3
        %v4354 = vand.u32 %v4353, 3
        %vm4355 = vcmp.lt.s32.totalorder %v4354, 2
        %vm4356 = vcmp.eq.s32.totalorder %v4354, 0
        %v4357 = vxor.u32 %v4351, 2147483648
        %v4358 = vsel %vm4356, %v4343, %v4357
        %vm4359 = vcmp.eq.s32.totalorder %v4354, 2
        %v4360 = vxor.u32 %v4343, 2147483648
        %v4361 = vsel %vm4359, %v4360, %v4351
        %v4362 = vsel %vm4355, %v4358, %v4361
        %v4363 = vsel %vm4352, nan, %v4362
        %v4364 = vand.u32 2147483647, %v525
        %vm4365 = vcmp.le.f32.partialorder %v4364, 0.7853982
        %vm4366 = vcmp.lt.s32.totalorder %v525, 0
        %v4367 = vand.u32 %v525, 2139095040
        %v4368 = vshrl.u32 %v4367, 23
        %v4369 = vsub.s32 %v4368, 127
        %v4370 = vand.u32 2147483647, %v525
        %v4371 = vand.u32 %v4370, 8388607
        %v4372 = vor.u32 %v4371, 8388608
        %v4373 = vsub.s32 0, %v4372
        %v4374 = vadd.s32 %v4369, 1
        %vm4375 = vcmp.gt.s32.totalorder %v4374, 0
        %v4376 = vsel %vm4375, %v4374, 0
        %v4377 = vshrl.u32 %v4376, 5
        %v4378 = vand.u32 %v4376, 31
        %v4379 = vsub.s32 32, %v4378
        %v4380 = vshrl.u32 683565275, %v4379
        %v4381 = vshll.u32 683565275, %v4378
        %v4382 = vshrl.u32 2475754826, %v4379
        %v4383 = vor.u32 %v4381, %v4382
        %v4384 = vshll.u32 2475754826, %v4378
        %v4385 = vshrl.u32 2131351028, %v4379
        %v4386 = vor.u32 %v4384, %v4385
        %v4387 = vshll.u32 2131351028, %v4378
        %v4388 = vshrl.u32 2102212464, %v4379
        %v4389 = vor.u32 %v4387, %v4388
        %v4390 = vshll.u32 2102212464, %v4378
        %v4391 = vshrl.u32 920167782, %v4379
        %v4392 = vor.u32 %v4390, %v4391
        %v4393 = vshll.u32 920167782, %v4378
        %v4394 = vshrl.u32 1326507024, %v4379
        %v4395 = vor.u32 %v4393, %v4394
        %vm4396 = vcmp.lt.s32.totalorder %v4377, 1
        %vm4397 = vcmp.lt.s32.totalorder %v4377, 2
        %vm4398 = vcmp.lt.s32.totalorder %v4377, 3
        %vm4399 = vcmp.lt.s32.totalorder %v4377, 4
        %v4400 = vsel %vm4396, %v4380, %v4383
        %v4401 = vsel %vm4399, %v4389, 2102212464
        %v4402 = vsel %vm4398, %v4386, %v4401
        %v4403 = vsel %vm4397, %v4400, %v4402
        %v4404 = vsel %vm4396, %v4383, %v4386
        %v4405 = vsel %vm4399, %v4392, 920167782
        %v4406 = vsel %vm4398, %v4389, %v4405
        %v4407 = vsel %vm4397, %v4404, %v4406
        %v4408 = vsel %vm4396, %v4386, %v4389
        %v4409 = vsel %vm4399, %v4395, 1326507024
        %v4410 = vsel %vm4398, %v4392, %v4409
        %v4411 = vsel %vm4397, %v4408, %v4410
        %v4412 = vshll.u32 %v4372, 8
        %v4413 = vand.u32 %v4412, 65535
        %v4414 = vshrl.u32 %v4412, 16
        %v4415 = vand.u32 %v4411, 65535
        %v4416 = vshrl.u32 %v4411, 16
        %v4417 = vmul.u32 %v4413, %v4415
        %v4418 = vmul.u32 %v4413, %v4416
        %v4419 = vmul.u32 %v4414, %v4415
        %v4420 = vmul.u32 %v4414, %v4416
        %v4421 = vshll.u32 %v4418, 16
        %v4422 = vshrl.u32 %v4418, 16
        %v4423 = vshll.u32 %v4419, 16
        %v4424 = vshrl.u32 %v4419, 16
        %vm4425 = vc.u32 %v4417, %v4421
        %v4426 = vsel %vm4425, 1, 0
        %v4427 = vadd.s32 %v4417, %v4421
        %v4428 = vadd.s32 %v4420, %v4426
        %vm4429 = vc.u32 %v4427, %v4423
        %v4430 = vsel %vm4429, 1, 0
        %v4431 = vadd.s32 %v4427, %v4423
        %v4432 = vadd.s32 %v4428, %v4430
        %v4433 = vadd.s32 %v4432, %v4422
        %v4434 = vadd.s32 %v4433, %v4424
        %v4435 = vand.u32 %v4412, 65535
        %v4436 = vshrl.u32 %v4412, 16
        %v4437 = vand.u32 %v4407, 65535
        %v4438 = vshrl.u32 %v4407, 16
        %v4439 = vmul.u32 %v4435, %v4437
        %v4440 = vmul.u32 %v4435, %v4438
        %v4441 = vmul.u32 %v4436, %v4437
        %v4442 = vmul.u32 %v4436, %v4438
        %v4443 = vshll.u32 %v4440, 16
        %v4444 = vshrl.u32 %v4440, 16
        %v4445 = vshll.u32 %v4441, 16
        %v4446 = vshrl.u32 %v4441, 16
        %vm4447 = vc.u32 %v4439, %v4443
        %v4448 = vsel %vm4447, 1, 0
        %v4449 = vadd.s32 %v4439, %v4443
        %v4450 = vadd.s32 %v4442, %v4448
        %vm4451 = vc.u32 %v4449, %v4445
        %v4452 = vsel %vm4451, 1, 0
        %v4453 = vadd.s32 %v4449, %v4445
        %v4454 = vadd.s32 %v4450, %v4452
        %v4455 = vadd.s32 %v4454, %v4444
        %v4456 = vadd.s32 %v4455, %v4446
        %v4457 = vmul.u32 %v4412, %v4403
        %v4458 = vadd.s32 %v4434, %v4453
        %vm4459 = vc.u32 %v4434, %v4453
        %v4460 = vadd.s32 %v4456, 1
        %v4461 = vsel %vm4459, %v4460, %v4456
        %v4462 = vadd.s32 %v4457, %v4461
        %v4463 = vadd.s32 %v4462, 536870912
        %v4464 = vshrl.u32 %v4463, 30
        %v4465 = vshll.u32 %v4464, 30
        %v4466 = vsub.s32 %v4462, %v4465
        %vm4467 = vcmp.lt.s32.totalorder %v4466, 0
        %v4468 = vsub.s32 0, %v4466
        %v4469 = vsel %vm4467, %v4468, %v4466
        %v4470 = vclz %v4469
        %v4471 = vsub.s32 %v4470, 2
        %vm4472 = vcmp.gt.s32.totalorder 0, %v4471
        %v4473 = vsel %vm4472, 0, %v4471
        %v4474 = vsub.s32 32, %v4473
        %v4475 = vshll.u32 %v4466, %v4473
        %v4476 = vshrl.u32 %v4458, %v4474
        %v4477 = vor.u32 %v4475, %v4476
        %v4478 = vsub.s32 4294967266, %v4473
        %v4479 = vadd.s32 %v4478, 127
        %v4480 = vshll.u32 %v4479, 23
        %v4481 = vor.u32 4788187, %v4480
        %v4482 = vand.u32 2147483647, %v4481
        %v4484 = vcvt.s32.f32 %v4477
        %v4485 = vmul.f32 %v4484, %v4482
        %v4486 = vxor.u32 %v4485, 2147483648
        %v4487 = vsel %vm4366, %v4486, %v4485
        %v4488 = vsub.s32 4, %v4464
        %v4489 = vsel %vm4366, %v4488, %v4464
        %v4490 = vsel %vm4365, %v525, %v4487
        %v4491 = vsel %vm4365, 0, %v4489
        %v4492 = vmul.f32 %v4490, %v4490
        %v4493 = vmul.f32 %v4492, -0.001358992
        %v4494 = vadd.f32 %v4493, 0.041655596
        %v4495 = vmul.f32 %v4492, %v4494
        %v4496 = vadd.f32 %v4495, -0.4999988
        %v4497 = vmul.f32 %v4492, %v4496
        %v4498 = vadd.f32 1.0, %v4497
        %v4499 = vmul.f32 %v4490, %v4490
        %v4500 = vmul.f32 %v4499, -0.00019511016
        %v4501 = vadd.f32 %v4500, 0.008332121
        %v4502 = vmul.f32 %v4499, %v4501
        %v4503 = vadd.f32 %v4502, -0.16666654
        %v4504 = vmul.f32 %v4499, %v4503
        %v4505 = vadd.f32 %v4504, 1.0
        %v4506 = vmul.f32 %v4505, %v4490
        %vm4507 = vweird.f32 %v525
        %v4508 = vadd.s32 %v4491, 3
        %v4509 = vand.u32 %v4508, 3
        %vm4510 = vcmp.lt.s32.totalorder %v4509, 2
        %vm4511 = vcmp.eq.s32.totalorder %v4509, 0
        %v4512 = vxor.u32 %v4506, 2147483648
        %v4513 = vsel %vm4511, %v4498, %v4512
        %vm4514 = vcmp.eq.s32.totalorder %v4509, 2
        %v4515 = vxor.u32 %v4498, 2147483648
        %v4516 = vsel %vm4514, %v4515, %v4506
        %v4517 = vsel %vm4510, %v4513, %v4516
        %v4518 = vsel %vm4507, nan, %v4517
        %v4519 = vand.u32 2147483647, %v528
        %vm4520 = vcmp.le.f32.partialorder %v4519, 0.7853982
        %vm4521 = vcmp.lt.s32.totalorder %v528, 0
        %v4522 = vand.u32 %v528, 2139095040
        %v4523 = vshrl.u32 %v4522, 23
        %v4524 = vsub.s32 %v4523, 127
        %v4525 = vand.u32 2147483647, %v528
        %v4526 = vand.u32 %v4525, 8388607
        %v4527 = vor.u32 %v4526, 8388608
        %v4528 = vsub.s32 0, %v4527
        %v4529 = vadd.s32 %v4524, 1
        %vm4530 = vcmp.gt.s32.totalorder %v4529, 0
        %v4531 = vsel %vm4530, %v4529, 0
        %v4532 = vshrl.u32 %v4531, 5
        %v4533 = vand.u32 %v4531, 31
        %v4534 = vsub.s32 32, %v4533
        %v4535 = vshrl.u32 683565275, %v4534
        %v4536 = vshll.u32 683565275, %v4533
        %v4537 = vshrl.u32 2475754826, %v4534
        %v4538 = vor.u32 %v4536, %v4537
        %v4539 = vshll.u32 2475754826, %v4533
        %v4540 = vshrl.u32 2131351028, %v4534
        %v4541 = vor.u32 %v4539, %v4540
        %v4542 = vshll.u32 2131351028, %v4533
        %v4543 = vshrl.u32 2102212464, %v4534
        %v4544 = vor.u32 %v4542, %v4543
        %v4545 = vshll.u32 2102212464, %v4533
        %v4546 = vshrl.u32 920167782, %v4534
        %v4547 = vor.u32 %v4545, %v4546
        %v4548 = vshll.u32 920167782, %v4533
        %v4549 = vshrl.u32 1326507024, %v4534
        %v4550 = vor.u32 %v4548, %v4549
        %vm4551 = vcmp.lt.s32.totalorder %v4532, 1
        %vm4552 = vcmp.lt.s32.totalorder %v4532, 2
        %vm4553 = vcmp.lt.s32.totalorder %v4532, 3
        %vm4554 = vcmp.lt.s32.totalorder %v4532, 4
        %v4555 = vsel %vm4551, %v4535, %v4538
        %v4556 = vsel %vm4554, %v4544, 2102212464
        %v4557 = vsel %vm4553, %v4541, %v4556
        %v4558 = vsel %vm4552, %v4555, %v4557
        %v4559 = vsel %vm4551, %v4538, %v4541
        %v4560 = vsel %vm4554, %v4547, 920167782
        %v4561 = vsel %vm4553, %v4544, %v4560
        %v4562 = vsel %vm4552, %v4559, %v4561
        %v4563 = vsel %vm4551, %v4541, %v4544
        %v4564 = vsel %vm4554, %v4550, 1326507024
        %v4565 = vsel %vm4553, %v4547, %v4564
        %v4566 = vsel %vm4552, %v4563, %v4565
        %v4567 = vshll.u32 %v4527, 8
        %v4568 = vand.u32 %v4567, 65535
        %v4569 = vshrl.u32 %v4567, 16
        %v4570 = vand.u32 %v4566, 65535
        %v4571 = vshrl.u32 %v4566, 16
        %v4572 = vmul.u32 %v4568, %v4570
        %v4573 = vmul.u32 %v4568, %v4571
        %v4574 = vmul.u32 %v4569, %v4570
        %v4575 = vmul.u32 %v4569, %v4571
        %v4576 = vshll.u32 %v4573, 16
        %v4577 = vshrl.u32 %v4573, 16
        %v4578 = vshll.u32 %v4574, 16
        %v4579 = vshrl.u32 %v4574, 16
        %vm4580 = vc.u32 %v4572, %v4576
        %v4581 = vsel %vm4580, 1, 0
        %v4582 = vadd.s32 %v4572, %v4576
        %v4583 = vadd.s32 %v4575, %v4581
        %vm4584 = vc.u32 %v4582, %v4578
        %v4585 = vsel %vm4584, 1, 0
        %v4586 = vadd.s32 %v4582, %v4578
        %v4587 = vadd.s32 %v4583, %v4585
        %v4588 = vadd.s32 %v4587, %v4577
        %v4589 = vadd.s32 %v4588, %v4579
        %v4590 = vand.u32 %v4567, 65535
        %v4591 = vshrl.u32 %v4567, 16
        %v4592 = vand.u32 %v4562, 65535
        %v4593 = vshrl.u32 %v4562, 16
        %v4594 = vmul.u32 %v4590, %v4592
        %v4595 = vmul.u32 %v4590, %v4593
        %v4596 = vmul.u32 %v4591, %v4592
        %v4597 = vmul.u32 %v4591, %v4593
        %v4598 = vshll.u32 %v4595, 16
        %v4599 = vshrl.u32 %v4595, 16
        %v4600 = vshll.u32 %v4596, 16
        %v4601 = vshrl.u32 %v4596, 16
        %vm4602 = vc.u32 %v4594, %v4598
        %v4603 = vsel %vm4602, 1, 0
        %v4604 = vadd.s32 %v4594, %v4598
        %v4605 = vadd.s32 %v4597, %v4603
        %vm4606 = vc.u32 %v4604, %v4600
        %v4607 = vsel %vm4606, 1, 0
        %v4608 = vadd.s32 %v4604, %v4600
        %v4609 = vadd.s32 %v4605, %v4607
        %v4610 = vadd.s32 %v4609, %v4599
        %v4611 = vadd.s32 %v4610, %v4601
        %v4612 = vmul.u32 %v4567, %v4558
        %v4613 = vadd.s32 %v4589, %v4608
        %vm4614 = vc.u32 %v4589, %v4608
        %v4615 = vadd.s32 %v4611, 1
        %v4616 = vsel %vm4614, %v4615, %v4611
        %v4617 = vadd.s32 %v4612, %v4616
        %v4618 = vadd.s32 %v4617, 536870912
        %v4619 = vshrl.u32 %v4618, 30
        %v4620 = vshll.u32 %v4619, 30
        %v4621 = vsub.s32 %v4617, %v4620
        %vm4622 = vcmp.lt.s32.totalorder %v4621, 0
        %v4623 = vsub.s32 0, %v4621
        %v4624 = vsel %vm4622, %v4623, %v4621
        %v4625 = vclz %v4624
        %v4626 = vsub.s32 %v4625, 2
        %vm4627 = vcmp.gt.s32.totalorder 0, %v4626
        %v4628 = vsel %vm4627, 0, %v4626
        %v4629 = vsub.s32 32, %v4628
        %v4630 = vshll.u32 %v4621, %v4628
        %v4631 = vshrl.u32 %v4613, %v4629
        %v4632 = vor.u32 %v4630, %v4631
        %v4633 = vsub.s32 4294967266, %v4628
        %v4634 = vadd.s32 %v4633, 127
        %v4635 = vshll.u32 %v4634, 23
        %v4636 = vor.u32 4788187, %v4635
        %v4637 = vand.u32 2147483647, %v4636
        %v4639 = vcvt.s32.f32 %v4632
        %v4640 = vmul.f32 %v4639, %v4637
        %v4641 = vxor.u32 %v4640, 2147483648
        %v4642 = vsel %vm4521, %v4641, %v4640
        %v4643 = vsub.s32 4, %v4619
        %v4644 = vsel %vm4521, %v4643, %v4619
        %v4645 = vsel %vm4520, %v528, %v4642
        %v4646 = vsel %vm4520, 0, %v4644
        %v4647 = vmul.f32 %v4645, %v4645
        %v4648 = vmul.f32 %v4647, -0.001358992
        %v4649 = vadd.f32 %v4648, 0.041655596
        %v4650 = vmul.f32 %v4647, %v4649
        %v4651 = vadd.f32 %v4650, -0.4999988
        %v4652 = vmul.f32 %v4647, %v4651
        %v4653 = vadd.f32 1.0, %v4652
        %v4654 = vmul.f32 %v4645, %v4645
        %v4655 = vmul.f32 %v4654, -0.00019511016
        %v4656 = vadd.f32 %v4655, 0.008332121
        %v4657 = vmul.f32 %v4654, %v4656
        %v4658 = vadd.f32 %v4657, -0.16666654
        %v4659 = vmul.f32 %v4654, %v4658
        %v4660 = vadd.f32 %v4659, 1.0
        %v4661 = vmul.f32 %v4660, %v4645
        %vm4662 = vweird.f32 %v528
        %v4663 = vadd.s32 %v4646, 3
        %v4664 = vand.u32 %v4663, 3
        %vm4665 = vcmp.lt.s32.totalorder %v4664, 2
        %vm4666 = vcmp.eq.s32.totalorder %v4664, 0
        %v4667 = vxor.u32 %v4661, 2147483648
        %v4668 = vsel %vm4666, %v4653, %v4667
        %vm4669 = vcmp.eq.s32.totalorder %v4664, 2
        %v4670 = vxor.u32 %v4653, 2147483648
        %v4671 = vsel %vm4669, %v4670, %v4661
        %v4672 = vsel %vm4665, %v4668, %v4671
        %v4673 = vsel %vm4662, nan, %v4672
        %v4674 = vand.u32 2147483647, %v531
        %vm4675 = vcmp.le.f32.partialorder %v4674, 0.7853982
        %vm4676 = vcmp.lt.s32.totalorder %v531, 0
        %v4677 = vand.u32 %v531, 2139095040
        %v4678 = vshrl.u32 %v4677, 23
        %v4679 = vsub.s32 %v4678, 127
        %v4680 = vand.u32 2147483647, %v531
        %v4681 = vand.u32 %v4680, 8388607
        %v4682 = vor.u32 %v4681, 8388608
        %v4683 = vsub.s32 0, %v4682
        %v4684 = vadd.s32 %v4679, 1
        %vm4685 = vcmp.gt.s32.totalorder %v4684, 0
        %v4686 = vsel %vm4685, %v4684, 0
        %v4687 = vshrl.u32 %v4686, 5
        %v4688 = vand.u32 %v4686, 31
        %v4689 = vsub.s32 32, %v4688
        %v4690 = vshrl.u32 683565275, %v4689
        %v4691 = vshll.u32 683565275, %v4688
        %v4692 = vshrl.u32 2475754826, %v4689
        %v4693 = vor.u32 %v4691, %v4692
        %v4694 = vshll.u32 2475754826, %v4688
        %v4695 = vshrl.u32 2131351028, %v4689
        %v4696 = vor.u32 %v4694, %v4695
        %v4697 = vshll.u32 2131351028, %v4688
        %v4698 = vshrl.u32 2102212464, %v4689
        %v4699 = vor.u32 %v4697, %v4698
        %v4700 = vshll.u32 2102212464, %v4688
        %v4701 = vshrl.u32 920167782, %v4689
        %v4702 = vor.u32 %v4700, %v4701
        %v4703 = vshll.u32 920167782, %v4688
        %v4704 = vshrl.u32 1326507024, %v4689
        %v4705 = vor.u32 %v4703, %v4704
        %vm4706 = vcmp.lt.s32.totalorder %v4687, 1
        %vm4707 = vcmp.lt.s32.totalorder %v4687, 2
        %vm4708 = vcmp.lt.s32.totalorder %v4687, 3
        %vm4709 = vcmp.lt.s32.totalorder %v4687, 4
        %v4710 = vsel %vm4706, %v4690, %v4693
        %v4711 = vsel %vm4709, %v4699, 2102212464
        %v4712 = vsel %vm4708, %v4696, %v4711
        %v4713 = vsel %vm4707, %v4710, %v4712
        %v4714 = vsel %vm4706, %v4693, %v4696
        %v4715 = vsel %vm4709, %v4702, 920167782
        %v4716 = vsel %vm4708, %v4699, %v4715
        %v4717 = vsel %vm4707, %v4714, %v4716
        %v4718 = vsel %vm4706, %v4696, %v4699
        %v4719 = vsel %vm4709, %v4705, 1326507024
        %v4720 = vsel %vm4708, %v4702, %v4719
        %v4721 = vsel %vm4707, %v4718, %v4720
        %v4722 = vshll.u32 %v4682, 8
        %v4723 = vand.u32 %v4722, 65535
        %v4724 = vshrl.u32 %v4722, 16
        %v4725 = vand.u32 %v4721, 65535
        %v4726 = vshrl.u32 %v4721, 16
        %v4727 = vmul.u32 %v4723, %v4725
        %v4728 = vmul.u32 %v4723, %v4726
        %v4729 = vmul.u32 %v4724, %v4725
        %v4730 = vmul.u32 %v4724, %v4726
        %v4731 = vshll.u32 %v4728, 16
        %v4732 = vshrl.u32 %v4728, 16
        %v4733 = vshll.u32 %v4729, 16
        %v4734 = vshrl.u32 %v4729, 16
        %vm4735 = vc.u32 %v4727, %v4731
        %v4736 = vsel %vm4735, 1, 0
        %v4737 = vadd.s32 %v4727, %v4731
        %v4738 = vadd.s32 %v4730, %v4736
        %vm4739 = vc.u32 %v4737, %v4733
        %v4740 = vsel %vm4739, 1, 0
        %v4741 = vadd.s32 %v4737, %v4733
        %v4742 = vadd.s32 %v4738, %v4740
        %v4743 = vadd.s32 %v4742, %v4732
        %v4744 = vadd.s32 %v4743, %v4734
        %v4745 = vand.u32 %v4722, 65535
        %v4746 = vshrl.u32 %v4722, 16
        %v4747 = vand.u32 %v4717, 65535
        %v4748 = vshrl.u32 %v4717, 16
        %v4749 = vmul.u32 %v4745, %v4747
        %v4750 = vmul.u32 %v4745, %v4748
        %v4751 = vmul.u32 %v4746, %v4747
        %v4752 = vmul.u32 %v4746, %v4748
        %v4753 = vshll.u32 %v4750, 16
        %v4754 = vshrl.u32 %v4750, 16
        %v4755 = vshll.u32 %v4751, 16
        %v4756 = vshrl.u32 %v4751, 16
        %vm4757 = vc.u32 %v4749, %v4753
        %v4758 = vsel %vm4757, 1, 0
        %v4759 = vadd.s32 %v4749, %v4753
        %v4760 = vadd.s32 %v4752, %v4758
        %vm4761 = vc.u32 %v4759, %v4755
        %v4762 = vsel %vm4761, 1, 0
        %v4763 = vadd.s32 %v4759, %v4755
        %v4764 = vadd.s32 %v4760, %v4762
        %v4765 = vadd.s32 %v4764, %v4754
        %v4766 = vadd.s32 %v4765, %v4756
        %v4767 = vmul.u32 %v4722, %v4713
        %v4768 = vadd.s32 %v4744, %v4763
        %vm4769 = vc.u32 %v4744, %v4763
        %v4770 = vadd.s32 %v4766, 1
        %v4771 = vsel %vm4769, %v4770, %v4766
        %v4772 = vadd.s32 %v4767, %v4771
        %v4773 = vadd.s32 %v4772, 536870912
        %v4774 = vshrl.u32 %v4773, 30
        %v4775 = vshll.u32 %v4774, 30
        %v4776 = vsub.s32 %v4772, %v4775
        %vm4777 = vcmp.lt.s32.totalorder %v4776, 0
        %v4778 = vsub.s32 0, %v4776
        %v4779 = vsel %vm4777, %v4778, %v4776
        %v4780 = vclz %v4779
        %v4781 = vsub.s32 %v4780, 2
        %vm4782 = vcmp.gt.s32.totalorder 0, %v4781
        %v4783 = vsel %vm4782, 0, %v4781
        %v4784 = vsub.s32 32, %v4783
        %v4785 = vshll.u32 %v4776, %v4783
        %v4786 = vshrl.u32 %v4768, %v4784
        %v4787 = vor.u32 %v4785, %v4786
        %v4788 = vsub.s32 4294967266, %v4783
        %v4789 = vadd.s32 %v4788, 127
        %v4790 = vshll.u32 %v4789, 23
        %v4791 = vor.u32 4788187, %v4790
        %v4792 = vand.u32 2147483647, %v4791
        %v4794 = vcvt.s32.f32 %v4787
        %v4795 = vmul.f32 %v4794, %v4792
        %v4796 = vxor.u32 %v4795, 2147483648
        %v4797 = vsel %vm4676, %v4796, %v4795
        %v4798 = vsub.s32 4, %v4774
        %v4799 = vsel %vm4676, %v4798, %v4774
        %v4800 = vsel %vm4675, %v531, %v4797
        %v4801 = vsel %vm4675, 0, %v4799
        %v4802 = vmul.f32 %v4800, %v4800
        %v4803 = vmul.f32 %v4802, -0.001358992
        %v4804 = vadd.f32 %v4803, 0.041655596
        %v4805 = vmul.f32 %v4802, %v4804
        %v4806 = vadd.f32 %v4805, -0.4999988
        %v4807 = vmul.f32 %v4802, %v4806
        %v4808 = vadd.f32 1.0, %v4807
        %v4809 = vmul.f32 %v4800, %v4800
        %v4810 = vmul.f32 %v4809, -0.00019511016
        %v4811 = vadd.f32 %v4810, 0.008332121
        %v4812 = vmul.f32 %v4809, %v4811
        %v4813 = vadd.f32 %v4812, -0.16666654
        %v4814 = vmul.f32 %v4809, %v4813
        %v4815 = vadd.f32 %v4814, 1.0
        %v4816 = vmul.f32 %v4815, %v4800
        %vm4817 = vweird.f32 %v531
        %v4818 = vadd.s32 %v4801, 3
        %v4819 = vand.u32 %v4818, 3
        %vm4820 = vcmp.lt.s32.totalorder %v4819, 2
        %vm4821 = vcmp.eq.s32.totalorder %v4819, 0
        %v4822 = vxor.u32 %v4816, 2147483648
        %v4823 = vsel %vm4821, %v4808, %v4822
        %vm4824 = vcmp.eq.s32.totalorder %v4819, 2
        %v4825 = vxor.u32 %v4808, 2147483648
        %v4826 = vsel %vm4824, %v4825, %v4816
        %v4827 = vsel %vm4820, %v4823, %v4826
        %v4828 = vsel %vm4817, nan, %v4827
        %v4829 = vand.u32 2147483647, %v534
        %vm4830 = vcmp.le.f32.partialorder %v4829, 0.7853982
        %vm4831 = vcmp.lt.s32.totalorder %v534, 0
        %v4832 = vand.u32 %v534, 2139095040
        %v4833 = vshrl.u32 %v4832, 23
        %v4834 = vsub.s32 %v4833, 127
        %v4835 = vand.u32 2147483647, %v534
        %v4836 = vand.u32 %v4835, 8388607
        %v4837 = vor.u32 %v4836, 8388608
        %v4838 = vsub.s32 0, %v4837
        %v4839 = vadd.s32 %v4834, 1
        %vm4840 = vcmp.gt.s32.totalorder %v4839, 0
        %v4841 = vsel %vm4840, %v4839, 0
        %v4842 = vshrl.u32 %v4841, 5
        %v4843 = vand.u32 %v4841, 31
        %v4844 = vsub.s32 32, %v4843
        %v4845 = vshrl.u32 683565275, %v4844
        %v4846 = vshll.u32 683565275, %v4843
        %v4847 = vshrl.u32 2475754826, %v4844
        %v4848 = vor.u32 %v4846, %v4847
        %v4849 = vshll.u32 2475754826, %v4843
        %v4850 = vshrl.u32 2131351028, %v4844
        %v4851 = vor.u32 %v4849, %v4850
        %v4852 = vshll.u32 2131351028, %v4843
        %v4853 = vshrl.u32 2102212464, %v4844
        %v4854 = vor.u32 %v4852, %v4853
        %v4855 = vshll.u32 2102212464, %v4843
        %v4856 = vshrl.u32 920167782, %v4844
        %v4857 = vor.u32 %v4855, %v4856
        %v4858 = vshll.u32 920167782, %v4843
        %v4859 = vshrl.u32 1326507024, %v4844
        %v4860 = vor.u32 %v4858, %v4859
        %vm4861 = vcmp.lt.s32.totalorder %v4842, 1
        %vm4862 = vcmp.lt.s32.totalorder %v4842, 2
        %vm4863 = vcmp.lt.s32.totalorder %v4842, 3
        %vm4864 = vcmp.lt.s32.totalorder %v4842, 4
        %v4865 = vsel %vm4861, %v4845, %v4848
        %v4866 = vsel %vm4864, %v4854, 2102212464
        %v4867 = vsel %vm4863, %v4851, %v4866
        %v4868 = vsel %vm4862, %v4865, %v4867
        %v4869 = vsel %vm4861, %v4848, %v4851
        %v4870 = vsel %vm4864, %v4857, 920167782
        %v4871 = vsel %vm4863, %v4854, %v4870
        %v4872 = vsel %vm4862, %v4869, %v4871
        %v4873 = vsel %vm4861, %v4851, %v4854
        %v4874 = vsel %vm4864, %v4860, 1326507024
        %v4875 = vsel %vm4863, %v4857, %v4874
        %v4876 = vsel %vm4862, %v4873, %v4875
        %v4877 = vshll.u32 %v4837, 8
        %v4878 = vand.u32 %v4877, 65535
        %v4879 = vshrl.u32 %v4877, 16
        %v4880 = vand.u32 %v4876, 65535
        %v4881 = vshrl.u32 %v4876, 16
        %v4882 = vmul.u32 %v4878, %v4880
        %v4883 = vmul.u32 %v4878, %v4881
        %v4884 = vmul.u32 %v4879, %v4880
        %v4885 = vmul.u32 %v4879, %v4881
        %v4886 = vshll.u32 %v4883, 16
        %v4887 = vshrl.u32 %v4883, 16
        %v4888 = vshll.u32 %v4884, 16
        %v4889 = vshrl.u32 %v4884, 16
        %vm4890 = vc.u32 %v4882, %v4886
        %v4891 = vsel %vm4890, 1, 0
        %v4892 = vadd.s32 %v4882, %v4886
        %v4893 = vadd.s32 %v4885, %v4891
        %vm4894 = vc.u32 %v4892, %v4888
        %v4895 = vsel %vm4894, 1, 0
        %v4896 = vadd.s32 %v4892, %v4888
        %v4897 = vadd.s32 %v4893, %v4895
        %v4898 = vadd.s32 %v4897, %v4887
        %v4899 = vadd.s32 %v4898, %v4889
        %v4900 = vand.u32 %v4877, 65535
        %v4901 = vshrl.u32 %v4877, 16
        %v4902 = vand.u32 %v4872, 65535
        %v4903 = vshrl.u32 %v4872, 16
        %v4904 = vmul.u32 %v4900, %v4902
        %v4905 = vmul.u32 %v4900, %v4903
        %v4906 = vmul.u32 %v4901, %v4902
        %v4907 = vmul.u32 %v4901, %v4903
        %v4908 = vshll.u32 %v4905, 16
        %v4909 = vshrl.u32 %v4905, 16
        %v4910 = vshll.u32 %v4906, 16
        %v4911 = vshrl.u32 %v4906, 16
        %vm4912 = vc.u32 %v4904, %v4908
        %v4913 = vsel %vm4912, 1, 0
        %v4914 = vadd.s32 %v4904, %v4908
        %v4915 = vadd.s32 %v4907, %v4913
        %vm4916 = vc.u32 %v4914, %v4910
        %v4917 = vsel %vm4916, 1, 0
        %v4918 = vadd.s32 %v4914, %v4910
        %v4919 = vadd.s32 %v4915, %v4917
        %v4920 = vadd.s32 %v4919, %v4909
        %v4921 = vadd.s32 %v4920, %v4911
        %v4922 = vmul.u32 %v4877, %v4868
        %v4923 = vadd.s32 %v4899, %v4918
        %vm4924 = vc.u32 %v4899, %v4918
        %v4925 = vadd.s32 %v4921, 1
        %v4926 = vsel %vm4924, %v4925, %v4921
        %v4927 = vadd.s32 %v4922, %v4926
        %v4928 = vadd.s32 %v4927, 536870912
        %v4929 = vshrl.u32 %v4928, 30
        %v4930 = vshll.u32 %v4929, 30
        %v4931 = vsub.s32 %v4927, %v4930
        %vm4932 = vcmp.lt.s32.totalorder %v4931, 0
        %v4933 = vsub.s32 0, %v4931
        %v4934 = vsel %vm4932, %v4933, %v4931
        %v4935 = vclz %v4934
        %v4936 = vsub.s32 %v4935, 2
        %vm4937 = vcmp.gt.s32.totalorder 0, %v4936
        %v4938 = vsel %vm4937, 0, %v4936
        %v4939 = vsub.s32 32, %v4938
        %v4940 = vshll.u32 %v4931, %v4938
        %v4941 = vshrl.u32 %v4923, %v4939
        %v4942 = vor.u32 %v4940, %v4941
        %v4943 = vsub.s32 4294967266, %v4938
        %v4944 = vadd.s32 %v4943, 127
        %v4945 = vshll.u32 %v4944, 23
        %v4946 = vor.u32 4788187, %v4945
        %v4947 = vand.u32 2147483647, %v4946
        %v4949 = vcvt.s32.f32 %v4942
        %v4950 = vmul.f32 %v4949, %v4947
        %v4951 = vxor.u32 %v4950, 2147483648
        %v4952 = vsel %vm4831, %v4951, %v4950
        %v4953 = vsub.s32 4, %v4929
        %v4954 = vsel %vm4831, %v4953, %v4929
        %v4955 = vsel %vm4830, %v534, %v4952
        %v4956 = vsel %vm4830, 0, %v4954
        %v4957 = vmul.f32 %v4955, %v4955
        %v4958 = vmul.f32 %v4957, -0.001358992
        %v4959 = vadd.f32 %v4958, 0.041655596
        %v4960 = vmul.f32 %v4957, %v4959
        %v4961 = vadd.f32 %v4960, -0.4999988
        %v4962 = vmul.f32 %v4957, %v4961
        %v4963 = vadd.f32 1.0, %v4962
        %v4964 = vmul.f32 %v4955, %v4955
        %v4965 = vmul.f32 %v4964, -0.00019511016
        %v4966 = vadd.f32 %v4965, 0.008332121
        %v4967 = vmul.f32 %v4964, %v4966
        %v4968 = vadd.f32 %v4967, -0.16666654
        %v4969 = vmul.f32 %v4964, %v4968
        %v4970 = vadd.f32 %v4969, 1.0
        %v4971 = vmul.f32 %v4970, %v4955
        %vm4972 = vweird.f32 %v534
        %v4973 = vadd.s32 %v4956, 3
        %v4974 = vand.u32 %v4973, 3
        %vm4975 = vcmp.lt.s32.totalorder %v4974, 2
        %vm4976 = vcmp.eq.s32.totalorder %v4974, 0
        %v4977 = vxor.u32 %v4971, 2147483648
        %v4978 = vsel %vm4976, %v4963, %v4977
        %vm4979 = vcmp.eq.s32.totalorder %v4974, 2
        %v4980 = vxor.u32 %v4963, 2147483648
        %v4981 = vsel %vm4979, %v4980, %v4971
        %v4982 = vsel %vm4975, %v4978, %v4981
        %v4983 = vsel %vm4972, nan, %v4982
        %v4984 = vand.u32 2147483647, %v537
        %vm4985 = vcmp.le.f32.partialorder %v4984, 0.7853982
        %vm4986 = vcmp.lt.s32.totalorder %v537, 0
        %v4987 = vand.u32 %v537, 2139095040
        %v4988 = vshrl.u32 %v4987, 23
        %v4989 = vsub.s32 %v4988, 127
        %v4990 = vand.u32 2147483647, %v537
        %v4991 = vand.u32 %v4990, 8388607
        %v4992 = vor.u32 %v4991, 8388608
        %v4993 = vsub.s32 0, %v4992
        %v4994 = vadd.s32 %v4989, 1
        %vm4995 = vcmp.gt.s32.totalorder %v4994, 0
        %v4996 = vsel %vm4995, %v4994, 0
        %v4997 = vshrl.u32 %v4996, 5
        %v4998 = vand.u32 %v4996, 31
        %v4999 = vsub.s32 32, %v4998
        %v5000 = vshrl.u32 683565275, %v4999
        %v5001 = vshll.u32 683565275, %v4998
        %v5002 = vshrl.u32 2475754826, %v4999
        %v5003 = vor.u32 %v5001, %v5002
        %v5004 = vshll.u32 2475754826, %v4998
        %v5005 = vshrl.u32 2131351028, %v4999
        %v5006 = vor.u32 %v5004, %v5005
        %v5007 = vshll.u32 2131351028, %v4998
        %v5008 = vshrl.u32 2102212464, %v4999
        %v5009 = vor.u32 %v5007, %v5008
        %v5010 = vshll.u32 2102212464, %v4998
        %v5011 = vshrl.u32 920167782, %v4999
        %v5012 = vor.u32 %v5010, %v5011
        %v5013 = vshll.u32 920167782, %v4998
        %v5014 = vshrl.u32 1326507024, %v4999
        %v5015 = vor.u32 %v5013, %v5014
        %vm5016 = vcmp.lt.s32.totalorder %v4997, 1
        %vm5017 = vcmp.lt.s32.totalorder %v4997, 2
        %vm5018 = vcmp.lt.s32.totalorder %v4997, 3
        %vm5019 = vcmp.lt.s32.totalorder %v4997, 4
        %v5020 = vsel %vm5016, %v5000, %v5003
        %v5021 = vsel %vm5019, %v5009, 2102212464
        %v5022 = vsel %vm5018, %v5006, %v5021
        %v5023 = vsel %vm5017, %v5020, %v5022
        %v5024 = vsel %vm5016, %v5003, %v5006
        %v5025 = vsel %vm5019, %v5012, 920167782
        %v5026 = vsel %vm5018, %v5009, %v5025
        %v5027 = vsel %vm5017, %v5024, %v5026
        %v5028 = vsel %vm5016, %v5006, %v5009
        %v5029 = vsel %vm5019, %v5015, 1326507024
        %v5030 = vsel %vm5018, %v5012, %v5029
        %v5031 = vsel %vm5017, %v5028, %v5030
        %v5032 = vshll.u32 %v4992, 8
        %v5033 = vand.u32 %v5032, 65535
        %v5034 = vshrl.u32 %v5032, 16
        %v5035 = vand.u32 %v5031, 65535
        %v5036 = vshrl.u32 %v5031, 16
        %v5037 = vmul.u32 %v5033, %v5035
        %v5038 = vmul.u32 %v5033, %v5036
        %v5039 = vmul.u32 %v5034, %v5035
        %v5040 = vmul.u32 %v5034, %v5036
        %v5041 = vshll.u32 %v5038, 16
        %v5042 = vshrl.u32 %v5038, 16
        %v5043 = vshll.u32 %v5039, 16
        %v5044 = vshrl.u32 %v5039, 16
        %vm5045 = vc.u32 %v5037, %v5041
        %v5046 = vsel %vm5045, 1, 0
        %v5047 = vadd.s32 %v5037, %v5041
        %v5048 = vadd.s32 %v5040, %v5046
        %vm5049 = vc.u32 %v5047, %v5043
        %v5050 = vsel %vm5049, 1, 0
        %v5051 = vadd.s32 %v5047, %v5043
        %v5052 = vadd.s32 %v5048, %v5050
        %v5053 = vadd.s32 %v5052, %v5042
        %v5054 = vadd.s32 %v5053, %v5044
        %v5055 = vand.u32 %v5032, 65535
        %v5056 = vshrl.u32 %v5032, 16
        %v5057 = vand.u32 %v5027, 65535
        %v5058 = vshrl.u32 %v5027, 16
        %v5059 = vmul.u32 %v5055, %v5057
        %v5060 = vmul.u32 %v5055, %v5058
        %v5061 = vmul.u32 %v5056, %v5057
        %v5062 = vmul.u32 %v5056, %v5058
        %v5063 = vshll.u32 %v5060, 16
        %v5064 = vshrl.u32 %v5060, 16
        %v5065 = vshll.u32 %v5061, 16
        %v5066 = vshrl.u32 %v5061, 16
        %vm5067 = vc.u32 %v5059, %v5063
        %v5068 = vsel %vm5067, 1, 0
        %v5069 = vadd.s32 %v5059, %v5063
        %v5070 = vadd.s32 %v5062, %v5068
        %vm5071 = vc.u32 %v5069, %v5065
        %v5072 = vsel %vm5071, 1, 0
        %v5073 = vadd.s32 %v5069, %v5065
        %v5074 = vadd.s32 %v5070, %v5072
        %v5075 = vadd.s32 %v5074, %v5064
        %v5076 = vadd.s32 %v5075, %v5066
        %v5077 = vmul.u32 %v5032, %v5023
        %v5078 = vadd.s32 %v5054, %v5073
        %vm5079 = vc.u32 %v5054, %v5073
        %v5080 = vadd.s32 %v5076, 1
        %v5081 = vsel %vm5079, %v5080, %v5076
        %v5082 = vadd.s32 %v5077, %v5081
        %v5083 = vadd.s32 %v5082, 536870912
        %v5084 = vshrl.u32 %v5083, 30
        %v5085 = vshll.u32 %v5084, 30
        %v5086 = vsub.s32 %v5082, %v5085
        %vm5087 = vcmp.lt.s32.totalorder %v5086, 0
        %v5088 = vsub.s32 0, %v5086
        %v5089 = vsel %vm5087, %v5088, %v5086
        %v5090 = vclz %v5089
        %v5091 = vsub.s32 %v5090, 2
        %vm5092 = vcmp.gt.s32.totalorder 0, %v5091
        %v5093 = vsel %vm5092, 0, %v5091
        %v5094 = vsub.s32 32, %v5093
        %v5095 = vshll.u32 %v5086, %v5093
        %v5096 = vshrl.u32 %v5078, %v5094
        %v5097 = vor.u32 %v5095, %v5096
        %v5098 = vsub.s32 4294967266, %v5093
        %v5099 = vadd.s32 %v5098, 127
        %v5100 = vshll.u32 %v5099, 23
        %v5101 = vor.u32 4788187, %v5100
        %v5102 = vand.u32 2147483647, %v5101
        %v5104 = vcvt.s32.f32 %v5097
        %v5105 = vmul.f32 %v5104, %v5102
        %v5106 = vxor.u32 %v5105, 2147483648
        %v5107 = vsel %vm4986, %v5106, %v5105
        %v5108 = vsub.s32 4, %v5084
        %v5109 = vsel %vm4986, %v5108, %v5084
        %v5110 = vsel %vm4985, %v537, %v5107
        %v5111 = vsel %vm4985, 0, %v5109
        %v5112 = vmul.f32 %v5110, %v5110
        %v5113 = vmul.f32 %v5112, -0.001358992
        %v5114 = vadd.f32 %v5113, 0.041655596
        %v5115 = vmul.f32 %v5112, %v5114
        %v5116 = vadd.f32 %v5115, -0.4999988
        %v5117 = vmul.f32 %v5112, %v5116
        %v5118 = vadd.f32 1.0, %v5117
        %v5119 = vmul.f32 %v5110, %v5110
        %v5120 = vmul.f32 %v5119, -0.00019511016
        %v5121 = vadd.f32 %v5120, 0.008332121
        %v5122 = vmul.f32 %v5119, %v5121
        %v5123 = vadd.f32 %v5122, -0.16666654
        %v5124 = vmul.f32 %v5119, %v5123
        %v5125 = vadd.f32 %v5124, 1.0
        %v5126 = vmul.f32 %v5125, %v5110
        %vm5127 = vweird.f32 %v537
        %v5128 = vadd.s32 %v5111, 3
        %v5129 = vand.u32 %v5128, 3
        %vm5130 = vcmp.lt.s32.totalorder %v5129, 2
        %vm5131 = vcmp.eq.s32.totalorder %v5129, 0
        %v5132 = vxor.u32 %v5126, 2147483648
        %v5133 = vsel %vm5131, %v5118, %v5132
        %vm5134 = vcmp.eq.s32.totalorder %v5129, 2
        %v5135 = vxor.u32 %v5118, 2147483648
        %v5136 = vsel %vm5134, %v5135, %v5126
        %v5137 = vsel %vm5130, %v5133, %v5136
        %v5138 = vsel %vm5127, nan, %v5137
        %v5139 = vand.u32 2147483647, %v540
        %vm5140 = vcmp.le.f32.partialorder %v5139, 0.7853982
        %vm5141 = vcmp.lt.s32.totalorder %v540, 0
        %v5142 = vand.u32 %v540, 2139095040
        %v5143 = vshrl.u32 %v5142, 23
        %v5144 = vsub.s32 %v5143, 127
        %v5145 = vand.u32 2147483647, %v540
        %v5146 = vand.u32 %v5145, 8388607
        %v5147 = vor.u32 %v5146, 8388608
        %v5148 = vsub.s32 0, %v5147
        %v5149 = vadd.s32 %v5144, 1
        %vm5150 = vcmp.gt.s32.totalorder %v5149, 0
        %v5151 = vsel %vm5150, %v5149, 0
        %v5152 = vshrl.u32 %v5151, 5
        %v5153 = vand.u32 %v5151, 31
        %v5154 = vsub.s32 32, %v5153
        %v5155 = vshrl.u32 683565275, %v5154
        %v5156 = vshll.u32 683565275, %v5153
        %v5157 = vshrl.u32 2475754826, %v5154
        %v5158 = vor.u32 %v5156, %v5157
        %v5159 = vshll.u32 2475754826, %v5153
        %v5160 = vshrl.u32 2131351028, %v5154
        %v5161 = vor.u32 %v5159, %v5160
        %v5162 = vshll.u32 2131351028, %v5153
        %v5163 = vshrl.u32 2102212464, %v5154
        %v5164 = vor.u32 %v5162, %v5163
        %v5165 = vshll.u32 2102212464, %v5153
        %v5166 = vshrl.u32 920167782, %v5154
        %v5167 = vor.u32 %v5165, %v5166
        %v5168 = vshll.u32 920167782, %v5153
        %v5169 = vshrl.u32 1326507024, %v5154
        %v5170 = vor.u32 %v5168, %v5169
        %vm5171 = vcmp.lt.s32.totalorder %v5152, 1
        %vm5172 = vcmp.lt.s32.totalorder %v5152, 2
        %vm5173 = vcmp.lt.s32.totalorder %v5152, 3
        %vm5174 = vcmp.lt.s32.totalorder %v5152, 4
        %v5175 = vsel %vm5171, %v5155, %v5158
        %v5176 = vsel %vm5174, %v5164, 2102212464
        %v5177 = vsel %vm5173, %v5161, %v5176
        %v5178 = vsel %vm5172, %v5175, %v5177
        %v5179 = vsel %vm5171, %v5158, %v5161
        %v5180 = vsel %vm5174, %v5167, 920167782
        %v5181 = vsel %vm5173, %v5164, %v5180
        %v5182 = vsel %vm5172, %v5179, %v5181
        %v5183 = vsel %vm5171, %v5161, %v5164
        %v5184 = vsel %vm5174, %v5170, 1326507024
        %v5185 = vsel %vm5173, %v5167, %v5184
        %v5186 = vsel %vm5172, %v5183, %v5185
        %v5187 = vshll.u32 %v5147, 8
        %v5188 = vand.u32 %v5187, 65535
        %v5189 = vshrl.u32 %v5187, 16
        %v5190 = vand.u32 %v5186, 65535
        %v5191 = vshrl.u32 %v5186, 16
        %v5192 = vmul.u32 %v5188, %v5190
        %v5193 = vmul.u32 %v5188, %v5191
        %v5194 = vmul.u32 %v5189, %v5190
        %v5195 = vmul.u32 %v5189, %v5191
        %v5196 = vshll.u32 %v5193, 16
        %v5197 = vshrl.u32 %v5193, 16
        %v5198 = vshll.u32 %v5194, 16
        %v5199 = vshrl.u32 %v5194, 16
        %vm5200 = vc.u32 %v5192, %v5196
        %v5201 = vsel %vm5200, 1, 0
        %v5202 = vadd.s32 %v5192, %v5196
        %v5203 = vadd.s32 %v5195, %v5201
        %vm5204 = vc.u32 %v5202, %v5198
        %v5205 = vsel %vm5204, 1, 0
        %v5206 = vadd.s32 %v5202, %v5198
        %v5207 = vadd.s32 %v5203, %v5205
        %v5208 = vadd.s32 %v5207, %v5197
        %v5209 = vadd.s32 %v5208, %v5199
        %v5210 = vand.u32 %v5187, 65535
        %v5211 = vshrl.u32 %v5187, 16
        %v5212 = vand.u32 %v5182, 65535
        %v5213 = vshrl.u32 %v5182, 16
        %v5214 = vmul.u32 %v5210, %v5212
        %v5215 = vmul.u32 %v5210, %v5213
        %v5216 = vmul.u32 %v5211, %v5212
        %v5217 = vmul.u32 %v5211, %v5213
        %v5218 = vshll.u32 %v5215, 16
        %v5219 = vshrl.u32 %v5215, 16
        %v5220 = vshll.u32 %v5216, 16
        %v5221 = vshrl.u32 %v5216, 16
        %vm5222 = vc.u32 %v5214, %v5218
        %v5223 = vsel %vm5222, 1, 0
        %v5224 = vadd.s32 %v5214, %v5218
        %v5225 = vadd.s32 %v5217, %v5223
        %vm5226 = vc.u32 %v5224, %v5220
        %v5227 = vsel %vm5226, 1, 0
        %v5228 = vadd.s32 %v5224, %v5220
        %v5229 = vadd.s32 %v5225, %v5227
        %v5230 = vadd.s32 %v5229, %v5219
        %v5231 = vadd.s32 %v5230, %v5221
        %v5232 = vmul.u32 %v5187, %v5178
        %v5233 = vadd.s32 %v5209, %v5228
        %vm5234 = vc.u32 %v5209, %v5228
        %v5235 = vadd.s32 %v5231, 1
        %v5236 = vsel %vm5234, %v5235, %v5231
        %v5237 = vadd.s32 %v5232, %v5236
        %v5238 = vadd.s32 %v5237, 536870912
        %v5239 = vshrl.u32 %v5238, 30
        %v5240 = vshll.u32 %v5239, 30
        %v5241 = vsub.s32 %v5237, %v5240
        %vm5242 = vcmp.lt.s32.totalorder %v5241, 0
        %v5243 = vsub.s32 0, %v5241
        %v5244 = vsel %vm5242, %v5243, %v5241
        %v5245 = vclz %v5244
        %v5246 = vsub.s32 %v5245, 2
        %vm5247 = vcmp.gt.s32.totalorder 0, %v5246
        %v5248 = vsel %vm5247, 0, %v5246
        %v5249 = vsub.s32 32, %v5248
        %v5250 = vshll.u32 %v5241, %v5248
        %v5251 = vshrl.u32 %v5233, %v5249
        %v5252 = vor.u32 %v5250, %v5251
        %v5253 = vsub.s32 4294967266, %v5248
        %v5254 = vadd.s32 %v5253, 127
        %v5255 = vshll.u32 %v5254, 23
        %v5256 = vor.u32 4788187, %v5255
        %v5257 = vand.u32 2147483647, %v5256
        %v5259 = vcvt.s32.f32 %v5252
        %v5260 = vmul.f32 %v5259, %v5257
        %v5261 = vxor.u32 %v5260, 2147483648
        %v5262 = vsel %vm5141, %v5261, %v5260
        %v5263 = vsub.s32 4, %v5239
        %v5264 = vsel %vm5141, %v5263, %v5239
        %v5265 = vsel %vm5140, %v540, %v5262
        %v5266 = vsel %vm5140, 0, %v5264
        %v5267 = vmul.f32 %v5265, %v5265
        %v5268 = vmul.f32 %v5267, -0.001358992
        %v5269 = vadd.f32 %v5268, 0.041655596
        %v5270 = vmul.f32 %v5267, %v5269
        %v5271 = vadd.f32 %v5270, -0.4999988
        %v5272 = vmul.f32 %v5267, %v5271
        %v5273 = vadd.f32 1.0, %v5272
        %v5274 = vmul.f32 %v5265, %v5265
        %v5275 = vmul.f32 %v5274, -0.00019511016
        %v5276 = vadd.f32 %v5275, 0.008332121
        %v5277 = vmul.f32 %v5274, %v5276
        %v5278 = vadd.f32 %v5277, -0.16666654
        %v5279 = vmul.f32 %v5274, %v5278
        %v5280 = vadd.f32 %v5279, 1.0
        %v5281 = vmul.f32 %v5280, %v5265
        %vm5282 = vweird.f32 %v540
        %v5283 = vadd.s32 %v5266, 3
        %v5284 = vand.u32 %v5283, 3
        %vm5285 = vcmp.lt.s32.totalorder %v5284, 2
        %vm5286 = vcmp.eq.s32.totalorder %v5284, 0
        %v5287 = vxor.u32 %v5281, 2147483648
        %v5288 = vsel %vm5286, %v5273, %v5287
        %vm5289 = vcmp.eq.s32.totalorder %v5284, 2
        %v5290 = vxor.u32 %v5273, 2147483648
        %v5291 = vsel %vm5289, %v5290, %v5281
        %v5292 = vsel %vm5285, %v5288, %v5291
        %v5293 = vsel %vm5282, nan, %v5292
        %v5294 = vand.u32 2147483647, %v543
        %vm5295 = vcmp.le.f32.partialorder %v5294, 0.7853982
        %vm5296 = vcmp.lt.s32.totalorder %v543, 0
        %v5297 = vand.u32 %v543, 2139095040
        %v5298 = vshrl.u32 %v5297, 23
        %v5299 = vsub.s32 %v5298, 127
        %v5300 = vand.u32 2147483647, %v543
        %v5301 = vand.u32 %v5300, 8388607
        %v5302 = vor.u32 %v5301, 8388608
        %v5303 = vsub.s32 0, %v5302
        %v5304 = vadd.s32 %v5299, 1
        %vm5305 = vcmp.gt.s32.totalorder %v5304, 0
        %v5306 = vsel %vm5305, %v5304, 0
        %v5307 = vshrl.u32 %v5306, 5
        %v5308 = vand.u32 %v5306, 31
        %v5309 = vsub.s32 32, %v5308
        %v5310 = vshrl.u32 683565275, %v5309
        %v5311 = vshll.u32 683565275, %v5308
        %v5312 = vshrl.u32 2475754826, %v5309
        %v5313 = vor.u32 %v5311, %v5312
        %v5314 = vshll.u32 2475754826, %v5308
        %v5315 = vshrl.u32 2131351028, %v5309
        %v5316 = vor.u32 %v5314, %v5315
        %v5317 = vshll.u32 2131351028, %v5308
        %v5318 = vshrl.u32 2102212464, %v5309
        %v5319 = vor.u32 %v5317, %v5318
        %v5320 = vshll.u32 2102212464, %v5308
        %v5321 = vshrl.u32 920167782, %v5309
        %v5322 = vor.u32 %v5320, %v5321
        %v5323 = vshll.u32 920167782, %v5308
        %v5324 = vshrl.u32 1326507024, %v5309
        %v5325 = vor.u32 %v5323, %v5324
        %vm5326 = vcmp.lt.s32.totalorder %v5307, 1
        %vm5327 = vcmp.lt.s32.totalorder %v5307, 2
        %vm5328 = vcmp.lt.s32.totalorder %v5307, 3
        %vm5329 = vcmp.lt.s32.totalorder %v5307, 4
        %v5330 = vsel %vm5326, %v5310, %v5313
        %v5331 = vsel %vm5329, %v5319, 2102212464
        %v5332 = vsel %vm5328, %v5316, %v5331
        %v5333 = vsel %vm5327, %v5330, %v5332
        %v5334 = vsel %vm5326, %v5313, %v5316
        %v5335 = vsel %vm5329, %v5322, 920167782
        %v5336 = vsel %vm5328, %v5319, %v5335
        %v5337 = vsel %vm5327, %v5334, %v5336
        %v5338 = vsel %vm5326, %v5316, %v5319
        %v5339 = vsel %vm5329, %v5325, 1326507024
        %v5340 = vsel %vm5328, %v5322, %v5339
        %v5341 = vsel %vm5327, %v5338, %v5340
        %v5342 = vshll.u32 %v5302, 8
        %v5343 = vand.u32 %v5342, 65535
        %v5344 = vshrl.u32 %v5342, 16
        %v5345 = vand.u32 %v5341, 65535
        %v5346 = vshrl.u32 %v5341, 16
        %v5347 = vmul.u32 %v5343, %v5345
        %v5348 = vmul.u32 %v5343, %v5346
        %v5349 = vmul.u32 %v5344, %v5345
        %v5350 = vmul.u32 %v5344, %v5346
        %v5351 = vshll.u32 %v5348, 16
        %v5352 = vshrl.u32 %v5348, 16
        %v5353 = vshll.u32 %v5349, 16
        %v5354 = vshrl.u32 %v5349, 16
        %vm5355 = vc.u32 %v5347, %v5351
        %v5356 = vsel %vm5355, 1, 0
        %v5357 = vadd.s32 %v5347, %v5351
        %v5358 = vadd.s32 %v5350, %v5356
        %vm5359 = vc.u32 %v5357, %v5353
        %v5360 = vsel %vm5359, 1, 0
        %v5361 = vadd.s32 %v5357, %v5353
        %v5362 = vadd.s32 %v5358, %v5360
        %v5363 = vadd.s32 %v5362, %v5352
        %v5364 = vadd.s32 %v5363, %v5354
        %v5365 = vand.u32 %v5342, 65535
        %v5366 = vshrl.u32 %v5342, 16
        %v5367 = vand.u32 %v5337, 65535
        %v5368 = vshrl.u32 %v5337, 16
        %v5369 = vmul.u32 %v5365, %v5367
        %v5370 = vmul.u32 %v5365, %v5368
        %v5371 = vmul.u32 %v5366, %v5367
        %v5372 = vmul.u32 %v5366, %v5368
        %v5373 = vshll.u32 %v5370, 16
        %v5374 = vshrl.u32 %v5370, 16
        %v5375 = vshll.u32 %v5371, 16
        %v5376 = vshrl.u32 %v5371, 16
        %vm5377 = vc.u32 %v5369, %v5373
        %v5378 = vsel %vm5377, 1, 0
        %v5379 = vadd.s32 %v5369, %v5373
        %v5380 = vadd.s32 %v5372, %v5378
        %vm5381 = vc.u32 %v5379, %v5375
        %v5382 = vsel %vm5381, 1, 0
        %v5383 = vadd.s32 %v5379, %v5375
        %v5384 = vadd.s32 %v5380, %v5382
        %v5385 = vadd.s32 %v5384, %v5374
        %v5386 = vadd.s32 %v5385, %v5376
        %v5387 = vmul.u32 %v5342, %v5333
        %v5388 = vadd.s32 %v5364, %v5383
        %vm5389 = vc.u32 %v5364, %v5383
        %v5390 = vadd.s32 %v5386, 1
        %v5391 = vsel %vm5389, %v5390, %v5386
        %v5392 = vadd.s32 %v5387, %v5391
        %v5393 = vadd.s32 %v5392, 536870912
        %v5394 = vshrl.u32 %v5393, 30
        %v5395 = vshll.u32 %v5394, 30
        %v5396 = vsub.s32 %v5392, %v5395
        %vm5397 = vcmp.lt.s32.totalorder %v5396, 0
        %v5398 = vsub.s32 0, %v5396
        %v5399 = vsel %vm5397, %v5398, %v5396
        %v5400 = vclz %v5399
        %v5401 = vsub.s32 %v5400, 2
        %vm5402 = vcmp.gt.s32.totalorder 0, %v5401
        %v5403 = vsel %vm5402, 0, %v5401
        %v5404 = vsub.s32 32, %v5403
        %v5405 = vshll.u32 %v5396, %v5403
        %v5406 = vshrl.u32 %v5388, %v5404
        %v5407 = vor.u32 %v5405, %v5406
        %v5408 = vsub.s32 4294967266, %v5403
        %v5409 = vadd.s32 %v5408, 127
        %v5410 = vshll.u32 %v5409, 23
        %v5411 = vor.u32 4788187, %v5410
        %v5412 = vand.u32 2147483647, %v5411
        %v5414 = vcvt.s32.f32 %v5407
        %v5415 = vmul.f32 %v5414, %v5412
        %v5416 = vxor.u32 %v5415, 2147483648
        %v5417 = vsel %vm5296, %v5416, %v5415
        %v5418 = vsub.s32 4, %v5394
        %v5419 = vsel %vm5296, %v5418, %v5394
        %v5420 = vsel %vm5295, %v543, %v5417
        %v5421 = vsel %vm5295, 0, %v5419
        %v5422 = vmul.f32 %v5420, %v5420
        %v5423 = vmul.f32 %v5422, -0.001358992
        %v5424 = vadd.f32 %v5423, 0.041655596
        %v5425 = vmul.f32 %v5422, %v5424
        %v5426 = vadd.f32 %v5425, -0.4999988
        %v5427 = vmul.f32 %v5422, %v5426
        %v5428 = vadd.f32 1.0, %v5427
        %v5429 = vmul.f32 %v5420, %v5420
        %v5430 = vmul.f32 %v5429, -0.00019511016
        %v5431 = vadd.f32 %v5430, 0.008332121
        %v5432 = vmul.f32 %v5429, %v5431
        %v5433 = vadd.f32 %v5432, -0.16666654
        %v5434 = vmul.f32 %v5429, %v5433
        %v5435 = vadd.f32 %v5434, 1.0
        %v5436 = vmul.f32 %v5435, %v5420
        %vm5437 = vweird.f32 %v543
        %v5438 = vadd.s32 %v5421, 3
        %v5439 = vand.u32 %v5438, 3
        %vm5440 = vcmp.lt.s32.totalorder %v5439, 2
        %vm5441 = vcmp.eq.s32.totalorder %v5439, 0
        %v5442 = vxor.u32 %v5436, 2147483648
        %v5443 = vsel %vm5441, %v5428, %v5442
        %vm5444 = vcmp.eq.s32.totalorder %v5439, 2
        %v5445 = vxor.u32 %v5428, 2147483648
        %v5446 = vsel %vm5444, %v5445, %v5436
        %v5447 = vsel %vm5440, %v5443, %v5446
        %v5448 = vsel %vm5437, nan, %v5447
        %v5449 = vand.u32 2147483647, %v546
        %vm5450 = vcmp.le.f32.partialorder %v5449, 0.7853982
        %vm5451 = vcmp.lt.s32.totalorder %v546, 0
        %v5452 = vand.u32 %v546, 2139095040
        %v5453 = vshrl.u32 %v5452, 23
        %v5454 = vsub.s32 %v5453, 127
        %v5455 = vand.u32 2147483647, %v546
        %v5456 = vand.u32 %v5455, 8388607
        %v5457 = vor.u32 %v5456, 8388608
        %v5458 = vsub.s32 0, %v5457
        %v5459 = vadd.s32 %v5454, 1
        %vm5460 = vcmp.gt.s32.totalorder %v5459, 0
        %v5461 = vsel %vm5460, %v5459, 0
        %v5462 = vshrl.u32 %v5461, 5
        %v5463 = vand.u32 %v5461, 31
        %v5464 = vsub.s32 32, %v5463
        %v5465 = vshrl.u32 683565275, %v5464
        %v5466 = vshll.u32 683565275, %v5463
        %v5467 = vshrl.u32 2475754826, %v5464
        %v5468 = vor.u32 %v5466, %v5467
        %v5469 = vshll.u32 2475754826, %v5463
        %v5470 = vshrl.u32 2131351028, %v5464
        %v5471 = vor.u32 %v5469, %v5470
        %v5472 = vshll.u32 2131351028, %v5463
        %v5473 = vshrl.u32 2102212464, %v5464
        %v5474 = vor.u32 %v5472, %v5473
        %v5475 = vshll.u32 2102212464, %v5463
        %v5476 = vshrl.u32 920167782, %v5464
        %v5477 = vor.u32 %v5475, %v5476
        %v5478 = vshll.u32 920167782, %v5463
        %v5479 = vshrl.u32 1326507024, %v5464
        %v5480 = vor.u32 %v5478, %v5479
        %vm5481 = vcmp.lt.s32.totalorder %v5462, 1
        %vm5482 = vcmp.lt.s32.totalorder %v5462, 2
        %vm5483 = vcmp.lt.s32.totalorder %v5462, 3
        %vm5484 = vcmp.lt.s32.totalorder %v5462, 4
        %v5485 = vsel %vm5481, %v5465, %v5468
        %v5486 = vsel %vm5484, %v5474, 2102212464
        %v5487 = vsel %vm5483, %v5471, %v5486
        %v5488 = vsel %vm5482, %v5485, %v5487
        %v5489 = vsel %vm5481, %v5468, %v5471
        %v5490 = vsel %vm5484, %v5477, 920167782
        %v5491 = vsel %vm5483, %v5474, %v5490
        %v5492 = vsel %vm5482, %v5489, %v5491
        %v5493 = vsel %vm5481, %v5471, %v5474
        %v5494 = vsel %vm5484, %v5480, 1326507024
        %v5495 = vsel %vm5483, %v5477, %v5494
        %v5496 = vsel %vm5482, %v5493, %v5495
        %v5497 = vshll.u32 %v5457, 8
        %v5498 = vand.u32 %v5497, 65535
        %v5499 = vshrl.u32 %v5497, 16
        %v5500 = vand.u32 %v5496, 65535
        %v5501 = vshrl.u32 %v5496, 16
        %v5502 = vmul.u32 %v5498, %v5500
        %v5503 = vmul.u32 %v5498, %v5501
        %v5504 = vmul.u32 %v5499, %v5500
        %v5505 = vmul.u32 %v5499, %v5501
        %v5506 = vshll.u32 %v5503, 16
        %v5507 = vshrl.u32 %v5503, 16
        %v5508 = vshll.u32 %v5504, 16
        %v5509 = vshrl.u32 %v5504, 16
        %vm5510 = vc.u32 %v5502, %v5506
        %v5511 = vsel %vm5510, 1, 0
        %v5512 = vadd.s32 %v5502, %v5506
        %v5513 = vadd.s32 %v5505, %v5511
        %vm5514 = vc.u32 %v5512, %v5508
        %v5515 = vsel %vm5514, 1, 0
        %v5516 = vadd.s32 %v5512, %v5508
        %v5517 = vadd.s32 %v5513, %v5515
        %v5518 = vadd.s32 %v5517, %v5507
        %v5519 = vadd.s32 %v5518, %v5509
        %v5520 = vand.u32 %v5497, 65535
        %v5521 = vshrl.u32 %v5497, 16
        %v5522 = vand.u32 %v5492, 65535
        %v5523 = vshrl.u32 %v5492, 16
        %v5524 = vmul.u32 %v5520, %v5522
        %v5525 = vmul.u32 %v5520, %v5523
        %v5526 = vmul.u32 %v5521, %v5522
        %v5527 = vmul.u32 %v5521, %v5523
        %v5528 = vshll.u32 %v5525, 16
        %v5529 = vshrl.u32 %v5525, 16
        %v5530 = vshll.u32 %v5526, 16
        %v5531 = vshrl.u32 %v5526, 16
        %vm5532 = vc.u32 %v5524, %v5528
        %v5533 = vsel %vm5532, 1, 0
        %v5534 = vadd.s32 %v5524, %v5528
        %v5535 = vadd.s32 %v5527, %v5533
        %vm5536 = vc.u32 %v5534, %v5530
        %v5537 = vsel %vm5536, 1, 0
        %v5538 = vadd.s32 %v5534, %v5530
        %v5539 = vadd.s32 %v5535, %v5537
        %v5540 = vadd.s32 %v5539, %v5529
        %v5541 = vadd.s32 %v5540, %v5531
        %v5542 = vmul.u32 %v5497, %v5488
        %v5543 = vadd.s32 %v5519, %v5538
        %vm5544 = vc.u32 %v5519, %v5538
        %v5545 = vadd.s32 %v5541, 1
        %v5546 = vsel %vm5544, %v5545, %v5541
        %v5547 = vadd.s32 %v5542, %v5546
        %v5548 = vadd.s32 %v5547, 536870912
        %v5549 = vshrl.u32 %v5548, 30
        %v5550 = vshll.u32 %v5549, 30
        %v5551 = vsub.s32 %v5547, %v5550
        %vm5552 = vcmp.lt.s32.totalorder %v5551, 0
        %v5553 = vsub.s32 0, %v5551
        %v5554 = vsel %vm5552, %v5553, %v5551
        %v5555 = vclz %v5554
        %v5556 = vsub.s32 %v5555, 2
        %vm5557 = vcmp.gt.s32.totalorder 0, %v5556
        %v5558 = vsel %vm5557, 0, %v5556
        %v5559 = vsub.s32 32, %v5558
        %v5560 = vshll.u32 %v5551, %v5558
        %v5561 = vshrl.u32 %v5543, %v5559
        %v5562 = vor.u32 %v5560, %v5561
        %v5563 = vsub.s32 4294967266, %v5558
        %v5564 = vadd.s32 %v5563, 127
        %v5565 = vshll.u32 %v5564, 23
        %v5566 = vor.u32 4788187, %v5565
        %v5567 = vand.u32 2147483647, %v5566
        %v5569 = vcvt.s32.f32 %v5562
        %v5570 = vmul.f32 %v5569, %v5567
        %v5571 = vxor.u32 %v5570, 2147483648
        %v5572 = vsel %vm5451, %v5571, %v5570
        %v5573 = vsub.s32 4, %v5549
        %v5574 = vsel %vm5451, %v5573, %v5549
        %v5575 = vsel %vm5450, %v546, %v5572
        %v5576 = vsel %vm5450, 0, %v5574
        %v5577 = vmul.f32 %v5575, %v5575
        %v5578 = vmul.f32 %v5577, -0.001358992
        %v5579 = vadd.f32 %v5578, 0.041655596
        %v5580 = vmul.f32 %v5577, %v5579
        %v5581 = vadd.f32 %v5580, -0.4999988
        %v5582 = vmul.f32 %v5577, %v5581
        %v5583 = vadd.f32 1.0, %v5582
        %v5584 = vmul.f32 %v5575, %v5575
        %v5585 = vmul.f32 %v5584, -0.00019511016
        %v5586 = vadd.f32 %v5585, 0.008332121
        %v5587 = vmul.f32 %v5584, %v5586
        %v5588 = vadd.f32 %v5587, -0.16666654
        %v5589 = vmul.f32 %v5584, %v5588
        %v5590 = vadd.f32 %v5589, 1.0
        %v5591 = vmul.f32 %v5590, %v5575
        %vm5592 = vweird.f32 %v546
        %v5593 = vadd.s32 %v5576, 3
        %v5594 = vand.u32 %v5593, 3
        %vm5595 = vcmp.lt.s32.totalorder %v5594, 2
        %vm5596 = vcmp.eq.s32.totalorder %v5594, 0
        %v5597 = vxor.u32 %v5591, 2147483648
        %v5598 = vsel %vm5596, %v5583, %v5597
        %vm5599 = vcmp.eq.s32.totalorder %v5594, 2
        %v5600 = vxor.u32 %v5583, 2147483648
        %v5601 = vsel %vm5599, %v5600, %v5591
        %v5602 = vsel %vm5595, %v5598, %v5601
        %v5603 = vsel %vm5592, nan, %v5602
        %v5604 = vand.u32 2147483647, %v549
        %vm5605 = vcmp.le.f32.partialorder %v5604, 0.7853982
        %vm5606 = vcmp.lt.s32.totalorder %v549, 0
        %v5607 = vand.u32 %v549, 2139095040
        %v5608 = vshrl.u32 %v5607, 23
        %v5609 = vsub.s32 %v5608, 127
        %v5610 = vand.u32 2147483647, %v549
        %v5611 = vand.u32 %v5610, 8388607
        %v5612 = vor.u32 %v5611, 8388608
        %v5613 = vsub.s32 0, %v5612
        %v5614 = vadd.s32 %v5609, 1
        %vm5615 = vcmp.gt.s32.totalorder %v5614, 0
        %v5616 = vsel %vm5615, %v5614, 0
        %v5617 = vshrl.u32 %v5616, 5
        %v5618 = vand.u32 %v5616, 31
        %v5619 = vsub.s32 32, %v5618
        %v5620 = vshrl.u32 683565275, %v5619
        %v5621 = vshll.u32 683565275, %v5618
        %v5622 = vshrl.u32 2475754826, %v5619
        %v5623 = vor.u32 %v5621, %v5622
        %v5624 = vshll.u32 2475754826, %v5618
        %v5625 = vshrl.u32 2131351028, %v5619
        %v5626 = vor.u32 %v5624, %v5625
        %v5627 = vshll.u32 2131351028, %v5618
        %v5628 = vshrl.u32 2102212464, %v5619
        %v5629 = vor.u32 %v5627, %v5628
        %v5630 = vshll.u32 2102212464, %v5618
        %v5631 = vshrl.u32 920167782, %v5619
        %v5632 = vor.u32 %v5630, %v5631
        %v5633 = vshll.u32 920167782, %v5618
        %v5634 = vshrl.u32 1326507024, %v5619
        %v5635 = vor.u32 %v5633, %v5634
        %vm5636 = vcmp.lt.s32.totalorder %v5617, 1
        %vm5637 = vcmp.lt.s32.totalorder %v5617, 2
        %vm5638 = vcmp.lt.s32.totalorder %v5617, 3
        %vm5639 = vcmp.lt.s32.totalorder %v5617, 4
        %v5640 = vsel %vm5636, %v5620, %v5623
        %v5641 = vsel %vm5639, %v5629, 2102212464
        %v5642 = vsel %vm5638, %v5626, %v5641
        %v5643 = vsel %vm5637, %v5640, %v5642
        %v5644 = vsel %vm5636, %v5623, %v5626
        %v5645 = vsel %vm5639, %v5632, 920167782
        %v5646 = vsel %vm5638, %v5629, %v5645
        %v5647 = vsel %vm5637, %v5644, %v5646
        %v5648 = vsel %vm5636, %v5626, %v5629
        %v5649 = vsel %vm5639, %v5635, 1326507024
        %v5650 = vsel %vm5638, %v5632, %v5649
        %v5651 = vsel %vm5637, %v5648, %v5650
        %v5652 = vshll.u32 %v5612, 8
        %v5653 = vand.u32 %v5652, 65535
        %v5654 = vshrl.u32 %v5652, 16
        %v5655 = vand.u32 %v5651, 65535
        %v5656 = vshrl.u32 %v5651, 16
        %v5657 = vmul.u32 %v5653, %v5655
        %v5658 = vmul.u32 %v5653, %v5656
        %v5659 = vmul.u32 %v5654, %v5655
        %v5660 = vmul.u32 %v5654, %v5656
        %v5661 = vshll.u32 %v5658, 16
        %v5662 = vshrl.u32 %v5658, 16
        %v5663 = vshll.u32 %v5659, 16
        %v5664 = vshrl.u32 %v5659, 16
        %vm5665 = vc.u32 %v5657, %v5661
        %v5666 = vsel %vm5665, 1, 0
        %v5667 = vadd.s32 %v5657, %v5661
        %v5668 = vadd.s32 %v5660, %v5666
        %vm5669 = vc.u32 %v5667, %v5663
        %v5670 = vsel %vm5669, 1, 0
        %v5671 = vadd.s32 %v5667, %v5663
        %v5672 = vadd.s32 %v5668, %v5670
        %v5673 = vadd.s32 %v5672, %v5662
        %v5674 = vadd.s32 %v5673, %v5664
        %v5675 = vand.u32 %v5652, 65535
        %v5676 = vshrl.u32 %v5652, 16
        %v5677 = vand.u32 %v5647, 65535
        %v5678 = vshrl.u32 %v5647, 16
        %v5679 = vmul.u32 %v5675, %v5677
        %v5680 = vmul.u32 %v5675, %v5678
        %v5681 = vmul.u32 %v5676, %v5677
        %v5682 = vmul.u32 %v5676, %v5678
        %v5683 = vshll.u32 %v5680, 16
        %v5684 = vshrl.u32 %v5680, 16
        %v5685 = vshll.u32 %v5681, 16
        %v5686 = vshrl.u32 %v5681, 16
        %vm5687 = vc.u32 %v5679, %v5683
        %v5688 = vsel %vm5687, 1, 0
        %v5689 = vadd.s32 %v5679, %v5683
        %v5690 = vadd.s32 %v5682, %v5688
        %vm5691 = vc.u32 %v5689, %v5685
        %v5692 = vsel %vm5691, 1, 0
        %v5693 = vadd.s32 %v5689, %v5685
        %v5694 = vadd.s32 %v5690, %v5692
        %v5695 = vadd.s32 %v5694, %v5684
        %v5696 = vadd.s32 %v5695, %v5686
        %v5697 = vmul.u32 %v5652, %v5643
        %v5698 = vadd.s32 %v5674, %v5693
        %vm5699 = vc.u32 %v5674, %v5693
        %v5700 = vadd.s32 %v5696, 1
        %v5701 = vsel %vm5699, %v5700, %v5696
        %v5702 = vadd.s32 %v5697, %v5701
        %v5703 = vadd.s32 %v5702, 536870912
        %v5704 = vshrl.u32 %v5703, 30
        %v5705 = vshll.u32 %v5704, 30
        %v5706 = vsub.s32 %v5702, %v5705
        %vm5707 = vcmp.lt.s32.totalorder %v5706, 0
        %v5708 = vsub.s32 0, %v5706
        %v5709 = vsel %vm5707, %v5708, %v5706
        %v5710 = vclz %v5709
        %v5711 = vsub.s32 %v5710, 2
        %vm5712 = vcmp.gt.s32.totalorder 0, %v5711
        %v5713 = vsel %vm5712, 0, %v5711
        %v5714 = vsub.s32 32, %v5713
        %v5715 = vshll.u32 %v5706, %v5713
        %v5716 = vshrl.u32 %v5698, %v5714
        %v5717 = vor.u32 %v5715, %v5716
        %v5718 = vsub.s32 4294967266, %v5713
        %v5719 = vadd.s32 %v5718, 127
        %v5720 = vshll.u32 %v5719, 23
        %v5721 = vor.u32 4788187, %v5720
        %v5722 = vand.u32 2147483647, %v5721
        %v5724 = vcvt.s32.f32 %v5717
        %v5725 = vmul.f32 %v5724, %v5722
        %v5726 = vxor.u32 %v5725, 2147483648
        %v5727 = vsel %vm5606, %v5726, %v5725
        %v5728 = vsub.s32 4, %v5704
        %v5729 = vsel %vm5606, %v5728, %v5704
        %v5730 = vsel %vm5605, %v549, %v5727
        %v5731 = vsel %vm5605, 0, %v5729
        %v5732 = vmul.f32 %v5730, %v5730
        %v5733 = vmul.f32 %v5732, -0.001358992
        %v5734 = vadd.f32 %v5733, 0.041655596
        %v5735 = vmul.f32 %v5732, %v5734
        %v5736 = vadd.f32 %v5735, -0.4999988
        %v5737 = vmul.f32 %v5732, %v5736
        %v5738 = vadd.f32 1.0, %v5737
        %v5739 = vmul.f32 %v5730, %v5730
        %v5740 = vmul.f32 %v5739, -0.00019511016
        %v5741 = vadd.f32 %v5740, 0.008332121
        %v5742 = vmul.f32 %v5739, %v5741
        %v5743 = vadd.f32 %v5742, -0.16666654
        %v5744 = vmul.f32 %v5739, %v5743
        %v5745 = vadd.f32 %v5744, 1.0
        %v5746 = vmul.f32 %v5745, %v5730
        %vm5747 = vweird.f32 %v549
        %v5748 = vadd.s32 %v5731, 3
        %v5749 = vand.u32 %v5748, 3
        %vm5750 = vcmp.lt.s32.totalorder %v5749, 2
        %vm5751 = vcmp.eq.s32.totalorder %v5749, 0
        %v5752 = vxor.u32 %v5746, 2147483648
        %v5753 = vsel %vm5751, %v5738, %v5752
        %vm5754 = vcmp.eq.s32.totalorder %v5749, 2
        %v5755 = vxor.u32 %v5738, 2147483648
        %v5756 = vsel %vm5754, %v5755, %v5746
        %v5757 = vsel %vm5750, %v5753, %v5756
        %v5758 = vsel %vm5747, nan, %v5757
        %v5759 = vand.u32 2147483647, %v552
        %vm5760 = vcmp.le.f32.partialorder %v5759, 0.7853982
        %vm5761 = vcmp.lt.s32.totalorder %v552, 0
        %v5762 = vand.u32 %v552, 2139095040
        %v5763 = vshrl.u32 %v5762, 23
        %v5764 = vsub.s32 %v5763, 127
        %v5765 = vand.u32 2147483647, %v552
        %v5766 = vand.u32 %v5765, 8388607
        %v5767 = vor.u32 %v5766, 8388608
        %v5768 = vsub.s32 0, %v5767
        %v5769 = vadd.s32 %v5764, 1
        %vm5770 = vcmp.gt.s32.totalorder %v5769, 0
        %v5771 = vsel %vm5770, %v5769, 0
        %v5772 = vshrl.u32 %v5771, 5
        %v5773 = vand.u32 %v5771, 31
        %v5774 = vsub.s32 32, %v5773
        %v5775 = vshrl.u32 683565275, %v5774
        %v5776 = vshll.u32 683565275, %v5773
        %v5777 = vshrl.u32 2475754826, %v5774
        %v5778 = vor.u32 %v5776, %v5777
        %v5779 = vshll.u32 2475754826, %v5773
        %v5780 = vshrl.u32 2131351028, %v5774
        %v5781 = vor.u32 %v5779, %v5780
        %v5782 = vshll.u32 2131351028, %v5773
        %v5783 = vshrl.u32 2102212464, %v5774
        %v5784 = vor.u32 %v5782, %v5783
        %v5785 = vshll.u32 2102212464, %v5773
        %v5786 = vshrl.u32 920167782, %v5774
        %v5787 = vor.u32 %v5785, %v5786
        %v5788 = vshll.u32 920167782, %v5773
        %v5789 = vshrl.u32 1326507024, %v5774
        %v5790 = vor.u32 %v5788, %v5789
        %vm5791 = vcmp.lt.s32.totalorder %v5772, 1
        %vm5792 = vcmp.lt.s32.totalorder %v5772, 2
        %vm5793 = vcmp.lt.s32.totalorder %v5772, 3
        %vm5794 = vcmp.lt.s32.totalorder %v5772, 4
        %v5795 = vsel %vm5791, %v5775, %v5778
        %v5796 = vsel %vm5794, %v5784, 2102212464
        %v5797 = vsel %vm5793, %v5781, %v5796
        %v5798 = vsel %vm5792, %v5795, %v5797
        %v5799 = vsel %vm5791, %v5778, %v5781
        %v5800 = vsel %vm5794, %v5787, 920167782
        %v5801 = vsel %vm5793, %v5784, %v5800
        %v5802 = vsel %vm5792, %v5799, %v5801
        %v5803 = vsel %vm5791, %v5781, %v5784
        %v5804 = vsel %vm5794, %v5790, 1326507024
        %v5805 = vsel %vm5793, %v5787, %v5804
        %v5806 = vsel %vm5792, %v5803, %v5805
        %v5807 = vshll.u32 %v5767, 8
        %v5808 = vand.u32 %v5807, 65535
        %v5809 = vshrl.u32 %v5807, 16
        %v5810 = vand.u32 %v5806, 65535
        %v5811 = vshrl.u32 %v5806, 16
        %v5812 = vmul.u32 %v5808, %v5810
        %v5813 = vmul.u32 %v5808, %v5811
        %v5814 = vmul.u32 %v5809, %v5810
        %v5815 = vmul.u32 %v5809, %v5811
        %v5816 = vshll.u32 %v5813, 16
        %v5817 = vshrl.u32 %v5813, 16
        %v5818 = vshll.u32 %v5814, 16
        %v5819 = vshrl.u32 %v5814, 16
        %vm5820 = vc.u32 %v5812, %v5816
        %v5821 = vsel %vm5820, 1, 0
        %v5822 = vadd.s32 %v5812, %v5816
        %v5823 = vadd.s32 %v5815, %v5821
        %vm5824 = vc.u32 %v5822, %v5818
        %v5825 = vsel %vm5824, 1, 0
        %v5826 = vadd.s32 %v5822, %v5818
        %v5827 = vadd.s32 %v5823, %v5825
        %v5828 = vadd.s32 %v5827, %v5817
        %v5829 = vadd.s32 %v5828, %v5819
        %v5830 = vand.u32 %v5807, 65535
        %v5831 = vshrl.u32 %v5807, 16
        %v5832 = vand.u32 %v5802, 65535
        %v5833 = vshrl.u32 %v5802, 16
        %v5834 = vmul.u32 %v5830, %v5832
        %v5835 = vmul.u32 %v5830, %v5833
        %v5836 = vmul.u32 %v5831, %v5832
        %v5837 = vmul.u32 %v5831, %v5833
        %v5838 = vshll.u32 %v5835, 16
        %v5839 = vshrl.u32 %v5835, 16
        %v5840 = vshll.u32 %v5836, 16
        %v5841 = vshrl.u32 %v5836, 16
        %vm5842 = vc.u32 %v5834, %v5838
        %v5843 = vsel %vm5842, 1, 0
        %v5844 = vadd.s32 %v5834, %v5838
        %v5845 = vadd.s32 %v5837, %v5843
        %vm5846 = vc.u32 %v5844, %v5840
        %v5847 = vsel %vm5846, 1, 0
        %v5848 = vadd.s32 %v5844, %v5840
        %v5849 = vadd.s32 %v5845, %v5847
        %v5850 = vadd.s32 %v5849, %v5839
        %v5851 = vadd.s32 %v5850, %v5841
        %v5852 = vmul.u32 %v5807, %v5798
        %v5853 = vadd.s32 %v5829, %v5848
        %vm5854 = vc.u32 %v5829, %v5848
        %v5855 = vadd.s32 %v5851, 1
        %v5856 = vsel %vm5854, %v5855, %v5851
        %v5857 = vadd.s32 %v5852, %v5856
        %v5858 = vadd.s32 %v5857, 536870912
        %v5859 = vshrl.u32 %v5858, 30
        %v5860 = vshll.u32 %v5859, 30
        %v5861 = vsub.s32 %v5857, %v5860
        %vm5862 = vcmp.lt.s32.totalorder %v5861, 0
        %v5863 = vsub.s32 0, %v5861
        %v5864 = vsel %vm5862, %v5863, %v5861
        %v5865 = vclz %v5864
        %v5866 = vsub.s32 %v5865, 2
        %vm5867 = vcmp.gt.s32.totalorder 0, %v5866
        %v5868 = vsel %vm5867, 0, %v5866
        %v5869 = vsub.s32 32, %v5868
        %v5870 = vshll.u32 %v5861, %v5868
        %v5871 = vshrl.u32 %v5853, %v5869
        %v5872 = vor.u32 %v5870, %v5871
        %v5873 = vsub.s32 4294967266, %v5868
        %v5874 = vadd.s32 %v5873, 127
        %v5875 = vshll.u32 %v5874, 23
        %v5876 = vor.u32 4788187, %v5875
        %v5877 = vand.u32 2147483647, %v5876
        %v5879 = vcvt.s32.f32 %v5872
        %v5880 = vmul.f32 %v5879, %v5877
        %v5881 = vxor.u32 %v5880, 2147483648
        %v5882 = vsel %vm5761, %v5881, %v5880
        %v5883 = vsub.s32 4, %v5859
        %v5884 = vsel %vm5761, %v5883, %v5859
        %v5885 = vsel %vm5760, %v552, %v5882
        %v5886 = vsel %vm5760, 0, %v5884
        %v5887 = vmul.f32 %v5885, %v5885
        %v5888 = vmul.f32 %v5887, -0.001358992
        %v5889 = vadd.f32 %v5888, 0.041655596
        %v5890 = vmul.f32 %v5887, %v5889
        %v5891 = vadd.f32 %v5890, -0.4999988
        %v5892 = vmul.f32 %v5887, %v5891
        %v5893 = vadd.f32 1.0, %v5892
        %v5894 = vmul.f32 %v5885, %v5885
        %v5895 = vmul.f32 %v5894, -0.00019511016
        %v5896 = vadd.f32 %v5895, 0.008332121
        %v5897 = vmul.f32 %v5894, %v5896
        %v5898 = vadd.f32 %v5897, -0.16666654
        %v5899 = vmul.f32 %v5894, %v5898
        %v5900 = vadd.f32 %v5899, 1.0
        %v5901 = vmul.f32 %v5900, %v5885
        %vm5902 = vweird.f32 %v552
        %v5903 = vadd.s32 %v5886, 3
        %v5904 = vand.u32 %v5903, 3
        %vm5905 = vcmp.lt.s32.totalorder %v5904, 2
        %vm5906 = vcmp.eq.s32.totalorder %v5904, 0
        %v5907 = vxor.u32 %v5901, 2147483648
        %v5908 = vsel %vm5906, %v5893, %v5907
        %vm5909 = vcmp.eq.s32.totalorder %v5904, 2
        %v5910 = vxor.u32 %v5893, 2147483648
        %v5911 = vsel %vm5909, %v5910, %v5901
        %v5912 = vsel %vm5905, %v5908, %v5911
        %v5913 = vsel %vm5902, nan, %v5912
        %v5914 = vand.u32 2147483647, %v555
        %vm5915 = vcmp.le.f32.partialorder %v5914, 0.7853982
        %vm5916 = vcmp.lt.s32.totalorder %v555, 0
        %v5917 = vand.u32 %v555, 2139095040
        %v5918 = vshrl.u32 %v5917, 23
        %v5919 = vsub.s32 %v5918, 127
        %v5920 = vand.u32 2147483647, %v555
        %v5921 = vand.u32 %v5920, 8388607
        %v5922 = vor.u32 %v5921, 8388608
        %v5923 = vsub.s32 0, %v5922
        %v5924 = vadd.s32 %v5919, 1
        %vm5925 = vcmp.gt.s32.totalorder %v5924, 0
        %v5926 = vsel %vm5925, %v5924, 0
        %v5927 = vshrl.u32 %v5926, 5
        %v5928 = vand.u32 %v5926, 31
        %v5929 = vsub.s32 32, %v5928
        %v5930 = vshrl.u32 683565275, %v5929
        %v5931 = vshll.u32 683565275, %v5928
        %v5932 = vshrl.u32 2475754826, %v5929
        %v5933 = vor.u32 %v5931, %v5932
        %v5934 = vshll.u32 2475754826, %v5928
        %v5935 = vshrl.u32 2131351028, %v5929
        %v5936 = vor.u32 %v5934, %v5935
        %v5937 = vshll.u32 2131351028, %v5928
        %v5938 = vshrl.u32 2102212464, %v5929
        %v5939 = vor.u32 %v5937, %v5938
        %v5940 = vshll.u32 2102212464, %v5928
        %v5941 = vshrl.u32 920167782, %v5929
        %v5942 = vor.u32 %v5940, %v5941
        %v5943 = vshll.u32 920167782, %v5928
        %v5944 = vshrl.u32 1326507024, %v5929
        %v5945 = vor.u32 %v5943, %v5944
        %vm5946 = vcmp.lt.s32.totalorder %v5927, 1
        %vm5947 = vcmp.lt.s32.totalorder %v5927, 2
        %vm5948 = vcmp.lt.s32.totalorder %v5927, 3
        %vm5949 = vcmp.lt.s32.totalorder %v5927, 4
        %v5950 = vsel %vm5946, %v5930, %v5933
        %v5951 = vsel %vm5949, %v5939, 2102212464
        %v5952 = vsel %vm5948, %v5936, %v5951
        %v5953 = vsel %vm5947, %v5950, %v5952
        %v5954 = vsel %vm5946, %v5933, %v5936
        %v5955 = vsel %vm5949, %v5942, 920167782
        %v5956 = vsel %vm5948, %v5939, %v5955
        %v5957 = vsel %vm5947, %v5954, %v5956
        %v5958 = vsel %vm5946, %v5936, %v5939
        %v5959 = vsel %vm5949, %v5945, 1326507024
        %v5960 = vsel %vm5948, %v5942, %v5959
        %v5961 = vsel %vm5947, %v5958, %v5960
        %v5962 = vshll.u32 %v5922, 8
        %v5963 = vand.u32 %v5962, 65535
        %v5964 = vshrl.u32 %v5962, 16
        %v5965 = vand.u32 %v5961, 65535
        %v5966 = vshrl.u32 %v5961, 16
        %v5967 = vmul.u32 %v5963, %v5965
        %v5968 = vmul.u32 %v5963, %v5966
        %v5969 = vmul.u32 %v5964, %v5965
        %v5970 = vmul.u32 %v5964, %v5966
        %v5971 = vshll.u32 %v5968, 16
        %v5972 = vshrl.u32 %v5968, 16
        %v5973 = vshll.u32 %v5969, 16
        %v5974 = vshrl.u32 %v5969, 16
        %vm5975 = vc.u32 %v5967, %v5971
        %v5976 = vsel %vm5975, 1, 0
        %v5977 = vadd.s32 %v5967, %v5971
        %v5978 = vadd.s32 %v5970, %v5976
        %vm5979 = vc.u32 %v5977, %v5973
        %v5980 = vsel %vm5979, 1, 0
        %v5981 = vadd.s32 %v5977, %v5973
        %v5982 = vadd.s32 %v5978, %v5980
        %v5983 = vadd.s32 %v5982, %v5972
        %v5984 = vadd.s32 %v5983, %v5974
        %v5985 = vand.u32 %v5962, 65535
        %v5986 = vshrl.u32 %v5962, 16
        %v5987 = vand.u32 %v5957, 65535
        %v5988 = vshrl.u32 %v5957, 16
        %v5989 = vmul.u32 %v5985, %v5987
        %v5990 = vmul.u32 %v5985, %v5988
        %v5991 = vmul.u32 %v5986, %v5987
        %v5992 = vmul.u32 %v5986, %v5988
        %v5993 = vshll.u32 %v5990, 16
        %v5994 = vshrl.u32 %v5990, 16
        %v5995 = vshll.u32 %v5991, 16
        %v5996 = vshrl.u32 %v5991, 16
        %vm5997 = vc.u32 %v5989, %v5993
        %v5998 = vsel %vm5997, 1, 0
        %v5999 = vadd.s32 %v5989, %v5993
        %v6000 = vadd.s32 %v5992, %v5998
        %vm6001 = vc.u32 %v5999, %v5995
        %v6002 = vsel %vm6001, 1, 0
        %v6003 = vadd.s32 %v5999, %v5995
        %v6004 = vadd.s32 %v6000, %v6002
        %v6005 = vadd.s32 %v6004, %v5994
        %v6006 = vadd.s32 %v6005, %v5996
        %v6007 = vmul.u32 %v5962, %v5953
        %v6008 = vadd.s32 %v5984, %v6003
        %vm6009 = vc.u32 %v5984, %v6003
        %v6010 = vadd.s32 %v6006, 1
        %v6011 = vsel %vm6009, %v6010, %v6006
        %v6012 = vadd.s32 %v6007, %v6011
        %v6013 = vadd.s32 %v6012, 536870912
        %v6014 = vshrl.u32 %v6013, 30
        %v6015 = vshll.u32 %v6014, 30
        %v6016 = vsub.s32 %v6012, %v6015
        %vm6017 = vcmp.lt.s32.totalorder %v6016, 0
        %v6018 = vsub.s32 0, %v6016
        %v6019 = vsel %vm6017, %v6018, %v6016
        %v6020 = vclz %v6019
        %v6021 = vsub.s32 %v6020, 2
        %vm6022 = vcmp.gt.s32.totalorder 0, %v6021
        %v6023 = vsel %vm6022, 0, %v6021
        %v6024 = vsub.s32 32, %v6023
        %v6025 = vshll.u32 %v6016, %v6023
        %v6026 = vshrl.u32 %v6008, %v6024
        %v6027 = vor.u32 %v6025, %v6026
        %v6028 = vsub.s32 4294967266, %v6023
        %v6029 = vadd.s32 %v6028, 127
        %v6030 = vshll.u32 %v6029, 23
        %v6031 = vor.u32 4788187, %v6030
        %v6032 = vand.u32 2147483647, %v6031
        %v6034 = vcvt.s32.f32 %v6027
        %v6035 = vmul.f32 %v6034, %v6032
        %v6036 = vxor.u32 %v6035, 2147483648
        %v6037 = vsel %vm5916, %v6036, %v6035
        %v6038 = vsub.s32 4, %v6014
        %v6039 = vsel %vm5916, %v6038, %v6014
        %v6040 = vsel %vm5915, %v555, %v6037
        %v6041 = vsel %vm5915, 0, %v6039
        %v6042 = vmul.f32 %v6040, %v6040
        %v6043 = vmul.f32 %v6042, -0.001358992
        %v6044 = vadd.f32 %v6043, 0.041655596
        %v6045 = vmul.f32 %v6042, %v6044
        %v6046 = vadd.f32 %v6045, -0.4999988
        %v6047 = vmul.f32 %v6042, %v6046
        %v6048 = vadd.f32 1.0, %v6047
        %v6049 = vmul.f32 %v6040, %v6040
        %v6050 = vmul.f32 %v6049, -0.00019511016
        %v6051 = vadd.f32 %v6050, 0.008332121
        %v6052 = vmul.f32 %v6049, %v6051
        %v6053 = vadd.f32 %v6052, -0.16666654
        %v6054 = vmul.f32 %v6049, %v6053
        %v6055 = vadd.f32 %v6054, 1.0
        %v6056 = vmul.f32 %v6055, %v6040
        %vm6057 = vweird.f32 %v555
        %v6058 = vadd.s32 %v6041, 3
        %v6059 = vand.u32 %v6058, 3
        %vm6060 = vcmp.lt.s32.totalorder %v6059, 2
        %vm6061 = vcmp.eq.s32.totalorder %v6059, 0
        %v6062 = vxor.u32 %v6056, 2147483648
        %v6063 = vsel %vm6061, %v6048, %v6062
        %vm6064 = vcmp.eq.s32.totalorder %v6059, 2
        %v6065 = vxor.u32 %v6048, 2147483648
        %v6066 = vsel %vm6064, %v6065, %v6056
        %v6067 = vsel %vm6060, %v6063, %v6066
        %v6068 = vsel %vm6057, nan, %v6067
        %v6069 = vand.u32 2147483647, %v558
        %vm6070 = vcmp.le.f32.partialorder %v6069, 0.7853982
        %vm6071 = vcmp.lt.s32.totalorder %v558, 0
        %v6072 = vand.u32 %v558, 2139095040
        %v6073 = vshrl.u32 %v6072, 23
        %v6074 = vsub.s32 %v6073, 127
        %v6075 = vand.u32 2147483647, %v558
        %v6076 = vand.u32 %v6075, 8388607
        %v6077 = vor.u32 %v6076, 8388608
        %v6078 = vsub.s32 0, %v6077
        %v6079 = vadd.s32 %v6074, 1
        %vm6080 = vcmp.gt.s32.totalorder %v6079, 0
        %v6081 = vsel %vm6080, %v6079, 0
        %v6082 = vshrl.u32 %v6081, 5
        %v6083 = vand.u32 %v6081, 31
        %v6084 = vsub.s32 32, %v6083
        %v6085 = vshrl.u32 683565275, %v6084
        %v6086 = vshll.u32 683565275, %v6083
        %v6087 = vshrl.u32 2475754826, %v6084
        %v6088 = vor.u32 %v6086, %v6087
        %v6089 = vshll.u32 2475754826, %v6083
        %v6090 = vshrl.u32 2131351028, %v6084
        %v6091 = vor.u32 %v6089, %v6090
        %v6092 = vshll.u32 2131351028, %v6083
        %v6093 = vshrl.u32 2102212464, %v6084
        %v6094 = vor.u32 %v6092, %v6093
        %v6095 = vshll.u32 2102212464, %v6083
        %v6096 = vshrl.u32 920167782, %v6084
        %v6097 = vor.u32 %v6095, %v6096
        %v6098 = vshll.u32 920167782, %v6083
        %v6099 = vshrl.u32 1326507024, %v6084
        %v6100 = vor.u32 %v6098, %v6099
        %vm6101 = vcmp.lt.s32.totalorder %v6082, 1
        %vm6102 = vcmp.lt.s32.totalorder %v6082, 2
        %vm6103 = vcmp.lt.s32.totalorder %v6082, 3
        %vm6104 = vcmp.lt.s32.totalorder %v6082, 4
        %v6105 = vsel %vm6101, %v6085, %v6088
        %v6106 = vsel %vm6104, %v6094, 2102212464
        %v6107 = vsel %vm6103, %v6091, %v6106
        %v6108 = vsel %vm6102, %v6105, %v6107
        %v6109 = vsel %vm6101, %v6088, %v6091
        %v6110 = vsel %vm6104, %v6097, 920167782
        %v6111 = vsel %vm6103, %v6094, %v6110
        %v6112 = vsel %vm6102, %v6109, %v6111
        %v6113 = vsel %vm6101, %v6091, %v6094
        %v6114 = vsel %vm6104, %v6100, 1326507024
        %v6115 = vsel %vm6103, %v6097, %v6114
        %v6116 = vsel %vm6102, %v6113, %v6115
        %v6117 = vshll.u32 %v6077, 8
        %v6118 = vand.u32 %v6117, 65535
        %v6119 = vshrl.u32 %v6117, 16
        %v6120 = vand.u32 %v6116, 65535
        %v6121 = vshrl.u32 %v6116, 16
        %v6122 = vmul.u32 %v6118, %v6120
        %v6123 = vmul.u32 %v6118, %v6121
        %v6124 = vmul.u32 %v6119, %v6120
        %v6125 = vmul.u32 %v6119, %v6121
        %v6126 = vshll.u32 %v6123, 16
        %v6127 = vshrl.u32 %v6123, 16
        %v6128 = vshll.u32 %v6124, 16
        %v6129 = vshrl.u32 %v6124, 16
        %vm6130 = vc.u32 %v6122, %v6126
        %v6131 = vsel %vm6130, 1, 0
        %v6132 = vadd.s32 %v6122, %v6126
        %v6133 = vadd.s32 %v6125, %v6131
        %vm6134 = vc.u32 %v6132, %v6128
        %v6135 = vsel %vm6134, 1, 0
        %v6136 = vadd.s32 %v6132, %v6128
        %v6137 = vadd.s32 %v6133, %v6135
        %v6138 = vadd.s32 %v6137, %v6127
        %v6139 = vadd.s32 %v6138, %v6129
        %v6140 = vand.u32 %v6117, 65535
        %v6141 = vshrl.u32 %v6117, 16
        %v6142 = vand.u32 %v6112, 65535
        %v6143 = vshrl.u32 %v6112, 16
        %v6144 = vmul.u32 %v6140, %v6142
        %v6145 = vmul.u32 %v6140, %v6143
        %v6146 = vmul.u32 %v6141, %v6142
        %v6147 = vmul.u32 %v6141, %v6143
        %v6148 = vshll.u32 %v6145, 16
        %v6149 = vshrl.u32 %v6145, 16
        %v6150 = vshll.u32 %v6146, 16
        %v6151 = vshrl.u32 %v6146, 16
        %vm6152 = vc.u32 %v6144, %v6148
        %v6153 = vsel %vm6152, 1, 0
        %v6154 = vadd.s32 %v6144, %v6148
        %v6155 = vadd.s32 %v6147, %v6153
        %vm6156 = vc.u32 %v6154, %v6150
        %v6157 = vsel %vm6156, 1, 0
        %v6158 = vadd.s32 %v6154, %v6150
        %v6159 = vadd.s32 %v6155, %v6157
        %v6160 = vadd.s32 %v6159, %v6149
        %v6161 = vadd.s32 %v6160, %v6151
        %v6162 = vmul.u32 %v6117, %v6108
        %v6163 = vadd.s32 %v6139, %v6158
        %vm6164 = vc.u32 %v6139, %v6158
        %v6165 = vadd.s32 %v6161, 1
        %v6166 = vsel %vm6164, %v6165, %v6161
        %v6167 = vadd.s32 %v6162, %v6166
        %v6168 = vadd.s32 %v6167, 536870912
        %v6169 = vshrl.u32 %v6168, 30
        %v6170 = vshll.u32 %v6169, 30
        %v6171 = vsub.s32 %v6167, %v6170
        %vm6172 = vcmp.lt.s32.totalorder %v6171, 0
        %v6173 = vsub.s32 0, %v6171
        %v6174 = vsel %vm6172, %v6173, %v6171
        %v6175 = vclz %v6174
        %v6176 = vsub.s32 %v6175, 2
        %vm6177 = vcmp.gt.s32.totalorder 0, %v6176
        %v6178 = vsel %vm6177, 0, %v6176
        %v6179 = vsub.s32 32, %v6178
        %v6180 = vshll.u32 %v6171, %v6178
        %v6181 = vshrl.u32 %v6163, %v6179
        %v6182 = vor.u32 %v6180, %v6181
        %v6183 = vsub.s32 4294967266, %v6178
        %v6184 = vadd.s32 %v6183, 127
        %v6185 = vshll.u32 %v6184, 23
        %v6186 = vor.u32 4788187, %v6185
        %v6187 = vand.u32 2147483647, %v6186
        %v6189 = vcvt.s32.f32 %v6182
        %v6190 = vmul.f32 %v6189, %v6187
        %v6191 = vxor.u32 %v6190, 2147483648
        %v6192 = vsel %vm6071, %v6191, %v6190
        %v6193 = vsub.s32 4, %v6169
        %v6194 = vsel %vm6071, %v6193, %v6169
        %v6195 = vsel %vm6070, %v558, %v6192
        %v6196 = vsel %vm6070, 0, %v6194
        %v6197 = vmul.f32 %v6195, %v6195
        %v6198 = vmul.f32 %v6197, -0.001358992
        %v6199 = vadd.f32 %v6198, 0.041655596
        %v6200 = vmul.f32 %v6197, %v6199
        %v6201 = vadd.f32 %v6200, -0.4999988
        %v6202 = vmul.f32 %v6197, %v6201
        %v6203 = vadd.f32 1.0, %v6202
        %v6204 = vmul.f32 %v6195, %v6195
        %v6205 = vmul.f32 %v6204, -0.00019511016
        %v6206 = vadd.f32 %v6205, 0.008332121
        %v6207 = vmul.f32 %v6204, %v6206
        %v6208 = vadd.f32 %v6207, -0.16666654
        %v6209 = vmul.f32 %v6204, %v6208
        %v6210 = vadd.f32 %v6209, 1.0
        %v6211 = vmul.f32 %v6210, %v6195
        %vm6212 = vweird.f32 %v558
        %v6213 = vadd.s32 %v6196, 3
        %v6214 = vand.u32 %v6213, 3
        %vm6215 = vcmp.lt.s32.totalorder %v6214, 2
        %vm6216 = vcmp.eq.s32.totalorder %v6214, 0
        %v6217 = vxor.u32 %v6211, 2147483648
        %v6218 = vsel %vm6216, %v6203, %v6217
        %vm6219 = vcmp.eq.s32.totalorder %v6214, 2
        %v6220 = vxor.u32 %v6203, 2147483648
        %v6221 = vsel %vm6219, %v6220, %v6211
        %v6222 = vsel %vm6215, %v6218, %v6221
        %v6223 = vsel %vm6212, nan, %v6222
        %v6224 = vand.u32 2147483647, %v561
        %vm6225 = vcmp.le.f32.partialorder %v6224, 0.7853982
        %vm6226 = vcmp.lt.s32.totalorder %v561, 0
        %v6227 = vand.u32 %v561, 2139095040
        %v6228 = vshrl.u32 %v6227, 23
        %v6229 = vsub.s32 %v6228, 127
        %v6230 = vand.u32 2147483647, %v561
        %v6231 = vand.u32 %v6230, 8388607
        %v6232 = vor.u32 %v6231, 8388608
        %v6233 = vsub.s32 0, %v6232
        %v6234 = vadd.s32 %v6229, 1
        %vm6235 = vcmp.gt.s32.totalorder %v6234, 0
        %v6236 = vsel %vm6235, %v6234, 0
        %v6237 = vshrl.u32 %v6236, 5
        %v6238 = vand.u32 %v6236, 31
        %v6239 = vsub.s32 32, %v6238
        %v6240 = vshrl.u32 683565275, %v6239
        %v6241 = vshll.u32 683565275, %v6238
        %v6242 = vshrl.u32 2475754826, %v6239
        %v6243 = vor.u32 %v6241, %v6242
        %v6244 = vshll.u32 2475754826, %v6238
        %v6245 = vshrl.u32 2131351028, %v6239
        %v6246 = vor.u32 %v6244, %v6245
        %v6247 = vshll.u32 2131351028, %v6238
        %v6248 = vshrl.u32 2102212464, %v6239
        %v6249 = vor.u32 %v6247, %v6248
        %v6250 = vshll.u32 2102212464, %v6238
        %v6251 = vshrl.u32 920167782, %v6239
        %v6252 = vor.u32 %v6250, %v6251
        %v6253 = vshll.u32 920167782, %v6238
        %v6254 = vshrl.u32 1326507024, %v6239
        %v6255 = vor.u32 %v6253, %v6254
        %vm6256 = vcmp.lt.s32.totalorder %v6237, 1
        %vm6257 = vcmp.lt.s32.totalorder %v6237, 2
        %vm6258 = vcmp.lt.s32.totalorder %v6237, 3
        %vm6259 = vcmp.lt.s32.totalorder %v6237, 4
        %v6260 = vsel %vm6256, %v6240, %v6243
        %v6261 = vsel %vm6259, %v6249, 2102212464
        %v6262 = vsel %vm6258, %v6246, %v6261
        %v6263 = vsel %vm6257, %v6260, %v6262
        %v6264 = vsel %vm6256, %v6243, %v6246
        %v6265 = vsel %vm6259, %v6252, 920167782
        %v6266 = vsel %vm6258, %v6249, %v6265
        %v6267 = vsel %vm6257, %v6264, %v6266
        %v6268 = vsel %vm6256, %v6246, %v6249
        %v6269 = vsel %vm6259, %v6255, 1326507024
        %v6270 = vsel %vm6258, %v6252, %v6269
        %v6271 = vsel %vm6257, %v6268, %v6270
        %v6272 = vshll.u32 %v6232, 8
        %v6273 = vand.u32 %v6272, 65535
        %v6274 = vshrl.u32 %v6272, 16
        %v6275 = vand.u32 %v6271, 65535
        %v6276 = vshrl.u32 %v6271, 16
        %v6277 = vmul.u32 %v6273, %v6275
        %v6278 = vmul.u32 %v6273, %v6276
        %v6279 = vmul.u32 %v6274, %v6275
        %v6280 = vmul.u32 %v6274, %v6276
        %v6281 = vshll.u32 %v6278, 16
        %v6282 = vshrl.u32 %v6278, 16
        %v6283 = vshll.u32 %v6279, 16
        %v6284 = vshrl.u32 %v6279, 16
        %vm6285 = vc.u32 %v6277, %v6281
        %v6286 = vsel %vm6285, 1, 0
        %v6287 = vadd.s32 %v6277, %v6281
        %v6288 = vadd.s32 %v6280, %v6286
        %vm6289 = vc.u32 %v6287, %v6283
        %v6290 = vsel %vm6289, 1, 0
        %v6291 = vadd.s32 %v6287, %v6283
        %v6292 = vadd.s32 %v6288, %v6290
        %v6293 = vadd.s32 %v6292, %v6282
        %v6294 = vadd.s32 %v6293, %v6284
        %v6295 = vand.u32 %v6272, 65535
        %v6296 = vshrl.u32 %v6272, 16
        %v6297 = vand.u32 %v6267, 65535
        %v6298 = vshrl.u32 %v6267, 16
        %v6299 = vmul.u32 %v6295, %v6297
        %v6300 = vmul.u32 %v6295, %v6298
        %v6301 = vmul.u32 %v6296, %v6297
        %v6302 = vmul.u32 %v6296, %v6298
        %v6303 = vshll.u32 %v6300, 16
        %v6304 = vshrl.u32 %v6300, 16
        %v6305 = vshll.u32 %v6301, 16
        %v6306 = vshrl.u32 %v6301, 16
        %vm6307 = vc.u32 %v6299, %v6303
        %v6308 = vsel %vm6307, 1, 0
        %v6309 = vadd.s32 %v6299, %v6303
        %v6310 = vadd.s32 %v6302, %v6308
        %vm6311 = vc.u32 %v6309, %v6305
        %v6312 = vsel %vm6311, 1, 0
        %v6313 = vadd.s32 %v6309, %v6305
        %v6314 = vadd.s32 %v6310, %v6312
        %v6315 = vadd.s32 %v6314, %v6304
        %v6316 = vadd.s32 %v6315, %v6306
        %v6317 = vmul.u32 %v6272, %v6263
        %v6318 = vadd.s32 %v6294, %v6313
        %vm6319 = vc.u32 %v6294, %v6313
        %v6320 = vadd.s32 %v6316, 1
        %v6321 = vsel %vm6319, %v6320, %v6316
        %v6322 = vadd.s32 %v6317, %v6321
        %v6323 = vadd.s32 %v6322, 536870912
        %v6324 = vshrl.u32 %v6323, 30
        %v6325 = vshll.u32 %v6324, 30
        %v6326 = vsub.s32 %v6322, %v6325
        %vm6327 = vcmp.lt.s32.totalorder %v6326, 0
        %v6328 = vsub.s32 0, %v6326
        %v6329 = vsel %vm6327, %v6328, %v6326
        %v6330 = vclz %v6329
        %v6331 = vsub.s32 %v6330, 2
        %vm6332 = vcmp.gt.s32.totalorder 0, %v6331
        %v6333 = vsel %vm6332, 0, %v6331
        %v6334 = vsub.s32 32, %v6333
        %v6335 = vshll.u32 %v6326, %v6333
        %v6336 = vshrl.u32 %v6318, %v6334
        %v6337 = vor.u32 %v6335, %v6336
        %v6338 = vsub.s32 4294967266, %v6333
        %v6339 = vadd.s32 %v6338, 127
        %v6340 = vshll.u32 %v6339, 23
        %v6341 = vor.u32 4788187, %v6340
        %v6342 = vand.u32 2147483647, %v6341
        %v6344 = vcvt.s32.f32 %v6337
        %v6345 = vmul.f32 %v6344, %v6342
        %v6346 = vxor.u32 %v6345, 2147483648
        %v6347 = vsel %vm6226, %v6346, %v6345
        %v6348 = vsub.s32 4, %v6324
        %v6349 = vsel %vm6226, %v6348, %v6324
        %v6350 = vsel %vm6225, %v561, %v6347
        %v6351 = vsel %vm6225, 0, %v6349
        %v6352 = vmul.f32 %v6350, %v6350
        %v6353 = vmul.f32 %v6352, -0.001358992
        %v6354 = vadd.f32 %v6353, 0.041655596
        %v6355 = vmul.f32 %v6352, %v6354
        %v6356 = vadd.f32 %v6355, -0.4999988
        %v6357 = vmul.f32 %v6352, %v6356
        %v6358 = vadd.f32 1.0, %v6357
        %v6359 = vmul.f32 %v6350, %v6350
        %v6360 = vmul.f32 %v6359, -0.00019511016
        %v6361 = vadd.f32 %v6360, 0.008332121
        %v6362 = vmul.f32 %v6359, %v6361
        %v6363 = vadd.f32 %v6362, -0.16666654
        %v6364 = vmul.f32 %v6359, %v6363
        %v6365 = vadd.f32 %v6364, 1.0
        %v6366 = vmul.f32 %v6365, %v6350
        %vm6367 = vweird.f32 %v561
        %v6368 = vadd.s32 %v6351, 3
        %v6369 = vand.u32 %v6368, 3
        %vm6370 = vcmp.lt.s32.totalorder %v6369, 2
        %vm6371 = vcmp.eq.s32.totalorder %v6369, 0
        %v6372 = vxor.u32 %v6366, 2147483648
        %v6373 = vsel %vm6371, %v6358, %v6372
        %vm6374 = vcmp.eq.s32.totalorder %v6369, 2
        %v6375 = vxor.u32 %v6358, 2147483648
        %v6376 = vsel %vm6374, %v6375, %v6366
        %v6377 = vsel %vm6370, %v6373, %v6376
        %v6378 = vsel %vm6367, nan, %v6377
        %v6379 = vand.u32 2147483647, %v564
        %vm6380 = vcmp.le.f32.partialorder %v6379, 0.7853982
        %vm6381 = vcmp.lt.s32.totalorder %v564, 0
        %v6382 = vand.u32 %v564, 2139095040
        %v6383 = vshrl.u32 %v6382, 23
        %v6384 = vsub.s32 %v6383, 127
        %v6385 = vand.u32 2147483647, %v564
        %v6386 = vand.u32 %v6385, 8388607
        %v6387 = vor.u32 %v6386, 8388608
        %v6388 = vsub.s32 0, %v6387
        %v6389 = vadd.s32 %v6384, 1
        %vm6390 = vcmp.gt.s32.totalorder %v6389, 0
        %v6391 = vsel %vm6390, %v6389, 0
        %v6392 = vshrl.u32 %v6391, 5
        %v6393 = vand.u32 %v6391, 31
        %v6394 = vsub.s32 32, %v6393
        %v6395 = vshrl.u32 683565275, %v6394
        %v6396 = vshll.u32 683565275, %v6393
        %v6397 = vshrl.u32 2475754826, %v6394
        %v6398 = vor.u32 %v6396, %v6397
        %v6399 = vshll.u32 2475754826, %v6393
        %v6400 = vshrl.u32 2131351028, %v6394
        %v6401 = vor.u32 %v6399, %v6400
        %v6402 = vshll.u32 2131351028, %v6393
        %v6403 = vshrl.u32 2102212464, %v6394
        %v6404 = vor.u32 %v6402, %v6403
        %v6405 = vshll.u32 2102212464, %v6393
        %v6406 = vshrl.u32 920167782, %v6394
        %v6407 = vor.u32 %v6405, %v6406
        %v6408 = vshll.u32 920167782, %v6393
        %v6409 = vshrl.u32 1326507024, %v6394
        %v6410 = vor.u32 %v6408, %v6409
        %vm6411 = vcmp.lt.s32.totalorder %v6392, 1
        %vm6412 = vcmp.lt.s32.totalorder %v6392, 2
        %vm6413 = vcmp.lt.s32.totalorder %v6392, 3
        %vm6414 = vcmp.lt.s32.totalorder %v6392, 4
        %v6415 = vsel %vm6411, %v6395, %v6398
        %v6416 = vsel %vm6414, %v6404, 2102212464
        %v6417 = vsel %vm6413, %v6401, %v6416
        %v6418 = vsel %vm6412, %v6415, %v6417
        %v6419 = vsel %vm6411, %v6398, %v6401
        %v6420 = vsel %vm6414, %v6407, 920167782
        %v6421 = vsel %vm6413, %v6404, %v6420
        %v6422 = vsel %vm6412, %v6419, %v6421
        %v6423 = vsel %vm6411, %v6401, %v6404
        %v6424 = vsel %vm6414, %v6410, 1326507024
        %v6425 = vsel %vm6413, %v6407, %v6424
        %v6426 = vsel %vm6412, %v6423, %v6425
        %v6427 = vshll.u32 %v6387, 8
        %v6428 = vand.u32 %v6427, 65535
        %v6429 = vshrl.u32 %v6427, 16
        %v6430 = vand.u32 %v6426, 65535
        %v6431 = vshrl.u32 %v6426, 16
        %v6432 = vmul.u32 %v6428, %v6430
        %v6433 = vmul.u32 %v6428, %v6431
        %v6434 = vmul.u32 %v6429, %v6430
        %v6435 = vmul.u32 %v6429, %v6431
        %v6436 = vshll.u32 %v6433, 16
        %v6437 = vshrl.u32 %v6433, 16
        %v6438 = vshll.u32 %v6434, 16
        %v6439 = vshrl.u32 %v6434, 16
        %vm6440 = vc.u32 %v6432, %v6436
        %v6441 = vsel %vm6440, 1, 0
        %v6442 = vadd.s32 %v6432, %v6436
        %v6443 = vadd.s32 %v6435, %v6441
        %vm6444 = vc.u32 %v6442, %v6438
        %v6445 = vsel %vm6444, 1, 0
        %v6446 = vadd.s32 %v6442, %v6438
        %v6447 = vadd.s32 %v6443, %v6445
        %v6448 = vadd.s32 %v6447, %v6437
        %v6449 = vadd.s32 %v6448, %v6439
        %v6450 = vand.u32 %v6427, 65535
        %v6451 = vshrl.u32 %v6427, 16
        %v6452 = vand.u32 %v6422, 65535
        %v6453 = vshrl.u32 %v6422, 16
        %v6454 = vmul.u32 %v6450, %v6452
        %v6455 = vmul.u32 %v6450, %v6453
        %v6456 = vmul.u32 %v6451, %v6452
        %v6457 = vmul.u32 %v6451, %v6453
        %v6458 = vshll.u32 %v6455, 16
        %v6459 = vshrl.u32 %v6455, 16
        %v6460 = vshll.u32 %v6456, 16
        %v6461 = vshrl.u32 %v6456, 16
        %vm6462 = vc.u32 %v6454, %v6458
        %v6463 = vsel %vm6462, 1, 0
        %v6464 = vadd.s32 %v6454, %v6458
        %v6465 = vadd.s32 %v6457, %v6463
        %vm6466 = vc.u32 %v6464, %v6460
        %v6467 = vsel %vm6466, 1, 0
        %v6468 = vadd.s32 %v6464, %v6460
        %v6469 = vadd.s32 %v6465, %v6467
        %v6470 = vadd.s32 %v6469, %v6459
        %v6471 = vadd.s32 %v6470, %v6461
        %v6472 = vmul.u32 %v6427, %v6418
        %v6473 = vadd.s32 %v6449, %v6468
        %vm6474 = vc.u32 %v6449, %v6468
        %v6475 = vadd.s32 %v6471, 1
        %v6476 = vsel %vm6474, %v6475, %v6471
        %v6477 = vadd.s32 %v6472, %v6476
        %v6478 = vadd.s32 %v6477, 536870912
        %v6479 = vshrl.u32 %v6478, 30
        %v6480 = vshll.u32 %v6479, 30
        %v6481 = vsub.s32 %v6477, %v6480
        %vm6482 = vcmp.lt.s32.totalorder %v6481, 0
        %v6483 = vsub.s32 0, %v6481
        %v6484 = vsel %vm6482, %v6483, %v6481
        %v6485 = vclz %v6484
        %v6486 = vsub.s32 %v6485, 2
        %vm6487 = vcmp.gt.s32.totalorder 0, %v6486
        %v6488 = vsel %vm6487, 0, %v6486
        %v6489 = vsub.s32 32, %v6488
        %v6490 = vshll.u32 %v6481, %v6488
        %v6491 = vshrl.u32 %v6473, %v6489
        %v6492 = vor.u32 %v6490, %v6491
        %v6493 = vsub.s32 4294967266, %v6488
        %v6494 = vadd.s32 %v6493, 127
        %v6495 = vshll.u32 %v6494, 23
        %v6496 = vor.u32 4788187, %v6495
        %v6497 = vand.u32 2147483647, %v6496
        %v6499 = vcvt.s32.f32 %v6492
        %v6500 = vmul.f32 %v6499, %v6497
        %v6501 = vxor.u32 %v6500, 2147483648
        %v6502 = vsel %vm6381, %v6501, %v6500
        %v6503 = vsub.s32 4, %v6479
        %v6504 = vsel %vm6381, %v6503, %v6479
        %v6505 = vsel %vm6380, %v564, %v6502
        %v6506 = vsel %vm6380, 0, %v6504
        %v6507 = vmul.f32 %v6505, %v6505
        %v6508 = vmul.f32 %v6507, -0.001358992
        %v6509 = vadd.f32 %v6508, 0.041655596
        %v6510 = vmul.f32 %v6507, %v6509
        %v6511 = vadd.f32 %v6510, -0.4999988
        %v6512 = vmul.f32 %v6507, %v6511
        %v6513 = vadd.f32 1.0, %v6512
        %v6514 = vmul.f32 %v6505, %v6505
        %v6515 = vmul.f32 %v6514, -0.00019511016
        %v6516 = vadd.f32 %v6515, 0.008332121
        %v6517 = vmul.f32 %v6514, %v6516
        %v6518 = vadd.f32 %v6517, -0.16666654
        %v6519 = vmul.f32 %v6514, %v6518
        %v6520 = vadd.f32 %v6519, 1.0
        %v6521 = vmul.f32 %v6520, %v6505
        %vm6522 = vweird.f32 %v564
        %v6523 = vadd.s32 %v6506, 3
        %v6524 = vand.u32 %v6523, 3
        %vm6525 = vcmp.lt.s32.totalorder %v6524, 2
        %vm6526 = vcmp.eq.s32.totalorder %v6524, 0
        %v6527 = vxor.u32 %v6521, 2147483648
        %v6528 = vsel %vm6526, %v6513, %v6527
        %vm6529 = vcmp.eq.s32.totalorder %v6524, 2
        %v6530 = vxor.u32 %v6513, 2147483648
        %v6531 = vsel %vm6529, %v6530, %v6521
        %v6532 = vsel %vm6525, %v6528, %v6531
        %v6533 = vsel %vm6522, nan, %v6532
        %v6534 = vand.u32 2147483647, %v567
        %vm6535 = vcmp.le.f32.partialorder %v6534, 0.7853982
        %vm6536 = vcmp.lt.s32.totalorder %v567, 0
        %v6537 = vand.u32 %v567, 2139095040
        %v6538 = vshrl.u32 %v6537, 23
        %v6539 = vsub.s32 %v6538, 127
        %v6540 = vand.u32 2147483647, %v567
        %v6541 = vand.u32 %v6540, 8388607
        %v6542 = vor.u32 %v6541, 8388608
        %v6543 = vsub.s32 0, %v6542
        %v6544 = vadd.s32 %v6539, 1
        %vm6545 = vcmp.gt.s32.totalorder %v6544, 0
        %v6546 = vsel %vm6545, %v6544, 0
        %v6547 = vshrl.u32 %v6546, 5
        %v6548 = vand.u32 %v6546, 31
        %v6549 = vsub.s32 32, %v6548
        %v6550 = vshrl.u32 683565275, %v6549
        %v6551 = vshll.u32 683565275, %v6548
        %v6552 = vshrl.u32 2475754826, %v6549
        %v6553 = vor.u32 %v6551, %v6552
        %v6554 = vshll.u32 2475754826, %v6548
        %v6555 = vshrl.u32 2131351028, %v6549
        %v6556 = vor.u32 %v6554, %v6555
        %v6557 = vshll.u32 2131351028, %v6548
        %v6558 = vshrl.u32 2102212464, %v6549
        %v6559 = vor.u32 %v6557, %v6558
        %v6560 = vshll.u32 2102212464, %v6548
        %v6561 = vshrl.u32 920167782, %v6549
        %v6562 = vor.u32 %v6560, %v6561
        %v6563 = vshll.u32 920167782, %v6548
        %v6564 = vshrl.u32 1326507024, %v6549
        %v6565 = vor.u32 %v6563, %v6564
        %vm6566 = vcmp.lt.s32.totalorder %v6547, 1
        %vm6567 = vcmp.lt.s32.totalorder %v6547, 2
        %vm6568 = vcmp.lt.s32.totalorder %v6547, 3
        %vm6569 = vcmp.lt.s32.totalorder %v6547, 4
        %v6570 = vsel %vm6566, %v6550, %v6553
        %v6571 = vsel %vm6569, %v6559, 2102212464
        %v6572 = vsel %vm6568, %v6556, %v6571
        %v6573 = vsel %vm6567, %v6570, %v6572
        %v6574 = vsel %vm6566, %v6553, %v6556
        %v6575 = vsel %vm6569, %v6562, 920167782
        %v6576 = vsel %vm6568, %v6559, %v6575
        %v6577 = vsel %vm6567, %v6574, %v6576
        %v6578 = vsel %vm6566, %v6556, %v6559
        %v6579 = vsel %vm6569, %v6565, 1326507024
        %v6580 = vsel %vm6568, %v6562, %v6579
        %v6581 = vsel %vm6567, %v6578, %v6580
        %v6582 = vshll.u32 %v6542, 8
        %v6583 = vand.u32 %v6582, 65535
        %v6584 = vshrl.u32 %v6582, 16
        %v6585 = vand.u32 %v6581, 65535
        %v6586 = vshrl.u32 %v6581, 16
        %v6587 = vmul.u32 %v6583, %v6585
        %v6588 = vmul.u32 %v6583, %v6586
        %v6589 = vmul.u32 %v6584, %v6585
        %v6590 = vmul.u32 %v6584, %v6586
        %v6591 = vshll.u32 %v6588, 16
        %v6592 = vshrl.u32 %v6588, 16
        %v6593 = vshll.u32 %v6589, 16
        %v6594 = vshrl.u32 %v6589, 16
        %vm6595 = vc.u32 %v6587, %v6591
        %v6596 = vsel %vm6595, 1, 0
        %v6597 = vadd.s32 %v6587, %v6591
        %v6598 = vadd.s32 %v6590, %v6596
        %vm6599 = vc.u32 %v6597, %v6593
        %v6600 = vsel %vm6599, 1, 0
        %v6601 = vadd.s32 %v6597, %v6593
        %v6602 = vadd.s32 %v6598, %v6600
        %v6603 = vadd.s32 %v6602, %v6592
        %v6604 = vadd.s32 %v6603, %v6594
        %v6605 = vand.u32 %v6582, 65535
        %v6606 = vshrl.u32 %v6582, 16
        %v6607 = vand.u32 %v6577, 65535
        %v6608 = vshrl.u32 %v6577, 16
        %v6609 = vmul.u32 %v6605, %v6607
        %v6610 = vmul.u32 %v6605, %v6608
        %v6611 = vmul.u32 %v6606, %v6607
        %v6612 = vmul.u32 %v6606, %v6608
        %v6613 = vshll.u32 %v6610, 16
        %v6614 = vshrl.u32 %v6610, 16
        %v6615 = vshll.u32 %v6611, 16
        %v6616 = vshrl.u32 %v6611, 16
        %vm6617 = vc.u32 %v6609, %v6613
        %v6618 = vsel %vm6617, 1, 0
        %v6619 = vadd.s32 %v6609, %v6613
        %v6620 = vadd.s32 %v6612, %v6618
        %vm6621 = vc.u32 %v6619, %v6615
        %v6622 = vsel %vm6621, 1, 0
        %v6623 = vadd.s32 %v6619, %v6615
        %v6624 = vadd.s32 %v6620, %v6622
        %v6625 = vadd.s32 %v6624, %v6614
        %v6626 = vadd.s32 %v6625, %v6616
        %v6627 = vmul.u32 %v6582, %v6573
        %v6628 = vadd.s32 %v6604, %v6623
        %vm6629 = vc.u32 %v6604, %v6623
        %v6630 = vadd.s32 %v6626, 1
        %v6631 = vsel %vm6629, %v6630, %v6626
        %v6632 = vadd.s32 %v6627, %v6631
        %v6633 = vadd.s32 %v6632, 536870912
        %v6634 = vshrl.u32 %v6633, 30
        %v6635 = vshll.u32 %v6634, 30
        %v6636 = vsub.s32 %v6632, %v6635
        %vm6637 = vcmp.lt.s32.totalorder %v6636, 0
        %v6638 = vsub.s32 0, %v6636
        %v6639 = vsel %vm6637, %v6638, %v6636
        %v6640 = vclz %v6639
        %v6641 = vsub.s32 %v6640, 2
        %vm6642 = vcmp.gt.s32.totalorder 0, %v6641
        %v6643 = vsel %vm6642, 0, %v6641
        %v6644 = vsub.s32 32, %v6643
        %v6645 = vshll.u32 %v6636, %v6643
        %v6646 = vshrl.u32 %v6628, %v6644
        %v6647 = vor.u32 %v6645, %v6646
        %v6648 = vsub.s32 4294967266, %v6643
        %v6649 = vadd.s32 %v6648, 127
        %v6650 = vshll.u32 %v6649, 23
        %v6651 = vor.u32 4788187, %v6650
        %v6652 = vand.u32 2147483647, %v6651
        %v6654 = vcvt.s32.f32 %v6647
        %v6655 = vmul.f32 %v6654, %v6652
        %v6656 = vxor.u32 %v6655, 2147483648
        %v6657 = vsel %vm6536, %v6656, %v6655
        %v6658 = vsub.s32 4, %v6634
        %v6659 = vsel %vm6536, %v6658, %v6634
        %v6660 = vsel %vm6535, %v567, %v6657
        %v6661 = vsel %vm6535, 0, %v6659
        %v6662 = vmul.f32 %v6660, %v6660
        %v6663 = vmul.f32 %v6662, -0.001358992
        %v6664 = vadd.f32 %v6663, 0.041655596
        %v6665 = vmul.f32 %v6662, %v6664
        %v6666 = vadd.f32 %v6665, -0.4999988
        %v6667 = vmul.f32 %v6662, %v6666
        %v6668 = vadd.f32 1.0, %v6667
        %v6669 = vmul.f32 %v6660, %v6660
        %v6670 = vmul.f32 %v6669, -0.00019511016
        %v6671 = vadd.f32 %v6670, 0.008332121
        %v6672 = vmul.f32 %v6669, %v6671
        %v6673 = vadd.f32 %v6672, -0.16666654
        %v6674 = vmul.f32 %v6669, %v6673
        %v6675 = vadd.f32 %v6674, 1.0
        %v6676 = vmul.f32 %v6675, %v6660
        %vm6677 = vweird.f32 %v567
        %v6678 = vadd.s32 %v6661, 3
        %v6679 = vand.u32 %v6678, 3
        %vm6680 = vcmp.lt.s32.totalorder %v6679, 2
        %vm6681 = vcmp.eq.s32.totalorder %v6679, 0
        %v6682 = vxor.u32 %v6676, 2147483648
        %v6683 = vsel %vm6681, %v6668, %v6682
        %vm6684 = vcmp.eq.s32.totalorder %v6679, 2
        %v6685 = vxor.u32 %v6668, 2147483648
        %v6686 = vsel %vm6684, %v6685, %v6676
        %v6687 = vsel %vm6680, %v6683, %v6686
        %v6688 = vsel %vm6677, nan, %v6687
        %v6689 = vand.u32 2147483647, %v570
        %vm6690 = vcmp.le.f32.partialorder %v6689, 0.7853982
        %vm6691 = vcmp.lt.s32.totalorder %v570, 0
        %v6692 = vand.u32 %v570, 2139095040
        %v6693 = vshrl.u32 %v6692, 23
        %v6694 = vsub.s32 %v6693, 127
        %v6695 = vand.u32 2147483647, %v570
        %v6696 = vand.u32 %v6695, 8388607
        %v6697 = vor.u32 %v6696, 8388608
        %v6698 = vsub.s32 0, %v6697
        %v6699 = vadd.s32 %v6694, 1
        %vm6700 = vcmp.gt.s32.totalorder %v6699, 0
        %v6701 = vsel %vm6700, %v6699, 0
        %v6702 = vshrl.u32 %v6701, 5
        %v6703 = vand.u32 %v6701, 31
        %v6704 = vsub.s32 32, %v6703
        %v6705 = vshrl.u32 683565275, %v6704
        %v6706 = vshll.u32 683565275, %v6703
        %v6707 = vshrl.u32 2475754826, %v6704
        %v6708 = vor.u32 %v6706, %v6707
        %v6709 = vshll.u32 2475754826, %v6703
        %v6710 = vshrl.u32 2131351028, %v6704
        %v6711 = vor.u32 %v6709, %v6710
        %v6712 = vshll.u32 2131351028, %v6703
        %v6713 = vshrl.u32 2102212464, %v6704
        %v6714 = vor.u32 %v6712, %v6713
        %v6715 = vshll.u32 2102212464, %v6703
        %v6716 = vshrl.u32 920167782, %v6704
        %v6717 = vor.u32 %v6715, %v6716
        %v6718 = vshll.u32 920167782, %v6703
        %v6719 = vshrl.u32 1326507024, %v6704
        %v6720 = vor.u32 %v6718, %v6719
        %vm6721 = vcmp.lt.s32.totalorder %v6702, 1
        %vm6722 = vcmp.lt.s32.totalorder %v6702, 2
        %vm6723 = vcmp.lt.s32.totalorder %v6702, 3
        %vm6724 = vcmp.lt.s32.totalorder %v6702, 4
        %v6725 = vsel %vm6721, %v6705, %v6708
        %v6726 = vsel %vm6724, %v6714, 2102212464
        %v6727 = vsel %vm6723, %v6711, %v6726
        %v6728 = vsel %vm6722, %v6725, %v6727
        %v6729 = vsel %vm6721, %v6708, %v6711
        %v6730 = vsel %vm6724, %v6717, 920167782
        %v6731 = vsel %vm6723, %v6714, %v6730
        %v6732 = vsel %vm6722, %v6729, %v6731
        %v6733 = vsel %vm6721, %v6711, %v6714
        %v6734 = vsel %vm6724, %v6720, 1326507024
        %v6735 = vsel %vm6723, %v6717, %v6734
        %v6736 = vsel %vm6722, %v6733, %v6735
        %v6737 = vshll.u32 %v6697, 8
        %v6738 = vand.u32 %v6737, 65535
        %v6739 = vshrl.u32 %v6737, 16
        %v6740 = vand.u32 %v6736, 65535
        %v6741 = vshrl.u32 %v6736, 16
        %v6742 = vmul.u32 %v6738, %v6740
        %v6743 = vmul.u32 %v6738, %v6741
        %v6744 = vmul.u32 %v6739, %v6740
        %v6745 = vmul.u32 %v6739, %v6741
        %v6746 = vshll.u32 %v6743, 16
        %v6747 = vshrl.u32 %v6743, 16
        %v6748 = vshll.u32 %v6744, 16
        %v6749 = vshrl.u32 %v6744, 16
        %vm6750 = vc.u32 %v6742, %v6746
        %v6751 = vsel %vm6750, 1, 0
        %v6752 = vadd.s32 %v6742, %v6746
        %v6753 = vadd.s32 %v6745, %v6751
        %vm6754 = vc.u32 %v6752, %v6748
        %v6755 = vsel %vm6754, 1, 0
        %v6756 = vadd.s32 %v6752, %v6748
        %v6757 = vadd.s32 %v6753, %v6755
        %v6758 = vadd.s32 %v6757, %v6747
        %v6759 = vadd.s32 %v6758, %v6749
        %v6760 = vand.u32 %v6737, 65535
        %v6761 = vshrl.u32 %v6737, 16
        %v6762 = vand.u32 %v6732, 65535
        %v6763 = vshrl.u32 %v6732, 16
        %v6764 = vmul.u32 %v6760, %v6762
        %v6765 = vmul.u32 %v6760, %v6763
        %v6766 = vmul.u32 %v6761, %v6762
        %v6767 = vmul.u32 %v6761, %v6763
        %v6768 = vshll.u32 %v6765, 16
        %v6769 = vshrl.u32 %v6765, 16
        %v6770 = vshll.u32 %v6766, 16
        %v6771 = vshrl.u32 %v6766, 16
        %vm6772 = vc.u32 %v6764, %v6768
        %v6773 = vsel %vm6772, 1, 0
        %v6774 = vadd.s32 %v6764, %v6768
        %v6775 = vadd.s32 %v6767, %v6773
        %vm6776 = vc.u32 %v6774, %v6770
        %v6777 = vsel %vm6776, 1, 0
        %v6778 = vadd.s32 %v6774, %v6770
        %v6779 = vadd.s32 %v6775, %v6777
        %v6780 = vadd.s32 %v6779, %v6769
        %v6781 = vadd.s32 %v6780, %v6771
        %v6782 = vmul.u32 %v6737, %v6728
        %v6783 = vadd.s32 %v6759, %v6778
        %vm6784 = vc.u32 %v6759, %v6778
        %v6785 = vadd.s32 %v6781, 1
        %v6786 = vsel %vm6784, %v6785, %v6781
        %v6787 = vadd.s32 %v6782, %v6786
        %v6788 = vadd.s32 %v6787, 536870912
        %v6789 = vshrl.u32 %v6788, 30
        %v6790 = vshll.u32 %v6789, 30
        %v6791 = vsub.s32 %v6787, %v6790
        %vm6792 = vcmp.lt.s32.totalorder %v6791, 0
        %v6793 = vsub.s32 0, %v6791
        %v6794 = vsel %vm6792, %v6793, %v6791
        %v6795 = vclz %v6794
        %v6796 = vsub.s32 %v6795, 2
        %vm6797 = vcmp.gt.s32.totalorder 0, %v6796
        %v6798 = vsel %vm6797, 0, %v6796
        %v6799 = vsub.s32 32, %v6798
        %v6800 = vshll.u32 %v6791, %v6798
        %v6801 = vshrl.u32 %v6783, %v6799
        %v6802 = vor.u32 %v6800, %v6801
        %v6803 = vsub.s32 4294967266, %v6798
        %v6804 = vadd.s32 %v6803, 127
        %v6805 = vshll.u32 %v6804, 23
        %v6806 = vor.u32 4788187, %v6805
        %v6807 = vand.u32 2147483647, %v6806
        %v6809 = vcvt.s32.f32 %v6802
        %v6810 = vmul.f32 %v6809, %v6807
        %v6811 = vxor.u32 %v6810, 2147483648
        %v6812 = vsel %vm6691, %v6811, %v6810
        %v6813 = vsub.s32 4, %v6789
        %v6814 = vsel %vm6691, %v6813, %v6789
        %v6815 = vsel %vm6690, %v570, %v6812
        %v6816 = vsel %vm6690, 0, %v6814
        %v6817 = vmul.f32 %v6815, %v6815
        %v6818 = vmul.f32 %v6817, -0.001358992
        %v6819 = vadd.f32 %v6818, 0.041655596
        %v6820 = vmul.f32 %v6817, %v6819
        %v6821 = vadd.f32 %v6820, -0.4999988
        %v6822 = vmul.f32 %v6817, %v6821
        %v6823 = vadd.f32 1.0, %v6822
        %v6824 = vmul.f32 %v6815, %v6815
        %v6825 = vmul.f32 %v6824, -0.00019511016
        %v6826 = vadd.f32 %v6825, 0.008332121
        %v6827 = vmul.f32 %v6824, %v6826
        %v6828 = vadd.f32 %v6827, -0.16666654
        %v6829 = vmul.f32 %v6824, %v6828
        %v6830 = vadd.f32 %v6829, 1.0
        %v6831 = vmul.f32 %v6830, %v6815
        %vm6832 = vweird.f32 %v570
        %v6833 = vadd.s32 %v6816, 3
        %v6834 = vand.u32 %v6833, 3
        %vm6835 = vcmp.lt.s32.totalorder %v6834, 2
        %vm6836 = vcmp.eq.s32.totalorder %v6834, 0
        %v6837 = vxor.u32 %v6831, 2147483648
        %v6838 = vsel %vm6836, %v6823, %v6837
        %vm6839 = vcmp.eq.s32.totalorder %v6834, 2
        %v6840 = vxor.u32 %v6823, 2147483648
        %v6841 = vsel %vm6839, %v6840, %v6831
        %v6842 = vsel %vm6835, %v6838, %v6841
        %v6843 = vsel %vm6832, nan, %v6842
        %v6844 = vand.u32 2147483647, %v573
        %vm6845 = vcmp.le.f32.partialorder %v6844, 0.7853982
        %vm6846 = vcmp.lt.s32.totalorder %v573, 0
        %v6847 = vand.u32 %v573, 2139095040
        %v6848 = vshrl.u32 %v6847, 23
        %v6849 = vsub.s32 %v6848, 127
        %v6850 = vand.u32 2147483647, %v573
        %v6851 = vand.u32 %v6850, 8388607
        %v6852 = vor.u32 %v6851, 8388608
        %v6853 = vsub.s32 0, %v6852
        %v6854 = vadd.s32 %v6849, 1
        %vm6855 = vcmp.gt.s32.totalorder %v6854, 0
        %v6856 = vsel %vm6855, %v6854, 0
        %v6857 = vshrl.u32 %v6856, 5
        %v6858 = vand.u32 %v6856, 31
        %v6859 = vsub.s32 32, %v6858
        %v6860 = vshrl.u32 683565275, %v6859
        %v6861 = vshll.u32 683565275, %v6858
        %v6862 = vshrl.u32 2475754826, %v6859
        %v6863 = vor.u32 %v6861, %v6862
        %v6864 = vshll.u32 2475754826, %v6858
        %v6865 = vshrl.u32 2131351028, %v6859
        %v6866 = vor.u32 %v6864, %v6865
        %v6867 = vshll.u32 2131351028, %v6858
        %v6868 = vshrl.u32 2102212464, %v6859
        %v6869 = vor.u32 %v6867, %v6868
        %v6870 = vshll.u32 2102212464, %v6858
        %v6871 = vshrl.u32 920167782, %v6859
        %v6872 = vor.u32 %v6870, %v6871
        %v6873 = vshll.u32 920167782, %v6858
        %v6874 = vshrl.u32 1326507024, %v6859
        %v6875 = vor.u32 %v6873, %v6874
        %vm6876 = vcmp.lt.s32.totalorder %v6857, 1
        %vm6877 = vcmp.lt.s32.totalorder %v6857, 2
        %vm6878 = vcmp.lt.s32.totalorder %v6857, 3
        %vm6879 = vcmp.lt.s32.totalorder %v6857, 4
        %v6880 = vsel %vm6876, %v6860, %v6863
        %v6881 = vsel %vm6879, %v6869, 2102212464
        %v6882 = vsel %vm6878, %v6866, %v6881
        %v6883 = vsel %vm6877, %v6880, %v6882
        %v6884 = vsel %vm6876, %v6863, %v6866
        %v6885 = vsel %vm6879, %v6872, 920167782
        %v6886 = vsel %vm6878, %v6869, %v6885
        %v6887 = vsel %vm6877, %v6884, %v6886
        %v6888 = vsel %vm6876, %v6866, %v6869
        %v6889 = vsel %vm6879, %v6875, 1326507024
        %v6890 = vsel %vm6878, %v6872, %v6889
        %v6891 = vsel %vm6877, %v6888, %v6890
        %v6892 = vshll.u32 %v6852, 8
        %v6893 = vand.u32 %v6892, 65535
        %v6894 = vshrl.u32 %v6892, 16
        %v6895 = vand.u32 %v6891, 65535
        %v6896 = vshrl.u32 %v6891, 16
        %v6897 = vmul.u32 %v6893, %v6895
        %v6898 = vmul.u32 %v6893, %v6896
        %v6899 = vmul.u32 %v6894, %v6895
        %v6900 = vmul.u32 %v6894, %v6896
        %v6901 = vshll.u32 %v6898, 16
        %v6902 = vshrl.u32 %v6898, 16
        %v6903 = vshll.u32 %v6899, 16
        %v6904 = vshrl.u32 %v6899, 16
        %vm6905 = vc.u32 %v6897, %v6901
        %v6906 = vsel %vm6905, 1, 0
        %v6907 = vadd.s32 %v6897, %v6901
        %v6908 = vadd.s32 %v6900, %v6906
        %vm6909 = vc.u32 %v6907, %v6903
        %v6910 = vsel %vm6909, 1, 0
        %v6911 = vadd.s32 %v6907, %v6903
        %v6912 = vadd.s32 %v6908, %v6910
        %v6913 = vadd.s32 %v6912, %v6902
        %v6914 = vadd.s32 %v6913, %v6904
        %v6915 = vand.u32 %v6892, 65535
        %v6916 = vshrl.u32 %v6892, 16
        %v6917 = vand.u32 %v6887, 65535
        %v6918 = vshrl.u32 %v6887, 16
        %v6919 = vmul.u32 %v6915, %v6917
        %v6920 = vmul.u32 %v6915, %v6918
        %v6921 = vmul.u32 %v6916, %v6917
        %v6922 = vmul.u32 %v6916, %v6918
        %v6923 = vshll.u32 %v6920, 16
        %v6924 = vshrl.u32 %v6920, 16
        %v6925 = vshll.u32 %v6921, 16
        %v6926 = vshrl.u32 %v6921, 16
        %vm6927 = vc.u32 %v6919, %v6923
        %v6928 = vsel %vm6927, 1, 0
        %v6929 = vadd.s32 %v6919, %v6923
        %v6930 = vadd.s32 %v6922, %v6928
        %vm6931 = vc.u32 %v6929, %v6925
        %v6932 = vsel %vm6931, 1, 0
        %v6933 = vadd.s32 %v6929, %v6925
        %v6934 = vadd.s32 %v6930, %v6932
        %v6935 = vadd.s32 %v6934, %v6924
        %v6936 = vadd.s32 %v6935, %v6926
        %v6937 = vmul.u32 %v6892, %v6883
        %v6938 = vadd.s32 %v6914, %v6933
        %vm6939 = vc.u32 %v6914, %v6933
        %v6940 = vadd.s32 %v6936, 1
        %v6941 = vsel %vm6939, %v6940, %v6936
        %v6942 = vadd.s32 %v6937, %v6941
        %v6943 = vadd.s32 %v6942, 536870912
        %v6944 = vshrl.u32 %v6943, 30
        %v6945 = vshll.u32 %v6944, 30
        %v6946 = vsub.s32 %v6942, %v6945
        %vm6947 = vcmp.lt.s32.totalorder %v6946, 0
        %v6948 = vsub.s32 0, %v6946
        %v6949 = vsel %vm6947, %v6948, %v6946
        %v6950 = vclz %v6949
        %v6951 = vsub.s32 %v6950, 2
        %vm6952 = vcmp.gt.s32.totalorder 0, %v6951
        %v6953 = vsel %vm6952, 0, %v6951
        %v6954 = vsub.s32 32, %v6953
        %v6955 = vshll.u32 %v6946, %v6953
        %v6956 = vshrl.u32 %v6938, %v6954
        %v6957 = vor.u32 %v6955, %v6956
        %v6958 = vsub.s32 4294967266, %v6953
        %v6959 = vadd.s32 %v6958, 127
        %v6960 = vshll.u32 %v6959, 23
        %v6961 = vor.u32 4788187, %v6960
        %v6962 = vand.u32 2147483647, %v6961
        %v6964 = vcvt.s32.f32 %v6957
        %v6965 = vmul.f32 %v6964, %v6962
        %v6966 = vxor.u32 %v6965, 2147483648
        %v6967 = vsel %vm6846, %v6966, %v6965
        %v6968 = vsub.s32 4, %v6944
        %v6969 = vsel %vm6846, %v6968, %v6944
        %v6970 = vsel %vm6845, %v573, %v6967
        %v6971 = vsel %vm6845, 0, %v6969
        %v6972 = vmul.f32 %v6970, %v6970
        %v6973 = vmul.f32 %v6972, -0.001358992
        %v6974 = vadd.f32 %v6973, 0.041655596
        %v6975 = vmul.f32 %v6972, %v6974
        %v6976 = vadd.f32 %v6975, -0.4999988
        %v6977 = vmul.f32 %v6972, %v6976
        %v6978 = vadd.f32 1.0, %v6977
        %v6979 = vmul.f32 %v6970, %v6970
        %v6980 = vmul.f32 %v6979, -0.00019511016
        %v6981 = vadd.f32 %v6980, 0.008332121
        %v6982 = vmul.f32 %v6979, %v6981
        %v6983 = vadd.f32 %v6982, -0.16666654
        %v6984 = vmul.f32 %v6979, %v6983
        %v6985 = vadd.f32 %v6984, 1.0
        %v6986 = vmul.f32 %v6985, %v6970
        %vm6987 = vweird.f32 %v573
        %v6988 = vadd.s32 %v6971, 3
        %v6989 = vand.u32 %v6988, 3
        %vm6990 = vcmp.lt.s32.totalorder %v6989, 2
        %vm6991 = vcmp.eq.s32.totalorder %v6989, 0
        %v6992 = vxor.u32 %v6986, 2147483648
        %v6993 = vsel %vm6991, %v6978, %v6992
        %vm6994 = vcmp.eq.s32.totalorder %v6989, 2
        %v6995 = vxor.u32 %v6978, 2147483648
        %v6996 = vsel %vm6994, %v6995, %v6986
        %v6997 = vsel %vm6990, %v6993, %v6996
        %v6998 = vsel %vm6987, nan, %v6997
        %v6999 = vand.u32 2147483647, %v576
        %vm7000 = vcmp.le.f32.partialorder %v6999, 0.7853982
        %vm7001 = vcmp.lt.s32.totalorder %v576, 0
        %v7002 = vand.u32 %v576, 2139095040
        %v7003 = vshrl.u32 %v7002, 23
        %v7004 = vsub.s32 %v7003, 127
        %v7005 = vand.u32 2147483647, %v576
        %v7006 = vand.u32 %v7005, 8388607
        %v7007 = vor.u32 %v7006, 8388608
        %v7008 = vsub.s32 0, %v7007
        %v7009 = vadd.s32 %v7004, 1
        %vm7010 = vcmp.gt.s32.totalorder %v7009, 0
        %v7011 = vsel %vm7010, %v7009, 0
        %v7012 = vshrl.u32 %v7011, 5
        %v7013 = vand.u32 %v7011, 31
        %v7014 = vsub.s32 32, %v7013
        %v7015 = vshrl.u32 683565275, %v7014
        %v7016 = vshll.u32 683565275, %v7013
        %v7017 = vshrl.u32 2475754826, %v7014
        %v7018 = vor.u32 %v7016, %v7017
        %v7019 = vshll.u32 2475754826, %v7013
        %v7020 = vshrl.u32 2131351028, %v7014
        %v7021 = vor.u32 %v7019, %v7020
        %v7022 = vshll.u32 2131351028, %v7013
        %v7023 = vshrl.u32 2102212464, %v7014
        %v7024 = vor.u32 %v7022, %v7023
        %v7025 = vshll.u32 2102212464, %v7013
        %v7026 = vshrl.u32 920167782, %v7014
        %v7027 = vor.u32 %v7025, %v7026
        %v7028 = vshll.u32 920167782, %v7013
        %v7029 = vshrl.u32 1326507024, %v7014
        %v7030 = vor.u32 %v7028, %v7029
        %vm7031 = vcmp.lt.s32.totalorder %v7012, 1
        %vm7032 = vcmp.lt.s32.totalorder %v7012, 2
        %vm7033 = vcmp.lt.s32.totalorder %v7012, 3
        %vm7034 = vcmp.lt.s32.totalorder %v7012, 4
        %v7035 = vsel %vm7031, %v7015, %v7018
        %v7036 = vsel %vm7034, %v7024, 2102212464
        %v7037 = vsel %vm7033, %v7021, %v7036
        %v7038 = vsel %vm7032, %v7035, %v7037
        %v7039 = vsel %vm7031, %v7018, %v7021
        %v7040 = vsel %vm7034, %v7027, 920167782
        %v7041 = vsel %vm7033, %v7024, %v7040
        %v7042 = vsel %vm7032, %v7039, %v7041
        %v7043 = vsel %vm7031, %v7021, %v7024
        %v7044 = vsel %vm7034, %v7030, 1326507024
        %v7045 = vsel %vm7033, %v7027, %v7044
        %v7046 = vsel %vm7032, %v7043, %v7045
        %v7047 = vshll.u32 %v7007, 8
        %v7048 = vand.u32 %v7047, 65535
        %v7049 = vshrl.u32 %v7047, 16
        %v7050 = vand.u32 %v7046, 65535
        %v7051 = vshrl.u32 %v7046, 16
        %v7052 = vmul.u32 %v7048, %v7050
        %v7053 = vmul.u32 %v7048, %v7051
        %v7054 = vmul.u32 %v7049, %v7050
        %v7055 = vmul.u32 %v7049, %v7051
        %v7056 = vshll.u32 %v7053, 16
        %v7057 = vshrl.u32 %v7053, 16
        %v7058 = vshll.u32 %v7054, 16
        %v7059 = vshrl.u32 %v7054, 16
        %vm7060 = vc.u32 %v7052, %v7056
        %v7061 = vsel %vm7060, 1, 0
        %v7062 = vadd.s32 %v7052, %v7056
        %v7063 = vadd.s32 %v7055, %v7061
        %vm7064 = vc.u32 %v7062, %v7058
        %v7065 = vsel %vm7064, 1, 0
        %v7066 = vadd.s32 %v7062, %v7058
        %v7067 = vadd.s32 %v7063, %v7065
        %v7068 = vadd.s32 %v7067, %v7057
        %v7069 = vadd.s32 %v7068, %v7059
        %v7070 = vand.u32 %v7047, 65535
        %v7071 = vshrl.u32 %v7047, 16
        %v7072 = vand.u32 %v7042, 65535
        %v7073 = vshrl.u32 %v7042, 16
        %v7074 = vmul.u32 %v7070, %v7072
        %v7075 = vmul.u32 %v7070, %v7073
        %v7076 = vmul.u32 %v7071, %v7072
        %v7077 = vmul.u32 %v7071, %v7073
        %v7078 = vshll.u32 %v7075, 16
        %v7079 = vshrl.u32 %v7075, 16
        %v7080 = vshll.u32 %v7076, 16
        %v7081 = vshrl.u32 %v7076, 16
        %vm7082 = vc.u32 %v7074, %v7078
        %v7083 = vsel %vm7082, 1, 0
        %v7084 = vadd.s32 %v7074, %v7078
        %v7085 = vadd.s32 %v7077, %v7083
        %vm7086 = vc.u32 %v7084, %v7080
        %v7087 = vsel %vm7086, 1, 0
        %v7088 = vadd.s32 %v7084, %v7080
        %v7089 = vadd.s32 %v7085, %v7087
        %v7090 = vadd.s32 %v7089, %v7079
        %v7091 = vadd.s32 %v7090, %v7081
        %v7092 = vmul.u32 %v7047, %v7038
        %v7093 = vadd.s32 %v7069, %v7088
        %vm7094 = vc.u32 %v7069, %v7088
        %v7095 = vadd.s32 %v7091, 1
        %v7096 = vsel %vm7094, %v7095, %v7091
        %v7097 = vadd.s32 %v7092, %v7096
        %v7098 = vadd.s32 %v7097, 536870912
        %v7099 = vshrl.u32 %v7098, 30
        %v7100 = vshll.u32 %v7099, 30
        %v7101 = vsub.s32 %v7097, %v7100
        %vm7102 = vcmp.lt.s32.totalorder %v7101, 0
        %v7103 = vsub.s32 0, %v7101
        %v7104 = vsel %vm7102, %v7103, %v7101
        %v7105 = vclz %v7104
        %v7106 = vsub.s32 %v7105, 2
        %vm7107 = vcmp.gt.s32.totalorder 0, %v7106
        %v7108 = vsel %vm7107, 0, %v7106
        %v7109 = vsub.s32 32, %v7108
        %v7110 = vshll.u32 %v7101, %v7108
        %v7111 = vshrl.u32 %v7093, %v7109
        %v7112 = vor.u32 %v7110, %v7111
        %v7113 = vsub.s32 4294967266, %v7108
        %v7114 = vadd.s32 %v7113, 127
        %v7115 = vshll.u32 %v7114, 23
        %v7116 = vor.u32 4788187, %v7115
        %v7117 = vand.u32 2147483647, %v7116
        %v7119 = vcvt.s32.f32 %v7112
        %v7120 = vmul.f32 %v7119, %v7117
        %v7121 = vxor.u32 %v7120, 2147483648
        %v7122 = vsel %vm7001, %v7121, %v7120
        %v7123 = vsub.s32 4, %v7099
        %v7124 = vsel %vm7001, %v7123, %v7099
        %v7125 = vsel %vm7000, %v576, %v7122
        %v7126 = vsel %vm7000, 0, %v7124
        %v7127 = vmul.f32 %v7125, %v7125
        %v7128 = vmul.f32 %v7127, -0.001358992
        %v7129 = vadd.f32 %v7128, 0.041655596
        %v7130 = vmul.f32 %v7127, %v7129
        %v7131 = vadd.f32 %v7130, -0.4999988
        %v7132 = vmul.f32 %v7127, %v7131
        %v7133 = vadd.f32 1.0, %v7132
        %v7134 = vmul.f32 %v7125, %v7125
        %v7135 = vmul.f32 %v7134, -0.00019511016
        %v7136 = vadd.f32 %v7135, 0.008332121
        %v7137 = vmul.f32 %v7134, %v7136
        %v7138 = vadd.f32 %v7137, -0.16666654
        %v7139 = vmul.f32 %v7134, %v7138
        %v7140 = vadd.f32 %v7139, 1.0
        %v7141 = vmul.f32 %v7140, %v7125
        %vm7142 = vweird.f32 %v576
        %v7143 = vadd.s32 %v7126, 3
        %v7144 = vand.u32 %v7143, 3
        %vm7145 = vcmp.lt.s32.totalorder %v7144, 2
        %vm7146 = vcmp.eq.s32.totalorder %v7144, 0
        %v7147 = vxor.u32 %v7141, 2147483648
        %v7148 = vsel %vm7146, %v7133, %v7147
        %vm7149 = vcmp.eq.s32.totalorder %v7144, 2
        %v7150 = vxor.u32 %v7133, 2147483648
        %v7151 = vsel %vm7149, %v7150, %v7141
        %v7152 = vsel %vm7145, %v7148, %v7151
        %v7153 = vsel %vm7142, nan, %v7152
        %v7154 = vand.u32 2147483647, %v579
        %vm7155 = vcmp.le.f32.partialorder %v7154, 0.7853982
        %vm7156 = vcmp.lt.s32.totalorder %v579, 0
        %v7157 = vand.u32 %v579, 2139095040
        %v7158 = vshrl.u32 %v7157, 23
        %v7159 = vsub.s32 %v7158, 127
        %v7160 = vand.u32 2147483647, %v579
        %v7161 = vand.u32 %v7160, 8388607
        %v7162 = vor.u32 %v7161, 8388608
        %v7163 = vsub.s32 0, %v7162
        %v7164 = vadd.s32 %v7159, 1
        %vm7165 = vcmp.gt.s32.totalorder %v7164, 0
        %v7166 = vsel %vm7165, %v7164, 0
        %v7167 = vshrl.u32 %v7166, 5
        %v7168 = vand.u32 %v7166, 31
        %v7169 = vsub.s32 32, %v7168
        %v7170 = vshrl.u32 683565275, %v7169
        %v7171 = vshll.u32 683565275, %v7168
        %v7172 = vshrl.u32 2475754826, %v7169
        %v7173 = vor.u32 %v7171, %v7172
        %v7174 = vshll.u32 2475754826, %v7168
        %v7175 = vshrl.u32 2131351028, %v7169
        %v7176 = vor.u32 %v7174, %v7175
        %v7177 = vshll.u32 2131351028, %v7168
        %v7178 = vshrl.u32 2102212464, %v7169
        %v7179 = vor.u32 %v7177, %v7178
        %v7180 = vshll.u32 2102212464, %v7168
        %v7181 = vshrl.u32 920167782, %v7169
        %v7182 = vor.u32 %v7180, %v7181
        %v7183 = vshll.u32 920167782, %v7168
        %v7184 = vshrl.u32 1326507024, %v7169
        %v7185 = vor.u32 %v7183, %v7184
        %vm7186 = vcmp.lt.s32.totalorder %v7167, 1
        %vm7187 = vcmp.lt.s32.totalorder %v7167, 2
        %vm7188 = vcmp.lt.s32.totalorder %v7167, 3
        %vm7189 = vcmp.lt.s32.totalorder %v7167, 4
        %v7190 = vsel %vm7186, %v7170, %v7173
        %v7191 = vsel %vm7189, %v7179, 2102212464
        %v7192 = vsel %vm7188, %v7176, %v7191
        %v7193 = vsel %vm7187, %v7190, %v7192
        %v7194 = vsel %vm7186, %v7173, %v7176
        %v7195 = vsel %vm7189, %v7182, 920167782
        %v7196 = vsel %vm7188, %v7179, %v7195
        %v7197 = vsel %vm7187, %v7194, %v7196
        %v7198 = vsel %vm7186, %v7176, %v7179
        %v7199 = vsel %vm7189, %v7185, 1326507024
        %v7200 = vsel %vm7188, %v7182, %v7199
        %v7201 = vsel %vm7187, %v7198, %v7200
        %v7202 = vshll.u32 %v7162, 8
        %v7203 = vand.u32 %v7202, 65535
        %v7204 = vshrl.u32 %v7202, 16
        %v7205 = vand.u32 %v7201, 65535
        %v7206 = vshrl.u32 %v7201, 16
        %v7207 = vmul.u32 %v7203, %v7205
        %v7208 = vmul.u32 %v7203, %v7206
        %v7209 = vmul.u32 %v7204, %v7205
        %v7210 = vmul.u32 %v7204, %v7206
        %v7211 = vshll.u32 %v7208, 16
        %v7212 = vshrl.u32 %v7208, 16
        %v7213 = vshll.u32 %v7209, 16
        %v7214 = vshrl.u32 %v7209, 16
        %vm7215 = vc.u32 %v7207, %v7211
        %v7216 = vsel %vm7215, 1, 0
        %v7217 = vadd.s32 %v7207, %v7211
        %v7218 = vadd.s32 %v7210, %v7216
        %vm7219 = vc.u32 %v7217, %v7213
        %v7220 = vsel %vm7219, 1, 0
        %v7221 = vadd.s32 %v7217, %v7213
        %v7222 = vadd.s32 %v7218, %v7220
        %v7223 = vadd.s32 %v7222, %v7212
        %v7224 = vadd.s32 %v7223, %v7214
        %v7225 = vand.u32 %v7202, 65535
        %v7226 = vshrl.u32 %v7202, 16
        %v7227 = vand.u32 %v7197, 65535
        %v7228 = vshrl.u32 %v7197, 16
        %v7229 = vmul.u32 %v7225, %v7227
        %v7230 = vmul.u32 %v7225, %v7228
        %v7231 = vmul.u32 %v7226, %v7227
        %v7232 = vmul.u32 %v7226, %v7228
        %v7233 = vshll.u32 %v7230, 16
        %v7234 = vshrl.u32 %v7230, 16
        %v7235 = vshll.u32 %v7231, 16
        %v7236 = vshrl.u32 %v7231, 16
        %vm7237 = vc.u32 %v7229, %v7233
        %v7238 = vsel %vm7237, 1, 0
        %v7239 = vadd.s32 %v7229, %v7233
        %v7240 = vadd.s32 %v7232, %v7238
        %vm7241 = vc.u32 %v7239, %v7235
        %v7242 = vsel %vm7241, 1, 0
        %v7243 = vadd.s32 %v7239, %v7235
        %v7244 = vadd.s32 %v7240, %v7242
        %v7245 = vadd.s32 %v7244, %v7234
        %v7246 = vadd.s32 %v7245, %v7236
        %v7247 = vmul.u32 %v7202, %v7193
        %v7248 = vadd.s32 %v7224, %v7243
        %vm7249 = vc.u32 %v7224, %v7243
        %v7250 = vadd.s32 %v7246, 1
        %v7251 = vsel %vm7249, %v7250, %v7246
        %v7252 = vadd.s32 %v7247, %v7251
        %v7253 = vadd.s32 %v7252, 536870912
        %v7254 = vshrl.u32 %v7253, 30
        %v7255 = vshll.u32 %v7254, 30
        %v7256 = vsub.s32 %v7252, %v7255
        %vm7257 = vcmp.lt.s32.totalorder %v7256, 0
        %v7258 = vsub.s32 0, %v7256
        %v7259 = vsel %vm7257, %v7258, %v7256
        %v7260 = vclz %v7259
        %v7261 = vsub.s32 %v7260, 2
        %vm7262 = vcmp.gt.s32.totalorder 0, %v7261
        %v7263 = vsel %vm7262, 0, %v7261
        %v7264 = vsub.s32 32, %v7263
        %v7265 = vshll.u32 %v7256, %v7263
        %v7266 = vshrl.u32 %v7248, %v7264
        %v7267 = vor.u32 %v7265, %v7266
        %v7268 = vsub.s32 4294967266, %v7263
        %v7269 = vadd.s32 %v7268, 127
        %v7270 = vshll.u32 %v7269, 23
        %v7271 = vor.u32 4788187, %v7270
        %v7272 = vand.u32 2147483647, %v7271
        %v7274 = vcvt.s32.f32 %v7267
        %v7275 = vmul.f32 %v7274, %v7272
        %v7276 = vxor.u32 %v7275, 2147483648
        %v7277 = vsel %vm7156, %v7276, %v7275
        %v7278 = vsub.s32 4, %v7254
        %v7279 = vsel %vm7156, %v7278, %v7254
        %v7280 = vsel %vm7155, %v579, %v7277
        %v7281 = vsel %vm7155, 0, %v7279
        %v7282 = vmul.f32 %v7280, %v7280
        %v7283 = vmul.f32 %v7282, -0.001358992
        %v7284 = vadd.f32 %v7283, 0.041655596
        %v7285 = vmul.f32 %v7282, %v7284
        %v7286 = vadd.f32 %v7285, -0.4999988
        %v7287 = vmul.f32 %v7282, %v7286
        %v7288 = vadd.f32 1.0, %v7287
        %v7289 = vmul.f32 %v7280, %v7280
        %v7290 = vmul.f32 %v7289, -0.00019511016
        %v7291 = vadd.f32 %v7290, 0.008332121
        %v7292 = vmul.f32 %v7289, %v7291
        %v7293 = vadd.f32 %v7292, -0.16666654
        %v7294 = vmul.f32 %v7289, %v7293
        %v7295 = vadd.f32 %v7294, 1.0
        %v7296 = vmul.f32 %v7295, %v7280
        %vm7297 = vweird.f32 %v579
        %v7298 = vadd.s32 %v7281, 3
        %v7299 = vand.u32 %v7298, 3
        %vm7300 = vcmp.lt.s32.totalorder %v7299, 2
        %vm7301 = vcmp.eq.s32.totalorder %v7299, 0
        %v7302 = vxor.u32 %v7296, 2147483648
        %v7303 = vsel %vm7301, %v7288, %v7302
        %vm7304 = vcmp.eq.s32.totalorder %v7299, 2
        %v7305 = vxor.u32 %v7288, 2147483648
        %v7306 = vsel %vm7304, %v7305, %v7296
        %v7307 = vsel %vm7300, %v7303, %v7306
        %v7308 = vsel %vm7297, nan, %v7307
        %v7309 = vand.u32 2147483647, %v582
        %vm7310 = vcmp.le.f32.partialorder %v7309, 0.7853982
        %vm7311 = vcmp.lt.s32.totalorder %v582, 0
        %v7312 = vand.u32 %v582, 2139095040
        %v7313 = vshrl.u32 %v7312, 23
        %v7314 = vsub.s32 %v7313, 127
        %v7315 = vand.u32 2147483647, %v582
        %v7316 = vand.u32 %v7315, 8388607
        %v7317 = vor.u32 %v7316, 8388608
        %v7318 = vsub.s32 0, %v7317
        %v7319 = vadd.s32 %v7314, 1
        %vm7320 = vcmp.gt.s32.totalorder %v7319, 0
        %v7321 = vsel %vm7320, %v7319, 0
        %v7322 = vshrl.u32 %v7321, 5
        %v7323 = vand.u32 %v7321, 31
        %v7324 = vsub.s32 32, %v7323
        %v7325 = vshrl.u32 683565275, %v7324
        %v7326 = vshll.u32 683565275, %v7323
        %v7327 = vshrl.u32 2475754826, %v7324
        %v7328 = vor.u32 %v7326, %v7327
        %v7329 = vshll.u32 2475754826, %v7323
        %v7330 = vshrl.u32 2131351028, %v7324
        %v7331 = vor.u32 %v7329, %v7330
        %v7332 = vshll.u32 2131351028, %v7323
        %v7333 = vshrl.u32 2102212464, %v7324
        %v7334 = vor.u32 %v7332, %v7333
        %v7335 = vshll.u32 2102212464, %v7323
        %v7336 = vshrl.u32 920167782, %v7324
        %v7337 = vor.u32 %v7335, %v7336
        %v7338 = vshll.u32 920167782, %v7323
        %v7339 = vshrl.u32 1326507024, %v7324
        %v7340 = vor.u32 %v7338, %v7339
        %vm7341 = vcmp.lt.s32.totalorder %v7322, 1
        %vm7342 = vcmp.lt.s32.totalorder %v7322, 2
        %vm7343 = vcmp.lt.s32.totalorder %v7322, 3
        %vm7344 = vcmp.lt.s32.totalorder %v7322, 4
        %v7345 = vsel %vm7341, %v7325, %v7328
        %v7346 = vsel %vm7344, %v7334, 2102212464
        %v7347 = vsel %vm7343, %v7331, %v7346
        %v7348 = vsel %vm7342, %v7345, %v7347
        %v7349 = vsel %vm7341, %v7328, %v7331
        %v7350 = vsel %vm7344, %v7337, 920167782
        %v7351 = vsel %vm7343, %v7334, %v7350
        %v7352 = vsel %vm7342, %v7349, %v7351
        %v7353 = vsel %vm7341, %v7331, %v7334
        %v7354 = vsel %vm7344, %v7340, 1326507024
        %v7355 = vsel %vm7343, %v7337, %v7354
        %v7356 = vsel %vm7342, %v7353, %v7355
        %v7357 = vshll.u32 %v7317, 8
        %v7358 = vand.u32 %v7357, 65535
        %v7359 = vshrl.u32 %v7357, 16
        %v7360 = vand.u32 %v7356, 65535
        %v7361 = vshrl.u32 %v7356, 16
        %v7362 = vmul.u32 %v7358, %v7360
        %v7363 = vmul.u32 %v7358, %v7361
        %v7364 = vmul.u32 %v7359, %v7360
        %v7365 = vmul.u32 %v7359, %v7361
        %v7366 = vshll.u32 %v7363, 16
        %v7367 = vshrl.u32 %v7363, 16
        %v7368 = vshll.u32 %v7364, 16
        %v7369 = vshrl.u32 %v7364, 16
        %vm7370 = vc.u32 %v7362, %v7366
        %v7371 = vsel %vm7370, 1, 0
        %v7372 = vadd.s32 %v7362, %v7366
        %v7373 = vadd.s32 %v7365, %v7371
        %vm7374 = vc.u32 %v7372, %v7368
        %v7375 = vsel %vm7374, 1, 0
        %v7376 = vadd.s32 %v7372, %v7368
        %v7377 = vadd.s32 %v7373, %v7375
        %v7378 = vadd.s32 %v7377, %v7367
        %v7379 = vadd.s32 %v7378, %v7369
        %v7380 = vand.u32 %v7357, 65535
        %v7381 = vshrl.u32 %v7357, 16
        %v7382 = vand.u32 %v7352, 65535
        %v7383 = vshrl.u32 %v7352, 16
        %v7384 = vmul.u32 %v7380, %v7382
        %v7385 = vmul.u32 %v7380, %v7383
        %v7386 = vmul.u32 %v7381, %v7382
        %v7387 = vmul.u32 %v7381, %v7383
        %v7388 = vshll.u32 %v7385, 16
        %v7389 = vshrl.u32 %v7385, 16
        %v7390 = vshll.u32 %v7386, 16
        %v7391 = vshrl.u32 %v7386, 16
        %vm7392 = vc.u32 %v7384, %v7388
        %v7393 = vsel %vm7392, 1, 0
        %v7394 = vadd.s32 %v7384, %v7388
        %v7395 = vadd.s32 %v7387, %v7393
        %vm7396 = vc.u32 %v7394, %v7390
        %v7397 = vsel %vm7396, 1, 0
        %v7398 = vadd.s32 %v7394, %v7390
        %v7399 = vadd.s32 %v7395, %v7397
        %v7400 = vadd.s32 %v7399, %v7389
        %v7401 = vadd.s32 %v7400, %v7391
        %v7402 = vmul.u32 %v7357, %v7348
        %v7403 = vadd.s32 %v7379, %v7398
        %vm7404 = vc.u32 %v7379, %v7398
        %v7405 = vadd.s32 %v7401, 1
        %v7406 = vsel %vm7404, %v7405, %v7401
        %v7407 = vadd.s32 %v7402, %v7406
        %v7408 = vadd.s32 %v7407, 536870912
        %v7409 = vshrl.u32 %v7408, 30
        %v7410 = vshll.u32 %v7409, 30
        %v7411 = vsub.s32 %v7407, %v7410
        %vm7412 = vcmp.lt.s32.totalorder %v7411, 0
        %v7413 = vsub.s32 0, %v7411
        %v7414 = vsel %vm7412, %v7413, %v7411
        %v7415 = vclz %v7414
        %v7416 = vsub.s32 %v7415, 2
        %vm7417 = vcmp.gt.s32.totalorder 0, %v7416
        %v7418 = vsel %vm7417, 0, %v7416
        %v7419 = vsub.s32 32, %v7418
        %v7420 = vshll.u32 %v7411, %v7418
        %v7421 = vshrl.u32 %v7403, %v7419
        %v7422 = vor.u32 %v7420, %v7421
        %v7423 = vsub.s32 4294967266, %v7418
        %v7424 = vadd.s32 %v7423, 127
        %v7425 = vshll.u32 %v7424, 23
        %v7426 = vor.u32 4788187, %v7425
        %v7427 = vand.u32 2147483647, %v7426
        %v7429 = vcvt.s32.f32 %v7422
        %v7430 = vmul.f32 %v7429, %v7427
        %v7431 = vxor.u32 %v7430, 2147483648
        %v7432 = vsel %vm7311, %v7431, %v7430
        %v7433 = vsub.s32 4, %v7409
        %v7434 = vsel %vm7311, %v7433, %v7409
        %v7435 = vsel %vm7310, %v582, %v7432
        %v7436 = vsel %vm7310, 0, %v7434
        %v7437 = vmul.f32 %v7435, %v7435
        %v7438 = vmul.f32 %v7437, -0.001358992
        %v7439 = vadd.f32 %v7438, 0.041655596
        %v7440 = vmul.f32 %v7437, %v7439
        %v7441 = vadd.f32 %v7440, -0.4999988
        %v7442 = vmul.f32 %v7437, %v7441
        %v7443 = vadd.f32 1.0, %v7442
        %v7444 = vmul.f32 %v7435, %v7435
        %v7445 = vmul.f32 %v7444, -0.00019511016
        %v7446 = vadd.f32 %v7445, 0.008332121
        %v7447 = vmul.f32 %v7444, %v7446
        %v7448 = vadd.f32 %v7447, -0.16666654
        %v7449 = vmul.f32 %v7444, %v7448
        %v7450 = vadd.f32 %v7449, 1.0
        %v7451 = vmul.f32 %v7450, %v7435
        %vm7452 = vweird.f32 %v582
        %v7453 = vadd.s32 %v7436, 3
        %v7454 = vand.u32 %v7453, 3
        %vm7455 = vcmp.lt.s32.totalorder %v7454, 2
        %vm7456 = vcmp.eq.s32.totalorder %v7454, 0
        %v7457 = vxor.u32 %v7451, 2147483648
        %v7458 = vsel %vm7456, %v7443, %v7457
        %vm7459 = vcmp.eq.s32.totalorder %v7454, 2
        %v7460 = vxor.u32 %v7443, 2147483648
        %v7461 = vsel %vm7459, %v7460, %v7451
        %v7462 = vsel %vm7455, %v7458, %v7461
        %v7463 = vsel %vm7452, nan, %v7462
        %v7464 = vand.u32 2147483647, %v585
        %vm7465 = vcmp.le.f32.partialorder %v7464, 0.7853982
        %vm7466 = vcmp.lt.s32.totalorder %v585, 0
        %v7467 = vand.u32 %v585, 2139095040
        %v7468 = vshrl.u32 %v7467, 23
        %v7469 = vsub.s32 %v7468, 127
        %v7470 = vand.u32 2147483647, %v585
        %v7471 = vand.u32 %v7470, 8388607
        %v7472 = vor.u32 %v7471, 8388608
        %v7473 = vsub.s32 0, %v7472
        %v7474 = vadd.s32 %v7469, 1
        %vm7475 = vcmp.gt.s32.totalorder %v7474, 0
        %v7476 = vsel %vm7475, %v7474, 0
        %v7477 = vshrl.u32 %v7476, 5
        %v7478 = vand.u32 %v7476, 31
        %v7479 = vsub.s32 32, %v7478
        %v7480 = vshrl.u32 683565275, %v7479
        %v7481 = vshll.u32 683565275, %v7478
        %v7482 = vshrl.u32 2475754826, %v7479
        %v7483 = vor.u32 %v7481, %v7482
        %v7484 = vshll.u32 2475754826, %v7478
        %v7485 = vshrl.u32 2131351028, %v7479
        %v7486 = vor.u32 %v7484, %v7485
        %v7487 = vshll.u32 2131351028, %v7478
        %v7488 = vshrl.u32 2102212464, %v7479
        %v7489 = vor.u32 %v7487, %v7488
        %v7490 = vshll.u32 2102212464, %v7478
        %v7491 = vshrl.u32 920167782, %v7479
        %v7492 = vor.u32 %v7490, %v7491
        %v7493 = vshll.u32 920167782, %v7478
        %v7494 = vshrl.u32 1326507024, %v7479
        %v7495 = vor.u32 %v7493, %v7494
        %vm7496 = vcmp.lt.s32.totalorder %v7477, 1
        %vm7497 = vcmp.lt.s32.totalorder %v7477, 2
        %vm7498 = vcmp.lt.s32.totalorder %v7477, 3
        %vm7499 = vcmp.lt.s32.totalorder %v7477, 4
        %v7500 = vsel %vm7496, %v7480, %v7483
        %v7501 = vsel %vm7499, %v7489, 2102212464
        %v7502 = vsel %vm7498, %v7486, %v7501
        %v7503 = vsel %vm7497, %v7500, %v7502
        %v7504 = vsel %vm7496, %v7483, %v7486
        %v7505 = vsel %vm7499, %v7492, 920167782
        %v7506 = vsel %vm7498, %v7489, %v7505
        %v7507 = vsel %vm7497, %v7504, %v7506
        %v7508 = vsel %vm7496, %v7486, %v7489
        %v7509 = vsel %vm7499, %v7495, 1326507024
        %v7510 = vsel %vm7498, %v7492, %v7509
        %v7511 = vsel %vm7497, %v7508, %v7510
        %v7512 = vshll.u32 %v7472, 8
        %v7513 = vand.u32 %v7512, 65535
        %v7514 = vshrl.u32 %v7512, 16
        %v7515 = vand.u32 %v7511, 65535
        %v7516 = vshrl.u32 %v7511, 16
        %v7517 = vmul.u32 %v7513, %v7515
        %v7518 = vmul.u32 %v7513, %v7516
        %v7519 = vmul.u32 %v7514, %v7515
        %v7520 = vmul.u32 %v7514, %v7516
        %v7521 = vshll.u32 %v7518, 16
        %v7522 = vshrl.u32 %v7518, 16
        %v7523 = vshll.u32 %v7519, 16
        %v7524 = vshrl.u32 %v7519, 16
        %vm7525 = vc.u32 %v7517, %v7521
        %v7526 = vsel %vm7525, 1, 0
        %v7527 = vadd.s32 %v7517, %v7521
        %v7528 = vadd.s32 %v7520, %v7526
        %vm7529 = vc.u32 %v7527, %v7523
        %v7530 = vsel %vm7529, 1, 0
        %v7531 = vadd.s32 %v7527, %v7523
        %v7532 = vadd.s32 %v7528, %v7530
        %v7533 = vadd.s32 %v7532, %v7522
        %v7534 = vadd.s32 %v7533, %v7524
        %v7535 = vand.u32 %v7512, 65535
        %v7536 = vshrl.u32 %v7512, 16
        %v7537 = vand.u32 %v7507, 65535
        %v7538 = vshrl.u32 %v7507, 16
        %v7539 = vmul.u32 %v7535, %v7537
        %v7540 = vmul.u32 %v7535, %v7538
        %v7541 = vmul.u32 %v7536, %v7537
        %v7542 = vmul.u32 %v7536, %v7538
        %v7543 = vshll.u32 %v7540, 16
        %v7544 = vshrl.u32 %v7540, 16
        %v7545 = vshll.u32 %v7541, 16
        %v7546 = vshrl.u32 %v7541, 16
        %vm7547 = vc.u32 %v7539, %v7543
        %v7548 = vsel %vm7547, 1, 0
        %v7549 = vadd.s32 %v7539, %v7543
        %v7550 = vadd.s32 %v7542, %v7548
        %vm7551 = vc.u32 %v7549, %v7545
        %v7552 = vsel %vm7551, 1, 0
        %v7553 = vadd.s32 %v7549, %v7545
        %v7554 = vadd.s32 %v7550, %v7552
        %v7555 = vadd.s32 %v7554, %v7544
        %v7556 = vadd.s32 %v7555, %v7546
        %v7557 = vmul.u32 %v7512, %v7503
        %v7558 = vadd.s32 %v7534, %v7553
        %vm7559 = vc.u32 %v7534, %v7553
        %v7560 = vadd.s32 %v7556, 1
        %v7561 = vsel %vm7559, %v7560, %v7556
        %v7562 = vadd.s32 %v7557, %v7561
        %v7563 = vadd.s32 %v7562, 536870912
        %v7564 = vshrl.u32 %v7563, 30
        %v7565 = vshll.u32 %v7564, 30
        %v7566 = vsub.s32 %v7562, %v7565
        %vm7567 = vcmp.lt.s32.totalorder %v7566, 0
        %v7568 = vsub.s32 0, %v7566
        %v7569 = vsel %vm7567, %v7568, %v7566
        %v7570 = vclz %v7569
        %v7571 = vsub.s32 %v7570, 2
        %vm7572 = vcmp.gt.s32.totalorder 0, %v7571
        %v7573 = vsel %vm7572, 0, %v7571
        %v7574 = vsub.s32 32, %v7573
        %v7575 = vshll.u32 %v7566, %v7573
        %v7576 = vshrl.u32 %v7558, %v7574
        %v7577 = vor.u32 %v7575, %v7576
        %v7578 = vsub.s32 4294967266, %v7573
        %v7579 = vadd.s32 %v7578, 127
        %v7580 = vshll.u32 %v7579, 23
        %v7581 = vor.u32 4788187, %v7580
        %v7582 = vand.u32 2147483647, %v7581
        %v7584 = vcvt.s32.f32 %v7577
        %v7585 = vmul.f32 %v7584, %v7582
        %v7586 = vxor.u32 %v7585, 2147483648
        %v7587 = vsel %vm7466, %v7586, %v7585
        %v7588 = vsub.s32 4, %v7564
        %v7589 = vsel %vm7466, %v7588, %v7564
        %v7590 = vsel %vm7465, %v585, %v7587
        %v7591 = vsel %vm7465, 0, %v7589
        %v7592 = vmul.f32 %v7590, %v7590
        %v7593 = vmul.f32 %v7592, -0.001358992
        %v7594 = vadd.f32 %v7593, 0.041655596
        %v7595 = vmul.f32 %v7592, %v7594
        %v7596 = vadd.f32 %v7595, -0.4999988
        %v7597 = vmul.f32 %v7592, %v7596
        %v7598 = vadd.f32 1.0, %v7597
        %v7599 = vmul.f32 %v7590, %v7590
        %v7600 = vmul.f32 %v7599, -0.00019511016
        %v7601 = vadd.f32 %v7600, 0.008332121
        %v7602 = vmul.f32 %v7599, %v7601
        %v7603 = vadd.f32 %v7602, -0.16666654
        %v7604 = vmul.f32 %v7599, %v7603
        %v7605 = vadd.f32 %v7604, 1.0
        %v7606 = vmul.f32 %v7605, %v7590
        %vm7607 = vweird.f32 %v585
        %v7608 = vadd.s32 %v7591, 3
        %v7609 = vand.u32 %v7608, 3
        %vm7610 = vcmp.lt.s32.totalorder %v7609, 2
        %vm7611 = vcmp.eq.s32.totalorder %v7609, 0
        %v7612 = vxor.u32 %v7606, 2147483648
        %v7613 = vsel %vm7611, %v7598, %v7612
        %vm7614 = vcmp.eq.s32.totalorder %v7609, 2
        %v7615 = vxor.u32 %v7598, 2147483648
        %v7616 = vsel %vm7614, %v7615, %v7606
        %v7617 = vsel %vm7610, %v7613, %v7616
        %v7618 = vsel %vm7607, nan, %v7617
        %v7619 = vand.u32 2147483647, %v588
        %vm7620 = vcmp.le.f32.partialorder %v7619, 0.7853982
        %vm7621 = vcmp.lt.s32.totalorder %v588, 0
        %v7622 = vand.u32 %v588, 2139095040
        %v7623 = vshrl.u32 %v7622, 23
        %v7624 = vsub.s32 %v7623, 127
        %v7625 = vand.u32 2147483647, %v588
        %v7626 = vand.u32 %v7625, 8388607
        %v7627 = vor.u32 %v7626, 8388608
        %v7628 = vsub.s32 0, %v7627
        %v7629 = vadd.s32 %v7624, 1
        %vm7630 = vcmp.gt.s32.totalorder %v7629, 0
        %v7631 = vsel %vm7630, %v7629, 0
        %v7632 = vshrl.u32 %v7631, 5
        %v7633 = vand.u32 %v7631, 31
        %v7634 = vsub.s32 32, %v7633
        %v7635 = vshrl.u32 683565275, %v7634
        %v7636 = vshll.u32 683565275, %v7633
        %v7637 = vshrl.u32 2475754826, %v7634
        %v7638 = vor.u32 %v7636, %v7637
        %v7639 = vshll.u32 2475754826, %v7633
        %v7640 = vshrl.u32 2131351028, %v7634
        %v7641 = vor.u32 %v7639, %v7640
        %v7642 = vshll.u32 2131351028, %v7633
        %v7643 = vshrl.u32 2102212464, %v7634
        %v7644 = vor.u32 %v7642, %v7643
        %v7645 = vshll.u32 2102212464, %v7633
        %v7646 = vshrl.u32 920167782, %v7634
        %v7647 = vor.u32 %v7645, %v7646
        %v7648 = vshll.u32 920167782, %v7633
        %v7649 = vshrl.u32 1326507024, %v7634
        %v7650 = vor.u32 %v7648, %v7649
        %vm7651 = vcmp.lt.s32.totalorder %v7632, 1
        %vm7652 = vcmp.lt.s32.totalorder %v7632, 2
        %vm7653 = vcmp.lt.s32.totalorder %v7632, 3
        %vm7654 = vcmp.lt.s32.totalorder %v7632, 4
        %v7655 = vsel %vm7651, %v7635, %v7638
        %v7656 = vsel %vm7654, %v7644, 2102212464
        %v7657 = vsel %vm7653, %v7641, %v7656
        %v7658 = vsel %vm7652, %v7655, %v7657
        %v7659 = vsel %vm7651, %v7638, %v7641
        %v7660 = vsel %vm7654, %v7647, 920167782
        %v7661 = vsel %vm7653, %v7644, %v7660
        %v7662 = vsel %vm7652, %v7659, %v7661
        %v7663 = vsel %vm7651, %v7641, %v7644
        %v7664 = vsel %vm7654, %v7650, 1326507024
        %v7665 = vsel %vm7653, %v7647, %v7664
        %v7666 = vsel %vm7652, %v7663, %v7665
        %v7667 = vshll.u32 %v7627, 8
        %v7668 = vand.u32 %v7667, 65535
        %v7669 = vshrl.u32 %v7667, 16
        %v7670 = vand.u32 %v7666, 65535
        %v7671 = vshrl.u32 %v7666, 16
        %v7672 = vmul.u32 %v7668, %v7670
        %v7673 = vmul.u32 %v7668, %v7671
        %v7674 = vmul.u32 %v7669, %v7670
        %v7675 = vmul.u32 %v7669, %v7671
        %v7676 = vshll.u32 %v7673, 16
        %v7677 = vshrl.u32 %v7673, 16
        %v7678 = vshll.u32 %v7674, 16
        %v7679 = vshrl.u32 %v7674, 16
        %vm7680 = vc.u32 %v7672, %v7676
        %v7681 = vsel %vm7680, 1, 0
        %v7682 = vadd.s32 %v7672, %v7676
        %v7683 = vadd.s32 %v7675, %v7681
        %vm7684 = vc.u32 %v7682, %v7678
        %v7685 = vsel %vm7684, 1, 0
        %v7686 = vadd.s32 %v7682, %v7678
        %v7687 = vadd.s32 %v7683, %v7685
        %v7688 = vadd.s32 %v7687, %v7677
        %v7689 = vadd.s32 %v7688, %v7679
        %v7690 = vand.u32 %v7667, 65535
        %v7691 = vshrl.u32 %v7667, 16
        %v7692 = vand.u32 %v7662, 65535
        %v7693 = vshrl.u32 %v7662, 16
        %v7694 = vmul.u32 %v7690, %v7692
        %v7695 = vmul.u32 %v7690, %v7693
        %v7696 = vmul.u32 %v7691, %v7692
        %v7697 = vmul.u32 %v7691, %v7693
        %v7698 = vshll.u32 %v7695, 16
        %v7699 = vshrl.u32 %v7695, 16
        %v7700 = vshll.u32 %v7696, 16
        %v7701 = vshrl.u32 %v7696, 16
        %vm7702 = vc.u32 %v7694, %v7698
        %v7703 = vsel %vm7702, 1, 0
        %v7704 = vadd.s32 %v7694, %v7698
        %v7705 = vadd.s32 %v7697, %v7703
        %vm7706 = vc.u32 %v7704, %v7700
        %v7707 = vsel %vm7706, 1, 0
        %v7708 = vadd.s32 %v7704, %v7700
        %v7709 = vadd.s32 %v7705, %v7707
        %v7710 = vadd.s32 %v7709, %v7699
        %v7711 = vadd.s32 %v7710, %v7701
        %v7712 = vmul.u32 %v7667, %v7658
        %v7713 = vadd.s32 %v7689, %v7708
        %vm7714 = vc.u32 %v7689, %v7708
        %v7715 = vadd.s32 %v7711, 1
        %v7716 = vsel %vm7714, %v7715, %v7711
        %v7717 = vadd.s32 %v7712, %v7716
        %v7718 = vadd.s32 %v7717, 536870912
        %v7719 = vshrl.u32 %v7718, 30
        %v7720 = vshll.u32 %v7719, 30
        %v7721 = vsub.s32 %v7717, %v7720
        %vm7722 = vcmp.lt.s32.totalorder %v7721, 0
        %v7723 = vsub.s32 0, %v7721
        %v7724 = vsel %vm7722, %v7723, %v7721
        %v7725 = vclz %v7724
        %v7726 = vsub.s32 %v7725, 2
        %vm7727 = vcmp.gt.s32.totalorder 0, %v7726
        %v7728 = vsel %vm7727, 0, %v7726
        %v7729 = vsub.s32 32, %v7728
        %v7730 = vshll.u32 %v7721, %v7728
        %v7731 = vshrl.u32 %v7713, %v7729
        %v7732 = vor.u32 %v7730, %v7731
        %v7733 = vsub.s32 4294967266, %v7728
        %v7734 = vadd.s32 %v7733, 127
        %v7735 = vshll.u32 %v7734, 23
        %v7736 = vor.u32 4788187, %v7735
        %v7737 = vand.u32 2147483647, %v7736
        %v7739 = vcvt.s32.f32 %v7732
        %v7740 = vmul.f32 %v7739, %v7737
        %v7741 = vxor.u32 %v7740, 2147483648
        %v7742 = vsel %vm7621, %v7741, %v7740
        %v7743 = vsub.s32 4, %v7719
        %v7744 = vsel %vm7621, %v7743, %v7719
        %v7745 = vsel %vm7620, %v588, %v7742
        %v7746 = vsel %vm7620, 0, %v7744
        %v7747 = vmul.f32 %v7745, %v7745
        %v7748 = vmul.f32 %v7747, -0.001358992
        %v7749 = vadd.f32 %v7748, 0.041655596
        %v7750 = vmul.f32 %v7747, %v7749
        %v7751 = vadd.f32 %v7750, -0.4999988
        %v7752 = vmul.f32 %v7747, %v7751
        %v7753 = vadd.f32 1.0, %v7752
        %v7754 = vmul.f32 %v7745, %v7745
        %v7755 = vmul.f32 %v7754, -0.00019511016
        %v7756 = vadd.f32 %v7755, 0.008332121
        %v7757 = vmul.f32 %v7754, %v7756
        %v7758 = vadd.f32 %v7757, -0.16666654
        %v7759 = vmul.f32 %v7754, %v7758
        %v7760 = vadd.f32 %v7759, 1.0
        %v7761 = vmul.f32 %v7760, %v7745
        %vm7762 = vweird.f32 %v588
        %v7763 = vadd.s32 %v7746, 3
        %v7764 = vand.u32 %v7763, 3
        %vm7765 = vcmp.lt.s32.totalorder %v7764, 2
        %vm7766 = vcmp.eq.s32.totalorder %v7764, 0
        %v7767 = vxor.u32 %v7761, 2147483648
        %v7768 = vsel %vm7766, %v7753, %v7767
        %vm7769 = vcmp.eq.s32.totalorder %v7764, 2
        %v7770 = vxor.u32 %v7753, 2147483648
        %v7771 = vsel %vm7769, %v7770, %v7761
        %v7772 = vsel %vm7765, %v7768, %v7771
        %v7773 = vsel %vm7762, nan, %v7772
        %v7774 = vand.u32 2147483647, %v591
        %vm7775 = vcmp.le.f32.partialorder %v7774, 0.7853982
        %vm7776 = vcmp.lt.s32.totalorder %v591, 0
        %v7777 = vand.u32 %v591, 2139095040
        %v7778 = vshrl.u32 %v7777, 23
        %v7779 = vsub.s32 %v7778, 127
        %v7780 = vand.u32 2147483647, %v591
        %v7781 = vand.u32 %v7780, 8388607
        %v7782 = vor.u32 %v7781, 8388608
        %v7783 = vsub.s32 0, %v7782
        %v7784 = vadd.s32 %v7779, 1
        %vm7785 = vcmp.gt.s32.totalorder %v7784, 0
        %v7786 = vsel %vm7785, %v7784, 0
        %v7787 = vshrl.u32 %v7786, 5
        %v7788 = vand.u32 %v7786, 31
        %v7789 = vsub.s32 32, %v7788
        %v7790 = vshrl.u32 683565275, %v7789
        %v7791 = vshll.u32 683565275, %v7788
        %v7792 = vshrl.u32 2475754826, %v7789
        %v7793 = vor.u32 %v7791, %v7792
        %v7794 = vshll.u32 2475754826, %v7788
        %v7795 = vshrl.u32 2131351028, %v7789
        %v7796 = vor.u32 %v7794, %v7795
        %v7797 = vshll.u32 2131351028, %v7788
        %v7798 = vshrl.u32 2102212464, %v7789
        %v7799 = vor.u32 %v7797, %v7798
        %v7800 = vshll.u32 2102212464, %v7788
        %v7801 = vshrl.u32 920167782, %v7789
        %v7802 = vor.u32 %v7800, %v7801
        %v7803 = vshll.u32 920167782, %v7788
        %v7804 = vshrl.u32 1326507024, %v7789
        %v7805 = vor.u32 %v7803, %v7804
        %vm7806 = vcmp.lt.s32.totalorder %v7787, 1
        %vm7807 = vcmp.lt.s32.totalorder %v7787, 2
        %vm7808 = vcmp.lt.s32.totalorder %v7787, 3
        %vm7809 = vcmp.lt.s32.totalorder %v7787, 4
        %v7810 = vsel %vm7806, %v7790, %v7793
        %v7811 = vsel %vm7809, %v7799, 2102212464
        %v7812 = vsel %vm7808, %v7796, %v7811
        %v7813 = vsel %vm7807, %v7810, %v7812
        %v7814 = vsel %vm7806, %v7793, %v7796
        %v7815 = vsel %vm7809, %v7802, 920167782
        %v7816 = vsel %vm7808, %v7799, %v7815
        %v7817 = vsel %vm7807, %v7814, %v7816
        %v7818 = vsel %vm7806, %v7796, %v7799
        %v7819 = vsel %vm7809, %v7805, 1326507024
        %v7820 = vsel %vm7808, %v7802, %v7819
        %v7821 = vsel %vm7807, %v7818, %v7820
        %v7822 = vshll.u32 %v7782, 8
        %v7823 = vand.u32 %v7822, 65535
        %v7824 = vshrl.u32 %v7822, 16
        %v7825 = vand.u32 %v7821, 65535
        %v7826 = vshrl.u32 %v7821, 16
        %v7827 = vmul.u32 %v7823, %v7825
        %v7828 = vmul.u32 %v7823, %v7826
        %v7829 = vmul.u32 %v7824, %v7825
        %v7830 = vmul.u32 %v7824, %v7826
        %v7831 = vshll.u32 %v7828, 16
        %v7832 = vshrl.u32 %v7828, 16
        %v7833 = vshll.u32 %v7829, 16
        %v7834 = vshrl.u32 %v7829, 16
        %vm7835 = vc.u32 %v7827, %v7831
        %v7836 = vsel %vm7835, 1, 0
        %v7837 = vadd.s32 %v7827, %v7831
        %v7838 = vadd.s32 %v7830, %v7836
        %vm7839 = vc.u32 %v7837, %v7833
        %v7840 = vsel %vm7839, 1, 0
        %v7841 = vadd.s32 %v7837, %v7833
        %v7842 = vadd.s32 %v7838, %v7840
        %v7843 = vadd.s32 %v7842, %v7832
        %v7844 = vadd.s32 %v7843, %v7834
        %v7845 = vand.u32 %v7822, 65535
        %v7846 = vshrl.u32 %v7822, 16
        %v7847 = vand.u32 %v7817, 65535
        %v7848 = vshrl.u32 %v7817, 16
        %v7849 = vmul.u32 %v7845, %v7847
        %v7850 = vmul.u32 %v7845, %v7848
        %v7851 = vmul.u32 %v7846, %v7847
        %v7852 = vmul.u32 %v7846, %v7848
        %v7853 = vshll.u32 %v7850, 16
        %v7854 = vshrl.u32 %v7850, 16
        %v7855 = vshll.u32 %v7851, 16
        %v7856 = vshrl.u32 %v7851, 16
        %vm7857 = vc.u32 %v7849, %v7853
        %v7858 = vsel %vm7857, 1, 0
        %v7859 = vadd.s32 %v7849, %v7853
        %v7860 = vadd.s32 %v7852, %v7858
        %vm7861 = vc.u32 %v7859, %v7855
        %v7862 = vsel %vm7861, 1, 0
        %v7863 = vadd.s32 %v7859, %v7855
        %v7864 = vadd.s32 %v7860, %v7862
        %v7865 = vadd.s32 %v7864, %v7854
        %v7866 = vadd.s32 %v7865, %v7856
        %v7867 = vmul.u32 %v7822, %v7813
        %v7868 = vadd.s32 %v7844, %v7863
        %vm7869 = vc.u32 %v7844, %v7863
        %v7870 = vadd.s32 %v7866, 1
        %v7871 = vsel %vm7869, %v7870, %v7866
        %v7872 = vadd.s32 %v7867, %v7871
        %v7873 = vadd.s32 %v7872, 536870912
        %v7874 = vshrl.u32 %v7873, 30
        %v7875 = vshll.u32 %v7874, 30
        %v7876 = vsub.s32 %v7872, %v7875
        %vm7877 = vcmp.lt.s32.totalorder %v7876, 0
        %v7878 = vsub.s32 0, %v7876
        %v7879 = vsel %vm7877, %v7878, %v7876
        %v7880 = vclz %v7879
        %v7881 = vsub.s32 %v7880, 2
        %vm7882 = vcmp.gt.s32.totalorder 0, %v7881
        %v7883 = vsel %vm7882, 0, %v7881
        %v7884 = vsub.s32 32, %v7883
        %v7885 = vshll.u32 %v7876, %v7883
        %v7886 = vshrl.u32 %v7868, %v7884
        %v7887 = vor.u32 %v7885, %v7886
        %v7888 = vsub.s32 4294967266, %v7883
        %v7889 = vadd.s32 %v7888, 127
        %v7890 = vshll.u32 %v7889, 23
        %v7891 = vor.u32 4788187, %v7890
        %v7892 = vand.u32 2147483647, %v7891
        %v7894 = vcvt.s32.f32 %v7887
        %v7895 = vmul.f32 %v7894, %v7892
        %v7896 = vxor.u32 %v7895, 2147483648
        %v7897 = vsel %vm7776, %v7896, %v7895
        %v7898 = vsub.s32 4, %v7874
        %v7899 = vsel %vm7776, %v7898, %v7874
        %v7900 = vsel %vm7775, %v591, %v7897
        %v7901 = vsel %vm7775, 0, %v7899
        %v7902 = vmul.f32 %v7900, %v7900
        %v7903 = vmul.f32 %v7902, -0.001358992
        %v7904 = vadd.f32 %v7903, 0.041655596
        %v7905 = vmul.f32 %v7902, %v7904
        %v7906 = vadd.f32 %v7905, -0.4999988
        %v7907 = vmul.f32 %v7902, %v7906
        %v7908 = vadd.f32 1.0, %v7907
        %v7909 = vmul.f32 %v7900, %v7900
        %v7910 = vmul.f32 %v7909, -0.00019511016
        %v7911 = vadd.f32 %v7910, 0.008332121
        %v7912 = vmul.f32 %v7909, %v7911
        %v7913 = vadd.f32 %v7912, -0.16666654
        %v7914 = vmul.f32 %v7909, %v7913
        %v7915 = vadd.f32 %v7914, 1.0
        %v7916 = vmul.f32 %v7915, %v7900
        %vm7917 = vweird.f32 %v591
        %v7918 = vadd.s32 %v7901, 3
        %v7919 = vand.u32 %v7918, 3
        %vm7920 = vcmp.lt.s32.totalorder %v7919, 2
        %vm7921 = vcmp.eq.s32.totalorder %v7919, 0
        %v7922 = vxor.u32 %v7916, 2147483648
        %v7923 = vsel %vm7921, %v7908, %v7922
        %vm7924 = vcmp.eq.s32.totalorder %v7919, 2
        %v7925 = vxor.u32 %v7908, 2147483648
        %v7926 = vsel %vm7924, %v7925, %v7916
        %v7927 = vsel %vm7920, %v7923, %v7926
        %v7928 = vsel %vm7917, nan, %v7927
        %v7929 = vand.u32 2147483647, %v594
        %vm7930 = vcmp.le.f32.partialorder %v7929, 0.7853982
        %vm7931 = vcmp.lt.s32.totalorder %v594, 0
        %v7932 = vand.u32 %v594, 2139095040
        %v7933 = vshrl.u32 %v7932, 23
        %v7934 = vsub.s32 %v7933, 127
        %v7935 = vand.u32 2147483647, %v594
        %v7936 = vand.u32 %v7935, 8388607
        %v7937 = vor.u32 %v7936, 8388608
        %v7938 = vsub.s32 0, %v7937
        %v7939 = vadd.s32 %v7934, 1
        %vm7940 = vcmp.gt.s32.totalorder %v7939, 0
        %v7941 = vsel %vm7940, %v7939, 0
        %v7942 = vshrl.u32 %v7941, 5
        %v7943 = vand.u32 %v7941, 31
        %v7944 = vsub.s32 32, %v7943
        %v7945 = vshrl.u32 683565275, %v7944
        %v7946 = vshll.u32 683565275, %v7943
        %v7947 = vshrl.u32 2475754826, %v7944
        %v7948 = vor.u32 %v7946, %v7947
        %v7949 = vshll.u32 2475754826, %v7943
        %v7950 = vshrl.u32 2131351028, %v7944
        %v7951 = vor.u32 %v7949, %v7950
        %v7952 = vshll.u32 2131351028, %v7943
        %v7953 = vshrl.u32 2102212464, %v7944
        %v7954 = vor.u32 %v7952, %v7953
        %v7955 = vshll.u32 2102212464, %v7943
        %v7956 = vshrl.u32 920167782, %v7944
        %v7957 = vor.u32 %v7955, %v7956
        %v7958 = vshll.u32 920167782, %v7943
        %v7959 = vshrl.u32 1326507024, %v7944
        %v7960 = vor.u32 %v7958, %v7959
        %vm7961 = vcmp.lt.s32.totalorder %v7942, 1
        %vm7962 = vcmp.lt.s32.totalorder %v7942, 2
        %vm7963 = vcmp.lt.s32.totalorder %v7942, 3
        %vm7964 = vcmp.lt.s32.totalorder %v7942, 4
        %v7965 = vsel %vm7961, %v7945, %v7948
        %v7966 = vsel %vm7964, %v7954, 2102212464
        %v7967 = vsel %vm7963, %v7951, %v7966
        %v7968 = vsel %vm7962, %v7965, %v7967
        %v7969 = vsel %vm7961, %v7948, %v7951
        %v7970 = vsel %vm7964, %v7957, 920167782
        %v7971 = vsel %vm7963, %v7954, %v7970
        %v7972 = vsel %vm7962, %v7969, %v7971
        %v7973 = vsel %vm7961, %v7951, %v7954
        %v7974 = vsel %vm7964, %v7960, 1326507024
        %v7975 = vsel %vm7963, %v7957, %v7974
        %v7976 = vsel %vm7962, %v7973, %v7975
        %v7977 = vshll.u32 %v7937, 8
        %v7978 = vand.u32 %v7977, 65535
        %v7979 = vshrl.u32 %v7977, 16
        %v7980 = vand.u32 %v7976, 65535
        %v7981 = vshrl.u32 %v7976, 16
        %v7982 = vmul.u32 %v7978, %v7980
        %v7983 = vmul.u32 %v7978, %v7981
        %v7984 = vmul.u32 %v7979, %v7980
        %v7985 = vmul.u32 %v7979, %v7981
        %v7986 = vshll.u32 %v7983, 16
        %v7987 = vshrl.u32 %v7983, 16
        %v7988 = vshll.u32 %v7984, 16
        %v7989 = vshrl.u32 %v7984, 16
        %vm7990 = vc.u32 %v7982, %v7986
        %v7991 = vsel %vm7990, 1, 0
        %v7992 = vadd.s32 %v7982, %v7986
        %v7993 = vadd.s32 %v7985, %v7991
        %vm7994 = vc.u32 %v7992, %v7988
        %v7995 = vsel %vm7994, 1, 0
        %v7996 = vadd.s32 %v7992, %v7988
        %v7997 = vadd.s32 %v7993, %v7995
        %v7998 = vadd.s32 %v7997, %v7987
        %v7999 = vadd.s32 %v7998, %v7989
        %v8000 = vand.u32 %v7977, 65535
        %v8001 = vshrl.u32 %v7977, 16
        %v8002 = vand.u32 %v7972, 65535
        %v8003 = vshrl.u32 %v7972, 16
        %v8004 = vmul.u32 %v8000, %v8002
        %v8005 = vmul.u32 %v8000, %v8003
        %v8006 = vmul.u32 %v8001, %v8002
        %v8007 = vmul.u32 %v8001, %v8003
        %v8008 = vshll.u32 %v8005, 16
        %v8009 = vshrl.u32 %v8005, 16
        %v8010 = vshll.u32 %v8006, 16
        %v8011 = vshrl.u32 %v8006, 16
        %vm8012 = vc.u32 %v8004, %v8008
        %v8013 = vsel %vm8012, 1, 0
        %v8014 = vadd.s32 %v8004, %v8008
        %v8015 = vadd.s32 %v8007, %v8013
        %vm8016 = vc.u32 %v8014, %v8010
        %v8017 = vsel %vm8016, 1, 0
        %v8018 = vadd.s32 %v8014, %v8010
        %v8019 = vadd.s32 %v8015, %v8017
        %v8020 = vadd.s32 %v8019, %v8009
        %v8021 = vadd.s32 %v8020, %v8011
        %v8022 = vmul.u32 %v7977, %v7968
        %v8023 = vadd.s32 %v7999, %v8018
        %vm8024 = vc.u32 %v7999, %v8018
        %v8025 = vadd.s32 %v8021, 1
        %v8026 = vsel %vm8024, %v8025, %v8021
        %v8027 = vadd.s32 %v8022, %v8026
        %v8028 = vadd.s32 %v8027, 536870912
        %v8029 = vshrl.u32 %v8028, 30
        %v8030 = vshll.u32 %v8029, 30
        %v8031 = vsub.s32 %v8027, %v8030
        %vm8032 = vcmp.lt.s32.totalorder %v8031, 0
        %v8033 = vsub.s32 0, %v8031
        %v8034 = vsel %vm8032, %v8033, %v8031
        %v8035 = vclz %v8034
        %v8036 = vsub.s32 %v8035, 2
        %vm8037 = vcmp.gt.s32.totalorder 0, %v8036
        %v8038 = vsel %vm8037, 0, %v8036
        %v8039 = vsub.s32 32, %v8038
        %v8040 = vshll.u32 %v8031, %v8038
        %v8041 = vshrl.u32 %v8023, %v8039
        %v8042 = vor.u32 %v8040, %v8041
        %v8043 = vsub.s32 4294967266, %v8038
        %v8044 = vadd.s32 %v8043, 127
        %v8045 = vshll.u32 %v8044, 23
        %v8046 = vor.u32 4788187, %v8045
        %v8047 = vand.u32 2147483647, %v8046
        %v8049 = vcvt.s32.f32 %v8042
        %v8050 = vmul.f32 %v8049, %v8047
        %v8051 = vxor.u32 %v8050, 2147483648
        %v8052 = vsel %vm7931, %v8051, %v8050
        %v8053 = vsub.s32 4, %v8029
        %v8054 = vsel %vm7931, %v8053, %v8029
        %v8055 = vsel %vm7930, %v594, %v8052
        %v8056 = vsel %vm7930, 0, %v8054
        %v8057 = vmul.f32 %v8055, %v8055
        %v8058 = vmul.f32 %v8057, -0.001358992
        %v8059 = vadd.f32 %v8058, 0.041655596
        %v8060 = vmul.f32 %v8057, %v8059
        %v8061 = vadd.f32 %v8060, -0.4999988
        %v8062 = vmul.f32 %v8057, %v8061
        %v8063 = vadd.f32 1.0, %v8062
        %v8064 = vmul.f32 %v8055, %v8055
        %v8065 = vmul.f32 %v8064, -0.00019511016
        %v8066 = vadd.f32 %v8065, 0.008332121
        %v8067 = vmul.f32 %v8064, %v8066
        %v8068 = vadd.f32 %v8067, -0.16666654
        %v8069 = vmul.f32 %v8064, %v8068
        %v8070 = vadd.f32 %v8069, 1.0
        %v8071 = vmul.f32 %v8070, %v8055
        %vm8072 = vweird.f32 %v594
        %v8073 = vadd.s32 %v8056, 3
        %v8074 = vand.u32 %v8073, 3
        %vm8075 = vcmp.lt.s32.totalorder %v8074, 2
        %vm8076 = vcmp.eq.s32.totalorder %v8074, 0
        %v8077 = vxor.u32 %v8071, 2147483648
        %v8078 = vsel %vm8076, %v8063, %v8077
        %vm8079 = vcmp.eq.s32.totalorder %v8074, 2
        %v8080 = vxor.u32 %v8063, 2147483648
        %v8081 = vsel %vm8079, %v8080, %v8071
        %v8082 = vsel %vm8075, %v8078, %v8081
        %v8083 = vsel %vm8072, nan, %v8082
        %v8084 = vand.u32 2147483647, %v597
        %vm8085 = vcmp.le.f32.partialorder %v8084, 0.7853982
        %vm8086 = vcmp.lt.s32.totalorder %v597, 0
        %v8087 = vand.u32 %v597, 2139095040
        %v8088 = vshrl.u32 %v8087, 23
        %v8089 = vsub.s32 %v8088, 127
        %v8090 = vand.u32 2147483647, %v597
        %v8091 = vand.u32 %v8090, 8388607
        %v8092 = vor.u32 %v8091, 8388608
        %v8093 = vsub.s32 0, %v8092
        %v8094 = vadd.s32 %v8089, 1
        %vm8095 = vcmp.gt.s32.totalorder %v8094, 0
        %v8096 = vsel %vm8095, %v8094, 0
        %v8097 = vshrl.u32 %v8096, 5
        %v8098 = vand.u32 %v8096, 31
        %v8099 = vsub.s32 32, %v8098
        %v8100 = vshrl.u32 683565275, %v8099
        %v8101 = vshll.u32 683565275, %v8098
        %v8102 = vshrl.u32 2475754826, %v8099
        %v8103 = vor.u32 %v8101, %v8102
        %v8104 = vshll.u32 2475754826, %v8098
        %v8105 = vshrl.u32 2131351028, %v8099
        %v8106 = vor.u32 %v8104, %v8105
        %v8107 = vshll.u32 2131351028, %v8098
        %v8108 = vshrl.u32 2102212464, %v8099
        %v8109 = vor.u32 %v8107, %v8108
        %v8110 = vshll.u32 2102212464, %v8098
        %v8111 = vshrl.u32 920167782, %v8099
        %v8112 = vor.u32 %v8110, %v8111
        %v8113 = vshll.u32 920167782, %v8098
        %v8114 = vshrl.u32 1326507024, %v8099
        %v8115 = vor.u32 %v8113, %v8114
        %vm8116 = vcmp.lt.s32.totalorder %v8097, 1
        %vm8117 = vcmp.lt.s32.totalorder %v8097, 2
        %vm8118 = vcmp.lt.s32.totalorder %v8097, 3
        %vm8119 = vcmp.lt.s32.totalorder %v8097, 4
        %v8120 = vsel %vm8116, %v8100, %v8103
        %v8121 = vsel %vm8119, %v8109, 2102212464
        %v8122 = vsel %vm8118, %v8106, %v8121
        %v8123 = vsel %vm8117, %v8120, %v8122
        %v8124 = vsel %vm8116, %v8103, %v8106
        %v8125 = vsel %vm8119, %v8112, 920167782
        %v8126 = vsel %vm8118, %v8109, %v8125
        %v8127 = vsel %vm8117, %v8124, %v8126
        %v8128 = vsel %vm8116, %v8106, %v8109
        %v8129 = vsel %vm8119, %v8115, 1326507024
        %v8130 = vsel %vm8118, %v8112, %v8129
        %v8131 = vsel %vm8117, %v8128, %v8130
        %v8132 = vshll.u32 %v8092, 8
        %v8133 = vand.u32 %v8132, 65535
        %v8134 = vshrl.u32 %v8132, 16
        %v8135 = vand.u32 %v8131, 65535
        %v8136 = vshrl.u32 %v8131, 16
        %v8137 = vmul.u32 %v8133, %v8135
        %v8138 = vmul.u32 %v8133, %v8136
        %v8139 = vmul.u32 %v8134, %v8135
        %v8140 = vmul.u32 %v8134, %v8136
        %v8141 = vshll.u32 %v8138, 16
        %v8142 = vshrl.u32 %v8138, 16
        %v8143 = vshll.u32 %v8139, 16
        %v8144 = vshrl.u32 %v8139, 16
        %vm8145 = vc.u32 %v8137, %v8141
        %v8146 = vsel %vm8145, 1, 0
        %v8147 = vadd.s32 %v8137, %v8141
        %v8148 = vadd.s32 %v8140, %v8146
        %vm8149 = vc.u32 %v8147, %v8143
        %v8150 = vsel %vm8149, 1, 0
        %v8151 = vadd.s32 %v8147, %v8143
        %v8152 = vadd.s32 %v8148, %v8150
        %v8153 = vadd.s32 %v8152, %v8142
        %v8154 = vadd.s32 %v8153, %v8144
        %v8155 = vand.u32 %v8132, 65535
        %v8156 = vshrl.u32 %v8132, 16
        %v8157 = vand.u32 %v8127, 65535
        %v8158 = vshrl.u32 %v8127, 16
        %v8159 = vmul.u32 %v8155, %v8157
        %v8160 = vmul.u32 %v8155, %v8158
        %v8161 = vmul.u32 %v8156, %v8157
        %v8162 = vmul.u32 %v8156, %v8158
        %v8163 = vshll.u32 %v8160, 16
        %v8164 = vshrl.u32 %v8160, 16
        %v8165 = vshll.u32 %v8161, 16
        %v8166 = vshrl.u32 %v8161, 16
        %vm8167 = vc.u32 %v8159, %v8163
        %v8168 = vsel %vm8167, 1, 0
        %v8169 = vadd.s32 %v8159, %v8163
        %v8170 = vadd.s32 %v8162, %v8168
        %vm8171 = vc.u32 %v8169, %v8165
        %v8172 = vsel %vm8171, 1, 0
        %v8173 = vadd.s32 %v8169, %v8165
        %v8174 = vadd.s32 %v8170, %v8172
        %v8175 = vadd.s32 %v8174, %v8164
        %v8176 = vadd.s32 %v8175, %v8166
        %v8177 = vmul.u32 %v8132, %v8123
        %v8178 = vadd.s32 %v8154, %v8173
        %vm8179 = vc.u32 %v8154, %v8173
        %v8180 = vadd.s32 %v8176, 1
        %v8181 = vsel %vm8179, %v8180, %v8176
        %v8182 = vadd.s32 %v8177, %v8181
        %v8183 = vadd.s32 %v8182, 536870912
        %v8184 = vshrl.u32 %v8183, 30
        %v8185 = vshll.u32 %v8184, 30
        %v8186 = vsub.s32 %v8182, %v8185
        %vm8187 = vcmp.lt.s32.totalorder %v8186, 0
        %v8188 = vsub.s32 0, %v8186
        %v8189 = vsel %vm8187, %v8188, %v8186
        %v8190 = vclz %v8189
        %v8191 = vsub.s32 %v8190, 2
        %vm8192 = vcmp.gt.s32.totalorder 0, %v8191
        %v8193 = vsel %vm8192, 0, %v8191
        %v8194 = vsub.s32 32, %v8193
        %v8195 = vshll.u32 %v8186, %v8193
        %v8196 = vshrl.u32 %v8178, %v8194
        %v8197 = vor.u32 %v8195, %v8196
        %v8198 = vsub.s32 4294967266, %v8193
        %v8199 = vadd.s32 %v8198, 127
        %v8200 = vshll.u32 %v8199, 23
        %v8201 = vor.u32 4788187, %v8200
        %v8202 = vand.u32 2147483647, %v8201
        %v8204 = vcvt.s32.f32 %v8197
        %v8205 = vmul.f32 %v8204, %v8202
        %v8206 = vxor.u32 %v8205, 2147483648
        %v8207 = vsel %vm8086, %v8206, %v8205
        %v8208 = vsub.s32 4, %v8184
        %v8209 = vsel %vm8086, %v8208, %v8184
        %v8210 = vsel %vm8085, %v597, %v8207
        %v8211 = vsel %vm8085, 0, %v8209
        %v8212 = vmul.f32 %v8210, %v8210
        %v8213 = vmul.f32 %v8212, -0.001358992
        %v8214 = vadd.f32 %v8213, 0.041655596
        %v8215 = vmul.f32 %v8212, %v8214
        %v8216 = vadd.f32 %v8215, -0.4999988
        %v8217 = vmul.f32 %v8212, %v8216
        %v8218 = vadd.f32 1.0, %v8217
        %v8219 = vmul.f32 %v8210, %v8210
        %v8220 = vmul.f32 %v8219, -0.00019511016
        %v8221 = vadd.f32 %v8220, 0.008332121
        %v8222 = vmul.f32 %v8219, %v8221
        %v8223 = vadd.f32 %v8222, -0.16666654
        %v8224 = vmul.f32 %v8219, %v8223
        %v8225 = vadd.f32 %v8224, 1.0
        %v8226 = vmul.f32 %v8225, %v8210
        %vm8227 = vweird.f32 %v597
        %v8228 = vadd.s32 %v8211, 3
        %v8229 = vand.u32 %v8228, 3
        %vm8230 = vcmp.lt.s32.totalorder %v8229, 2
        %vm8231 = vcmp.eq.s32.totalorder %v8229, 0
        %v8232 = vxor.u32 %v8226, 2147483648
        %v8233 = vsel %vm8231, %v8218, %v8232
        %vm8234 = vcmp.eq.s32.totalorder %v8229, 2
        %v8235 = vxor.u32 %v8218, 2147483648
        %v8236 = vsel %vm8234, %v8235, %v8226
        %v8237 = vsel %vm8230, %v8233, %v8236
        %v8238 = vsel %vm8227, nan, %v8237
        %v8239 = vand.u32 2147483647, %v600
        %vm8240 = vcmp.le.f32.partialorder %v8239, 0.7853982
        %vm8241 = vcmp.lt.s32.totalorder %v600, 0
        %v8242 = vand.u32 %v600, 2139095040
        %v8243 = vshrl.u32 %v8242, 23
        %v8244 = vsub.s32 %v8243, 127
        %v8245 = vand.u32 2147483647, %v600
        %v8246 = vand.u32 %v8245, 8388607
        %v8247 = vor.u32 %v8246, 8388608
        %v8248 = vsub.s32 0, %v8247
        %v8249 = vadd.s32 %v8244, 1
        %vm8250 = vcmp.gt.s32.totalorder %v8249, 0
        %v8251 = vsel %vm8250, %v8249, 0
        %v8252 = vshrl.u32 %v8251, 5
        %v8253 = vand.u32 %v8251, 31
        %v8254 = vsub.s32 32, %v8253
        %v8255 = vshrl.u32 683565275, %v8254
        %v8256 = vshll.u32 683565275, %v8253
        %v8257 = vshrl.u32 2475754826, %v8254
        %v8258 = vor.u32 %v8256, %v8257
        %v8259 = vshll.u32 2475754826, %v8253
        %v8260 = vshrl.u32 2131351028, %v8254
        %v8261 = vor.u32 %v8259, %v8260
        %v8262 = vshll.u32 2131351028, %v8253
        %v8263 = vshrl.u32 2102212464, %v8254
        %v8264 = vor.u32 %v8262, %v8263
        %v8265 = vshll.u32 2102212464, %v8253
        %v8266 = vshrl.u32 920167782, %v8254
        %v8267 = vor.u32 %v8265, %v8266
        %v8268 = vshll.u32 920167782, %v8253
        %v8269 = vshrl.u32 1326507024, %v8254
        %v8270 = vor.u32 %v8268, %v8269
        %vm8271 = vcmp.lt.s32.totalorder %v8252, 1
        %vm8272 = vcmp.lt.s32.totalorder %v8252, 2
        %vm8273 = vcmp.lt.s32.totalorder %v8252, 3
        %vm8274 = vcmp.lt.s32.totalorder %v8252, 4
        %v8275 = vsel %vm8271, %v8255, %v8258
        %v8276 = vsel %vm8274, %v8264, 2102212464
        %v8277 = vsel %vm8273, %v8261, %v8276
        %v8278 = vsel %vm8272, %v8275, %v8277
        %v8279 = vsel %vm8271, %v8258, %v8261
        %v8280 = vsel %vm8274, %v8267, 920167782
        %v8281 = vsel %vm8273, %v8264, %v8280
        %v8282 = vsel %vm8272, %v8279, %v8281
        %v8283 = vsel %vm8271, %v8261, %v8264
        %v8284 = vsel %vm8274, %v8270, 1326507024
        %v8285 = vsel %vm8273, %v8267, %v8284
        %v8286 = vsel %vm8272, %v8283, %v8285
        %v8287 = vshll.u32 %v8247, 8
        %v8288 = vand.u32 %v8287, 65535
        %v8289 = vshrl.u32 %v8287, 16
        %v8290 = vand.u32 %v8286, 65535
        %v8291 = vshrl.u32 %v8286, 16
        %v8292 = vmul.u32 %v8288, %v8290
        %v8293 = vmul.u32 %v8288, %v8291
        %v8294 = vmul.u32 %v8289, %v8290
        %v8295 = vmul.u32 %v8289, %v8291
        %v8296 = vshll.u32 %v8293, 16
        %v8297 = vshrl.u32 %v8293, 16
        %v8298 = vshll.u32 %v8294, 16
        %v8299 = vshrl.u32 %v8294, 16
        %vm8300 = vc.u32 %v8292, %v8296
        %v8301 = vsel %vm8300, 1, 0
        %v8302 = vadd.s32 %v8292, %v8296
        %v8303 = vadd.s32 %v8295, %v8301
        %vm8304 = vc.u32 %v8302, %v8298
        %v8305 = vsel %vm8304, 1, 0
        %v8306 = vadd.s32 %v8302, %v8298
        %v8307 = vadd.s32 %v8303, %v8305
        %v8308 = vadd.s32 %v8307, %v8297
        %v8309 = vadd.s32 %v8308, %v8299
        %v8310 = vand.u32 %v8287, 65535
        %v8311 = vshrl.u32 %v8287, 16
        %v8312 = vand.u32 %v8282, 65535
        %v8313 = vshrl.u32 %v8282, 16
        %v8314 = vmul.u32 %v8310, %v8312
        %v8315 = vmul.u32 %v8310, %v8313
        %v8316 = vmul.u32 %v8311, %v8312
        %v8317 = vmul.u32 %v8311, %v8313
        %v8318 = vshll.u32 %v8315, 16
        %v8319 = vshrl.u32 %v8315, 16
        %v8320 = vshll.u32 %v8316, 16
        %v8321 = vshrl.u32 %v8316, 16
        %vm8322 = vc.u32 %v8314, %v8318
        %v8323 = vsel %vm8322, 1, 0
        %v8324 = vadd.s32 %v8314, %v8318
        %v8325 = vadd.s32 %v8317, %v8323
        %vm8326 = vc.u32 %v8324, %v8320
        %v8327 = vsel %vm8326, 1, 0
        %v8328 = vadd.s32 %v8324, %v8320
        %v8329 = vadd.s32 %v8325, %v8327
        %v8330 = vadd.s32 %v8329, %v8319
        %v8331 = vadd.s32 %v8330, %v8321
        %v8332 = vmul.u32 %v8287, %v8278
        %v8333 = vadd.s32 %v8309, %v8328
        %vm8334 = vc.u32 %v8309, %v8328
        %v8335 = vadd.s32 %v8331, 1
        %v8336 = vsel %vm8334, %v8335, %v8331
        %v8337 = vadd.s32 %v8332, %v8336
        %v8338 = vadd.s32 %v8337, 536870912
        %v8339 = vshrl.u32 %v8338, 30
        %v8340 = vshll.u32 %v8339, 30
        %v8341 = vsub.s32 %v8337, %v8340
        %vm8342 = vcmp.lt.s32.totalorder %v8341, 0
        %v8343 = vsub.s32 0, %v8341
        %v8344 = vsel %vm8342, %v8343, %v8341
        %v8345 = vclz %v8344
        %v8346 = vsub.s32 %v8345, 2
        %vm8347 = vcmp.gt.s32.totalorder 0, %v8346
        %v8348 = vsel %vm8347, 0, %v8346
        %v8349 = vsub.s32 32, %v8348
        %v8350 = vshll.u32 %v8341, %v8348
        %v8351 = vshrl.u32 %v8333, %v8349
        %v8352 = vor.u32 %v8350, %v8351
        %v8353 = vsub.s32 4294967266, %v8348
        %v8354 = vadd.s32 %v8353, 127
        %v8355 = vshll.u32 %v8354, 23
        %v8356 = vor.u32 4788187, %v8355
        %v8357 = vand.u32 2147483647, %v8356
        %v8359 = vcvt.s32.f32 %v8352
        %v8360 = vmul.f32 %v8359, %v8357
        %v8361 = vxor.u32 %v8360, 2147483648
        %v8362 = vsel %vm8241, %v8361, %v8360
        %v8363 = vsub.s32 4, %v8339
        %v8364 = vsel %vm8241, %v8363, %v8339
        %v8365 = vsel %vm8240, %v600, %v8362
        %v8366 = vsel %vm8240, 0, %v8364
        %v8367 = vmul.f32 %v8365, %v8365
        %v8368 = vmul.f32 %v8367, -0.001358992
        %v8369 = vadd.f32 %v8368, 0.041655596
        %v8370 = vmul.f32 %v8367, %v8369
        %v8371 = vadd.f32 %v8370, -0.4999988
        %v8372 = vmul.f32 %v8367, %v8371
        %v8373 = vadd.f32 1.0, %v8372
        %v8374 = vmul.f32 %v8365, %v8365
        %v8375 = vmul.f32 %v8374, -0.00019511016
        %v8376 = vadd.f32 %v8375, 0.008332121
        %v8377 = vmul.f32 %v8374, %v8376
        %v8378 = vadd.f32 %v8377, -0.16666654
        %v8379 = vmul.f32 %v8374, %v8378
        %v8380 = vadd.f32 %v8379, 1.0
        %v8381 = vmul.f32 %v8380, %v8365
        %vm8382 = vweird.f32 %v600
        %v8383 = vadd.s32 %v8366, 3
        %v8384 = vand.u32 %v8383, 3
        %vm8385 = vcmp.lt.s32.totalorder %v8384, 2
        %vm8386 = vcmp.eq.s32.totalorder %v8384, 0
        %v8387 = vxor.u32 %v8381, 2147483648
        %v8388 = vsel %vm8386, %v8373, %v8387
        %vm8389 = vcmp.eq.s32.totalorder %v8384, 2
        %v8390 = vxor.u32 %v8373, 2147483648
        %v8391 = vsel %vm8389, %v8390, %v8381
        %v8392 = vsel %vm8385, %v8388, %v8391
        %v8393 = vsel %vm8382, nan, %v8392
        %v8394 = vand.u32 2147483647, %v603
        %vm8395 = vcmp.le.f32.partialorder %v8394, 0.7853982
        %vm8396 = vcmp.lt.s32.totalorder %v603, 0
        %v8397 = vand.u32 %v603, 2139095040
        %v8398 = vshrl.u32 %v8397, 23
        %v8399 = vsub.s32 %v8398, 127
        %v8400 = vand.u32 2147483647, %v603
        %v8401 = vand.u32 %v8400, 8388607
        %v8402 = vor.u32 %v8401, 8388608
        %v8403 = vsub.s32 0, %v8402
        %v8404 = vadd.s32 %v8399, 1
        %vm8405 = vcmp.gt.s32.totalorder %v8404, 0
        %v8406 = vsel %vm8405, %v8404, 0
        %v8407 = vshrl.u32 %v8406, 5
        %v8408 = vand.u32 %v8406, 31
        %v8409 = vsub.s32 32, %v8408
        %v8410 = vshrl.u32 683565275, %v8409
        %v8411 = vshll.u32 683565275, %v8408
        %v8412 = vshrl.u32 2475754826, %v8409
        %v8413 = vor.u32 %v8411, %v8412
        %v8414 = vshll.u32 2475754826, %v8408
        %v8415 = vshrl.u32 2131351028, %v8409
        %v8416 = vor.u32 %v8414, %v8415
        %v8417 = vshll.u32 2131351028, %v8408
        %v8418 = vshrl.u32 2102212464, %v8409
        %v8419 = vor.u32 %v8417, %v8418
        %v8420 = vshll.u32 2102212464, %v8408
        %v8421 = vshrl.u32 920167782, %v8409
        %v8422 = vor.u32 %v8420, %v8421
        %v8423 = vshll.u32 920167782, %v8408
        %v8424 = vshrl.u32 1326507024, %v8409
        %v8425 = vor.u32 %v8423, %v8424
        %vm8426 = vcmp.lt.s32.totalorder %v8407, 1
        %vm8427 = vcmp.lt.s32.totalorder %v8407, 2
        %vm8428 = vcmp.lt.s32.totalorder %v8407, 3
        %vm8429 = vcmp.lt.s32.totalorder %v8407, 4
        %v8430 = vsel %vm8426, %v8410, %v8413
        %v8431 = vsel %vm8429, %v8419, 2102212464
        %v8432 = vsel %vm8428, %v8416, %v8431
        %v8433 = vsel %vm8427, %v8430, %v8432
        %v8434 = vsel %vm8426, %v8413, %v8416
        %v8435 = vsel %vm8429, %v8422, 920167782
        %v8436 = vsel %vm8428, %v8419, %v8435
        %v8437 = vsel %vm8427, %v8434, %v8436
        %v8438 = vsel %vm8426, %v8416, %v8419
        %v8439 = vsel %vm8429, %v8425, 1326507024
        %v8440 = vsel %vm8428, %v8422, %v8439
        %v8441 = vsel %vm8427, %v8438, %v8440
        %v8442 = vshll.u32 %v8402, 8
        %v8443 = vand.u32 %v8442, 65535
        %v8444 = vshrl.u32 %v8442, 16
        %v8445 = vand.u32 %v8441, 65535
        %v8446 = vshrl.u32 %v8441, 16
        %v8447 = vmul.u32 %v8443, %v8445
        %v8448 = vmul.u32 %v8443, %v8446
        %v8449 = vmul.u32 %v8444, %v8445
        %v8450 = vmul.u32 %v8444, %v8446
        %v8451 = vshll.u32 %v8448, 16
        %v8452 = vshrl.u32 %v8448, 16
        %v8453 = vshll.u32 %v8449, 16
        %v8454 = vshrl.u32 %v8449, 16
        %vm8455 = vc.u32 %v8447, %v8451
        %v8456 = vsel %vm8455, 1, 0
        %v8457 = vadd.s32 %v8447, %v8451
        %v8458 = vadd.s32 %v8450, %v8456
        %vm8459 = vc.u32 %v8457, %v8453
        %v8460 = vsel %vm8459, 1, 0
        %v8461 = vadd.s32 %v8457, %v8453
        %v8462 = vadd.s32 %v8458, %v8460
        %v8463 = vadd.s32 %v8462, %v8452
        %v8464 = vadd.s32 %v8463, %v8454
        %v8465 = vand.u32 %v8442, 65535
        %v8466 = vshrl.u32 %v8442, 16
        %v8467 = vand.u32 %v8437, 65535
        %v8468 = vshrl.u32 %v8437, 16
        %v8469 = vmul.u32 %v8465, %v8467
        %v8470 = vmul.u32 %v8465, %v8468
        %v8471 = vmul.u32 %v8466, %v8467
        %v8472 = vmul.u32 %v8466, %v8468
        %v8473 = vshll.u32 %v8470, 16
        %v8474 = vshrl.u32 %v8470, 16
        %v8475 = vshll.u32 %v8471, 16
        %v8476 = vshrl.u32 %v8471, 16
        %vm8477 = vc.u32 %v8469, %v8473
        %v8478 = vsel %vm8477, 1, 0
        %v8479 = vadd.s32 %v8469, %v8473
        %v8480 = vadd.s32 %v8472, %v8478
        %vm8481 = vc.u32 %v8479, %v8475
        %v8482 = vsel %vm8481, 1, 0
        %v8483 = vadd.s32 %v8479, %v8475
        %v8484 = vadd.s32 %v8480, %v8482
        %v8485 = vadd.s32 %v8484, %v8474
        %v8486 = vadd.s32 %v8485, %v8476
        %v8487 = vmul.u32 %v8442, %v8433
        %v8488 = vadd.s32 %v8464, %v8483
        %vm8489 = vc.u32 %v8464, %v8483
        %v8490 = vadd.s32 %v8486, 1
        %v8491 = vsel %vm8489, %v8490, %v8486
        %v8492 = vadd.s32 %v8487, %v8491
        %v8493 = vadd.s32 %v8492, 536870912
        %v8494 = vshrl.u32 %v8493, 30
        %v8495 = vshll.u32 %v8494, 30
        %v8496 = vsub.s32 %v8492, %v8495
        %vm8497 = vcmp.lt.s32.totalorder %v8496, 0
        %v8498 = vsub.s32 0, %v8496
        %v8499 = vsel %vm8497, %v8498, %v8496
        %v8500 = vclz %v8499
        %v8501 = vsub.s32 %v8500, 2
        %vm8502 = vcmp.gt.s32.totalorder 0, %v8501
        %v8503 = vsel %vm8502, 0, %v8501
        %v8504 = vsub.s32 32, %v8503
        %v8505 = vshll.u32 %v8496, %v8503
        %v8506 = vshrl.u32 %v8488, %v8504
        %v8507 = vor.u32 %v8505, %v8506
        %v8508 = vsub.s32 4294967266, %v8503
        %v8509 = vadd.s32 %v8508, 127
        %v8510 = vshll.u32 %v8509, 23
        %v8511 = vor.u32 4788187, %v8510
        %v8512 = vand.u32 2147483647, %v8511
        %v8514 = vcvt.s32.f32 %v8507
        %v8515 = vmul.f32 %v8514, %v8512
        %v8516 = vxor.u32 %v8515, 2147483648
        %v8517 = vsel %vm8396, %v8516, %v8515
        %v8518 = vsub.s32 4, %v8494
        %v8519 = vsel %vm8396, %v8518, %v8494
        %v8520 = vsel %vm8395, %v603, %v8517
        %v8521 = vsel %vm8395, 0, %v8519
        %v8522 = vmul.f32 %v8520, %v8520
        %v8523 = vmul.f32 %v8522, -0.001358992
        %v8524 = vadd.f32 %v8523, 0.041655596
        %v8525 = vmul.f32 %v8522, %v8524
        %v8526 = vadd.f32 %v8525, -0.4999988
        %v8527 = vmul.f32 %v8522, %v8526
        %v8528 = vadd.f32 1.0, %v8527
        %v8529 = vmul.f32 %v8520, %v8520
        %v8530 = vmul.f32 %v8529, -0.00019511016
        %v8531 = vadd.f32 %v8530, 0.008332121
        %v8532 = vmul.f32 %v8529, %v8531
        %v8533 = vadd.f32 %v8532, -0.16666654
        %v8534 = vmul.f32 %v8529, %v8533
        %v8535 = vadd.f32 %v8534, 1.0
        %v8536 = vmul.f32 %v8535, %v8520
        %vm8537 = vweird.f32 %v603
        %v8538 = vadd.s32 %v8521, 3
        %v8539 = vand.u32 %v8538, 3
        %vm8540 = vcmp.lt.s32.totalorder %v8539, 2
        %vm8541 = vcmp.eq.s32.totalorder %v8539, 0
        %v8542 = vxor.u32 %v8536, 2147483648
        %v8543 = vsel %vm8541, %v8528, %v8542
        %vm8544 = vcmp.eq.s32.totalorder %v8539, 2
        %v8545 = vxor.u32 %v8528, 2147483648
        %v8546 = vsel %vm8544, %v8545, %v8536
        %v8547 = vsel %vm8540, %v8543, %v8546
        %v8548 = vsel %vm8537, nan, %v8547
        %v8549 = vand.u32 2147483647, %v606
        %vm8550 = vcmp.le.f32.partialorder %v8549, 0.7853982
        %vm8551 = vcmp.lt.s32.totalorder %v606, 0
        %v8552 = vand.u32 %v606, 2139095040
        %v8553 = vshrl.u32 %v8552, 23
        %v8554 = vsub.s32 %v8553, 127
        %v8555 = vand.u32 2147483647, %v606
        %v8556 = vand.u32 %v8555, 8388607
        %v8557 = vor.u32 %v8556, 8388608
        %v8558 = vsub.s32 0, %v8557
        %v8559 = vadd.s32 %v8554, 1
        %vm8560 = vcmp.gt.s32.totalorder %v8559, 0
        %v8561 = vsel %vm8560, %v8559, 0
        %v8562 = vshrl.u32 %v8561, 5
        %v8563 = vand.u32 %v8561, 31
        %v8564 = vsub.s32 32, %v8563
        %v8565 = vshrl.u32 683565275, %v8564
        %v8566 = vshll.u32 683565275, %v8563
        %v8567 = vshrl.u32 2475754826, %v8564
        %v8568 = vor.u32 %v8566, %v8567
        %v8569 = vshll.u32 2475754826, %v8563
        %v8570 = vshrl.u32 2131351028, %v8564
        %v8571 = vor.u32 %v8569, %v8570
        %v8572 = vshll.u32 2131351028, %v8563
        %v8573 = vshrl.u32 2102212464, %v8564
        %v8574 = vor.u32 %v8572, %v8573
        %v8575 = vshll.u32 2102212464, %v8563
        %v8576 = vshrl.u32 920167782, %v8564
        %v8577 = vor.u32 %v8575, %v8576
        %v8578 = vshll.u32 920167782, %v8563
        %v8579 = vshrl.u32 1326507024, %v8564
        %v8580 = vor.u32 %v8578, %v8579
        %vm8581 = vcmp.lt.s32.totalorder %v8562, 1
        %vm8582 = vcmp.lt.s32.totalorder %v8562, 2
        %vm8583 = vcmp.lt.s32.totalorder %v8562, 3
        %vm8584 = vcmp.lt.s32.totalorder %v8562, 4
        %v8585 = vsel %vm8581, %v8565, %v8568
        %v8586 = vsel %vm8584, %v8574, 2102212464
        %v8587 = vsel %vm8583, %v8571, %v8586
        %v8588 = vsel %vm8582, %v8585, %v8587
        %v8589 = vsel %vm8581, %v8568, %v8571
        %v8590 = vsel %vm8584, %v8577, 920167782
        %v8591 = vsel %vm8583, %v8574, %v8590
        %v8592 = vsel %vm8582, %v8589, %v8591
        %v8593 = vsel %vm8581, %v8571, %v8574
        %v8594 = vsel %vm8584, %v8580, 1326507024
        %v8595 = vsel %vm8583, %v8577, %v8594
        %v8596 = vsel %vm8582, %v8593, %v8595
        %v8597 = vshll.u32 %v8557, 8
        %v8598 = vand.u32 %v8597, 65535
        %v8599 = vshrl.u32 %v8597, 16
        %v8600 = vand.u32 %v8596, 65535
        %v8601 = vshrl.u32 %v8596, 16
        %v8602 = vmul.u32 %v8598, %v8600
        %v8603 = vmul.u32 %v8598, %v8601
        %v8604 = vmul.u32 %v8599, %v8600
        %v8605 = vmul.u32 %v8599, %v8601
        %v8606 = vshll.u32 %v8603, 16
        %v8607 = vshrl.u32 %v8603, 16
        %v8608 = vshll.u32 %v8604, 16
        %v8609 = vshrl.u32 %v8604, 16
        %vm8610 = vc.u32 %v8602, %v8606
        %v8611 = vsel %vm8610, 1, 0
        %v8612 = vadd.s32 %v8602, %v8606
        %v8613 = vadd.s32 %v8605, %v8611
        %vm8614 = vc.u32 %v8612, %v8608
        %v8615 = vsel %vm8614, 1, 0
        %v8616 = vadd.s32 %v8612, %v8608
        %v8617 = vadd.s32 %v8613, %v8615
        %v8618 = vadd.s32 %v8617, %v8607
        %v8619 = vadd.s32 %v8618, %v8609
        %v8620 = vand.u32 %v8597, 65535
        %v8621 = vshrl.u32 %v8597, 16
        %v8622 = vand.u32 %v8592, 65535
        %v8623 = vshrl.u32 %v8592, 16
        %v8624 = vmul.u32 %v8620, %v8622
        %v8625 = vmul.u32 %v8620, %v8623
        %v8626 = vmul.u32 %v8621, %v8622
        %v8627 = vmul.u32 %v8621, %v8623
        %v8628 = vshll.u32 %v8625, 16
        %v8629 = vshrl.u32 %v8625, 16
        %v8630 = vshll.u32 %v8626, 16
        %v8631 = vshrl.u32 %v8626, 16
        %vm8632 = vc.u32 %v8624, %v8628
        %v8633 = vsel %vm8632, 1, 0
        %v8634 = vadd.s32 %v8624, %v8628
        %v8635 = vadd.s32 %v8627, %v8633
        %vm8636 = vc.u32 %v8634, %v8630
        %v8637 = vsel %vm8636, 1, 0
        %v8638 = vadd.s32 %v8634, %v8630
        %v8639 = vadd.s32 %v8635, %v8637
        %v8640 = vadd.s32 %v8639, %v8629
        %v8641 = vadd.s32 %v8640, %v8631
        %v8642 = vmul.u32 %v8597, %v8588
        %v8643 = vadd.s32 %v8619, %v8638
        %vm8644 = vc.u32 %v8619, %v8638
        %v8645 = vadd.s32 %v8641, 1
        %v8646 = vsel %vm8644, %v8645, %v8641
        %v8647 = vadd.s32 %v8642, %v8646
        %v8648 = vadd.s32 %v8647, 536870912
        %v8649 = vshrl.u32 %v8648, 30
        %v8650 = vshll.u32 %v8649, 30
        %v8651 = vsub.s32 %v8647, %v8650
        %vm8652 = vcmp.lt.s32.totalorder %v8651, 0
        %v8653 = vsub.s32 0, %v8651
        %v8654 = vsel %vm8652, %v8653, %v8651
        %v8655 = vclz %v8654
        %v8656 = vsub.s32 %v8655, 2
        %vm8657 = vcmp.gt.s32.totalorder 0, %v8656
        %v8658 = vsel %vm8657, 0, %v8656
        %v8659 = vsub.s32 32, %v8658
        %v8660 = vshll.u32 %v8651, %v8658
        %v8661 = vshrl.u32 %v8643, %v8659
        %v8662 = vor.u32 %v8660, %v8661
        %v8663 = vsub.s32 4294967266, %v8658
        %v8664 = vadd.s32 %v8663, 127
        %v8665 = vshll.u32 %v8664, 23
        %v8666 = vor.u32 4788187, %v8665
        %v8667 = vand.u32 2147483647, %v8666
        %v8669 = vcvt.s32.f32 %v8662
        %v8670 = vmul.f32 %v8669, %v8667
        %v8671 = vxor.u32 %v8670, 2147483648
        %v8672 = vsel %vm8551, %v8671, %v8670
        %v8673 = vsub.s32 4, %v8649
        %v8674 = vsel %vm8551, %v8673, %v8649
        %v8675 = vsel %vm8550, %v606, %v8672
        %v8676 = vsel %vm8550, 0, %v8674
        %v8677 = vmul.f32 %v8675, %v8675
        %v8678 = vmul.f32 %v8677, -0.001358992
        %v8679 = vadd.f32 %v8678, 0.041655596
        %v8680 = vmul.f32 %v8677, %v8679
        %v8681 = vadd.f32 %v8680, -0.4999988
        %v8682 = vmul.f32 %v8677, %v8681
        %v8683 = vadd.f32 1.0, %v8682
        %v8684 = vmul.f32 %v8675, %v8675
        %v8685 = vmul.f32 %v8684, -0.00019511016
        %v8686 = vadd.f32 %v8685, 0.008332121
        %v8687 = vmul.f32 %v8684, %v8686
        %v8688 = vadd.f32 %v8687, -0.16666654
        %v8689 = vmul.f32 %v8684, %v8688
        %v8690 = vadd.f32 %v8689, 1.0
        %v8691 = vmul.f32 %v8690, %v8675
        %vm8692 = vweird.f32 %v606
        %v8693 = vadd.s32 %v8676, 3
        %v8694 = vand.u32 %v8693, 3
        %vm8695 = vcmp.lt.s32.totalorder %v8694, 2
        %vm8696 = vcmp.eq.s32.totalorder %v8694, 0
        %v8697 = vxor.u32 %v8691, 2147483648
        %v8698 = vsel %vm8696, %v8683, %v8697
        %vm8699 = vcmp.eq.s32.totalorder %v8694, 2
        %v8700 = vxor.u32 %v8683, 2147483648
        %v8701 = vsel %vm8699, %v8700, %v8691
        %v8702 = vsel %vm8695, %v8698, %v8701
        %v8703 = vsel %vm8692, nan, %v8702
        %v8704 = vand.u32 2147483647, %v609
        %vm8705 = vcmp.le.f32.partialorder %v8704, 0.7853982
        %vm8706 = vcmp.lt.s32.totalorder %v609, 0
        %v8707 = vand.u32 %v609, 2139095040
        %v8708 = vshrl.u32 %v8707, 23
        %v8709 = vsub.s32 %v8708, 127
        %v8710 = vand.u32 2147483647, %v609
        %v8711 = vand.u32 %v8710, 8388607
        %v8712 = vor.u32 %v8711, 8388608
        %v8713 = vsub.s32 0, %v8712
        %v8714 = vadd.s32 %v8709, 1
        %vm8715 = vcmp.gt.s32.totalorder %v8714, 0
        %v8716 = vsel %vm8715, %v8714, 0
        %v8717 = vshrl.u32 %v8716, 5
        %v8718 = vand.u32 %v8716, 31
        %v8719 = vsub.s32 32, %v8718
        %v8720 = vshrl.u32 683565275, %v8719
        %v8721 = vshll.u32 683565275, %v8718
        %v8722 = vshrl.u32 2475754826, %v8719
        %v8723 = vor.u32 %v8721, %v8722
        %v8724 = vshll.u32 2475754826, %v8718
        %v8725 = vshrl.u32 2131351028, %v8719
        %v8726 = vor.u32 %v8724, %v8725
        %v8727 = vshll.u32 2131351028, %v8718
        %v8728 = vshrl.u32 2102212464, %v8719
        %v8729 = vor.u32 %v8727, %v8728
        %v8730 = vshll.u32 2102212464, %v8718
        %v8731 = vshrl.u32 920167782, %v8719
        %v8732 = vor.u32 %v8730, %v8731
        %v8733 = vshll.u32 920167782, %v8718
        %v8734 = vshrl.u32 1326507024, %v8719
        %v8735 = vor.u32 %v8733, %v8734
        %vm8736 = vcmp.lt.s32.totalorder %v8717, 1
        %vm8737 = vcmp.lt.s32.totalorder %v8717, 2
        %vm8738 = vcmp.lt.s32.totalorder %v8717, 3
        %vm8739 = vcmp.lt.s32.totalorder %v8717, 4
        %v8740 = vsel %vm8736, %v8720, %v8723
        %v8741 = vsel %vm8739, %v8729, 2102212464
        %v8742 = vsel %vm8738, %v8726, %v8741
        %v8743 = vsel %vm8737, %v8740, %v8742
        %v8744 = vsel %vm8736, %v8723, %v8726
        %v8745 = vsel %vm8739, %v8732, 920167782
        %v8746 = vsel %vm8738, %v8729, %v8745
        %v8747 = vsel %vm8737, %v8744, %v8746
        %v8748 = vsel %vm8736, %v8726, %v8729
        %v8749 = vsel %vm8739, %v8735, 1326507024
        %v8750 = vsel %vm8738, %v8732, %v8749
        %v8751 = vsel %vm8737, %v8748, %v8750
        %v8752 = vshll.u32 %v8712, 8
        %v8753 = vand.u32 %v8752, 65535
        %v8754 = vshrl.u32 %v8752, 16
        %v8755 = vand.u32 %v8751, 65535
        %v8756 = vshrl.u32 %v8751, 16
        %v8757 = vmul.u32 %v8753, %v8755
        %v8758 = vmul.u32 %v8753, %v8756
        %v8759 = vmul.u32 %v8754, %v8755
        %v8760 = vmul.u32 %v8754, %v8756
        %v8761 = vshll.u32 %v8758, 16
        %v8762 = vshrl.u32 %v8758, 16
        %v8763 = vshll.u32 %v8759, 16
        %v8764 = vshrl.u32 %v8759, 16
        %vm8765 = vc.u32 %v8757, %v8761
        %v8766 = vsel %vm8765, 1, 0
        %v8767 = vadd.s32 %v8757, %v8761
        %v8768 = vadd.s32 %v8760, %v8766
        %vm8769 = vc.u32 %v8767, %v8763
        %v8770 = vsel %vm8769, 1, 0
        %v8771 = vadd.s32 %v8767, %v8763
        %v8772 = vadd.s32 %v8768, %v8770
        %v8773 = vadd.s32 %v8772, %v8762
        %v8774 = vadd.s32 %v8773, %v8764
        %v8775 = vand.u32 %v8752, 65535
        %v8776 = vshrl.u32 %v8752, 16
        %v8777 = vand.u32 %v8747, 65535
        %v8778 = vshrl.u32 %v8747, 16
        %v8779 = vmul.u32 %v8775, %v8777
        %v8780 = vmul.u32 %v8775, %v8778
        %v8781 = vmul.u32 %v8776, %v8777
        %v8782 = vmul.u32 %v8776, %v8778
        %v8783 = vshll.u32 %v8780, 16
        %v8784 = vshrl.u32 %v8780, 16
        %v8785 = vshll.u32 %v8781, 16
        %v8786 = vshrl.u32 %v8781, 16
        %vm8787 = vc.u32 %v8779, %v8783
        %v8788 = vsel %vm8787, 1, 0
        %v8789 = vadd.s32 %v8779, %v8783
        %v8790 = vadd.s32 %v8782, %v8788
        %vm8791 = vc.u32 %v8789, %v8785
        %v8792 = vsel %vm8791, 1, 0
        %v8793 = vadd.s32 %v8789, %v8785
        %v8794 = vadd.s32 %v8790, %v8792
        %v8795 = vadd.s32 %v8794, %v8784
        %v8796 = vadd.s32 %v8795, %v8786
        %v8797 = vmul.u32 %v8752, %v8743
        %v8798 = vadd.s32 %v8774, %v8793
        %vm8799 = vc.u32 %v8774, %v8793
        %v8800 = vadd.s32 %v8796, 1
        %v8801 = vsel %vm8799, %v8800, %v8796
        %v8802 = vadd.s32 %v8797, %v8801
        %v8803 = vadd.s32 %v8802, 536870912
        %v8804 = vshrl.u32 %v8803, 30
        %v8805 = vshll.u32 %v8804, 30
        %v8806 = vsub.s32 %v8802, %v8805
        %vm8807 = vcmp.lt.s32.totalorder %v8806, 0
        %v8808 = vsub.s32 0, %v8806
        %v8809 = vsel %vm8807, %v8808, %v8806
        %v8810 = vclz %v8809
        %v8811 = vsub.s32 %v8810, 2
        %vm8812 = vcmp.gt.s32.totalorder 0, %v8811
        %v8813 = vsel %vm8812, 0, %v8811
        %v8814 = vsub.s32 32, %v8813
        %v8815 = vshll.u32 %v8806, %v8813
        %v8816 = vshrl.u32 %v8798, %v8814
        %v8817 = vor.u32 %v8815, %v8816
        %v8818 = vsub.s32 4294967266, %v8813
        %v8819 = vadd.s32 %v8818, 127
        %v8820 = vshll.u32 %v8819, 23
        %v8821 = vor.u32 4788187, %v8820
        %v8822 = vand.u32 2147483647, %v8821
        %v8824 = vcvt.s32.f32 %v8817
        %v8825 = vmul.f32 %v8824, %v8822
        %v8826 = vxor.u32 %v8825, 2147483648
        %v8827 = vsel %vm8706, %v8826, %v8825
        %v8828 = vsub.s32 4, %v8804
        %v8829 = vsel %vm8706, %v8828, %v8804
        %v8830 = vsel %vm8705, %v609, %v8827
        %v8831 = vsel %vm8705, 0, %v8829
        %v8832 = vmul.f32 %v8830, %v8830
        %v8833 = vmul.f32 %v8832, -0.001358992
        %v8834 = vadd.f32 %v8833, 0.041655596
        %v8835 = vmul.f32 %v8832, %v8834
        %v8836 = vadd.f32 %v8835, -0.4999988
        %v8837 = vmul.f32 %v8832, %v8836
        %v8838 = vadd.f32 1.0, %v8837
        %v8839 = vmul.f32 %v8830, %v8830
        %v8840 = vmul.f32 %v8839, -0.00019511016
        %v8841 = vadd.f32 %v8840, 0.008332121
        %v8842 = vmul.f32 %v8839, %v8841
        %v8843 = vadd.f32 %v8842, -0.16666654
        %v8844 = vmul.f32 %v8839, %v8843
        %v8845 = vadd.f32 %v8844, 1.0
        %v8846 = vmul.f32 %v8845, %v8830
        %vm8847 = vweird.f32 %v609
        %v8848 = vadd.s32 %v8831, 3
        %v8849 = vand.u32 %v8848, 3
        %vm8850 = vcmp.lt.s32.totalorder %v8849, 2
        %vm8851 = vcmp.eq.s32.totalorder %v8849, 0
        %v8852 = vxor.u32 %v8846, 2147483648
        %v8853 = vsel %vm8851, %v8838, %v8852
        %vm8854 = vcmp.eq.s32.totalorder %v8849, 2
        %v8855 = vxor.u32 %v8838, 2147483648
        %v8856 = vsel %vm8854, %v8855, %v8846
        %v8857 = vsel %vm8850, %v8853, %v8856
        %v8858 = vsel %vm8847, nan, %v8857
        %v8859 = vand.u32 2147483647, %v612
        %vm8860 = vcmp.le.f32.partialorder %v8859, 0.7853982
        %vm8861 = vcmp.lt.s32.totalorder %v612, 0
        %v8862 = vand.u32 %v612, 2139095040
        %v8863 = vshrl.u32 %v8862, 23
        %v8864 = vsub.s32 %v8863, 127
        %v8865 = vand.u32 2147483647, %v612
        %v8866 = vand.u32 %v8865, 8388607
        %v8867 = vor.u32 %v8866, 8388608
        %v8868 = vsub.s32 0, %v8867
        %v8869 = vadd.s32 %v8864, 1
        %vm8870 = vcmp.gt.s32.totalorder %v8869, 0
        %v8871 = vsel %vm8870, %v8869, 0
        %v8872 = vshrl.u32 %v8871, 5
        %v8873 = vand.u32 %v8871, 31
        %v8874 = vsub.s32 32, %v8873
        %v8875 = vshrl.u32 683565275, %v8874
        %v8876 = vshll.u32 683565275, %v8873
        %v8877 = vshrl.u32 2475754826, %v8874
        %v8878 = vor.u32 %v8876, %v8877
        %v8879 = vshll.u32 2475754826, %v8873
        %v8880 = vshrl.u32 2131351028, %v8874
        %v8881 = vor.u32 %v8879, %v8880
        %v8882 = vshll.u32 2131351028, %v8873
        %v8883 = vshrl.u32 2102212464, %v8874
        %v8884 = vor.u32 %v8882, %v8883
        %v8885 = vshll.u32 2102212464, %v8873
        %v8886 = vshrl.u32 920167782, %v8874
        %v8887 = vor.u32 %v8885, %v8886
        %v8888 = vshll.u32 920167782, %v8873
        %v8889 = vshrl.u32 1326507024, %v8874
        %v8890 = vor.u32 %v8888, %v8889
        %vm8891 = vcmp.lt.s32.totalorder %v8872, 1
        %vm8892 = vcmp.lt.s32.totalorder %v8872, 2
        %vm8893 = vcmp.lt.s32.totalorder %v8872, 3
        %vm8894 = vcmp.lt.s32.totalorder %v8872, 4
        %v8895 = vsel %vm8891, %v8875, %v8878
        %v8896 = vsel %vm8894, %v8884, 2102212464
        %v8897 = vsel %vm8893, %v8881, %v8896
        %v8898 = vsel %vm8892, %v8895, %v8897
        %v8899 = vsel %vm8891, %v8878, %v8881
        %v8900 = vsel %vm8894, %v8887, 920167782
        %v8901 = vsel %vm8893, %v8884, %v8900
        %v8902 = vsel %vm8892, %v8899, %v8901
        %v8903 = vsel %vm8891, %v8881, %v8884
        %v8904 = vsel %vm8894, %v8890, 1326507024
        %v8905 = vsel %vm8893, %v8887, %v8904
        %v8906 = vsel %vm8892, %v8903, %v8905
        %v8907 = vshll.u32 %v8867, 8
        %v8908 = vand.u32 %v8907, 65535
        %v8909 = vshrl.u32 %v8907, 16
        %v8910 = vand.u32 %v8906, 65535
        %v8911 = vshrl.u32 %v8906, 16
        %v8912 = vmul.u32 %v8908, %v8910
        %v8913 = vmul.u32 %v8908, %v8911
        %v8914 = vmul.u32 %v8909, %v8910
        %v8915 = vmul.u32 %v8909, %v8911
        %v8916 = vshll.u32 %v8913, 16
        %v8917 = vshrl.u32 %v8913, 16
        %v8918 = vshll.u32 %v8914, 16
        %v8919 = vshrl.u32 %v8914, 16
        %vm8920 = vc.u32 %v8912, %v8916
        %v8921 = vsel %vm8920, 1, 0
        %v8922 = vadd.s32 %v8912, %v8916
        %v8923 = vadd.s32 %v8915, %v8921
        %vm8924 = vc.u32 %v8922, %v8918
        %v8925 = vsel %vm8924, 1, 0
        %v8926 = vadd.s32 %v8922, %v8918
        %v8927 = vadd.s32 %v8923, %v8925
        %v8928 = vadd.s32 %v8927, %v8917
        %v8929 = vadd.s32 %v8928, %v8919
        %v8930 = vand.u32 %v8907, 65535
        %v8931 = vshrl.u32 %v8907, 16
        %v8932 = vand.u32 %v8902, 65535
        %v8933 = vshrl.u32 %v8902, 16
        %v8934 = vmul.u32 %v8930, %v8932
        %v8935 = vmul.u32 %v8930, %v8933
        %v8936 = vmul.u32 %v8931, %v8932
        %v8937 = vmul.u32 %v8931, %v8933
        %v8938 = vshll.u32 %v8935, 16
        %v8939 = vshrl.u32 %v8935, 16
        %v8940 = vshll.u32 %v8936, 16
        %v8941 = vshrl.u32 %v8936, 16
        %vm8942 = vc.u32 %v8934, %v8938
        %v8943 = vsel %vm8942, 1, 0
        %v8944 = vadd.s32 %v8934, %v8938
        %v8945 = vadd.s32 %v8937, %v8943
        %vm8946 = vc.u32 %v8944, %v8940
        %v8947 = vsel %vm8946, 1, 0
        %v8948 = vadd.s32 %v8944, %v8940
        %v8949 = vadd.s32 %v8945, %v8947
        %v8950 = vadd.s32 %v8949, %v8939
        %v8951 = vadd.s32 %v8950, %v8941
        %v8952 = vmul.u32 %v8907, %v8898
        %v8953 = vadd.s32 %v8929, %v8948
        %vm8954 = vc.u32 %v8929, %v8948
        %v8955 = vadd.s32 %v8951, 1
        %v8956 = vsel %vm8954, %v8955, %v8951
        %v8957 = vadd.s32 %v8952, %v8956
        %v8958 = vadd.s32 %v8957, 536870912
        %v8959 = vshrl.u32 %v8958, 30
        %v8960 = vshll.u32 %v8959, 30
        %v8961 = vsub.s32 %v8957, %v8960
        %vm8962 = vcmp.lt.s32.totalorder %v8961, 0
        %v8963 = vsub.s32 0, %v8961
        %v8964 = vsel %vm8962, %v8963, %v8961
        %v8965 = vclz %v8964
        %v8966 = vsub.s32 %v8965, 2
        %vm8967 = vcmp.gt.s32.totalorder 0, %v8966
        %v8968 = vsel %vm8967, 0, %v8966
        %v8969 = vsub.s32 32, %v8968
        %v8970 = vshll.u32 %v8961, %v8968
        %v8971 = vshrl.u32 %v8953, %v8969
        %v8972 = vor.u32 %v8970, %v8971
        %v8973 = vsub.s32 4294967266, %v8968
        %v8974 = vadd.s32 %v8973, 127
        %v8975 = vshll.u32 %v8974, 23
        %v8976 = vor.u32 4788187, %v8975
        %v8977 = vand.u32 2147483647, %v8976
        %v8979 = vcvt.s32.f32 %v8972
        %v8980 = vmul.f32 %v8979, %v8977
        %v8981 = vxor.u32 %v8980, 2147483648
        %v8982 = vsel %vm8861, %v8981, %v8980
        %v8983 = vsub.s32 4, %v8959
        %v8984 = vsel %vm8861, %v8983, %v8959
        %v8985 = vsel %vm8860, %v612, %v8982
        %v8986 = vsel %vm8860, 0, %v8984
        %v8987 = vmul.f32 %v8985, %v8985
        %v8988 = vmul.f32 %v8987, -0.001358992
        %v8989 = vadd.f32 %v8988, 0.041655596
        %v8990 = vmul.f32 %v8987, %v8989
        %v8991 = vadd.f32 %v8990, -0.4999988
        %v8992 = vmul.f32 %v8987, %v8991
        %v8993 = vadd.f32 1.0, %v8992
        %v8994 = vmul.f32 %v8985, %v8985
        %v8995 = vmul.f32 %v8994, -0.00019511016
        %v8996 = vadd.f32 %v8995, 0.008332121
        %v8997 = vmul.f32 %v8994, %v8996
        %v8998 = vadd.f32 %v8997, -0.16666654
        %v8999 = vmul.f32 %v8994, %v8998
        %v9000 = vadd.f32 %v8999, 1.0
        %v9001 = vmul.f32 %v9000, %v8985
        %vm9002 = vweird.f32 %v612
        %v9003 = vadd.s32 %v8986, 3
        %v9004 = vand.u32 %v9003, 3
        %vm9005 = vcmp.lt.s32.totalorder %v9004, 2
        %vm9006 = vcmp.eq.s32.totalorder %v9004, 0
        %v9007 = vxor.u32 %v9001, 2147483648
        %v9008 = vsel %vm9006, %v8993, %v9007
        %vm9009 = vcmp.eq.s32.totalorder %v9004, 2
        %v9010 = vxor.u32 %v8993, 2147483648
        %v9011 = vsel %vm9009, %v9010, %v9001
        %v9012 = vsel %vm9005, %v9008, %v9011
        %v9013 = vsel %vm9002, nan, %v9012
        %v9014 = vand.u32 2147483647, %v615
        %vm9015 = vcmp.le.f32.partialorder %v9014, 0.7853982
        %vm9016 = vcmp.lt.s32.totalorder %v615, 0
        %v9017 = vand.u32 %v615, 2139095040
        %v9018 = vshrl.u32 %v9017, 23
        %v9019 = vsub.s32 %v9018, 127
        %v9020 = vand.u32 2147483647, %v615
        %v9021 = vand.u32 %v9020, 8388607
        %v9022 = vor.u32 %v9021, 8388608
        %v9023 = vsub.s32 0, %v9022
        %v9024 = vadd.s32 %v9019, 1
        %vm9025 = vcmp.gt.s32.totalorder %v9024, 0
        %v9026 = vsel %vm9025, %v9024, 0
        %v9027 = vshrl.u32 %v9026, 5
        %v9028 = vand.u32 %v9026, 31
        %v9029 = vsub.s32 32, %v9028
        %v9030 = vshrl.u32 683565275, %v9029
        %v9031 = vshll.u32 683565275, %v9028
        %v9032 = vshrl.u32 2475754826, %v9029
        %v9033 = vor.u32 %v9031, %v9032
        %v9034 = vshll.u32 2475754826, %v9028
        %v9035 = vshrl.u32 2131351028, %v9029
        %v9036 = vor.u32 %v9034, %v9035
        %v9037 = vshll.u32 2131351028, %v9028
        %v9038 = vshrl.u32 2102212464, %v9029
        %v9039 = vor.u32 %v9037, %v9038
        %v9040 = vshll.u32 2102212464, %v9028
        %v9041 = vshrl.u32 920167782, %v9029
        %v9042 = vor.u32 %v9040, %v9041
        %v9043 = vshll.u32 920167782, %v9028
        %v9044 = vshrl.u32 1326507024, %v9029
        %v9045 = vor.u32 %v9043, %v9044
        %vm9046 = vcmp.lt.s32.totalorder %v9027, 1
        %vm9047 = vcmp.lt.s32.totalorder %v9027, 2
        %vm9048 = vcmp.lt.s32.totalorder %v9027, 3
        %vm9049 = vcmp.lt.s32.totalorder %v9027, 4
        %v9050 = vsel %vm9046, %v9030, %v9033
        %v9051 = vsel %vm9049, %v9039, 2102212464
        %v9052 = vsel %vm9048, %v9036, %v9051
        %v9053 = vsel %vm9047, %v9050, %v9052
        %v9054 = vsel %vm9046, %v9033, %v9036
        %v9055 = vsel %vm9049, %v9042, 920167782
        %v9056 = vsel %vm9048, %v9039, %v9055
        %v9057 = vsel %vm9047, %v9054, %v9056
        %v9058 = vsel %vm9046, %v9036, %v9039
        %v9059 = vsel %vm9049, %v9045, 1326507024
        %v9060 = vsel %vm9048, %v9042, %v9059
        %v9061 = vsel %vm9047, %v9058, %v9060
        %v9062 = vshll.u32 %v9022, 8
        %v9063 = vand.u32 %v9062, 65535
        %v9064 = vshrl.u32 %v9062, 16
        %v9065 = vand.u32 %v9061, 65535
        %v9066 = vshrl.u32 %v9061, 16
        %v9067 = vmul.u32 %v9063, %v9065
        %v9068 = vmul.u32 %v9063, %v9066
        %v9069 = vmul.u32 %v9064, %v9065
        %v9070 = vmul.u32 %v9064, %v9066
        %v9071 = vshll.u32 %v9068, 16
        %v9072 = vshrl.u32 %v9068, 16
        %v9073 = vshll.u32 %v9069, 16
        %v9074 = vshrl.u32 %v9069, 16
        %vm9075 = vc.u32 %v9067, %v9071
        %v9076 = vsel %vm9075, 1, 0
        %v9077 = vadd.s32 %v9067, %v9071
        %v9078 = vadd.s32 %v9070, %v9076
        %vm9079 = vc.u32 %v9077, %v9073
        %v9080 = vsel %vm9079, 1, 0
        %v9081 = vadd.s32 %v9077, %v9073
        %v9082 = vadd.s32 %v9078, %v9080
        %v9083 = vadd.s32 %v9082, %v9072
        %v9084 = vadd.s32 %v9083, %v9074
        %v9085 = vand.u32 %v9062, 65535
        %v9086 = vshrl.u32 %v9062, 16
        %v9087 = vand.u32 %v9057, 65535
        %v9088 = vshrl.u32 %v9057, 16
        %v9089 = vmul.u32 %v9085, %v9087
        %v9090 = vmul.u32 %v9085, %v9088
        %v9091 = vmul.u32 %v9086, %v9087
        %v9092 = vmul.u32 %v9086, %v9088
        %v9093 = vshll.u32 %v9090, 16
        %v9094 = vshrl.u32 %v9090, 16
        %v9095 = vshll.u32 %v9091, 16
        %v9096 = vshrl.u32 %v9091, 16
        %vm9097 = vc.u32 %v9089, %v9093
        %v9098 = vsel %vm9097, 1, 0
        %v9099 = vadd.s32 %v9089, %v9093
        %v9100 = vadd.s32 %v9092, %v9098
        %vm9101 = vc.u32 %v9099, %v9095
        %v9102 = vsel %vm9101, 1, 0
        %v9103 = vadd.s32 %v9099, %v9095
        %v9104 = vadd.s32 %v9100, %v9102
        %v9105 = vadd.s32 %v9104, %v9094
        %v9106 = vadd.s32 %v9105, %v9096
        %v9107 = vmul.u32 %v9062, %v9053
        %v9108 = vadd.s32 %v9084, %v9103
        %vm9109 = vc.u32 %v9084, %v9103
        %v9110 = vadd.s32 %v9106, 1
        %v9111 = vsel %vm9109, %v9110, %v9106
        %v9112 = vadd.s32 %v9107, %v9111
        %v9113 = vadd.s32 %v9112, 536870912
        %v9114 = vshrl.u32 %v9113, 30
        %v9115 = vshll.u32 %v9114, 30
        %v9116 = vsub.s32 %v9112, %v9115
        %vm9117 = vcmp.lt.s32.totalorder %v9116, 0
        %v9118 = vsub.s32 0, %v9116
        %v9119 = vsel %vm9117, %v9118, %v9116
        %v9120 = vclz %v9119
        %v9121 = vsub.s32 %v9120, 2
        %vm9122 = vcmp.gt.s32.totalorder 0, %v9121
        %v9123 = vsel %vm9122, 0, %v9121
        %v9124 = vsub.s32 32, %v9123
        %v9125 = vshll.u32 %v9116, %v9123
        %v9126 = vshrl.u32 %v9108, %v9124
        %v9127 = vor.u32 %v9125, %v9126
        %v9128 = vsub.s32 4294967266, %v9123
        %v9129 = vadd.s32 %v9128, 127
        %v9130 = vshll.u32 %v9129, 23
        %v9131 = vor.u32 4788187, %v9130
        %v9132 = vand.u32 2147483647, %v9131
        %v9134 = vcvt.s32.f32 %v9127
        %v9135 = vmul.f32 %v9134, %v9132
        %v9136 = vxor.u32 %v9135, 2147483648
        %v9137 = vsel %vm9016, %v9136, %v9135
        %v9138 = vsub.s32 4, %v9114
        %v9139 = vsel %vm9016, %v9138, %v9114
        %v9140 = vsel %vm9015, %v615, %v9137
        %v9141 = vsel %vm9015, 0, %v9139
        %v9142 = vmul.f32 %v9140, %v9140
        %v9143 = vmul.f32 %v9142, -0.001358992
        %v9144 = vadd.f32 %v9143, 0.041655596
        %v9145 = vmul.f32 %v9142, %v9144
        %v9146 = vadd.f32 %v9145, -0.4999988
        %v9147 = vmul.f32 %v9142, %v9146
        %v9148 = vadd.f32 1.0, %v9147
        %v9149 = vmul.f32 %v9140, %v9140
        %v9150 = vmul.f32 %v9149, -0.00019511016
        %v9151 = vadd.f32 %v9150, 0.008332121
        %v9152 = vmul.f32 %v9149, %v9151
        %v9153 = vadd.f32 %v9152, -0.16666654
        %v9154 = vmul.f32 %v9149, %v9153
        %v9155 = vadd.f32 %v9154, 1.0
        %v9156 = vmul.f32 %v9155, %v9140
        %vm9157 = vweird.f32 %v615
        %v9158 = vadd.s32 %v9141, 3
        %v9159 = vand.u32 %v9158, 3
        %vm9160 = vcmp.lt.s32.totalorder %v9159, 2
        %vm9161 = vcmp.eq.s32.totalorder %v9159, 0
        %v9162 = vxor.u32 %v9156, 2147483648
        %v9163 = vsel %vm9161, %v9148, %v9162
        %vm9164 = vcmp.eq.s32.totalorder %v9159, 2
        %v9165 = vxor.u32 %v9148, 2147483648
        %v9166 = vsel %vm9164, %v9165, %v9156
        %v9167 = vsel %vm9160, %v9163, %v9166
        %v9168 = vsel %vm9157, nan, %v9167
        %v9169 = vand.u32 2147483647, %v618
        %vm9170 = vcmp.le.f32.partialorder %v9169, 0.7853982
        %vm9171 = vcmp.lt.s32.totalorder %v618, 0
        %v9172 = vand.u32 %v618, 2139095040
        %v9173 = vshrl.u32 %v9172, 23
        %v9174 = vsub.s32 %v9173, 127
        %v9175 = vand.u32 2147483647, %v618
        %v9176 = vand.u32 %v9175, 8388607
        %v9177 = vor.u32 %v9176, 8388608
        %v9178 = vsub.s32 0, %v9177
        %v9179 = vadd.s32 %v9174, 1
        %vm9180 = vcmp.gt.s32.totalorder %v9179, 0
        %v9181 = vsel %vm9180, %v9179, 0
        %v9182 = vshrl.u32 %v9181, 5
        %v9183 = vand.u32 %v9181, 31
        %v9184 = vsub.s32 32, %v9183
        %v9185 = vshrl.u32 683565275, %v9184
        %v9186 = vshll.u32 683565275, %v9183
        %v9187 = vshrl.u32 2475754826, %v9184
        %v9188 = vor.u32 %v9186, %v9187
        %v9189 = vshll.u32 2475754826, %v9183
        %v9190 = vshrl.u32 2131351028, %v9184
        %v9191 = vor.u32 %v9189, %v9190
        %v9192 = vshll.u32 2131351028, %v9183
        %v9193 = vshrl.u32 2102212464, %v9184
        %v9194 = vor.u32 %v9192, %v9193
        %v9195 = vshll.u32 2102212464, %v9183
        %v9196 = vshrl.u32 920167782, %v9184
        %v9197 = vor.u32 %v9195, %v9196
        %v9198 = vshll.u32 920167782, %v9183
        %v9199 = vshrl.u32 1326507024, %v9184
        %v9200 = vor.u32 %v9198, %v9199
        %vm9201 = vcmp.lt.s32.totalorder %v9182, 1
        %vm9202 = vcmp.lt.s32.totalorder %v9182, 2
        %vm9203 = vcmp.lt.s32.totalorder %v9182, 3
        %vm9204 = vcmp.lt.s32.totalorder %v9182, 4
        %v9205 = vsel %vm9201, %v9185, %v9188
        %v9206 = vsel %vm9204, %v9194, 2102212464
        %v9207 = vsel %vm9203, %v9191, %v9206
        %v9208 = vsel %vm9202, %v9205, %v9207
        %v9209 = vsel %vm9201, %v9188, %v9191
        %v9210 = vsel %vm9204, %v9197, 920167782
        %v9211 = vsel %vm9203, %v9194, %v9210
        %v9212 = vsel %vm9202, %v9209, %v9211
        %v9213 = vsel %vm9201, %v9191, %v9194
        %v9214 = vsel %vm9204, %v9200, 1326507024
        %v9215 = vsel %vm9203, %v9197, %v9214
        %v9216 = vsel %vm9202, %v9213, %v9215
        %v9217 = vshll.u32 %v9177, 8
        %v9218 = vand.u32 %v9217, 65535
        %v9219 = vshrl.u32 %v9217, 16
        %v9220 = vand.u32 %v9216, 65535
        %v9221 = vshrl.u32 %v9216, 16
        %v9222 = vmul.u32 %v9218, %v9220
        %v9223 = vmul.u32 %v9218, %v9221
        %v9224 = vmul.u32 %v9219, %v9220
        %v9225 = vmul.u32 %v9219, %v9221
        %v9226 = vshll.u32 %v9223, 16
        %v9227 = vshrl.u32 %v9223, 16
        %v9228 = vshll.u32 %v9224, 16
        %v9229 = vshrl.u32 %v9224, 16
        %vm9230 = vc.u32 %v9222, %v9226
        %v9231 = vsel %vm9230, 1, 0
        %v9232 = vadd.s32 %v9222, %v9226
        %v9233 = vadd.s32 %v9225, %v9231
        %vm9234 = vc.u32 %v9232, %v9228
        %v9235 = vsel %vm9234, 1, 0
        %v9236 = vadd.s32 %v9232, %v9228
        %v9237 = vadd.s32 %v9233, %v9235
        %v9238 = vadd.s32 %v9237, %v9227
        %v9239 = vadd.s32 %v9238, %v9229
        %v9240 = vand.u32 %v9217, 65535
        %v9241 = vshrl.u32 %v9217, 16
        %v9242 = vand.u32 %v9212, 65535
        %v9243 = vshrl.u32 %v9212, 16
        %v9244 = vmul.u32 %v9240, %v9242
        %v9245 = vmul.u32 %v9240, %v9243
        %v9246 = vmul.u32 %v9241, %v9242
        %v9247 = vmul.u32 %v9241, %v9243
        %v9248 = vshll.u32 %v9245, 16
        %v9249 = vshrl.u32 %v9245, 16
        %v9250 = vshll.u32 %v9246, 16
        %v9251 = vshrl.u32 %v9246, 16
        %vm9252 = vc.u32 %v9244, %v9248
        %v9253 = vsel %vm9252, 1, 0
        %v9254 = vadd.s32 %v9244, %v9248
        %v9255 = vadd.s32 %v9247, %v9253
        %vm9256 = vc.u32 %v9254, %v9250
        %v9257 = vsel %vm9256, 1, 0
        %v9258 = vadd.s32 %v9254, %v9250
        %v9259 = vadd.s32 %v9255, %v9257
        %v9260 = vadd.s32 %v9259, %v9249
        %v9261 = vadd.s32 %v9260, %v9251
        %v9262 = vmul.u32 %v9217, %v9208
        %v9263 = vadd.s32 %v9239, %v9258
        %vm9264 = vc.u32 %v9239, %v9258
        %v9265 = vadd.s32 %v9261, 1
        %v9266 = vsel %vm9264, %v9265, %v9261
        %v9267 = vadd.s32 %v9262, %v9266
        %v9268 = vadd.s32 %v9267, 536870912
        %v9269 = vshrl.u32 %v9268, 30
        %v9270 = vshll.u32 %v9269, 30
        %v9271 = vsub.s32 %v9267, %v9270
        %vm9272 = vcmp.lt.s32.totalorder %v9271, 0
        %v9273 = vsub.s32 0, %v9271
        %v9274 = vsel %vm9272, %v9273, %v9271
        %v9275 = vclz %v9274
        %v9276 = vsub.s32 %v9275, 2
        %vm9277 = vcmp.gt.s32.totalorder 0, %v9276
        %v9278 = vsel %vm9277, 0, %v9276
        %v9279 = vsub.s32 32, %v9278
        %v9280 = vshll.u32 %v9271, %v9278
        %v9281 = vshrl.u32 %v9263, %v9279
        %v9282 = vor.u32 %v9280, %v9281
        %v9283 = vsub.s32 4294967266, %v9278
        %v9284 = vadd.s32 %v9283, 127
        %v9285 = vshll.u32 %v9284, 23
        %v9286 = vor.u32 4788187, %v9285
        %v9287 = vand.u32 2147483647, %v9286
        %v9289 = vcvt.s32.f32 %v9282
        %v9290 = vmul.f32 %v9289, %v9287
        %v9291 = vxor.u32 %v9290, 2147483648
        %v9292 = vsel %vm9171, %v9291, %v9290
        %v9293 = vsub.s32 4, %v9269
        %v9294 = vsel %vm9171, %v9293, %v9269
        %v9295 = vsel %vm9170, %v618, %v9292
        %v9296 = vsel %vm9170, 0, %v9294
        %v9297 = vmul.f32 %v9295, %v9295
        %v9298 = vmul.f32 %v9297, -0.001358992
        %v9299 = vadd.f32 %v9298, 0.041655596
        %v9300 = vmul.f32 %v9297, %v9299
        %v9301 = vadd.f32 %v9300, -0.4999988
        %v9302 = vmul.f32 %v9297, %v9301
        %v9303 = vadd.f32 1.0, %v9302
        %v9304 = vmul.f32 %v9295, %v9295
        %v9305 = vmul.f32 %v9304, -0.00019511016
        %v9306 = vadd.f32 %v9305, 0.008332121
        %v9307 = vmul.f32 %v9304, %v9306
        %v9308 = vadd.f32 %v9307, -0.16666654
        %v9309 = vmul.f32 %v9304, %v9308
        %v9310 = vadd.f32 %v9309, 1.0
        %v9311 = vmul.f32 %v9310, %v9295
        %vm9312 = vweird.f32 %v618
        %v9313 = vadd.s32 %v9296, 3
        %v9314 = vand.u32 %v9313, 3
        %vm9315 = vcmp.lt.s32.totalorder %v9314, 2
        %vm9316 = vcmp.eq.s32.totalorder %v9314, 0
        %v9317 = vxor.u32 %v9311, 2147483648
        %v9318 = vsel %vm9316, %v9303, %v9317
        %vm9319 = vcmp.eq.s32.totalorder %v9314, 2
        %v9320 = vxor.u32 %v9303, 2147483648
        %v9321 = vsel %vm9319, %v9320, %v9311
        %v9322 = vsel %vm9315, %v9318, %v9321
        %v9323 = vsel %vm9312, nan, %v9322
        %v9324 = vand.u32 2147483647, %v621
        %vm9325 = vcmp.le.f32.partialorder %v9324, 0.7853982
        %vm9326 = vcmp.lt.s32.totalorder %v621, 0
        %v9327 = vand.u32 %v621, 2139095040
        %v9328 = vshrl.u32 %v9327, 23
        %v9329 = vsub.s32 %v9328, 127
        %v9330 = vand.u32 2147483647, %v621
        %v9331 = vand.u32 %v9330, 8388607
        %v9332 = vor.u32 %v9331, 8388608
        %v9333 = vsub.s32 0, %v9332
        %v9334 = vadd.s32 %v9329, 1
        %vm9335 = vcmp.gt.s32.totalorder %v9334, 0
        %v9336 = vsel %vm9335, %v9334, 0
        %v9337 = vshrl.u32 %v9336, 5
        %v9338 = vand.u32 %v9336, 31
        %v9339 = vsub.s32 32, %v9338
        %v9340 = vshrl.u32 683565275, %v9339
        %v9341 = vshll.u32 683565275, %v9338
        %v9342 = vshrl.u32 2475754826, %v9339
        %v9343 = vor.u32 %v9341, %v9342
        %v9344 = vshll.u32 2475754826, %v9338
        %v9345 = vshrl.u32 2131351028, %v9339
        %v9346 = vor.u32 %v9344, %v9345
        %v9347 = vshll.u32 2131351028, %v9338
        %v9348 = vshrl.u32 2102212464, %v9339
        %v9349 = vor.u32 %v9347, %v9348
        %v9350 = vshll.u32 2102212464, %v9338
        %v9351 = vshrl.u32 920167782, %v9339
        %v9352 = vor.u32 %v9350, %v9351
        %v9353 = vshll.u32 920167782, %v9338
        %v9354 = vshrl.u32 1326507024, %v9339
        %v9355 = vor.u32 %v9353, %v9354
        %vm9356 = vcmp.lt.s32.totalorder %v9337, 1
        %vm9357 = vcmp.lt.s32.totalorder %v9337, 2
        %vm9358 = vcmp.lt.s32.totalorder %v9337, 3
        %vm9359 = vcmp.lt.s32.totalorder %v9337, 4
        %v9360 = vsel %vm9356, %v9340, %v9343
        %v9361 = vsel %vm9359, %v9349, 2102212464
        %v9362 = vsel %vm9358, %v9346, %v9361
        %v9363 = vsel %vm9357, %v9360, %v9362
        %v9364 = vsel %vm9356, %v9343, %v9346
        %v9365 = vsel %vm9359, %v9352, 920167782
        %v9366 = vsel %vm9358, %v9349, %v9365
        %v9367 = vsel %vm9357, %v9364, %v9366
        %v9368 = vsel %vm9356, %v9346, %v9349
        %v9369 = vsel %vm9359, %v9355, 1326507024
        %v9370 = vsel %vm9358, %v9352, %v9369
        %v9371 = vsel %vm9357, %v9368, %v9370
        %v9372 = vshll.u32 %v9332, 8
        %v9373 = vand.u32 %v9372, 65535
        %v9374 = vshrl.u32 %v9372, 16
        %v9375 = vand.u32 %v9371, 65535
        %v9376 = vshrl.u32 %v9371, 16
        %v9377 = vmul.u32 %v9373, %v9375
        %v9378 = vmul.u32 %v9373, %v9376
        %v9379 = vmul.u32 %v9374, %v9375
        %v9380 = vmul.u32 %v9374, %v9376
        %v9381 = vshll.u32 %v9378, 16
        %v9382 = vshrl.u32 %v9378, 16
        %v9383 = vshll.u32 %v9379, 16
        %v9384 = vshrl.u32 %v9379, 16
        %vm9385 = vc.u32 %v9377, %v9381
        %v9386 = vsel %vm9385, 1, 0
        %v9387 = vadd.s32 %v9377, %v9381
        %v9388 = vadd.s32 %v9380, %v9386
        %vm9389 = vc.u32 %v9387, %v9383
        %v9390 = vsel %vm9389, 1, 0
        %v9391 = vadd.s32 %v9387, %v9383
        %v9392 = vadd.s32 %v9388, %v9390
        %v9393 = vadd.s32 %v9392, %v9382
        %v9394 = vadd.s32 %v9393, %v9384
        %v9395 = vand.u32 %v9372, 65535
        %v9396 = vshrl.u32 %v9372, 16
        %v9397 = vand.u32 %v9367, 65535
        %v9398 = vshrl.u32 %v9367, 16
        %v9399 = vmul.u32 %v9395, %v9397
        %v9400 = vmul.u32 %v9395, %v9398
        %v9401 = vmul.u32 %v9396, %v9397
        %v9402 = vmul.u32 %v9396, %v9398
        %v9403 = vshll.u32 %v9400, 16
        %v9404 = vshrl.u32 %v9400, 16
        %v9405 = vshll.u32 %v9401, 16
        %v9406 = vshrl.u32 %v9401, 16
        %vm9407 = vc.u32 %v9399, %v9403
        %v9408 = vsel %vm9407, 1, 0
        %v9409 = vadd.s32 %v9399, %v9403
        %v9410 = vadd.s32 %v9402, %v9408
        %vm9411 = vc.u32 %v9409, %v9405
        %v9412 = vsel %vm9411, 1, 0
        %v9413 = vadd.s32 %v9409, %v9405
        %v9414 = vadd.s32 %v9410, %v9412
        %v9415 = vadd.s32 %v9414, %v9404
        %v9416 = vadd.s32 %v9415, %v9406
        %v9417 = vmul.u32 %v9372, %v9363
        %v9418 = vadd.s32 %v9394, %v9413
        %vm9419 = vc.u32 %v9394, %v9413
        %v9420 = vadd.s32 %v9416, 1
        %v9421 = vsel %vm9419, %v9420, %v9416
        %v9422 = vadd.s32 %v9417, %v9421
        %v9423 = vadd.s32 %v9422, 536870912
        %v9424 = vshrl.u32 %v9423, 30
        %v9425 = vshll.u32 %v9424, 30
        %v9426 = vsub.s32 %v9422, %v9425
        %vm9427 = vcmp.lt.s32.totalorder %v9426, 0
        %v9428 = vsub.s32 0, %v9426
        %v9429 = vsel %vm9427, %v9428, %v9426
        %v9430 = vclz %v9429
        %v9431 = vsub.s32 %v9430, 2
        %vm9432 = vcmp.gt.s32.totalorder 0, %v9431
        %v9433 = vsel %vm9432, 0, %v9431
        %v9434 = vsub.s32 32, %v9433
        %v9435 = vshll.u32 %v9426, %v9433
        %v9436 = vshrl.u32 %v9418, %v9434
        %v9437 = vor.u32 %v9435, %v9436
        %v9438 = vsub.s32 4294967266, %v9433
        %v9439 = vadd.s32 %v9438, 127
        %v9440 = vshll.u32 %v9439, 23
        %v9441 = vor.u32 4788187, %v9440
        %v9442 = vand.u32 2147483647, %v9441
        %v9444 = vcvt.s32.f32 %v9437
        %v9445 = vmul.f32 %v9444, %v9442
        %v9446 = vxor.u32 %v9445, 2147483648
        %v9447 = vsel %vm9326, %v9446, %v9445
        %v9448 = vsub.s32 4, %v9424
        %v9449 = vsel %vm9326, %v9448, %v9424
        %v9450 = vsel %vm9325, %v621, %v9447
        %v9451 = vsel %vm9325, 0, %v9449
        %v9452 = vmul.f32 %v9450, %v9450
        %v9453 = vmul.f32 %v9452, -0.001358992
        %v9454 = vadd.f32 %v9453, 0.041655596
        %v9455 = vmul.f32 %v9452, %v9454
        %v9456 = vadd.f32 %v9455, -0.4999988
        %v9457 = vmul.f32 %v9452, %v9456
        %v9458 = vadd.f32 1.0, %v9457
        %v9459 = vmul.f32 %v9450, %v9450
        %v9460 = vmul.f32 %v9459, -0.00019511016
        %v9461 = vadd.f32 %v9460, 0.008332121
        %v9462 = vmul.f32 %v9459, %v9461
        %v9463 = vadd.f32 %v9462, -0.16666654
        %v9464 = vmul.f32 %v9459, %v9463
        %v9465 = vadd.f32 %v9464, 1.0
        %v9466 = vmul.f32 %v9465, %v9450
        %vm9467 = vweird.f32 %v621
        %v9468 = vadd.s32 %v9451, 3
        %v9469 = vand.u32 %v9468, 3
        %vm9470 = vcmp.lt.s32.totalorder %v9469, 2
        %vm9471 = vcmp.eq.s32.totalorder %v9469, 0
        %v9472 = vxor.u32 %v9466, 2147483648
        %v9473 = vsel %vm9471, %v9458, %v9472
        %vm9474 = vcmp.eq.s32.totalorder %v9469, 2
        %v9475 = vxor.u32 %v9458, 2147483648
        %v9476 = vsel %vm9474, %v9475, %v9466
        %v9477 = vsel %vm9470, %v9473, %v9476
        %v9478 = vsel %vm9467, nan, %v9477
        %v9479 = vand.u32 2147483647, %v624
        %vm9480 = vcmp.le.f32.partialorder %v9479, 0.7853982
        %vm9481 = vcmp.lt.s32.totalorder %v624, 0
        %v9482 = vand.u32 %v624, 2139095040
        %v9483 = vshrl.u32 %v9482, 23
        %v9484 = vsub.s32 %v9483, 127
        %v9485 = vand.u32 2147483647, %v624
        %v9486 = vand.u32 %v9485, 8388607
        %v9487 = vor.u32 %v9486, 8388608
        %v9488 = vsub.s32 0, %v9487
        %v9489 = vadd.s32 %v9484, 1
        %vm9490 = vcmp.gt.s32.totalorder %v9489, 0
        %v9491 = vsel %vm9490, %v9489, 0
        %v9492 = vshrl.u32 %v9491, 5
        %v9493 = vand.u32 %v9491, 31
        %v9494 = vsub.s32 32, %v9493
        %v9495 = vshrl.u32 683565275, %v9494
        %v9496 = vshll.u32 683565275, %v9493
        %v9497 = vshrl.u32 2475754826, %v9494
        %v9498 = vor.u32 %v9496, %v9497
        %v9499 = vshll.u32 2475754826, %v9493
        %v9500 = vshrl.u32 2131351028, %v9494
        %v9501 = vor.u32 %v9499, %v9500
        %v9502 = vshll.u32 2131351028, %v9493
        %v9503 = vshrl.u32 2102212464, %v9494
        %v9504 = vor.u32 %v9502, %v9503
        %v9505 = vshll.u32 2102212464, %v9493
        %v9506 = vshrl.u32 920167782, %v9494
        %v9507 = vor.u32 %v9505, %v9506
        %v9508 = vshll.u32 920167782, %v9493
        %v9509 = vshrl.u32 1326507024, %v9494
        %v9510 = vor.u32 %v9508, %v9509
        %vm9511 = vcmp.lt.s32.totalorder %v9492, 1
        %vm9512 = vcmp.lt.s32.totalorder %v9492, 2
        %vm9513 = vcmp.lt.s32.totalorder %v9492, 3
        %vm9514 = vcmp.lt.s32.totalorder %v9492, 4
        %v9515 = vsel %vm9511, %v9495, %v9498
        %v9516 = vsel %vm9514, %v9504, 2102212464
        %v9517 = vsel %vm9513, %v9501, %v9516
        %v9518 = vsel %vm9512, %v9515, %v9517
        %v9519 = vsel %vm9511, %v9498, %v9501
        %v9520 = vsel %vm9514, %v9507, 920167782
        %v9521 = vsel %vm9513, %v9504, %v9520
        %v9522 = vsel %vm9512, %v9519, %v9521
        %v9523 = vsel %vm9511, %v9501, %v9504
        %v9524 = vsel %vm9514, %v9510, 1326507024
        %v9525 = vsel %vm9513, %v9507, %v9524
        %v9526 = vsel %vm9512, %v9523, %v9525
        %v9527 = vshll.u32 %v9487, 8
        %v9528 = vand.u32 %v9527, 65535
        %v9529 = vshrl.u32 %v9527, 16
        %v9530 = vand.u32 %v9526, 65535
        %v9531 = vshrl.u32 %v9526, 16
        %v9532 = vmul.u32 %v9528, %v9530
        %v9533 = vmul.u32 %v9528, %v9531
        %v9534 = vmul.u32 %v9529, %v9530
        %v9535 = vmul.u32 %v9529, %v9531
        %v9536 = vshll.u32 %v9533, 16
        %v9537 = vshrl.u32 %v9533, 16
        %v9538 = vshll.u32 %v9534, 16
        %v9539 = vshrl.u32 %v9534, 16
        %vm9540 = vc.u32 %v9532, %v9536
        %v9541 = vsel %vm9540, 1, 0
        %v9542 = vadd.s32 %v9532, %v9536
        %v9543 = vadd.s32 %v9535, %v9541
        %vm9544 = vc.u32 %v9542, %v9538
        %v9545 = vsel %vm9544, 1, 0
        %v9546 = vadd.s32 %v9542, %v9538
        %v9547 = vadd.s32 %v9543, %v9545
        %v9548 = vadd.s32 %v9547, %v9537
        %v9549 = vadd.s32 %v9548, %v9539
        %v9550 = vand.u32 %v9527, 65535
        %v9551 = vshrl.u32 %v9527, 16
        %v9552 = vand.u32 %v9522, 65535
        %v9553 = vshrl.u32 %v9522, 16
        %v9554 = vmul.u32 %v9550, %v9552
        %v9555 = vmul.u32 %v9550, %v9553
        %v9556 = vmul.u32 %v9551, %v9552
        %v9557 = vmul.u32 %v9551, %v9553
        %v9558 = vshll.u32 %v9555, 16
        %v9559 = vshrl.u32 %v9555, 16
        %v9560 = vshll.u32 %v9556, 16
        %v9561 = vshrl.u32 %v9556, 16
        %vm9562 = vc.u32 %v9554, %v9558
        %v9563 = vsel %vm9562, 1, 0
        %v9564 = vadd.s32 %v9554, %v9558
        %v9565 = vadd.s32 %v9557, %v9563
        %vm9566 = vc.u32 %v9564, %v9560
        %v9567 = vsel %vm9566, 1, 0
        %v9568 = vadd.s32 %v9564, %v9560
        %v9569 = vadd.s32 %v9565, %v9567
        %v9570 = vadd.s32 %v9569, %v9559
        %v9571 = vadd.s32 %v9570, %v9561
        %v9572 = vmul.u32 %v9527, %v9518
        %v9573 = vadd.s32 %v9549, %v9568
        %vm9574 = vc.u32 %v9549, %v9568
        %v9575 = vadd.s32 %v9571, 1
        %v9576 = vsel %vm9574, %v9575, %v9571
        %v9577 = vadd.s32 %v9572, %v9576
        %v9578 = vadd.s32 %v9577, 536870912
        %v9579 = vshrl.u32 %v9578, 30
        %v9580 = vshll.u32 %v9579, 30
        %v9581 = vsub.s32 %v9577, %v9580
        %vm9582 = vcmp.lt.s32.totalorder %v9581, 0
        %v9583 = vsub.s32 0, %v9581
        %v9584 = vsel %vm9582, %v9583, %v9581
        %v9585 = vclz %v9584
        %v9586 = vsub.s32 %v9585, 2
        %vm9587 = vcmp.gt.s32.totalorder 0, %v9586
        %v9588 = vsel %vm9587, 0, %v9586
        %v9589 = vsub.s32 32, %v9588
        %v9590 = vshll.u32 %v9581, %v9588
        %v9591 = vshrl.u32 %v9573, %v9589
        %v9592 = vor.u32 %v9590, %v9591
        %v9593 = vsub.s32 4294967266, %v9588
        %v9594 = vadd.s32 %v9593, 127
        %v9595 = vshll.u32 %v9594, 23
        %v9596 = vor.u32 4788187, %v9595
        %v9597 = vand.u32 2147483647, %v9596
        %v9599 = vcvt.s32.f32 %v9592
        %v9600 = vmul.f32 %v9599, %v9597
        %v9601 = vxor.u32 %v9600, 2147483648
        %v9602 = vsel %vm9481, %v9601, %v9600
        %v9603 = vsub.s32 4, %v9579
        %v9604 = vsel %vm9481, %v9603, %v9579
        %v9605 = vsel %vm9480, %v624, %v9602
        %v9606 = vsel %vm9480, 0, %v9604
        %v9607 = vmul.f32 %v9605, %v9605
        %v9608 = vmul.f32 %v9607, -0.001358992
        %v9609 = vadd.f32 %v9608, 0.041655596
        %v9610 = vmul.f32 %v9607, %v9609
        %v9611 = vadd.f32 %v9610, -0.4999988
        %v9612 = vmul.f32 %v9607, %v9611
        %v9613 = vadd.f32 1.0, %v9612
        %v9614 = vmul.f32 %v9605, %v9605
        %v9615 = vmul.f32 %v9614, -0.00019511016
        %v9616 = vadd.f32 %v9615, 0.008332121
        %v9617 = vmul.f32 %v9614, %v9616
        %v9618 = vadd.f32 %v9617, -0.16666654
        %v9619 = vmul.f32 %v9614, %v9618
        %v9620 = vadd.f32 %v9619, 1.0
        %v9621 = vmul.f32 %v9620, %v9605
        %vm9622 = vweird.f32 %v624
        %v9623 = vadd.s32 %v9606, 3
        %v9624 = vand.u32 %v9623, 3
        %vm9625 = vcmp.lt.s32.totalorder %v9624, 2
        %vm9626 = vcmp.eq.s32.totalorder %v9624, 0
        %v9627 = vxor.u32 %v9621, 2147483648
        %v9628 = vsel %vm9626, %v9613, %v9627
        %vm9629 = vcmp.eq.s32.totalorder %v9624, 2
        %v9630 = vxor.u32 %v9613, 2147483648
        %v9631 = vsel %vm9629, %v9630, %v9621
        %v9632 = vsel %vm9625, %v9628, %v9631
        %v9633 = vsel %vm9622, nan, %v9632
        %v9634 = vand.u32 2147483647, %v627
        %vm9635 = vcmp.le.f32.partialorder %v9634, 0.7853982
        %vm9636 = vcmp.lt.s32.totalorder %v627, 0
        %v9637 = vand.u32 %v627, 2139095040
        %v9638 = vshrl.u32 %v9637, 23
        %v9639 = vsub.s32 %v9638, 127
        %v9640 = vand.u32 2147483647, %v627
        %v9641 = vand.u32 %v9640, 8388607
        %v9642 = vor.u32 %v9641, 8388608
        %v9643 = vsub.s32 0, %v9642
        %v9644 = vadd.s32 %v9639, 1
        %vm9645 = vcmp.gt.s32.totalorder %v9644, 0
        %v9646 = vsel %vm9645, %v9644, 0
        %v9647 = vshrl.u32 %v9646, 5
        %v9648 = vand.u32 %v9646, 31
        %v9649 = vsub.s32 32, %v9648
        %v9650 = vshrl.u32 683565275, %v9649
        %v9651 = vshll.u32 683565275, %v9648
        %v9652 = vshrl.u32 2475754826, %v9649
        %v9653 = vor.u32 %v9651, %v9652
        %v9654 = vshll.u32 2475754826, %v9648
        %v9655 = vshrl.u32 2131351028, %v9649
        %v9656 = vor.u32 %v9654, %v9655
        %v9657 = vshll.u32 2131351028, %v9648
        %v9658 = vshrl.u32 2102212464, %v9649
        %v9659 = vor.u32 %v9657, %v9658
        %v9660 = vshll.u32 2102212464, %v9648
        %v9661 = vshrl.u32 920167782, %v9649
        %v9662 = vor.u32 %v9660, %v9661
        %v9663 = vshll.u32 920167782, %v9648
        %v9664 = vshrl.u32 1326507024, %v9649
        %v9665 = vor.u32 %v9663, %v9664
        %vm9666 = vcmp.lt.s32.totalorder %v9647, 1
        %vm9667 = vcmp.lt.s32.totalorder %v9647, 2
        %vm9668 = vcmp.lt.s32.totalorder %v9647, 3
        %vm9669 = vcmp.lt.s32.totalorder %v9647, 4
        %v9670 = vsel %vm9666, %v9650, %v9653
        %v9671 = vsel %vm9669, %v9659, 2102212464
        %v9672 = vsel %vm9668, %v9656, %v9671
        %v9673 = vsel %vm9667, %v9670, %v9672
        %v9674 = vsel %vm9666, %v9653, %v9656
        %v9675 = vsel %vm9669, %v9662, 920167782
        %v9676 = vsel %vm9668, %v9659, %v9675
        %v9677 = vsel %vm9667, %v9674, %v9676
        %v9678 = vsel %vm9666, %v9656, %v9659
        %v9679 = vsel %vm9669, %v9665, 1326507024
        %v9680 = vsel %vm9668, %v9662, %v9679
        %v9681 = vsel %vm9667, %v9678, %v9680
        %v9682 = vshll.u32 %v9642, 8
        %v9683 = vand.u32 %v9682, 65535
        %v9684 = vshrl.u32 %v9682, 16
        %v9685 = vand.u32 %v9681, 65535
        %v9686 = vshrl.u32 %v9681, 16
        %v9687 = vmul.u32 %v9683, %v9685
        %v9688 = vmul.u32 %v9683, %v9686
        %v9689 = vmul.u32 %v9684, %v9685
        %v9690 = vmul.u32 %v9684, %v9686
        %v9691 = vshll.u32 %v9688, 16
        %v9692 = vshrl.u32 %v9688, 16
        %v9693 = vshll.u32 %v9689, 16
        %v9694 = vshrl.u32 %v9689, 16
        %vm9695 = vc.u32 %v9687, %v9691
        %v9696 = vsel %vm9695, 1, 0
        %v9697 = vadd.s32 %v9687, %v9691
        %v9698 = vadd.s32 %v9690, %v9696
        %vm9699 = vc.u32 %v9697, %v9693
        %v9700 = vsel %vm9699, 1, 0
        %v9701 = vadd.s32 %v9697, %v9693
        %v9702 = vadd.s32 %v9698, %v9700
        %v9703 = vadd.s32 %v9702, %v9692
        %v9704 = vadd.s32 %v9703, %v9694
        %v9705 = vand.u32 %v9682, 65535
        %v9706 = vshrl.u32 %v9682, 16
        %v9707 = vand.u32 %v9677, 65535
        %v9708 = vshrl.u32 %v9677, 16
        %v9709 = vmul.u32 %v9705, %v9707
        %v9710 = vmul.u32 %v9705, %v9708
        %v9711 = vmul.u32 %v9706, %v9707
        %v9712 = vmul.u32 %v9706, %v9708
        %v9713 = vshll.u32 %v9710, 16
        %v9714 = vshrl.u32 %v9710, 16
        %v9715 = vshll.u32 %v9711, 16
        %v9716 = vshrl.u32 %v9711, 16
        %vm9717 = vc.u32 %v9709, %v9713
        %v9718 = vsel %vm9717, 1, 0
        %v9719 = vadd.s32 %v9709, %v9713
        %v9720 = vadd.s32 %v9712, %v9718
        %vm9721 = vc.u32 %v9719, %v9715
        %v9722 = vsel %vm9721, 1, 0
        %v9723 = vadd.s32 %v9719, %v9715
        %v9724 = vadd.s32 %v9720, %v9722
        %v9725 = vadd.s32 %v9724, %v9714
        %v9726 = vadd.s32 %v9725, %v9716
        %v9727 = vmul.u32 %v9682, %v9673
        %v9728 = vadd.s32 %v9704, %v9723
        %vm9729 = vc.u32 %v9704, %v9723
        %v9730 = vadd.s32 %v9726, 1
        %v9731 = vsel %vm9729, %v9730, %v9726
        %v9732 = vadd.s32 %v9727, %v9731
        %v9733 = vadd.s32 %v9732, 536870912
        %v9734 = vshrl.u32 %v9733, 30
        %v9735 = vshll.u32 %v9734, 30
        %v9736 = vsub.s32 %v9732, %v9735
        %vm9737 = vcmp.lt.s32.totalorder %v9736, 0
        %v9738 = vsub.s32 0, %v9736
        %v9739 = vsel %vm9737, %v9738, %v9736
        %v9740 = vclz %v9739
        %v9741 = vsub.s32 %v9740, 2
        %vm9742 = vcmp.gt.s32.totalorder 0, %v9741
        %v9743 = vsel %vm9742, 0, %v9741
        %v9744 = vsub.s32 32, %v9743
        %v9745 = vshll.u32 %v9736, %v9743
        %v9746 = vshrl.u32 %v9728, %v9744
        %v9747 = vor.u32 %v9745, %v9746
        %v9748 = vsub.s32 4294967266, %v9743
        %v9749 = vadd.s32 %v9748, 127
        %v9750 = vshll.u32 %v9749, 23
        %v9751 = vor.u32 4788187, %v9750
        %v9752 = vand.u32 2147483647, %v9751
        %v9754 = vcvt.s32.f32 %v9747
        %v9755 = vmul.f32 %v9754, %v9752
        %v9756 = vxor.u32 %v9755, 2147483648
        %v9757 = vsel %vm9636, %v9756, %v9755
        %v9758 = vsub.s32 4, %v9734
        %v9759 = vsel %vm9636, %v9758, %v9734
        %v9760 = vsel %vm9635, %v627, %v9757
        %v9761 = vsel %vm9635, 0, %v9759
        %v9762 = vmul.f32 %v9760, %v9760
        %v9763 = vmul.f32 %v9762, -0.001358992
        %v9764 = vadd.f32 %v9763, 0.041655596
        %v9765 = vmul.f32 %v9762, %v9764
        %v9766 = vadd.f32 %v9765, -0.4999988
        %v9767 = vmul.f32 %v9762, %v9766
        %v9768 = vadd.f32 1.0, %v9767
        %v9769 = vmul.f32 %v9760, %v9760
        %v9770 = vmul.f32 %v9769, -0.00019511016
        %v9771 = vadd.f32 %v9770, 0.008332121
        %v9772 = vmul.f32 %v9769, %v9771
        %v9773 = vadd.f32 %v9772, -0.16666654
        %v9774 = vmul.f32 %v9769, %v9773
        %v9775 = vadd.f32 %v9774, 1.0
        %v9776 = vmul.f32 %v9775, %v9760
        %vm9777 = vweird.f32 %v627
        %v9778 = vadd.s32 %v9761, 3
        %v9779 = vand.u32 %v9778, 3
        %vm9780 = vcmp.lt.s32.totalorder %v9779, 2
        %vm9781 = vcmp.eq.s32.totalorder %v9779, 0
        %v9782 = vxor.u32 %v9776, 2147483648
        %v9783 = vsel %vm9781, %v9768, %v9782
        %vm9784 = vcmp.eq.s32.totalorder %v9779, 2
        %v9785 = vxor.u32 %v9768, 2147483648
        %v9786 = vsel %vm9784, %v9785, %v9776
        %v9787 = vsel %vm9780, %v9783, %v9786
        %v9788 = vsel %vm9777, nan, %v9787
        %v9789 = vand.u32 2147483647, %v630
        %vm9790 = vcmp.le.f32.partialorder %v9789, 0.7853982
        %vm9791 = vcmp.lt.s32.totalorder %v630, 0
        %v9792 = vand.u32 %v630, 2139095040
        %v9793 = vshrl.u32 %v9792, 23
        %v9794 = vsub.s32 %v9793, 127
        %v9795 = vand.u32 2147483647, %v630
        %v9796 = vand.u32 %v9795, 8388607
        %v9797 = vor.u32 %v9796, 8388608
        %v9798 = vsub.s32 0, %v9797
        %v9799 = vadd.s32 %v9794, 1
        %vm9800 = vcmp.gt.s32.totalorder %v9799, 0
        %v9801 = vsel %vm9800, %v9799, 0
        %v9802 = vshrl.u32 %v9801, 5
        %v9803 = vand.u32 %v9801, 31
        %v9804 = vsub.s32 32, %v9803
        %v9805 = vshrl.u32 683565275, %v9804
        %v9806 = vshll.u32 683565275, %v9803
        %v9807 = vshrl.u32 2475754826, %v9804
        %v9808 = vor.u32 %v9806, %v9807
        %v9809 = vshll.u32 2475754826, %v9803
        %v9810 = vshrl.u32 2131351028, %v9804
        %v9811 = vor.u32 %v9809, %v9810
        %v9812 = vshll.u32 2131351028, %v9803
        %v9813 = vshrl.u32 2102212464, %v9804
        %v9814 = vor.u32 %v9812, %v9813
        %v9815 = vshll.u32 2102212464, %v9803
        %v9816 = vshrl.u32 920167782, %v9804
        %v9817 = vor.u32 %v9815, %v9816
        %v9818 = vshll.u32 920167782, %v9803
        %v9819 = vshrl.u32 1326507024, %v9804
        %v9820 = vor.u32 %v9818, %v9819
        %vm9821 = vcmp.lt.s32.totalorder %v9802, 1
        %vm9822 = vcmp.lt.s32.totalorder %v9802, 2
        %vm9823 = vcmp.lt.s32.totalorder %v9802, 3
        %vm9824 = vcmp.lt.s32.totalorder %v9802, 4
        %v9825 = vsel %vm9821, %v9805, %v9808
        %v9826 = vsel %vm9824, %v9814, 2102212464
        %v9827 = vsel %vm9823, %v9811, %v9826
        %v9828 = vsel %vm9822, %v9825, %v9827
        %v9829 = vsel %vm9821, %v9808, %v9811
        %v9830 = vsel %vm9824, %v9817, 920167782
        %v9831 = vsel %vm9823, %v9814, %v9830
        %v9832 = vsel %vm9822, %v9829, %v9831
        %v9833 = vsel %vm9821, %v9811, %v9814
        %v9834 = vsel %vm9824, %v9820, 1326507024
        %v9835 = vsel %vm9823, %v9817, %v9834
        %v9836 = vsel %vm9822, %v9833, %v9835
        %v9837 = vshll.u32 %v9797, 8
        %v9838 = vand.u32 %v9837, 65535
        %v9839 = vshrl.u32 %v9837, 16
        %v9840 = vand.u32 %v9836, 65535
        %v9841 = vshrl.u32 %v9836, 16
        %v9842 = vmul.u32 %v9838, %v9840
        %v9843 = vmul.u32 %v9838, %v9841
        %v9844 = vmul.u32 %v9839, %v9840
        %v9845 = vmul.u32 %v9839, %v9841
        %v9846 = vshll.u32 %v9843, 16
        %v9847 = vshrl.u32 %v9843, 16
        %v9848 = vshll.u32 %v9844, 16
        %v9849 = vshrl.u32 %v9844, 16
        %vm9850 = vc.u32 %v9842, %v9846
        %v9851 = vsel %vm9850, 1, 0
        %v9852 = vadd.s32 %v9842, %v9846
        %v9853 = vadd.s32 %v9845, %v9851
        %vm9854 = vc.u32 %v9852, %v9848
        %v9855 = vsel %vm9854, 1, 0
        %v9856 = vadd.s32 %v9852, %v9848
        %v9857 = vadd.s32 %v9853, %v9855
        %v9858 = vadd.s32 %v9857, %v9847
        %v9859 = vadd.s32 %v9858, %v9849
        %v9860 = vand.u32 %v9837, 65535
        %v9861 = vshrl.u32 %v9837, 16
        %v9862 = vand.u32 %v9832, 65535
        %v9863 = vshrl.u32 %v9832, 16
        %v9864 = vmul.u32 %v9860, %v9862
        %v9865 = vmul.u32 %v9860, %v9863
        %v9866 = vmul.u32 %v9861, %v9862
        %v9867 = vmul.u32 %v9861, %v9863
        %v9868 = vshll.u32 %v9865, 16
        %v9869 = vshrl.u32 %v9865, 16
        %v9870 = vshll.u32 %v9866, 16
        %v9871 = vshrl.u32 %v9866, 16
        %vm9872 = vc.u32 %v9864, %v9868
        %v9873 = vsel %vm9872, 1, 0
        %v9874 = vadd.s32 %v9864, %v9868
        %v9875 = vadd.s32 %v9867, %v9873
        %vm9876 = vc.u32 %v9874, %v9870
        %v9877 = vsel %vm9876, 1, 0
        %v9878 = vadd.s32 %v9874, %v9870
        %v9879 = vadd.s32 %v9875, %v9877
        %v9880 = vadd.s32 %v9879, %v9869
        %v9881 = vadd.s32 %v9880, %v9871
        %v9882 = vmul.u32 %v9837, %v9828
        %v9883 = vadd.s32 %v9859, %v9878
        %vm9884 = vc.u32 %v9859, %v9878
        %v9885 = vadd.s32 %v9881, 1
        %v9886 = vsel %vm9884, %v9885, %v9881
        %v9887 = vadd.s32 %v9882, %v9886
        %v9888 = vadd.s32 %v9887, 536870912
        %v9889 = vshrl.u32 %v9888, 30
        %v9890 = vshll.u32 %v9889, 30
        %v9891 = vsub.s32 %v9887, %v9890
        %vm9892 = vcmp.lt.s32.totalorder %v9891, 0
        %v9893 = vsub.s32 0, %v9891
        %v9894 = vsel %vm9892, %v9893, %v9891
        %v9895 = vclz %v9894
        %v9896 = vsub.s32 %v9895, 2
        %vm9897 = vcmp.gt.s32.totalorder 0, %v9896
        %v9898 = vsel %vm9897, 0, %v9896
        %v9899 = vsub.s32 32, %v9898
        %v9900 = vshll.u32 %v9891, %v9898
        %v9901 = vshrl.u32 %v9883, %v9899
        %v9902 = vor.u32 %v9900, %v9901
        %v9903 = vsub.s32 4294967266, %v9898
        %v9904 = vadd.s32 %v9903, 127
        %v9905 = vshll.u32 %v9904, 23
        %v9906 = vor.u32 4788187, %v9905
        %v9907 = vand.u32 2147483647, %v9906
        %v9909 = vcvt.s32.f32 %v9902
        %v9910 = vmul.f32 %v9909, %v9907
        %v9911 = vxor.u32 %v9910, 2147483648
        %v9912 = vsel %vm9791, %v9911, %v9910
        %v9913 = vsub.s32 4, %v9889
        %v9914 = vsel %vm9791, %v9913, %v9889
        %v9915 = vsel %vm9790, %v630, %v9912
        %v9916 = vsel %vm9790, 0, %v9914
        %v9917 = vmul.f32 %v9915, %v9915
        %v9918 = vmul.f32 %v9917, -0.001358992
        %v9919 = vadd.f32 %v9918, 0.041655596
        %v9920 = vmul.f32 %v9917, %v9919
        %v9921 = vadd.f32 %v9920, -0.4999988
        %v9922 = vmul.f32 %v9917, %v9921
        %v9923 = vadd.f32 1.0, %v9922
        %v9924 = vmul.f32 %v9915, %v9915
        %v9925 = vmul.f32 %v9924, -0.00019511016
        %v9926 = vadd.f32 %v9925, 0.008332121
        %v9927 = vmul.f32 %v9924, %v9926
        %v9928 = vadd.f32 %v9927, -0.16666654
        %v9929 = vmul.f32 %v9924, %v9928
        %v9930 = vadd.f32 %v9929, 1.0
        %v9931 = vmul.f32 %v9930, %v9915
        %vm9932 = vweird.f32 %v630
        %v9933 = vadd.s32 %v9916, 3
        %v9934 = vand.u32 %v9933, 3
        %vm9935 = vcmp.lt.s32.totalorder %v9934, 2
        %vm9936 = vcmp.eq.s32.totalorder %v9934, 0
        %v9937 = vxor.u32 %v9931, 2147483648
        %v9938 = vsel %vm9936, %v9923, %v9937
        %vm9939 = vcmp.eq.s32.totalorder %v9934, 2
        %v9940 = vxor.u32 %v9923, 2147483648
        %v9941 = vsel %vm9939, %v9940, %v9931
        %v9942 = vsel %vm9935, %v9938, %v9941
        %v9943 = vsel %vm9932, nan, %v9942
        %v9944 = vand.u32 2147483647, %v633
        %vm9945 = vcmp.le.f32.partialorder %v9944, 0.7853982
        %vm9946 = vcmp.lt.s32.totalorder %v633, 0
        %v9947 = vand.u32 %v633, 2139095040
        %v9948 = vshrl.u32 %v9947, 23
        %v9949 = vsub.s32 %v9948, 127
        %v9950 = vand.u32 2147483647, %v633
        %v9951 = vand.u32 %v9950, 8388607
        %v9952 = vor.u32 %v9951, 8388608
        %v9953 = vsub.s32 0, %v9952
        %v9954 = vadd.s32 %v9949, 1
        %vm9955 = vcmp.gt.s32.totalorder %v9954, 0
        %v9956 = vsel %vm9955, %v9954, 0
        %v9957 = vshrl.u32 %v9956, 5
        %v9958 = vand.u32 %v9956, 31
        %v9959 = vsub.s32 32, %v9958
        %v9960 = vshrl.u32 683565275, %v9959
        %v9961 = vshll.u32 683565275, %v9958
        %v9962 = vshrl.u32 2475754826, %v9959
        %v9963 = vor.u32 %v9961, %v9962
        %v9964 = vshll.u32 2475754826, %v9958
        %v9965 = vshrl.u32 2131351028, %v9959
        %v9966 = vor.u32 %v9964, %v9965
        %v9967 = vshll.u32 2131351028, %v9958
        %v9968 = vshrl.u32 2102212464, %v9959
        %v9969 = vor.u32 %v9967, %v9968
        %v9970 = vshll.u32 2102212464, %v9958
        %v9971 = vshrl.u32 920167782, %v9959
        %v9972 = vor.u32 %v9970, %v9971
        %v9973 = vshll.u32 920167782, %v9958
        %v9974 = vshrl.u32 1326507024, %v9959
        %v9975 = vor.u32 %v9973, %v9974
        %vm9976 = vcmp.lt.s32.totalorder %v9957, 1
        %vm9977 = vcmp.lt.s32.totalorder %v9957, 2
        %vm9978 = vcmp.lt.s32.totalorder %v9957, 3
        %vm9979 = vcmp.lt.s32.totalorder %v9957, 4
        %v9980 = vsel %vm9976, %v9960, %v9963
        %v9981 = vsel %vm9979, %v9969, 2102212464
        %v9982 = vsel %vm9978, %v9966, %v9981
        %v9983 = vsel %vm9977, %v9980, %v9982
        %v9984 = vsel %vm9976, %v9963, %v9966
        %v9985 = vsel %vm9979, %v9972, 920167782
        %v9986 = vsel %vm9978, %v9969, %v9985
        %v9987 = vsel %vm9977, %v9984, %v9986
        %v9988 = vsel %vm9976, %v9966, %v9969
        %v9989 = vsel %vm9979, %v9975, 1326507024
        %v9990 = vsel %vm9978, %v9972, %v9989
        %v9991 = vsel %vm9977, %v9988, %v9990
        %v9992 = vshll.u32 %v9952, 8
        %v9993 = vand.u32 %v9992, 65535
        %v9994 = vshrl.u32 %v9992, 16
        %v9995 = vand.u32 %v9991, 65535
        %v9996 = vshrl.u32 %v9991, 16
        %v9997 = vmul.u32 %v9993, %v9995
        %v9998 = vmul.u32 %v9993, %v9996
        %v9999 = vmul.u32 %v9994, %v9995
        %v10000 = vmul.u32 %v9994, %v9996
        %v10001 = vshll.u32 %v9998, 16
        %v10002 = vshrl.u32 %v9998, 16
        %v10003 = vshll.u32 %v9999, 16
        %v10004 = vshrl.u32 %v9999, 16
        %vm10005 = vc.u32 %v9997, %v10001
        %v10006 = vsel %vm10005, 1, 0
        %v10007 = vadd.s32 %v9997, %v10001
        %v10008 = vadd.s32 %v10000, %v10006
        %vm10009 = vc.u32 %v10007, %v10003
        %v10010 = vsel %vm10009, 1, 0
        %v10011 = vadd.s32 %v10007, %v10003
        %v10012 = vadd.s32 %v10008, %v10010
        %v10013 = vadd.s32 %v10012, %v10002
        %v10014 = vadd.s32 %v10013, %v10004
        %v10015 = vand.u32 %v9992, 65535
        %v10016 = vshrl.u32 %v9992, 16
        %v10017 = vand.u32 %v9987, 65535
        %v10018 = vshrl.u32 %v9987, 16
        %v10019 = vmul.u32 %v10015, %v10017
        %v10020 = vmul.u32 %v10015, %v10018
        %v10021 = vmul.u32 %v10016, %v10017
        %v10022 = vmul.u32 %v10016, %v10018
        %v10023 = vshll.u32 %v10020, 16
        %v10024 = vshrl.u32 %v10020, 16
        %v10025 = vshll.u32 %v10021, 16
        %v10026 = vshrl.u32 %v10021, 16
        %vm10027 = vc.u32 %v10019, %v10023
        %v10028 = vsel %vm10027, 1, 0
        %v10029 = vadd.s32 %v10019, %v10023
        %v10030 = vadd.s32 %v10022, %v10028
        %vm10031 = vc.u32 %v10029, %v10025
        %v10032 = vsel %vm10031, 1, 0
        %v10033 = vadd.s32 %v10029, %v10025
        %v10034 = vadd.s32 %v10030, %v10032
        %v10035 = vadd.s32 %v10034, %v10024
        %v10036 = vadd.s32 %v10035, %v10026
        %v10037 = vmul.u32 %v9992, %v9983
        %v10038 = vadd.s32 %v10014, %v10033
        %vm10039 = vc.u32 %v10014, %v10033
        %v10040 = vadd.s32 %v10036, 1
        %v10041 = vsel %vm10039, %v10040, %v10036
        %v10042 = vadd.s32 %v10037, %v10041
        %v10043 = vadd.s32 %v10042, 536870912
        %v10044 = vshrl.u32 %v10043, 30
        %v10045 = vshll.u32 %v10044, 30
        %v10046 = vsub.s32 %v10042, %v10045
        %vm10047 = vcmp.lt.s32.totalorder %v10046, 0
        %v10048 = vsub.s32 0, %v10046
        %v10049 = vsel %vm10047, %v10048, %v10046
        %v10050 = vclz %v10049
        %v10051 = vsub.s32 %v10050, 2
        %vm10052 = vcmp.gt.s32.totalorder 0, %v10051
        %v10053 = vsel %vm10052, 0, %v10051
        %v10054 = vsub.s32 32, %v10053
        %v10055 = vshll.u32 %v10046, %v10053
        %v10056 = vshrl.u32 %v10038, %v10054
        %v10057 = vor.u32 %v10055, %v10056
        %v10058 = vsub.s32 4294967266, %v10053
        %v10059 = vadd.s32 %v10058, 127
        %v10060 = vshll.u32 %v10059, 23
        %v10061 = vor.u32 4788187, %v10060
        %v10062 = vand.u32 2147483647, %v10061
        %v10064 = vcvt.s32.f32 %v10057
        %v10065 = vmul.f32 %v10064, %v10062
        %v10066 = vxor.u32 %v10065, 2147483648
        %v10067 = vsel %vm9946, %v10066, %v10065
        %v10068 = vsub.s32 4, %v10044
        %v10069 = vsel %vm9946, %v10068, %v10044
        %v10070 = vsel %vm9945, %v633, %v10067
        %v10071 = vsel %vm9945, 0, %v10069
        %v10072 = vmul.f32 %v10070, %v10070
        %v10073 = vmul.f32 %v10072, -0.001358992
        %v10074 = vadd.f32 %v10073, 0.041655596
        %v10075 = vmul.f32 %v10072, %v10074
        %v10076 = vadd.f32 %v10075, -0.4999988
        %v10077 = vmul.f32 %v10072, %v10076
        %v10078 = vadd.f32 1.0, %v10077
        %v10079 = vmul.f32 %v10070, %v10070
        %v10080 = vmul.f32 %v10079, -0.00019511016
        %v10081 = vadd.f32 %v10080, 0.008332121
        %v10082 = vmul.f32 %v10079, %v10081
        %v10083 = vadd.f32 %v10082, -0.16666654
        %v10084 = vmul.f32 %v10079, %v10083
        %v10085 = vadd.f32 %v10084, 1.0
        %v10086 = vmul.f32 %v10085, %v10070
        %vm10087 = vweird.f32 %v633
        %v10088 = vadd.s32 %v10071, 3
        %v10089 = vand.u32 %v10088, 3
        %vm10090 = vcmp.lt.s32.totalorder %v10089, 2
        %vm10091 = vcmp.eq.s32.totalorder %v10089, 0
        %v10092 = vxor.u32 %v10086, 2147483648
        %v10093 = vsel %vm10091, %v10078, %v10092
        %vm10094 = vcmp.eq.s32.totalorder %v10089, 2
        %v10095 = vxor.u32 %v10078, 2147483648
        %v10096 = vsel %vm10094, %v10095, %v10086
        %v10097 = vsel %vm10090, %v10093, %v10096
        %v10098 = vsel %vm10087, nan, %v10097
        %v10099 = vand.u32 2147483647, %v636
        %vm10100 = vcmp.le.f32.partialorder %v10099, 0.7853982
        %vm10101 = vcmp.lt.s32.totalorder %v636, 0
        %v10102 = vand.u32 %v636, 2139095040
        %v10103 = vshrl.u32 %v10102, 23
        %v10104 = vsub.s32 %v10103, 127
        %v10105 = vand.u32 2147483647, %v636
        %v10106 = vand.u32 %v10105, 8388607
        %v10107 = vor.u32 %v10106, 8388608
        %v10108 = vsub.s32 0, %v10107
        %v10109 = vadd.s32 %v10104, 1
        %vm10110 = vcmp.gt.s32.totalorder %v10109, 0
        %v10111 = vsel %vm10110, %v10109, 0
        %v10112 = vshrl.u32 %v10111, 5
        %v10113 = vand.u32 %v10111, 31
        %v10114 = vsub.s32 32, %v10113
        %v10115 = vshrl.u32 683565275, %v10114
        %v10116 = vshll.u32 683565275, %v10113
        %v10117 = vshrl.u32 2475754826, %v10114
        %v10118 = vor.u32 %v10116, %v10117
        %v10119 = vshll.u32 2475754826, %v10113
        %v10120 = vshrl.u32 2131351028, %v10114
        %v10121 = vor.u32 %v10119, %v10120
        %v10122 = vshll.u32 2131351028, %v10113
        %v10123 = vshrl.u32 2102212464, %v10114
        %v10124 = vor.u32 %v10122, %v10123
        %v10125 = vshll.u32 2102212464, %v10113
        %v10126 = vshrl.u32 920167782, %v10114
        %v10127 = vor.u32 %v10125, %v10126
        %v10128 = vshll.u32 920167782, %v10113
        %v10129 = vshrl.u32 1326507024, %v10114
        %v10130 = vor.u32 %v10128, %v10129
        %vm10131 = vcmp.lt.s32.totalorder %v10112, 1
        %vm10132 = vcmp.lt.s32.totalorder %v10112, 2
        %vm10133 = vcmp.lt.s32.totalorder %v10112, 3
        %vm10134 = vcmp.lt.s32.totalorder %v10112, 4
        %v10135 = vsel %vm10131, %v10115, %v10118
        %v10136 = vsel %vm10134, %v10124, 2102212464
        %v10137 = vsel %vm10133, %v10121, %v10136
        %v10138 = vsel %vm10132, %v10135, %v10137
        %v10139 = vsel %vm10131, %v10118, %v10121
        %v10140 = vsel %vm10134, %v10127, 920167782
        %v10141 = vsel %vm10133, %v10124, %v10140
        %v10142 = vsel %vm10132, %v10139, %v10141
        %v10143 = vsel %vm10131, %v10121, %v10124
        %v10144 = vsel %vm10134, %v10130, 1326507024
        %v10145 = vsel %vm10133, %v10127, %v10144
        %v10146 = vsel %vm10132, %v10143, %v10145
        %v10147 = vshll.u32 %v10107, 8
        %v10148 = vand.u32 %v10147, 65535
        %v10149 = vshrl.u32 %v10147, 16
        %v10150 = vand.u32 %v10146, 65535
        %v10151 = vshrl.u32 %v10146, 16
        %v10152 = vmul.u32 %v10148, %v10150
        %v10153 = vmul.u32 %v10148, %v10151
        %v10154 = vmul.u32 %v10149, %v10150
        %v10155 = vmul.u32 %v10149, %v10151
        %v10156 = vshll.u32 %v10153, 16
        %v10157 = vshrl.u32 %v10153, 16
        %v10158 = vshll.u32 %v10154, 16
        %v10159 = vshrl.u32 %v10154, 16
        %vm10160 = vc.u32 %v10152, %v10156
        %v10161 = vsel %vm10160, 1, 0
        %v10162 = vadd.s32 %v10152, %v10156
        %v10163 = vadd.s32 %v10155, %v10161
        %vm10164 = vc.u32 %v10162, %v10158
        %v10165 = vsel %vm10164, 1, 0
        %v10166 = vadd.s32 %v10162, %v10158
        %v10167 = vadd.s32 %v10163, %v10165
        %v10168 = vadd.s32 %v10167, %v10157
        %v10169 = vadd.s32 %v10168, %v10159
        %v10170 = vand.u32 %v10147, 65535
        %v10171 = vshrl.u32 %v10147, 16
        %v10172 = vand.u32 %v10142, 65535
        %v10173 = vshrl.u32 %v10142, 16
        %v10174 = vmul.u32 %v10170, %v10172
        %v10175 = vmul.u32 %v10170, %v10173
        %v10176 = vmul.u32 %v10171, %v10172
        %v10177 = vmul.u32 %v10171, %v10173
        %v10178 = vshll.u32 %v10175, 16
        %v10179 = vshrl.u32 %v10175, 16
        %v10180 = vshll.u32 %v10176, 16
        %v10181 = vshrl.u32 %v10176, 16
        %vm10182 = vc.u32 %v10174, %v10178
        %v10183 = vsel %vm10182, 1, 0
        %v10184 = vadd.s32 %v10174, %v10178
        %v10185 = vadd.s32 %v10177, %v10183
        %vm10186 = vc.u32 %v10184, %v10180
        %v10187 = vsel %vm10186, 1, 0
        %v10188 = vadd.s32 %v10184, %v10180
        %v10189 = vadd.s32 %v10185, %v10187
        %v10190 = vadd.s32 %v10189, %v10179
        %v10191 = vadd.s32 %v10190, %v10181
        %v10192 = vmul.u32 %v10147, %v10138
        %v10193 = vadd.s32 %v10169, %v10188
        %vm10194 = vc.u32 %v10169, %v10188
        %v10195 = vadd.s32 %v10191, 1
        %v10196 = vsel %vm10194, %v10195, %v10191
        %v10197 = vadd.s32 %v10192, %v10196
        %v10198 = vadd.s32 %v10197, 536870912
        %v10199 = vshrl.u32 %v10198, 30
        %v10200 = vshll.u32 %v10199, 30
        %v10201 = vsub.s32 %v10197, %v10200
        %vm10202 = vcmp.lt.s32.totalorder %v10201, 0
        %v10203 = vsub.s32 0, %v10201
        %v10204 = vsel %vm10202, %v10203, %v10201
        %v10205 = vclz %v10204
        %v10206 = vsub.s32 %v10205, 2
        %vm10207 = vcmp.gt.s32.totalorder 0, %v10206
        %v10208 = vsel %vm10207, 0, %v10206
        %v10209 = vsub.s32 32, %v10208
        %v10210 = vshll.u32 %v10201, %v10208
        %v10211 = vshrl.u32 %v10193, %v10209
        %v10212 = vor.u32 %v10210, %v10211
        %v10213 = vsub.s32 4294967266, %v10208
        %v10214 = vadd.s32 %v10213, 127
        %v10215 = vshll.u32 %v10214, 23
        %v10216 = vor.u32 4788187, %v10215
        %v10217 = vand.u32 2147483647, %v10216
        %v10219 = vcvt.s32.f32 %v10212
        %v10220 = vmul.f32 %v10219, %v10217
        %v10221 = vxor.u32 %v10220, 2147483648
        %v10222 = vsel %vm10101, %v10221, %v10220
        %v10223 = vsub.s32 4, %v10199
        %v10224 = vsel %vm10101, %v10223, %v10199
        %v10225 = vsel %vm10100, %v636, %v10222
        %v10226 = vsel %vm10100, 0, %v10224
        %v10227 = vmul.f32 %v10225, %v10225
        %v10228 = vmul.f32 %v10227, -0.001358992
        %v10229 = vadd.f32 %v10228, 0.041655596
        %v10230 = vmul.f32 %v10227, %v10229
        %v10231 = vadd.f32 %v10230, -0.4999988
        %v10232 = vmul.f32 %v10227, %v10231
        %v10233 = vadd.f32 1.0, %v10232
        %v10234 = vmul.f32 %v10225, %v10225
        %v10235 = vmul.f32 %v10234, -0.00019511016
        %v10236 = vadd.f32 %v10235, 0.008332121
        %v10237 = vmul.f32 %v10234, %v10236
        %v10238 = vadd.f32 %v10237, -0.16666654
        %v10239 = vmul.f32 %v10234, %v10238
        %v10240 = vadd.f32 %v10239, 1.0
        %v10241 = vmul.f32 %v10240, %v10225
        %vm10242 = vweird.f32 %v636
        %v10243 = vadd.s32 %v10226, 3
        %v10244 = vand.u32 %v10243, 3
        %vm10245 = vcmp.lt.s32.totalorder %v10244, 2
        %vm10246 = vcmp.eq.s32.totalorder %v10244, 0
        %v10247 = vxor.u32 %v10241, 2147483648
        %v10248 = vsel %vm10246, %v10233, %v10247
        %vm10249 = vcmp.eq.s32.totalorder %v10244, 2
        %v10250 = vxor.u32 %v10233, 2147483648
        %v10251 = vsel %vm10249, %v10250, %v10241
        %v10252 = vsel %vm10245, %v10248, %v10251
        %v10253 = vsel %vm10242, nan, %v10252
        %v10254 = vand.u32 2147483647, %v639
        %vm10255 = vcmp.le.f32.partialorder %v10254, 0.7853982
        %vm10256 = vcmp.lt.s32.totalorder %v639, 0
        %v10257 = vand.u32 %v639, 2139095040
        %v10258 = vshrl.u32 %v10257, 23
        %v10259 = vsub.s32 %v10258, 127
        %v10260 = vand.u32 2147483647, %v639
        %v10261 = vand.u32 %v10260, 8388607
        %v10262 = vor.u32 %v10261, 8388608
        %v10263 = vsub.s32 0, %v10262
        %v10264 = vadd.s32 %v10259, 1
        %vm10265 = vcmp.gt.s32.totalorder %v10264, 0
        %v10266 = vsel %vm10265, %v10264, 0
        %v10267 = vshrl.u32 %v10266, 5
        %v10268 = vand.u32 %v10266, 31
        %v10269 = vsub.s32 32, %v10268
        %v10270 = vshrl.u32 683565275, %v10269
        %v10271 = vshll.u32 683565275, %v10268
        %v10272 = vshrl.u32 2475754826, %v10269
        %v10273 = vor.u32 %v10271, %v10272
        %v10274 = vshll.u32 2475754826, %v10268
        %v10275 = vshrl.u32 2131351028, %v10269
        %v10276 = vor.u32 %v10274, %v10275
        %v10277 = vshll.u32 2131351028, %v10268
        %v10278 = vshrl.u32 2102212464, %v10269
        %v10279 = vor.u32 %v10277, %v10278
        %v10280 = vshll.u32 2102212464, %v10268
        %v10281 = vshrl.u32 920167782, %v10269
        %v10282 = vor.u32 %v10280, %v10281
        %v10283 = vshll.u32 920167782, %v10268
        %v10284 = vshrl.u32 1326507024, %v10269
        %v10285 = vor.u32 %v10283, %v10284
        %vm10286 = vcmp.lt.s32.totalorder %v10267, 1
        %vm10287 = vcmp.lt.s32.totalorder %v10267, 2
        %vm10288 = vcmp.lt.s32.totalorder %v10267, 3
        %vm10289 = vcmp.lt.s32.totalorder %v10267, 4
        %v10290 = vsel %vm10286, %v10270, %v10273
        %v10291 = vsel %vm10289, %v10279, 2102212464
        %v10292 = vsel %vm10288, %v10276, %v10291
        %v10293 = vsel %vm10287, %v10290, %v10292
        %v10294 = vsel %vm10286, %v10273, %v10276
        %v10295 = vsel %vm10289, %v10282, 920167782
        %v10296 = vsel %vm10288, %v10279, %v10295
        %v10297 = vsel %vm10287, %v10294, %v10296
        %v10298 = vsel %vm10286, %v10276, %v10279
        %v10299 = vsel %vm10289, %v10285, 1326507024
        %v10300 = vsel %vm10288, %v10282, %v10299
        %v10301 = vsel %vm10287, %v10298, %v10300
        %v10302 = vshll.u32 %v10262, 8
        %v10303 = vand.u32 %v10302, 65535
        %v10304 = vshrl.u32 %v10302, 16
        %v10305 = vand.u32 %v10301, 65535
        %v10306 = vshrl.u32 %v10301, 16
        %v10307 = vmul.u32 %v10303, %v10305
        %v10308 = vmul.u32 %v10303, %v10306
        %v10309 = vmul.u32 %v10304, %v10305
        %v10310 = vmul.u32 %v10304, %v10306
        %v10311 = vshll.u32 %v10308, 16
        %v10312 = vshrl.u32 %v10308, 16
        %v10313 = vshll.u32 %v10309, 16
        %v10314 = vshrl.u32 %v10309, 16
        %vm10315 = vc.u32 %v10307, %v10311
        %v10316 = vsel %vm10315, 1, 0
        %v10317 = vadd.s32 %v10307, %v10311
        %v10318 = vadd.s32 %v10310, %v10316
        %vm10319 = vc.u32 %v10317, %v10313
        %v10320 = vsel %vm10319, 1, 0
        %v10321 = vadd.s32 %v10317, %v10313
        %v10322 = vadd.s32 %v10318, %v10320
        %v10323 = vadd.s32 %v10322, %v10312
        %v10324 = vadd.s32 %v10323, %v10314
        %v10325 = vand.u32 %v10302, 65535
        %v10326 = vshrl.u32 %v10302, 16
        %v10327 = vand.u32 %v10297, 65535
        %v10328 = vshrl.u32 %v10297, 16
        %v10329 = vmul.u32 %v10325, %v10327
        %v10330 = vmul.u32 %v10325, %v10328
        %v10331 = vmul.u32 %v10326, %v10327
        %v10332 = vmul.u32 %v10326, %v10328
        %v10333 = vshll.u32 %v10330, 16
        %v10334 = vshrl.u32 %v10330, 16
        %v10335 = vshll.u32 %v10331, 16
        %v10336 = vshrl.u32 %v10331, 16
        %vm10337 = vc.u32 %v10329, %v10333
        %v10338 = vsel %vm10337, 1, 0
        %v10339 = vadd.s32 %v10329, %v10333
        %v10340 = vadd.s32 %v10332, %v10338
        %vm10341 = vc.u32 %v10339, %v10335
        %v10342 = vsel %vm10341, 1, 0
        %v10343 = vadd.s32 %v10339, %v10335
        %v10344 = vadd.s32 %v10340, %v10342
        %v10345 = vadd.s32 %v10344, %v10334
        %v10346 = vadd.s32 %v10345, %v10336
        %v10347 = vmul.u32 %v10302, %v10293
        %v10348 = vadd.s32 %v10324, %v10343
        %vm10349 = vc.u32 %v10324, %v10343
        %v10350 = vadd.s32 %v10346, 1
        %v10351 = vsel %vm10349, %v10350, %v10346
        %v10352 = vadd.s32 %v10347, %v10351
        %v10353 = vadd.s32 %v10352, 536870912
        %v10354 = vshrl.u32 %v10353, 30
        %v10355 = vshll.u32 %v10354, 30
        %v10356 = vsub.s32 %v10352, %v10355
        %vm10357 = vcmp.lt.s32.totalorder %v10356, 0
        %v10358 = vsub.s32 0, %v10356
        %v10359 = vsel %vm10357, %v10358, %v10356
        %v10360 = vclz %v10359
        %v10361 = vsub.s32 %v10360, 2
        %vm10362 = vcmp.gt.s32.totalorder 0, %v10361
        %v10363 = vsel %vm10362, 0, %v10361
        %v10364 = vsub.s32 32, %v10363
        %v10365 = vshll.u32 %v10356, %v10363
        %v10366 = vshrl.u32 %v10348, %v10364
        %v10367 = vor.u32 %v10365, %v10366
        %v10368 = vsub.s32 4294967266, %v10363
        %v10369 = vadd.s32 %v10368, 127
        %v10370 = vshll.u32 %v10369, 23
        %v10371 = vor.u32 4788187, %v10370
        %v10372 = vand.u32 2147483647, %v10371
        %v10374 = vcvt.s32.f32 %v10367
        %v10375 = vmul.f32 %v10374, %v10372
        %v10376 = vxor.u32 %v10375, 2147483648
        %v10377 = vsel %vm10256, %v10376, %v10375
        %v10378 = vsub.s32 4, %v10354
        %v10379 = vsel %vm10256, %v10378, %v10354
        %v10380 = vsel %vm10255, %v639, %v10377
        %v10381 = vsel %vm10255, 0, %v10379
        %v10382 = vmul.f32 %v10380, %v10380
        %v10383 = vmul.f32 %v10382, -0.001358992
        %v10384 = vadd.f32 %v10383, 0.041655596
        %v10385 = vmul.f32 %v10382, %v10384
        %v10386 = vadd.f32 %v10385, -0.4999988
        %v10387 = vmul.f32 %v10382, %v10386
        %v10388 = vadd.f32 1.0, %v10387
        %v10389 = vmul.f32 %v10380, %v10380
        %v10390 = vmul.f32 %v10389, -0.00019511016
        %v10391 = vadd.f32 %v10390, 0.008332121
        %v10392 = vmul.f32 %v10389, %v10391
        %v10393 = vadd.f32 %v10392, -0.16666654
        %v10394 = vmul.f32 %v10389, %v10393
        %v10395 = vadd.f32 %v10394, 1.0
        %v10396 = vmul.f32 %v10395, %v10380
        %vm10397 = vweird.f32 %v639
        %v10398 = vadd.s32 %v10381, 3
        %v10399 = vand.u32 %v10398, 3
        %vm10400 = vcmp.lt.s32.totalorder %v10399, 2
        %vm10401 = vcmp.eq.s32.totalorder %v10399, 0
        %v10402 = vxor.u32 %v10396, 2147483648
        %v10403 = vsel %vm10401, %v10388, %v10402
        %vm10404 = vcmp.eq.s32.totalorder %v10399, 2
        %v10405 = vxor.u32 %v10388, 2147483648
        %v10406 = vsel %vm10404, %v10405, %v10396
        %v10407 = vsel %vm10400, %v10403, %v10406
        %v10408 = vsel %vm10397, nan, %v10407
        %v10409 = vand.u32 2147483647, %v642
        %vm10410 = vcmp.le.f32.partialorder %v10409, 0.7853982
        %vm10411 = vcmp.lt.s32.totalorder %v642, 0
        %v10412 = vand.u32 %v642, 2139095040
        %v10413 = vshrl.u32 %v10412, 23
        %v10414 = vsub.s32 %v10413, 127
        %v10415 = vand.u32 2147483647, %v642
        %v10416 = vand.u32 %v10415, 8388607
        %v10417 = vor.u32 %v10416, 8388608
        %v10418 = vsub.s32 0, %v10417
        %v10419 = vadd.s32 %v10414, 1
        %vm10420 = vcmp.gt.s32.totalorder %v10419, 0
        %v10421 = vsel %vm10420, %v10419, 0
        %v10422 = vshrl.u32 %v10421, 5
        %v10423 = vand.u32 %v10421, 31
        %v10424 = vsub.s32 32, %v10423
        %v10425 = vshrl.u32 683565275, %v10424
        %v10426 = vshll.u32 683565275, %v10423
        %v10427 = vshrl.u32 2475754826, %v10424
        %v10428 = vor.u32 %v10426, %v10427
        %v10429 = vshll.u32 2475754826, %v10423
        %v10430 = vshrl.u32 2131351028, %v10424
        %v10431 = vor.u32 %v10429, %v10430
        %v10432 = vshll.u32 2131351028, %v10423
        %v10433 = vshrl.u32 2102212464, %v10424
        %v10434 = vor.u32 %v10432, %v10433
        %v10435 = vshll.u32 2102212464, %v10423
        %v10436 = vshrl.u32 920167782, %v10424
        %v10437 = vor.u32 %v10435, %v10436
        %v10438 = vshll.u32 920167782, %v10423
        %v10439 = vshrl.u32 1326507024, %v10424
        %v10440 = vor.u32 %v10438, %v10439
        %vm10441 = vcmp.lt.s32.totalorder %v10422, 1
        %vm10442 = vcmp.lt.s32.totalorder %v10422, 2
        %vm10443 = vcmp.lt.s32.totalorder %v10422, 3
        %vm10444 = vcmp.lt.s32.totalorder %v10422, 4
        %v10445 = vsel %vm10441, %v10425, %v10428
        %v10446 = vsel %vm10444, %v10434, 2102212464
        %v10447 = vsel %vm10443, %v10431, %v10446
        %v10448 = vsel %vm10442, %v10445, %v10447
        %v10449 = vsel %vm10441, %v10428, %v10431
        %v10450 = vsel %vm10444, %v10437, 920167782
        %v10451 = vsel %vm10443, %v10434, %v10450
        %v10452 = vsel %vm10442, %v10449, %v10451
        %v10453 = vsel %vm10441, %v10431, %v10434
        %v10454 = vsel %vm10444, %v10440, 1326507024
        %v10455 = vsel %vm10443, %v10437, %v10454
        %v10456 = vsel %vm10442, %v10453, %v10455
        %v10457 = vshll.u32 %v10417, 8
        %v10458 = vand.u32 %v10457, 65535
        %v10459 = vshrl.u32 %v10457, 16
        %v10460 = vand.u32 %v10456, 65535
        %v10461 = vshrl.u32 %v10456, 16
        %v10462 = vmul.u32 %v10458, %v10460
        %v10463 = vmul.u32 %v10458, %v10461
        %v10464 = vmul.u32 %v10459, %v10460
        %v10465 = vmul.u32 %v10459, %v10461
        %v10466 = vshll.u32 %v10463, 16
        %v10467 = vshrl.u32 %v10463, 16
        %v10468 = vshll.u32 %v10464, 16
        %v10469 = vshrl.u32 %v10464, 16
        %vm10470 = vc.u32 %v10462, %v10466
        %v10471 = vsel %vm10470, 1, 0
        %v10472 = vadd.s32 %v10462, %v10466
        %v10473 = vadd.s32 %v10465, %v10471
        %vm10474 = vc.u32 %v10472, %v10468
        %v10475 = vsel %vm10474, 1, 0
        %v10476 = vadd.s32 %v10472, %v10468
        %v10477 = vadd.s32 %v10473, %v10475
        %v10478 = vadd.s32 %v10477, %v10467
        %v10479 = vadd.s32 %v10478, %v10469
        %v10480 = vand.u32 %v10457, 65535
        %v10481 = vshrl.u32 %v10457, 16
        %v10482 = vand.u32 %v10452, 65535
        %v10483 = vshrl.u32 %v10452, 16
        %v10484 = vmul.u32 %v10480, %v10482
        %v10485 = vmul.u32 %v10480, %v10483
        %v10486 = vmul.u32 %v10481, %v10482
        %v10487 = vmul.u32 %v10481, %v10483
        %v10488 = vshll.u32 %v10485, 16
        %v10489 = vshrl.u32 %v10485, 16
        %v10490 = vshll.u32 %v10486, 16
        %v10491 = vshrl.u32 %v10486, 16
        %vm10492 = vc.u32 %v10484, %v10488
        %v10493 = vsel %vm10492, 1, 0
        %v10494 = vadd.s32 %v10484, %v10488
        %v10495 = vadd.s32 %v10487, %v10493
        %vm10496 = vc.u32 %v10494, %v10490
        %v10497 = vsel %vm10496, 1, 0
        %v10498 = vadd.s32 %v10494, %v10490
        %v10499 = vadd.s32 %v10495, %v10497
        %v10500 = vadd.s32 %v10499, %v10489
        %v10501 = vadd.s32 %v10500, %v10491
        %v10502 = vmul.u32 %v10457, %v10448
        %v10503 = vadd.s32 %v10479, %v10498
        %vm10504 = vc.u32 %v10479, %v10498
        %v10505 = vadd.s32 %v10501, 1
        %v10506 = vsel %vm10504, %v10505, %v10501
        %v10507 = vadd.s32 %v10502, %v10506
        %v10508 = vadd.s32 %v10507, 536870912
        %v10509 = vshrl.u32 %v10508, 30
        %v10510 = vshll.u32 %v10509, 30
        %v10511 = vsub.s32 %v10507, %v10510
        %vm10512 = vcmp.lt.s32.totalorder %v10511, 0
        %v10513 = vsub.s32 0, %v10511
        %v10514 = vsel %vm10512, %v10513, %v10511
        %v10515 = vclz %v10514
        %v10516 = vsub.s32 %v10515, 2
        %vm10517 = vcmp.gt.s32.totalorder 0, %v10516
        %v10518 = vsel %vm10517, 0, %v10516
        %v10519 = vsub.s32 32, %v10518
        %v10520 = vshll.u32 %v10511, %v10518
        %v10521 = vshrl.u32 %v10503, %v10519
        %v10522 = vor.u32 %v10520, %v10521
        %v10523 = vsub.s32 4294967266, %v10518
        %v10524 = vadd.s32 %v10523, 127
        %v10525 = vshll.u32 %v10524, 23
        %v10526 = vor.u32 4788187, %v10525
        %v10527 = vand.u32 2147483647, %v10526
        %v10529 = vcvt.s32.f32 %v10522
        %v10530 = vmul.f32 %v10529, %v10527
        %v10531 = vxor.u32 %v10530, 2147483648
        %v10532 = vsel %vm10411, %v10531, %v10530
        %v10533 = vsub.s32 4, %v10509
        %v10534 = vsel %vm10411, %v10533, %v10509
        %v10535 = vsel %vm10410, %v642, %v10532
        %v10536 = vsel %vm10410, 0, %v10534
        %v10537 = vmul.f32 %v10535, %v10535
        %v10538 = vmul.f32 %v10537, -0.001358992
        %v10539 = vadd.f32 %v10538, 0.041655596
        %v10540 = vmul.f32 %v10537, %v10539
        %v10541 = vadd.f32 %v10540, -0.4999988
        %v10542 = vmul.f32 %v10537, %v10541
        %v10543 = vadd.f32 1.0, %v10542
        %v10544 = vmul.f32 %v10535, %v10535
        %v10545 = vmul.f32 %v10544, -0.00019511016
        %v10546 = vadd.f32 %v10545, 0.008332121
        %v10547 = vmul.f32 %v10544, %v10546
        %v10548 = vadd.f32 %v10547, -0.16666654
        %v10549 = vmul.f32 %v10544, %v10548
        %v10550 = vadd.f32 %v10549, 1.0
        %v10551 = vmul.f32 %v10550, %v10535
        %vm10552 = vweird.f32 %v642
        %v10553 = vadd.s32 %v10536, 3
        %v10554 = vand.u32 %v10553, 3
        %vm10555 = vcmp.lt.s32.totalorder %v10554, 2
        %vm10556 = vcmp.eq.s32.totalorder %v10554, 0
        %v10557 = vxor.u32 %v10551, 2147483648
        %v10558 = vsel %vm10556, %v10543, %v10557
        %vm10559 = vcmp.eq.s32.totalorder %v10554, 2
        %v10560 = vxor.u32 %v10543, 2147483648
        %v10561 = vsel %vm10559, %v10560, %v10551
        %v10562 = vsel %vm10555, %v10558, %v10561
        %v10563 = vsel %vm10552, nan, %v10562
        %10564 = vst [vmem:[%s164] sm:$0xff] %v798
        %10565 = vst [vmem:[%s164 + $0x8] sm:$0xff] %v953
        %10566 = vst [vmem:[%s164 + $0x10] sm:$0xff] %v1108
        %10567 = vst [vmem:[%s164 + $0x18] sm:$0xff] %v1263
        %10568 = vst [vmem:[%s164 + $0x20] sm:$0xff] %v1418
        %10569 = vst [vmem:[%s164 + $0x28] sm:$0xff] %v1573
        %10570 = vst [vmem:[%s164 + $0x30] sm:$0xff] %v1728
        %10571 = vst [vmem:[%s164 + $0x38] sm:$0xff] %v1883
        %10572 = vst [vmem:[%s164 + $0x40] sm:$0xff] %v2038
        %10573 = vst [vmem:[%s164 + $0x48] sm:$0xff] %v2193
        %10574 = vst [vmem:[%s164 + $0x50] sm:$0xff] %v2348
        %10575 = vst [vmem:[%s164 + $0x58] sm:$0xff] %v2503
        %10576 = vst [vmem:[%s164 + $0x60] sm:$0xff] %v2658
        %10577 = vst [vmem:[%s164 + $0x68] sm:$0xff] %v2813
        %10578 = vst [vmem:[%s164 + $0x70] sm:$0xff] %v2968
        %10579 = vst [vmem:[%s164 + $0x78] sm:$0xff] %v3123
        %10580 = vst [vmem:[%s164 + $0x80] sm:$0xff] %v3278
        %10581 = vst [vmem:[%s164 + $0x88] sm:$0xff] %v3433
        %10582 = vst [vmem:[%s164 + $0x90] sm:$0xff] %v3588
        %10583 = vst [vmem:[%s164 + $0x98] sm:$0xff] %v3743
        %10584 = vst [vmem:[%s164 + $0xa0] sm:$0xff] %v3898
        %10585 = vst [vmem:[%s164 + $0xa8] sm:$0xff] %v4053
        %10586 = vst [vmem:[%s164 + $0xb0] sm:$0xff] %v4208
        %10587 = vst [vmem:[%s164 + $0xb8] sm:$0xff] %v4363
        %10588 = vst [vmem:[%s164 + $0xc0] sm:$0xff] %v4518
        %10589 = vst [vmem:[%s164 + $0xc8] sm:$0xff] %v4673
        %10590 = vst [vmem:[%s164 + $0xd0] sm:$0xff] %v4828
        %10591 = vst [vmem:[%s164 + $0xd8] sm:$0xff] %v4983
        %10592 = vst [vmem:[%s164 + $0xe0] sm:$0xff] %v5138
        %10593 = vst [vmem:[%s164 + $0xe8] sm:$0xff] %v5293
        %10594 = vst [vmem:[%s164 + $0xf0] sm:$0xff] %v5448
        %10595 = vst [vmem:[%s164 + $0xf8] sm:$0xff] %v5603
        %10596 = vst [vmem:[%s164 + $0x100] sm:$0xff] %v5758
        %10597 = vst [vmem:[%s164 + $0x108] sm:$0xff] %v5913
        %10598 = vst [vmem:[%s164 + $0x110] sm:$0xff] %v6068
        %10599 = vst [vmem:[%s164 + $0x118] sm:$0xff] %v6223
        %10600 = vst [vmem:[%s164 + $0x120] sm:$0xff] %v6378
        %10601 = vst [vmem:[%s164 + $0x128] sm:$0xff] %v6533
        %10602 = vst [vmem:[%s164 + $0x130] sm:$0xff] %v6688
        %10603 = vst [vmem:[%s164 + $0x138] sm:$0xff] %v6843
        %10604 = vst [vmem:[%s164 + $0x140] sm:$0xff] %v6998
        %10605 = vst [vmem:[%s164 + $0x148] sm:$0xff] %v7153
        %10606 = vst [vmem:[%s164 + $0x150] sm:$0xff] %v7308
        %10607 = vst [vmem:[%s164 + $0x158] sm:$0xff] %v7463
        %10608 = vst [vmem:[%s164 + $0x160] sm:$0xff] %v7618
        %10609 = vst [vmem:[%s164 + $0x168] sm:$0xff] %v7773
        %10610 = vst [vmem:[%s164 + $0x170] sm:$0xff] %v7928
        %10611 = vst [vmem:[%s164 + $0x178] sm:$0xff] %v8083
        %10612 = vst [vmem:[%s164 + $0x180] sm:$0xff] %v8238
        %10613 = vst [vmem:[%s164 + $0x188] sm:$0xff] %v8393
        %10614 = vst [vmem:[%s164 + $0x190] sm:$0xff] %v8548
        %10615 = vst [vmem:[%s164 + $0x198] sm:$0xff] %v8703
        %10616 = vst [vmem:[%s164 + $0x1a0] sm:$0xff] %v8858
        %10617 = vst [vmem:[%s164 + $0x1a8] sm:$0xff] %v9013
        %10618 = vst [vmem:[%s164 + $0x1b0] sm:$0xff] %v9168
        %10619 = vst [vmem:[%s164 + $0x1b8] sm:$0xff] %v9323
        %10620 = vst [vmem:[%s164 + $0x1c0] sm:$0xff] %v9478
        %10621 = vst [vmem:[%s164 + $0x1c8] sm:$0xff] %v9633
        %10622 = vst [vmem:[%s164 + $0x1d0] sm:$0xff] %v9788
        %10623 = vst [vmem:[%s164 + $0x1d8] sm:$0xff] %v9943
        %10624 = vst [vmem:[%s164 + $0x1e0] sm:$0xff] %v10098
        %10625 = vst [vmem:[%s164 + $0x1e8] sm:$0xff] %v10253
        %10626 = vst [vmem:[%s164 + $0x1f0] sm:$0xff] %v10408
        %10627 = vst [vmem:[%s164 + $0x1f8] sm:$0xff] %v10563
        %s10628 = sand.u32 %s93, 1
        %s10629 = scalar_lea.sflag [#allocation3], %s10628
        %s10630 = sand.u32 %s93, 1
        %s10631 = smul.addr %s10630, 512
        %s10632 = scalar_lea.vmem [#allocation2], %s10631
        // Predicated region
        $region33: #{tpu_custom_call.1} parent=31 // pred_check
          %p10633 = pneg %p103
        $region34: #{tpu_custom_call.1} parent=31 // pred_check_branch
          %10635 = sbr.rel (%p10633) target = $region36
        $region35: #{tpu_custom_call.1} parent=31 // pred_region
          %s10636 = smul.u32 64, %s17
          %10638 = vsyncadd %s10629, 0
          %s10639 = smul.addr %s10636, 8
          %s10640 = scalar_lea.hbm %s3, %s10639
          %s10641 = sshll.u32 %s10632, 4
          %s10642 = int_to_ptr.vmem [resolvable:$true] %s10641
          %s10643 = sshll.u32 %s10640, 4
          %s10644 = int_to_ptr.hbm [resolvable:$true] %s10643
          %10649 = dma.vmem_to_hbm [thread:$0]  %s10642, 8192, %s10644, %s10629, 128, 128, 8
        $region36: #{tpu_custom_call.1} parent=31 // pred_fallthru
          _
      $region32: #{tpu_custom_call.1} parent=5 // pred_fallthru
        _
      %p10650 = scmp.le.s32.totalorder 2, %s12
      // Predicated region
      $region37: #{tpu_custom_call.1} parent=5 // pred_check
        %p10651 = pneg %p10650
      $region38: #{tpu_custom_call.1} parent=5 // pred_check_branch
        %10653 = sbr.rel (%p10651) target = $region40
      $region39: #{tpu_custom_call.1} parent=5 // pred_region
        %s10654 = ssub.s32 %s12, 2
        // Predicated region
        $region41: #{tpu_custom_call.1} parent=39 // pred_check
          %p10655 = pneg %p109
        $region42: #{tpu_custom_call.1} parent=39 // pred_check_branch
          %10657 = sbr.rel (%p10655) target = $region44
        $region43: #{tpu_custom_call.1} parent=39 // pred_region
          %s10658 = sand.u32 %s94, 1
          %s10659 = scalar_lea.sflag [#allocation3], %s10658
          %s10660 = sand.u32 %s94, 1
          %s10661 = smul.addr %s10660, 512
          %s10662 = scalar_lea.vmem [#allocation2], %s10661
          %10664 = dma.done %s10659, 8192
        $region44: #{tpu_custom_call.1} parent=39 // pred_fallthru
          _
      $region40: #{tpu_custom_call.1} parent=5 // pred_fallthru
        _
    $region6: #{tpu_custom_call.1} parent=1 // loop_footer
      %s16 = sadd.s32 1, %s12
    $region7: #{tpu_custom_call.1} parent=1 // loop_footer_branch
      %11 = sbr.rel target = $region3
    $region8: #{tpu_custom_call.1} parent=1 // loop_exit
      _
    %10665 = vsyncpa [#allocation3], 1
    %s10666 = scalar_lea.sflag [#allocation3], 1
    %10667 = vsyncpa %s10666, 1

</llo_original>
